<compile_context>
chip_gen: v7x
topology: tpu7x:2x2x1
jax: 0.10.0
libtpu: 0.0.40
codegen_flags: <defaults>
</compile_context>

<pallas_src>
import functools
import math

import jax
import jax.numpy as jnp
from jax.experimental import pallas as pl
from jax.experimental.pallas import tpu as pltpu

EPS = 1e-5          # nn.BatchNorm2d default
NEG_SLOPE = 0.01    # nn.LeakyReLU default
LANE = 128


def _round_up(x, m):
    return (x + m - 1) // m * m


# ------------------------- shared 3x3 conv helper --------------------------- #
# 9 taps as 3 kx-merged MXU matmuls (K = 3*Cin_p), accumulated in registers.

def _conv3x3_taps(tap, w_ref):
    acc = None
    for ky in range(3):
        slab = jnp.concatenate([tap(ky, kx) for kx in range(3)], axis=-1)
        part = jnp.dot(slab, w_ref[ky], preferred_element_type=jnp.float32)
        acc = part if acc is None else acc + part
    return acc  # (H*W, Cout_p) f32


# --------------- kernel 1: conv1 (pre-padded input) + BN1 stats -------------- #

def _conv1_kernel(xp_ref, w_ref, o_ref, st_ref):
    _, H, W, cout_p = o_ref.shape
    cp = xp_ref.shape[-1]

    def tap(ky, kx):
        return xp_ref[0, ky:ky + H, kx:kx + W, :].reshape(H * W, cp)

    acc = _conv3x3_taps(tap, w_ref)
    o_ref[0] = acc.reshape(H, W, cout_p).astype(o_ref.dtype)
    st_ref[0, 0:1, :] = jnp.sum(acc, axis=0, keepdims=True)
    st_ref[0, 1:2, :] = jnp.sum(acc * acc, axis=0, keepdims=True)


def conv3x3_bnstats(xpad, w):
    N, Hp2, Wp2, cin_p = xpad.shape
    H, W = Hp2 - 2, Wp2 - 2
    cout_p = w.shape[-1]
    return pl.pallas_call(
        _conv1_kernel,
        out_shape=(jax.ShapeDtypeStruct((N, H, W, cout_p), jnp.bfloat16),
                   jax.ShapeDtypeStruct((N, 2, cout_p), jnp.float32)),
        grid=(N,),
        in_specs=[pl.BlockSpec((1, Hp2, Wp2, cin_p), lambda n: (n, 0, 0, 0)),
                  pl.BlockSpec((3, 3 * cin_p, cout_p), lambda n: (0, 0, 0))],
        out_specs=(pl.BlockSpec((1, H, W, cout_p), lambda n: (n, 0, 0, 0)),
                   pl.BlockSpec((1, 2, cout_p), lambda n: (n, 0, 0))),
        compiler_params=pltpu.CompilerParams(
            dimension_semantics=("parallel",)),
    )(xpad, w)


# -------- kernel 2: fused BN-apply + LeakyReLU + halo (VMEM) + conv3x3 ------- #
# Takes the previous raw conv output + its per-image stats partials, applies
# x*scale+shift + LeakyReLU on the VPU, assembles the zero-haloed input in a
# VMEM scratch and runs the next 3x3 conv, emitting its stats for the next BN.

def _bn_relu_conv_kernel(c_ref, st_ref, g_ref, b_ref, w_ref,
                         o_ref, st_out_ref, xp_sc, *, count):
    _, H, W, cp = c_ref.shape
    cout_p = o_ref.shape[-1]

    # Fold per-image partial stats into batch mean/var; apply BN + LeakyReLU.
    tot = jnp.sum(st_ref[...], axis=0)                     # (2, Cp) f32
    mean = tot[0:1, :] * (1.0 / count)
    var = jnp.maximum(tot[1:2, :] * (1.0 / count) - mean * mean, 0.0)
    scale = g_ref[...] * jax.lax.rsqrt(var + EPS)
    shift = b_ref[...] - mean * scale
    y = c_ref[0].astype(jnp.float32) * scale + shift       # (H, W, Cp)
    y = jnp.where(y >= 0.0, y, NEG_SLOPE * y)

    # Zero-haloed conv input lives only in VMEM: zero the 4 halo strips and
    # store the interior once (no whole-tile double store).
    zrow = jnp.zeros((1, W + 2, cp), xp_sc.dtype)
    zcol = jnp.zeros((H, 1, cp), xp_sc.dtype)
    xp_sc[0:1, :, :] = zrow
    xp_sc[H + 1:H + 2, :, :] = zrow
    xp_sc[1:H + 1, 0:1, :] = zcol
    xp_sc[1:H + 1, W + 1:W + 2, :] = zcol
    xp_sc[1:H + 1, 1:W + 1, :] = y.astype(xp_sc.dtype)

    def tap(ky, kx):
        return xp_sc[ky:ky + H, kx:kx + W, :].reshape(H * W, cp)

    acc = _conv3x3_taps(tap, w_ref)
    o_ref[0] = acc.reshape(H, W, cout_p).astype(o_ref.dtype)
    st_out_ref[0, 0:1, :] = jnp.sum(acc, axis=0, keepdims=True)
    st_out_ref[0, 1:2, :] = jnp.sum(acc * acc, axis=0, keepdims=True)


def bn_relu_conv3x3(c, stats, g, b, w, count):
    N, H, W, cp = c.shape
    cout_p = w.shape[-1]
    kern = functools.partial(_bn_relu_conv_kernel, count=count)
    return pl.pallas_call(
        kern,
        out_shape=(jax.ShapeDtypeStruct((N, H, W, cout_p), jnp.bfloat16),
                   jax.ShapeDtypeStruct((N, 2, cout_p), jnp.float32)),
        grid=(N,),
        in_specs=[pl.BlockSpec((1, H, W, cp), lambda n: (n, 0, 0, 0)),
                  pl.BlockSpec((N, 2, cp), lambda n: (0, 0, 0)),
                  pl.BlockSpec((1, cp), lambda n: (0, 0)),
                  pl.BlockSpec((1, cp), lambda n: (0, 0)),
                  pl.BlockSpec((3, 3 * cp, cout_p), lambda n: (0, 0, 0))],
        out_specs=(pl.BlockSpec((1, H, W, cout_p), lambda n: (n, 0, 0, 0)),
                   pl.BlockSpec((1, 2, cout_p), lambda n: (n, 0, 0))),
        scratch_shapes=[pltpu.VMEM((H + 2, W + 2, cp), jnp.bfloat16)],
        compiler_params=pltpu.CompilerParams(
            dimension_semantics=("parallel",)),
    )(c, stats, g, b, w)


# ----- kernel 3: BN3 + LeakyReLU + 1x1 residual conv + add + 2x2 maxpool ----- #

def _bn_relu_respool_kernel(c_ref, st_ref, g_ref, b_ref, x_ref, w4_ref,
                            o_ref, z_sc, r_sc, *, count):
    _, H, W, fp = c_ref.shape
    tot = jnp.sum(st_ref[...], axis=0)
    mean = tot[0:1, :] * (1.0 / count)
    var = jnp.maximum(tot[1:2, :] * (1.0 / count) - mean * mean, 0.0)
    scale = g_ref[...] * jax.lax.rsqrt(var + EPS)
    shift = b_ref[...] - mean * scale
    y = c_ref[0].astype(jnp.float32) * scale + shift
    y = jnp.where(y >= 0.0, y, NEG_SLOPE * y)
    # Fused residual 1x1 conv of the original input (MXU); pre-pool tensor
    # never leaves VMEM.
    res = jnp.dot(x_ref[0].reshape(H * W, -1), w4_ref[...],
                  preferred_element_type=jnp.float32)
    z_sc[...] = y + res.reshape(H, W, fp)
    # 2x2 / stride-2 max-pool via strided VMEM reads.
    r_sc[...] = jnp.maximum(z_sc[pl.ds(0, H // 2, 2), :, :],
                            z_sc[pl.ds(1, H // 2, 2), :, :])
    o_ref[0] = jnp.maximum(r_sc[:, pl.ds(0, W // 2, 2), :],
                           r_sc[:, pl.ds(1, W // 2, 2), :]).astype(o_ref.dtype)
    # TODO(synk): nn.Dropout(p=0.9) is stochastic in training mode; applied as
    # identity (inference behaviour) here.
    # TODO(synk): only pool_padding=0 (module default) and even H/W supported.


def bn_relu_respool(c, stats, g, b, x, w4, count):
    N, H, W, fp = c.shape
    cin_p = x.shape[-1]
    kern = functools.partial(_bn_relu_respool_kernel, count=count)
    return pl.pallas_call(
        kern,
        out_shape=jax.ShapeDtypeStruct((N, H // 2, W // 2, fp), jnp.bfloat16),
        grid=(N,),
        in_specs=[pl.BlockSpec((1, H, W, fp), lambda n: (n, 0, 0, 0)),
                  pl.BlockSpec((N, 2, fp), lambda n: (0, 0, 0)),
                  pl.BlockSpec((1, fp), lambda n: (0, 0)),
                  pl.BlockSpec((1, fp), lambda n: (0, 0)),
                  pl.BlockSpec((1, H, W, cin_p), lambda n: (n, 0, 0, 0)),
                  pl.BlockSpec((cin_p, fp), lambda n: (0, 0))],
        out_specs=pl.BlockSpec((1, H // 2, W // 2, fp), lambda n: (n, 0, 0, 0)),
        scratch_shapes=[pltpu.VMEM((H, W, fp), jnp.float32),
                        pltpu.VMEM((H // 2, W, fp), jnp.float32)],
        compiler_params=pltpu.CompilerParams(
            dimension_semantics=("parallel",)),
    )(c, stats, g, b, x, w4)


# ------------------------------ parameter prep ------------------------------ #

def _prep_w3x3(w_oihw, cin_p, cout_p):
    cout, cin = w_oihw.shape[0], w_oihw.shape[1]
    w = jnp.transpose(w_oihw, (2, 3, 1, 0))               # [ky, kx, Cin, Cout]
    w = jnp.pad(w, ((0, 0), (0, 0), (0, cin_p - cin), (0, cout_p - cout)))
    return w.reshape(3, 3 * cin_p, cout_p).astype(jnp.bfloat16)


def _prep_w1x1(w_oihw, cin_p, cout_p):
    cout, cin = w_oihw.shape[0], w_oihw.shape[1]
    w = jnp.transpose(w_oihw[:, :, 0, 0], (1, 0))          # [Cin, Cout]
    w = jnp.pad(w, ((0, cin_p - cin), (0, cout_p - cout)))
    return w.astype(jnp.bfloat16)


def _prep_vec(v, cp):
    return jnp.pad(v.astype(jnp.float32), (0, cp - v.shape[0])).reshape(1, cp)


# --------------------------------- forward ---------------------------------- #

@jax.jit
def res_block_forward(x_nchw, params):
    N, cin, H, W = x_nchw.shape
    filters = params["W1"].shape[0]
    cin_p = _round_up(cin, LANE)
    fp = _round_up(filters, LANE)
    count = N * H * W

    # NCHW -> NHWC, lane-dense channel padding, bf16 MXU operands.
    x = jnp.transpose(x_nchw, (0, 2, 3, 1)).astype(jnp.float32)
    x_cp = jnp.pad(x, ((0, 0), (0, 0), (0, 0), (0, cin_p - cin))).astype(jnp.bfloat16)
    x_sp = jnp.pad(x_cp, ((0, 0), (1, 1), (1, 1), (0, 0)))   # halo for conv1

    w1 = _prep_w3x3(params["W1"], cin_p, fp)
    w2 = _prep_w3x3(params["W2"], fp, fp)
    w3 = _prep_w3x3(params["W3"], fp, fp)
    w4 = _prep_w1x1(params["W4"], cin_p, fp)
    g1, b1 = _prep_vec(params["g1"], fp), _prep_vec(params["b1"], fp)
    g2, b2 = _prep_vec(params["g2"], fp), _prep_vec(params["b2"], fp)
    g3, b3 = _prep_vec(params["g3"], fp), _prep_vec(params["b3"], fp)

    c1, st1 = conv3x3_bnstats(x_sp, w1)                   # conv1 + BN1 stats
    c2, st2 = bn_relu_conv3x3(c1, st1, g1, b1, w2, count) # BN1+LReLU fused into conv2
    c3, st3 = bn_relu_conv3x3(c2, st2, g2, b2, w3, count) # BN2+LReLU fused into conv3
    out = bn_relu_respool(c3, st3, g3, b3, x_cp, w4, count)

    out = out[:, :, :, :filters].astype(jnp.float32)       # strip channel padding
    return jnp.transpose(out, (0, 3, 1, 2))                # back to NCHW


# --------------------------- reference / params ------------------------------ #

def init_params(key, in_channels, filters):
    ks = jax.random.split(key, 10)
    std3 = math.sqrt(2.0 / (9 * in_channels))
    std3f = math.sqrt(2.0 / (9 * filters))
    std1 = math.sqrt(2.0 / in_channels)
    return {
        "W1": std3 * jax.random.normal(ks[0], (filters, in_channels, 3, 3), jnp.float32),
        "W2": std3f * jax.random.normal(ks[1], (filters, filters, 3, 3), jnp.float32),
        "W3": std3f * jax.random.normal(ks[2], (filters, filters, 3, 3), jnp.float32),
        "W4": std1 * jax.random.normal(ks[3], (filters, in_channels, 1, 1), jnp.float32),
        "g1": 1.0 + 0.1 * jax.random.normal(ks[4], (filters,), jnp.float32),
        "b1": 0.1 * jax.random.normal(ks[5], (filters,), jnp.float32),
        "g2": 1.0 + 0.1 * jax.random.normal(ks[6], (filters,), jnp.float32),
        "b2": 0.1 * jax.random.normal(ks[7], (filters,), jnp.float32),
        "g3": 1.0 + 0.1 * jax.random.normal(ks[8], (filters,), jnp.float32),
        "b3": 0.1 * jax.random.normal(ks[9], (filters,), jnp.float32),
    }


def ref_forward(x, params):
    """Pure-JAX f32 reference (lax conv + batch-stat BN + maxpool)."""
    def conv2d(t, w, pad):
        return jax.lax.conv_general_dilated(
            t, w, (1, 1), [(pad, pad), (pad, pad)],
            dimension_numbers=("NCHW", "OIHW", "NCHW"))

    def bn(t, g, b):
        mean = jnp.mean(t, axis=(0, 2, 3), keepdims=True)
        var = jnp.mean(jnp.square(t - mean), axis=(0, 2, 3), keepdims=True)
        return (t - mean) * jax.lax.rsqrt(var + EPS) * g.reshape(1, -1, 1, 1) \
            + b.reshape(1, -1, 1, 1)

    def lrelu(t):
        return jnp.where(t >= 0, t, NEG_SLOPE * t)

    residual = conv2d(x, params["W4"], 0)
    out = lrelu(bn(conv2d(x, params["W1"], 1), params["g1"], params["b1"]))
    out = lrelu(bn(conv2d(out, params["W2"], 1), params["g2"], params["b2"]))
    out = lrelu(bn(conv2d(out, params["W3"], 1), params["g3"], params["b3"]))
    out = out + residual
    return jax.lax.reduce_window(out, -jnp.inf, jax.lax.max,
                                 (1, 1, 2, 2), (1, 1, 2, 2), "VALID")


# ----------------------------------- main ------------------------------------ #

if __name__ == "__main__":
    key = jax.random.PRNGKey(0)
    kx, kp = jax.random.split(key)

    N, cin, H, W, filters = 2, 4, 16, 16, 8
    x = jax.random.normal(kx, (N, cin, H, W), jnp.float32)
    params = init_params(kp, cin, filters)

    out = jax.block_until_ready(res_block_forward(x, params))
    ref = jax.block_until_ready(ref_forward(x, params))

    assert out.shape == ref.shape == (N, filters, H // 2, W // 2), out.shape
    max_abs = float(jnp.max(jnp.abs(out - ref)))
    rel = float(jnp.linalg.norm(out - ref) / jnp.linalg.norm(ref))
    # bf16 MXU operands + bf16 intermediates -> expect ~1e-2 relative error.
    assert max_abs < 0.3 and rel < 0.05, (max_abs, rel)

    print("KERNEL_OK")
</pallas_src>

<mosaic_0001>
module attributes {stable_mosaic.version = 11 : i64} {
  func.func @_conv1_kernel(%arg0: i32, %arg1: memref<1x18x18x128xbf16, #tpu.memory_space<vmem>>, %arg2: memref<3x384x128xbf16, #tpu.memory_space<vmem>>, %arg3: memref<1x16x16x128xbf16, #tpu.memory_space<vmem>>, %arg4: memref<1x2x128xf32, #tpu.memory_space<vmem>>) attributes {dimension_semantics = [#tpu.dimension_semantics<parallel>], iteration_bounds = array<i64: 2>, scalar_prefetch = 0 : i64, scratch_operands = 0 : i64, tpu.core_type = #tpu.core_type<tc>, window_params = [{transform_indices = @transform_0, window_bounds = array<i64: 1, 18, 18, 128>}, {pipeline_mode = #tpu.pipeline_mode<synchronous>, transform_indices = @transform_1, window_bounds = array<i64: 3, 384, 128>}, {transform_indices = @transform_2, window_bounds = array<i64: 1, 16, 16, 128>}, {transform_indices = @transform_3, window_bounds = array<i64: 1, 2, 128>}]} {
    %c0 = arith.constant 0 : index
    %c0_0 = arith.constant 0 : index
    %c0_1 = arith.constant 0 : index
    %c0_2 = arith.constant 0 : index
    %0 = vector.load %arg1[%c0, %c0_0, %c0_1, %c0_2] : memref<1x18x18x128xbf16, #tpu.memory_space<vmem>>, vector<1x16x16x128xbf16>
    %1 = vector.shape_cast %0 : vector<1x16x16x128xbf16> to vector<16x16x128xbf16>
    %2 = vector.shape_cast %1 : vector<16x16x128xbf16> to vector<256x128xbf16>
    %c0_3 = arith.constant 0 : index
    %c0_4 = arith.constant 0 : index
    %c1 = arith.constant 1 : index
    %c0_5 = arith.constant 0 : index
    %3 = vector.load %arg1[%c0_3, %c0_4, %c1, %c0_5] : memref<1x18x18x128xbf16, #tpu.memory_space<vmem>>, vector<1x16x16x128xbf16>
    %4 = vector.shape_cast %3 : vector<1x16x16x128xbf16> to vector<16x16x128xbf16>
    %5 = vector.shape_cast %4 : vector<16x16x128xbf16> to vector<256x128xbf16>
    %c0_6 = arith.constant 0 : index
    %c0_7 = arith.constant 0 : index
    %c2 = arith.constant 2 : index
    %c0_8 = arith.constant 0 : index
    %6 = vector.load %arg1[%c0_6, %c0_7, %c2, %c0_8] : memref<1x18x18x128xbf16, #tpu.memory_space<vmem>>, vector<1x16x16x128xbf16>
    %7 = vector.shape_cast %6 : vector<1x16x16x128xbf16> to vector<16x16x128xbf16>
    %8 = vector.shape_cast %7 : vector<16x16x128xbf16> to vector<256x128xbf16>
    %9 = tpu.concatenate %2, %5, %8 in 1 : vector<256x128xbf16>, vector<256x128xbf16>, vector<256x128xbf16> -> vector<256x384xbf16>
    %c0_9 = arith.constant 0 : index
    %c0_10 = arith.constant 0 : index
    %c0_11 = arith.constant 0 : index
    %10 = vector.load %arg2[%c0_9, %c0_10, %c0_11] : memref<3x384x128xbf16, #tpu.memory_space<vmem>>, vector<1x384x128xbf16>
    %11 = vector.shape_cast %10 : vector<1x384x128xbf16> to vector<384x128xbf16>
    %cst = arith.constant dense<0.000000e+00> : vector<256x128xf32>
    %12 = tpu.matmul %9, %11, %cst {dimension_numbers = #tpu.dot_dimension_numbers<[1], [0], [0], [1], [0, 0, 1, 1], [], []>} : vector<256x384xbf16>, vector<384x128xbf16>, vector<256x128xf32> -> vector<256x128xf32>
    %c0_12 = arith.constant 0 : index
    %c1_13 = arith.constant 1 : index
    %c0_14 = arith.constant 0 : index
    %c0_15 = arith.constant 0 : index
    %13 = vector.load %arg1[%c0_12, %c1_13, %c0_14, %c0_15] : memref<1x18x18x128xbf16, #tpu.memory_space<vmem>>, vector<1x16x16x128xbf16>
    %14 = vector.shape_cast %13 : vector<1x16x16x128xbf16> to vector<16x16x128xbf16>
    %15 = vector.shape_cast %14 : vector<16x16x128xbf16> to vector<256x128xbf16>
    %c0_16 = arith.constant 0 : index
    %c1_17 = arith.constant 1 : index
    %c1_18 = arith.constant 1 : index
    %c0_19 = arith.constant 0 : index
    %16 = vector.load %arg1[%c0_16, %c1_17, %c1_18, %c0_19] : memref<1x18x18x128xbf16, #tpu.memory_space<vmem>>, vector<1x16x16x128xbf16>
    %17 = vector.shape_cast %16 : vector<1x16x16x128xbf16> to vector<16x16x128xbf16>
    %18 = vector.shape_cast %17 : vector<16x16x128xbf16> to vector<256x128xbf16>
    %c0_20 = arith.constant 0 : index
    %c1_21 = arith.constant 1 : index
    %c2_22 = arith.constant 2 : index
    %c0_23 = arith.constant 0 : index
    %19 = vector.load %arg1[%c0_20, %c1_21, %c2_22, %c0_23] : memref<1x18x18x128xbf16, #tpu.memory_space<vmem>>, vector<1x16x16x128xbf16>
    %20 = vector.shape_cast %19 : vector<1x16x16x128xbf16> to vector<16x16x128xbf16>
    %21 = vector.shape_cast %20 : vector<16x16x128xbf16> to vector<256x128xbf16>
    %22 = tpu.concatenate %15, %18, %21 in 1 : vector<256x128xbf16>, vector<256x128xbf16>, vector<256x128xbf16> -> vector<256x384xbf16>
    %c1_24 = arith.constant 1 : index
    %c0_25 = arith.constant 0 : index
    %c0_26 = arith.constant 0 : index
    %23 = vector.load %arg2[%c1_24, %c0_25, %c0_26] : memref<3x384x128xbf16, #tpu.memory_space<vmem>>, vector<1x384x128xbf16>
    %24 = vector.shape_cast %23 : vector<1x384x128xbf16> to vector<384x128xbf16>
    %cst_27 = arith.constant dense<0.000000e+00> : vector<256x128xf32>
    %25 = tpu.matmul %22, %24, %cst_27 {dimension_numbers = #tpu.dot_dimension_numbers<[1], [0], [0], [1], [0, 0, 1, 1], [], []>} : vector<256x384xbf16>, vector<384x128xbf16>, vector<256x128xf32> -> vector<256x128xf32>
    %26 = arith.addf %12, %25 : vector<256x128xf32>
    %c0_28 = arith.constant 0 : index
    %c2_29 = arith.constant 2 : index
    %c0_30 = arith.constant 0 : index
    %c0_31 = arith.constant 0 : index
    %27 = vector.load %arg1[%c0_28, %c2_29, %c0_30, %c0_31] : memref<1x18x18x128xbf16, #tpu.memory_space<vmem>>, vector<1x16x16x128xbf16>
    %28 = vector.shape_cast %27 : vector<1x16x16x128xbf16> to vector<16x16x128xbf16>
    %29 = vector.shape_cast %28 : vector<16x16x128xbf16> to vector<256x128xbf16>
    %c0_32 = arith.constant 0 : index
    %c2_33 = arith.constant 2 : index
    %c1_34 = arith.constant 1 : index
    %c0_35 = arith.constant 0 : index
    %30 = vector.load %arg1[%c0_32, %c2_33, %c1_34, %c0_35] : memref<1x18x18x128xbf16, #tpu.memory_space<vmem>>, vector<1x16x16x128xbf16>
    %31 = vector.shape_cast %30 : vector<1x16x16x128xbf16> to vector<16x16x128xbf16>
    %32 = vector.shape_cast %31 : vector<16x16x128xbf16> to vector<256x128xbf16>
    %c0_36 = arith.constant 0 : index
    %c2_37 = arith.constant 2 : index
    %c2_38 = arith.constant 2 : index
    %c0_39 = arith.constant 0 : index
    %33 = vector.load %arg1[%c0_36, %c2_37, %c2_38, %c0_39] : memref<1x18x18x128xbf16, #tpu.memory_space<vmem>>, vector<1x16x16x128xbf16>
    %34 = vector.shape_cast %33 : vector<1x16x16x128xbf16> to vector<16x16x128xbf16>
    %35 = vector.shape_cast %34 : vector<16x16x128xbf16> to vector<256x128xbf16>
    %36 = tpu.concatenate %29, %32, %35 in 1 : vector<256x128xbf16>, vector<256x128xbf16>, vector<256x128xbf16> -> vector<256x384xbf16>
    %c2_40 = arith.constant 2 : index
    %c0_41 = arith.constant 0 : index
    %c0_42 = arith.constant 0 : index
    %37 = vector.load %arg2[%c2_40, %c0_41, %c0_42] : memref<3x384x128xbf16, #tpu.memory_space<vmem>>, vector<1x384x128xbf16>
    %38 = vector.shape_cast %37 : vector<1x384x128xbf16> to vector<384x128xbf16>
    %cst_43 = arith.constant dense<0.000000e+00> : vector<256x128xf32>
    %39 = tpu.matmul %36, %38, %cst_43 {dimension_numbers = #tpu.dot_dimension_numbers<[1], [0], [0], [1], [0, 0, 1, 1], [], []>} : vector<256x384xbf16>, vector<384x128xbf16>, vector<256x128xf32> -> vector<256x128xf32>
    %40 = arith.addf %26, %39 : vector<256x128xf32>
    %41 = vector.shape_cast %40 : vector<256x128xf32> to vector<16x16x128xf32>
    %42 = arith.truncf %41 : vector<16x16x128xf32> to vector<16x16x128xbf16>
    %c0_44 = arith.constant 0 : index
    %c0_45 = arith.constant 0 : index
    %c0_46 = arith.constant 0 : index
    %c0_47 = arith.constant 0 : index
    %43 = vector.load %arg3[%c0_44, %c0_45, %c0_46, %c0_47] : memref<1x16x16x128xbf16, #tpu.memory_space<vmem>>, vector<1x16x16x128xbf16>
    %44 = vector.shape_cast %43 : vector<1x16x16x128xbf16> to vector<16x16x128xbf16>
    %45 = vector.shape_cast %42 : vector<16x16x128xbf16> to vector<1x16x16x128xbf16>
    tpu.vector_store %arg3[%c0_44, %c0_45, %c0_46, %c0_47], %45 {strides = array<i32>} : memref<1x16x16x128xbf16, #tpu.memory_space<vmem>>, vector<1x16x16x128xbf16>,
    %cst_48 = arith.constant dense<0.000000e+00> : vector<128xf32>
    %46 = vector.multi_reduction <add>, %40, %cst_48 [0] : vector<256x128xf32> to vector<128xf32>
    %47 = vector.shape_cast %46 : vector<128xf32> to vector<1x128xf32>
    %c0_49 = arith.constant 0 : index
    %c0_50 = arith.constant 0 : index
    %c0_51 = arith.constant 0 : index
    %48 = vector.load %arg4[%c0_49, %c0_50, %c0_51] : memref<1x2x128xf32, #tpu.memory_space<vmem>>, vector<1x1x128xf32>
    %49 = vector.shape_cast %48 : vector<1x1x128xf32> to vector<1x128xf32>
    %50 = vector.shape_cast %47 : vector<1x128xf32> to vector<1x1x128xf32>
    tpu.vector_store %arg4[%c0_49, %c0_50, %c0_51], %50 {strides = array<i32>} : memref<1x2x128xf32, #tpu.memory_space<vmem>>, vector<1x1x128xf32>,
    %51 = arith.mulf %40, %40 : vector<256x128xf32>
    %cst_52 = arith.constant dense<0.000000e+00> : vector<128xf32>
    %52 = vector.multi_reduction <add>, %51, %cst_52 [0] : vector<256x128xf32> to vector<128xf32>
    %53 = vector.shape_cast %52 : vector<128xf32> to vector<1x128xf32>
    %c0_53 = arith.constant 0 : index
    %c1_54 = arith.constant 1 : index
    %c0_55 = arith.constant 0 : index
    %54 = vector.load %arg4[%c0_53, %c1_54, %c0_55] : memref<1x2x128xf32, #tpu.memory_space<vmem>>, vector<1x1x128xf32>
    %55 = vector.shape_cast %54 : vector<1x1x128xf32> to vector<1x128xf32>
    %56 = vector.shape_cast %53 : vector<1x128xf32> to vector<1x1x128xf32>
    tpu.vector_store %arg4[%c0_53, %c1_54, %c0_55], %56 {strides = array<i32>} : memref<1x2x128xf32, #tpu.memory_space<vmem>>, vector<1x1x128xf32>,
    return
  }
  func.func @transform_0(%arg0: i32) -> (i32, i32, i32, i32) {
    %c0_i32 = arith.constant 0 : i32
    %c0_i32_0 = arith.constant 0 : i32
    %c0_i32_1 = arith.constant 0 : i32
    %c0_i32_2 = arith.constant 0 : i32
    return %arg0, %c0_i32, %c0_i32_0, %c0_i32_1 : i32, i32, i32, i32
  }
  func.func @transform_1(%arg0: i32) -> (i32, i32, i32) {
    %c0_i32 = arith.constant 0 : i32
    %c0_i32_0 = arith.constant 0 : i32
    %c0_i32_1 = arith.constant 0 : i32
    %c0_i32_2 = arith.constant 0 : i32
    return %c0_i32, %c0_i32_0, %c0_i32_1 : i32, i32, i32
  }
  func.func @transform_2(%arg0: i32) -> (i32, i32, i32, i32) {
    %c0_i32 = arith.constant 0 : i32
    %c0_i32_0 = arith.constant 0 : i32
    %c0_i32_1 = arith.constant 0 : i32
    %c0_i32_2 = arith.constant 0 : i32
    return %arg0, %c0_i32, %c0_i32_0, %c0_i32_1 : i32, i32, i32, i32
  }
  func.func @transform_3(%arg0: i32) -> (i32, i32, i32) {
    %c0_i32 = arith.constant 0 : i32
    %c0_i32_0 = arith.constant 0 : i32
    %c0_i32_1 = arith.constant 0 : i32
    return %arg0, %c0_i32, %c0_i32_0 : i32, i32, i32
  }
}

module attributes {stable_mosaic.version = 11 : i64} {
  func.func @_bn_relu_conv_kernel(%arg0: i32, %arg1: memref<1x16x16x128xbf16, #tpu.memory_space<vmem>>, %arg2: memref<2x2x128xf32, #tpu.memory_space<vmem>>, %arg3: memref<1x128xf32, #tpu.memory_space<vmem>>, %arg4: memref<1x128xf32, #tpu.memory_space<vmem>>, %arg5: memref<3x384x128xbf16, #tpu.memory_space<vmem>>, %arg6: memref<1x16x16x128xbf16, #tpu.memory_space<vmem>>, %arg7: memref<1x2x128xf32, #tpu.memory_space<vmem>>, %arg8: memref<18x18x128xbf16, #tpu.memory_space<vmem>>) attributes {dimension_semantics = [#tpu.dimension_semantics<parallel>], iteration_bounds = array<i64: 2>, scalar_prefetch = 0 : i64, scratch_operands = 1 : i64, tpu.core_type = #tpu.core_type<tc>, window_params = [{transform_indices = @transform_0, window_bounds = array<i64: 1, 16, 16, 128>}, {pipeline_mode = #tpu.pipeline_mode<synchronous>, transform_indices = @transform_1, window_bounds = array<i64: 2, 2, 128>}, {pipeline_mode = #tpu.pipeline_mode<synchronous>, transform_indices = @transform_2, window_bounds = array<i64: 1, 128>}, {pipeline_mode = #tpu.pipeline_mode<synchronous>, transform_indices = @transform_3, window_bounds = array<i64: 1, 128>}, {pipeline_mode = #tpu.pipeline_mode<synchronous>, transform_indices = @transform_4, window_bounds = array<i64: 3, 384, 128>}, {transform_indices = @transform_5, window_bounds = array<i64: 1, 16, 16, 128>}, {transform_indices = @transform_6, window_bounds = array<i64: 1, 2, 128>}]} {
    %c0 = arith.constant 0 : index
    %c0_0 = arith.constant 0 : index
    %c0_1 = arith.constant 0 : index
    %0 = vector.load %arg2[%c0, %c0_0, %c0_1] : memref<2x2x128xf32, #tpu.memory_space<vmem>>, vector<2x2x128xf32>
    %cst = arith.constant dense<0.000000e+00> : vector<2x128xf32>
    %1 = vector.multi_reduction <add>, %0, %cst [0] : vector<2x2x128xf32> to vector<2x128xf32>
    %2 = vector.extract_strided_slice %1 {offsets = [0, 0], sizes = [1, 128], strides = [1, 1]} : vector<2x128xf32> to vector<1x128xf32>
    %cst_2 = arith.constant 0.001953125 : f32
    %3 = vector.broadcast %cst_2 : f32 to vector<1x128xf32>
    %4 = arith.mulf %2, %3 : vector<1x128xf32>
    %5 = vector.extract_strided_slice %1 {offsets = [1, 0], sizes = [1, 128], strides = [1, 1]} : vector<2x128xf32> to vector<1x128xf32>
    %cst_3 = arith.constant 0.001953125 : f32
    %6 = vector.broadcast %cst_3 : f32 to vector<1x128xf32>
    %7 = arith.mulf %5, %6 : vector<1x128xf32>
    %8 = arith.mulf %4, %4 : vector<1x128xf32>
    %9 = arith.subf %7, %8 : vector<1x128xf32>
    %cst_4 = arith.constant 0.000000e+00 : f32
    %10 = vector.broadcast %cst_4 : f32 to vector<1x128xf32>
    %11 = arith.maximumf %9, %10 : vector<1x128xf32>
    %c0_5 = arith.constant 0 : index
    %c0_6 = arith.constant 0 : index
    %12 = vector.load %arg3[%c0_5, %c0_6] : memref<1x128xf32, #tpu.memory_space<vmem>>, vector<1x128xf32>
    %cst_7 = arith.constant 9.99999974E-6 : f32
    %13 = vector.broadcast %cst_7 : f32 to vector<1x128xf32>
    %14 = arith.addf %11, %13 : vector<1x128xf32>
    %15 = math.rsqrt %14 : vector<1x128xf32>
    %16 = arith.mulf %12, %15 : vector<1x128xf32>
    %c0_8 = arith.constant 0 : index
    %c0_9 = arith.constant 0 : index
    %17 = vector.load %arg4[%c0_8, %c0_9] : memref<1x128xf32, #tpu.memory_space<vmem>>, vector<1x128xf32>
    %18 = arith.mulf %4, %16 : vector<1x128xf32>
    %19 = arith.subf %17, %18 : vector<1x128xf32>
    %c0_10 = arith.constant 0 : index
    %c0_11 = arith.constant 0 : index
    %c0_12 = arith.constant 0 : index
    %c0_13 = arith.constant 0 : index
    %20 = vector.load %arg1[%c0_10, %c0_11, %c0_12, %c0_13] : memref<1x16x16x128xbf16, #tpu.memory_space<vmem>>, vector<1x16x16x128xbf16>
    %21 = vector.shape_cast %20 : vector<1x16x16x128xbf16> to vector<16x16x128xbf16>
    %22 = arith.extf %21 : vector<16x16x128xbf16> to vector<16x16x128xf32>
    %23 = vector.shape_cast %16 : vector<1x128xf32> to vector<1x1x128xf32>
    %24 = vector.broadcast %23 : vector<1x1x128xf32> to vector<16x16x128xf32>
    %25 = arith.mulf %22, %24 : vector<16x16x128xf32>
    %26 = vector.shape_cast %19 : vector<1x128xf32> to vector<1x1x128xf32>
    %27 = vector.broadcast %26 : vector<1x1x128xf32> to vector<16x16x128xf32>
    %28 = arith.addf %25, %27 : vector<16x16x128xf32>
    %cst_14 = arith.constant 0.000000e+00 : f32
    %29 = vector.broadcast %cst_14 : f32 to vector<16x16x128xf32>
    %30 = arith.cmpf oge, %28, %29 : vector<16x16x128xf32>
    %cst_15 = arith.constant 0.00999999977 : f32
    %31 = vector.broadcast %cst_15 : f32 to vector<16x16x128xf32>
    %32 = arith.mulf %31, %28 : vector<16x16x128xf32>
    %33 = arith.select %30, %28, %32 : vector<16x16x128xi1>, vector<16x16x128xf32>
    %cst_16 = arith.constant 0.000000e+00 : bf16
    %34 = vector.broadcast %cst_16 : bf16 to vector<1x18x128xbf16>
    %cst_17 = arith.constant 0.000000e+00 : bf16
    %35 = vector.broadcast %cst_17 : bf16 to vector<16x1x128xbf16>
    %c0_18 = arith.constant 0 : index
    %c0_19 = arith.constant 0 : index
    %c0_20 = arith.constant 0 : index
    %36 = vector.load %arg8[%c0_18, %c0_19, %c0_20] : memref<18x18x128xbf16, #tpu.memory_space<vmem>>, vector<1x18x128xbf16>
    tpu.vector_store %arg8[%c0_18, %c0_19, %c0_20], %34 {strides = array<i32>} : memref<18x18x128xbf16, #tpu.memory_space<vmem>>, vector<1x18x128xbf16>,
    %c17 = arith.constant 17 : index
    %c0_21 = arith.constant 0 : index
    %c0_22 = arith.constant 0 : index
    %37 = vector.load %arg8[%c17, %c0_21, %c0_22] : memref<18x18x128xbf16, #tpu.memory_space<vmem>>, vector<1x18x128xbf16>
    tpu.vector_store %arg8[%c17, %c0_21, %c0_22], %34 {strides = array<i32>} : memref<18x18x128xbf16, #tpu.memory_space<vmem>>, vector<1x18x128xbf16>,
    %c1 = arith.constant 1 : index
    %c0_23 = arith.constant 0 : index
    %c0_24 = arith.constant 0 : index
    %38 = vector.load %arg8[%c1, %c0_23, %c0_24] : memref<18x18x128xbf16, #tpu.memory_space<vmem>>, vector<16x1x128xbf16>
    tpu.vector_store %arg8[%c1, %c0_23, %c0_24], %35 {strides = array<i32>} : memref<18x18x128xbf16, #tpu.memory_space<vmem>>, vector<16x1x128xbf16>,
    %c1_25 = arith.constant 1 : index
    %c17_26 = arith.constant 17 : index
    %c0_27 = arith.constant 0 : index
    %39 = vector.load %arg8[%c1_25, %c17_26, %c0_27] : memref<18x18x128xbf16, #tpu.memory_space<vmem>>, vector<16x1x128xbf16>
    tpu.vector_store %arg8[%c1_25, %c17_26, %c0_27], %35 {strides = array<i32>} : memref<18x18x128xbf16, #tpu.memory_space<vmem>>, vector<16x1x128xbf16>,
    %40 = arith.truncf %33 : vector<16x16x128xf32> to vector<16x16x128xbf16>
    %c1_28 = arith.constant 1 : index
    %c1_29 = arith.constant 1 : index
    %c0_30 = arith.constant 0 : index
    %41 = vector.load %arg8[%c1_28, %c1_29, %c0_30] : memref<18x18x128xbf16, #tpu.memory_space<vmem>>, vector<16x16x128xbf16>
    tpu.vector_store %arg8[%c1_28, %c1_29, %c0_30], %40 {strides = array<i32>} : memref<18x18x128xbf16, #tpu.memory_space<vmem>>, vector<16x16x128xbf16>,
    %c0_31 = arith.constant 0 : index
    %c0_32 = arith.constant 0 : index
    %c0_33 = arith.constant 0 : index
    %42 = vector.load %arg8[%c0_31, %c0_32, %c0_33] : memref<18x18x128xbf16, #tpu.memory_space<vmem>>, vector<16x16x128xbf16>
    %43 = vector.shape_cast %42 : vector<16x16x128xbf16> to vector<256x128xbf16>
    %c0_34 = arith.constant 0 : index
    %c1_35 = arith.constant 1 : index
    %c0_36 = arith.constant 0 : index
    %44 = vector.load %arg8[%c0_34, %c1_35, %c0_36] : memref<18x18x128xbf16, #tpu.memory_space<vmem>>, vector<16x16x128xbf16>
    %45 = vector.shape_cast %44 : vector<16x16x128xbf16> to vector<256x128xbf16>
    %c0_37 = arith.constant 0 : index
    %c2 = arith.constant 2 : index
    %c0_38 = arith.constant 0 : index
    %46 = vector.load %arg8[%c0_37, %c2, %c0_38] : memref<18x18x128xbf16, #tpu.memory_space<vmem>>, vector<16x16x128xbf16>
    %47 = vector.shape_cast %46 : vector<16x16x128xbf16> to vector<256x128xbf16>
    %48 = tpu.concatenate %43, %45, %47 in 1 : vector<256x128xbf16>, vector<256x128xbf16>, vector<256x128xbf16> -> vector<256x384xbf16>
    %c0_39 = arith.constant 0 : index
    %c0_40 = arith.constant 0 : index
    %c0_41 = arith.constant 0 : index
    %49 = vector.load %arg5[%c0_39, %c0_40, %c0_41] : memref<3x384x128xbf16, #tpu.memory_space<vmem>>, vector<1x384x128xbf16>
    %50 = vector.shape_cast %49 : vector<1x384x128xbf16> to vector<384x128xbf16>
    %cst_42 = arith.constant dense<0.000000e+00> : vector<256x128xf32>
    %51 = tpu.matmul %48, %50, %cst_42 {dimension_numbers = #tpu.dot_dimension_numbers<[1], [0], [0], [1], [0, 0, 1, 1], [], []>} : vector<256x384xbf16>, vector<384x128xbf16>, vector<256x128xf32> -> vector<256x128xf32>
    %c1_43 = arith.constant 1 : index
    %c0_44 = arith.constant 0 : index
    %c0_45 = arith.constant 0 : index
    %52 = vector.load %arg8[%c1_43, %c0_44, %c0_45] : memref<18x18x128xbf16, #tpu.memory_space<vmem>>, vector<16x16x128xbf16>
    %53 = vector.shape_cast %52 : vector<16x16x128xbf16> to vector<256x128xbf16>
    %c1_46 = arith.constant 1 : index
    %c1_47 = arith.constant 1 : index
    %c0_48 = arith.constant 0 : index
    %54 = vector.load %arg8[%c1_46, %c1_47, %c0_48] : memref<18x18x128xbf16, #tpu.memory_space<vmem>>, vector<16x16x128xbf16>
    %55 = vector.shape_cast %54 : vector<16x16x128xbf16> to vector<256x128xbf16>
    %c1_49 = arith.constant 1 : index
    %c2_50 = arith.constant 2 : index
    %c0_51 = arith.constant 0 : index
    %56 = vector.load %arg8[%c1_49, %c2_50, %c0_51] : memref<18x18x128xbf16, #tpu.memory_space<vmem>>, vector<16x16x128xbf16>
    %57 = vector.shape_cast %56 : vector<16x16x128xbf16> to vector<256x128xbf16>
    %58 = tpu.concatenate %53, %55, %57 in 1 : vector<256x128xbf16>, vector<256x128xbf16>, vector<256x128xbf16> -> vector<256x384xbf16>
    %c1_52 = arith.constant 1 : index
    %c0_53 = arith.constant 0 : index
    %c0_54 = arith.constant 0 : index
    %59 = vector.load %arg5[%c1_52, %c0_53, %c0_54] : memref<3x384x128xbf16, #tpu.memory_space<vmem>>, vector<1x384x128xbf16>
    %60 = vector.shape_cast %59 : vector<1x384x128xbf16> to vector<384x128xbf16>
    %cst_55 = arith.constant dense<0.000000e+00> : vector<256x128xf32>
    %61 = tpu.matmul %58, %60, %cst_55 {dimension_numbers = #tpu.dot_dimension_numbers<[1], [0], [0], [1], [0, 0, 1, 1], [], []>} : vector<256x384xbf16>, vector<384x128xbf16>, vector<256x128xf32> -> vector<256x128xf32>
    %62 = arith.addf %51, %61 : vector<256x128xf32>
    %c2_56 = arith.constant 2 : index
    %c0_57 = arith.constant 0 : index
    %c0_58 = arith.constant 0 : index
    %63 = vector.load %arg8[%c2_56, %c0_57, %c0_58] : memref<18x18x128xbf16, #tpu.memory_space<vmem>>, vector<16x16x128xbf16>
    %64 = vector.shape_cast %63 : vector<16x16x128xbf16> to vector<256x128xbf16>
    %c2_59 = arith.constant 2 : index
    %c1_60 = arith.constant 1 : index
    %c0_61 = arith.constant 0 : index
    %65 = vector.load %arg8[%c2_59, %c1_60, %c0_61] : memref<18x18x128xbf16, #tpu.memory_space<vmem>>, vector<16x16x128xbf16>
    %66 = vector.shape_cast %65 : vector<16x16x128xbf16> to vector<256x128xbf16>
    %c2_62 = arith.constant 2 : index
    %c2_63 = arith.constant 2 : index
    %c0_64 = arith.constant 0 : index
    %67 = vector.load %arg8[%c2_62, %c2_63, %c0_64] : memref<18x18x128xbf16, #tpu.memory_space<vmem>>, vector<16x16x128xbf16>
    %68 = vector.shape_cast %67 : vector<16x16x128xbf16> to vector<256x128xbf16>
    %69 = tpu.concatenate %64, %66, %68 in 1 : vector<256x128xbf16>, vector<256x128xbf16>, vector<256x128xbf16> -> vector<256x384xbf16>
    %c2_65 = arith.constant 2 : index
    %c0_66 = arith.constant 0 : index
    %c0_67 = arith.constant 0 : index
    %70 = vector.load %arg5[%c2_65, %c0_66, %c0_67] : memref<3x384x128xbf16, #tpu.memory_space<vmem>>, vector<1x384x128xbf16>
    %71 = vector.shape_cast %70 : vector<1x384x128xbf16> to vector<384x128xbf16>
    %cst_68 = arith.constant dense<0.000000e+00> : vector<256x128xf32>
    %72 = tpu.matmul %69, %71, %cst_68 {dimension_numbers = #tpu.dot_dimension_numbers<[1], [0], [0], [1], [0, 0, 1, 1], [], []>} : vector<256x384xbf16>, vector<384x128xbf16>, vector<256x128xf32> -> vector<256x128xf32>
    %73 = arith.addf %62, %72 : vector<256x128xf32>
    %74 = vector.shape_cast %73 : vector<256x128xf32> to vector<16x16x128xf32>
    %75 = arith.truncf %74 : vector<16x16x128xf32> to vector<16x16x128xbf16>
    %c0_69 = arith.constant 0 : index
    %c0_70 = arith.constant 0 : index
    %c0_71 = arith.constant 0 : index
    %c0_72 = arith.constant 0 : index
    %76 = vector.load %arg6[%c0_69, %c0_70, %c0_71, %c0_72] : memref<1x16x16x128xbf16, #tpu.memory_space<vmem>>, vector<1x16x16x128xbf16>
    %77 = vector.shape_cast %76 : vector<1x16x16x128xbf16> to vector<16x16x128xbf16>
    %78 = vector.shape_cast %75 : vector<16x16x128xbf16> to vector<1x16x16x128xbf16>
    tpu.vector_store %arg6[%c0_69, %c0_70, %c0_71, %c0_72], %78 {strides = array<i32>} : memref<1x16x16x128xbf16, #tpu.memory_space<vmem>>, vector<1x16x16x128xbf16>,
    %cst_73 = arith.constant dense<0.000000e+00> : vector<128xf32>
    %79 = vector.multi_reduction <add>, %73, %cst_73 [0] : vector<256x128xf32> to vector<128xf32>
    %80 = vector.shape_cast %79 : vector<128xf32> to vector<1x128xf32>
    %c0_74 = arith.constant 0 : index
    %c0_75 = arith.constant 0 : index
    %c0_76 = arith.constant 0 : index
    %81 = vector.load %arg7[%c0_74, %c0_75, %c0_76] : memref<1x2x128xf32, #tpu.memory_space<vmem>>, vector<1x1x128xf32>
    %82 = vector.shape_cast %81 : vector<1x1x128xf32> to vector<1x128xf32>
    %83 = vector.shape_cast %80 : vector<1x128xf32> to vector<1x1x128xf32>
    tpu.vector_store %arg7[%c0_74, %c0_75, %c0_76], %83 {strides = array<i32>} : memref<1x2x128xf32, #tpu.memory_space<vmem>>, vector<1x1x128xf32>,
    %84 = arith.mulf %73, %73 : vector<256x128xf32>
    %cst_77 = arith.constant dense<0.000000e+00> : vector<128xf32>
    %85 = vector.multi_reduction <add>, %84, %cst_77 [0] : vector<256x128xf32> to vector<128xf32>
    %86 = vector.shape_cast %85 : vector<128xf32> to vector<1x128xf32>
    %c0_78 = arith.constant 0 : index
    %c1_79 = arith.constant 1 : index
    %c0_80 = arith.constant 0 : index
    %87 = vector.load %arg7[%c0_78, %c1_79, %c0_80] : memref<1x2x128xf32, #tpu.memory_space<vmem>>, vector<1x1x128xf32>
    %88 = vector.shape_cast %87 : vector<1x1x128xf32> to vector<1x128xf32>
    %89 = vector.shape_cast %86 : vector<1x128xf32> to vector<1x1x128xf32>
    tpu.vector_store %arg7[%c0_78, %c1_79, %c0_80], %89 {strides = array<i32>} : memref<1x2x128xf32, #tpu.memory_space<vmem>>, vector<1x1x128xf32>,
    return
  }
  func.func @transform_0(%arg0: i32) -> (i32, i32, i32, i32) {
    %c0_i32 = arith.constant 0 : i32
    %c0_i32_0 = arith.constant 0 : i32
    %c0_i32_1 = arith.constant 0 : i32
    %c0_i32_2 = arith.constant 0 : i32
    return %arg0, %c0_i32, %c0_i32_0, %c0_i32_1 : i32, i32, i32, i32
  }
  func.func @transform_1(%arg0: i32) -> (i32, i32, i32) {
    %c0_i32 = arith.constant 0 : i32
    %c0_i32_0 = arith.constant 0 : i32
    %c0_i32_1 = arith.constant 0 : i32
    %c0_i32_2 = arith.constant 0 : i32
    return %c0_i32, %c0_i32_0, %c0_i32_1 : i32, i32, i32
  }
  func.func @transform_2(%arg0: i32) -> (i32, i32) {
    %c0_i32 = arith.constant 0 : i32
    %c0_i32_0 = arith.constant 0 : i32
    %c0_i32_1 = arith.constant 0 : i32
    return %c0_i32, %c0_i32_0 : i32, i32
  }
  func.func @transform_3(%arg0: i32) -> (i32, i32) {
    %c0_i32 = arith.constant 0 : i32
    %c0_i32_0 = arith.constant 0 : i32
    %c0_i32_1 = arith.constant 0 : i32
    return %c0_i32, %c0_i32_0 : i32, i32
  }
  func.func @transform_4(%arg0: i32) -> (i32, i32, i32) {
    %c0_i32 = arith.constant 0 : i32
    %c0_i32_0 = arith.constant 0 : i32
    %c0_i32_1 = arith.constant 0 : i32
    %c0_i32_2 = arith.constant 0 : i32
    return %c0_i32, %c0_i32_0, %c0_i32_1 : i32, i32, i32
  }
  func.func @transform_5(%arg0: i32) -> (i32, i32, i32, i32) {
    %c0_i32 = arith.constant 0 : i32
    %c0_i32_0 = arith.constant 0 : i32
    %c0_i32_1 = arith.constant 0 : i32
    %c0_i32_2 = arith.constant 0 : i32
    return %arg0, %c0_i32, %c0_i32_0, %c0_i32_1 : i32, i32, i32, i32
  }
  func.func @transform_6(%arg0: i32) -> (i32, i32, i32) {
    %c0_i32 = arith.constant 0 : i32
    %c0_i32_0 = arith.constant 0 : i32
    %c0_i32_1 = arith.constant 0 : i32
    return %arg0, %c0_i32, %c0_i32_0 : i32, i32, i32
  }
}

module attributes {stable_mosaic.version = 11 : i64} {
  func.func @_bn_relu_respool_kernel(%arg0: i32, %arg1: memref<1x16x16x128xbf16, #tpu.memory_space<vmem>>, %arg2: memref<2x2x128xf32, #tpu.memory_space<vmem>>, %arg3: memref<1x128xf32, #tpu.memory_space<vmem>>, %arg4: memref<1x128xf32, #tpu.memory_space<vmem>>, %arg5: memref<1x16x16x128xbf16, #tpu.memory_space<vmem>>, %arg6: memref<128x128xbf16, #tpu.memory_space<vmem>>, %arg7: memref<1x8x8x128xbf16, #tpu.memory_space<vmem>>, %arg8: memref<16x16x128xf32, #tpu.memory_space<vmem>>, %arg9: memref<8x16x128xf32, #tpu.memory_space<vmem>>) attributes {dimension_semantics = [#tpu.dimension_semantics<parallel>], iteration_bounds = array<i64: 2>, scalar_prefetch = 0 : i64, scratch_operands = 2 : i64, tpu.core_type = #tpu.core_type<tc>, window_params = [{transform_indices = @transform_0, window_bounds = array<i64: 1, 16, 16, 128>}, {pipeline_mode = #tpu.pipeline_mode<synchronous>, transform_indices = @transform_1, window_bounds = array<i64: 2, 2, 128>}, {pipeline_mode = #tpu.pipeline_mode<synchronous>, transform_indices = @transform_2, window_bounds = array<i64: 1, 128>}, {pipeline_mode = #tpu.pipeline_mode<synchronous>, transform_indices = @transform_3, window_bounds = array<i64: 1, 128>}, {transform_indices = @transform_4, window_bounds = array<i64: 1, 16, 16, 128>}, {pipeline_mode = #tpu.pipeline_mode<synchronous>, transform_indices = @transform_5, window_bounds = array<i64: 128, 128>}, {transform_indices = @transform_6, window_bounds = array<i64: 1, 8, 8, 128>}]} {
    %c0 = arith.constant 0 : index
    %c0_0 = arith.constant 0 : index
    %c0_1 = arith.constant 0 : index
    %0 = vector.load %arg2[%c0, %c0_0, %c0_1] : memref<2x2x128xf32, #tpu.memory_space<vmem>>, vector<2x2x128xf32>
    %cst = arith.constant dense<0.000000e+00> : vector<2x128xf32>
    %1 = vector.multi_reduction <add>, %0, %cst [0] : vector<2x2x128xf32> to vector<2x128xf32>
    %2 = vector.extract_strided_slice %1 {offsets = [0, 0], sizes = [1, 128], strides = [1, 1]} : vector<2x128xf32> to vector<1x128xf32>
    %cst_2 = arith.constant 0.001953125 : f32
    %3 = vector.broadcast %cst_2 : f32 to vector<1x128xf32>
    %4 = arith.mulf %2, %3 : vector<1x128xf32>
    %5 = vector.extract_strided_slice %1 {offsets = [1, 0], sizes = [1, 128], strides = [1, 1]} : vector<2x128xf32> to vector<1x128xf32>
    %cst_3 = arith.constant 0.001953125 : f32
    %6 = vector.broadcast %cst_3 : f32 to vector<1x128xf32>
    %7 = arith.mulf %5, %6 : vector<1x128xf32>
    %8 = arith.mulf %4, %4 : vector<1x128xf32>
    %9 = arith.subf %7, %8 : vector<1x128xf32>
    %cst_4 = arith.constant 0.000000e+00 : f32
    %10 = vector.broadcast %cst_4 : f32 to vector<1x128xf32>
    %11 = arith.maximumf %9, %10 : vector<1x128xf32>
    %c0_5 = arith.constant 0 : index
    %c0_6 = arith.constant 0 : index
    %12 = vector.load %arg3[%c0_5, %c0_6] : memref<1x128xf32, #tpu.memory_space<vmem>>, vector<1x128xf32>
    %cst_7 = arith.constant 9.99999974E-6 : f32
    %13 = vector.broadcast %cst_7 : f32 to vector<1x128xf32>
    %14 = arith.addf %11, %13 : vector<1x128xf32>
    %15 = math.rsqrt %14 : vector<1x128xf32>
    %16 = arith.mulf %12, %15 : vector<1x128xf32>
    %c0_8 = arith.constant 0 : index
    %c0_9 = arith.constant 0 : index
    %17 = vector.load %arg4[%c0_8, %c0_9] : memref<1x128xf32, #tpu.memory_space<vmem>>, vector<1x128xf32>
    %18 = arith.mulf %4, %16 : vector<1x128xf32>
    %19 = arith.subf %17, %18 : vector<1x128xf32>
    %c0_10 = arith.constant 0 : index
    %c0_11 = arith.constant 0 : index
    %c0_12 = arith.constant 0 : index
    %c0_13 = arith.constant 0 : index
    %20 = vector.load %arg1[%c0_10, %c0_11, %c0_12, %c0_13] : memref<1x16x16x128xbf16, #tpu.memory_space<vmem>>, vector<1x16x16x128xbf16>
    %21 = vector.shape_cast %20 : vector<1x16x16x128xbf16> to vector<16x16x128xbf16>
    %22 = arith.extf %21 : vector<16x16x128xbf16> to vector<16x16x128xf32>
    %23 = vector.shape_cast %16 : vector<1x128xf32> to vector<1x1x128xf32>
    %24 = vector.broadcast %23 : vector<1x1x128xf32> to vector<16x16x128xf32>
    %25 = arith.mulf %22, %24 : vector<16x16x128xf32>
    %26 = vector.shape_cast %19 : vector<1x128xf32> to vector<1x1x128xf32>
    %27 = vector.broadcast %26 : vector<1x1x128xf32> to vector<16x16x128xf32>
    %28 = arith.addf %25, %27 : vector<16x16x128xf32>
    %cst_14 = arith.constant 0.000000e+00 : f32
    %29 = vector.broadcast %cst_14 : f32 to vector<16x16x128xf32>
    %30 = arith.cmpf oge, %28, %29 : vector<16x16x128xf32>
    %cst_15 = arith.constant 0.00999999977 : f32
    %31 = vector.broadcast %cst_15 : f32 to vector<16x16x128xf32>
    %32 = arith.mulf %31, %28 : vector<16x16x128xf32>
    %33 = arith.select %30, %28, %32 : vector<16x16x128xi1>, vector<16x16x128xf32>
    %c0_16 = arith.constant 0 : index
    %c0_17 = arith.constant 0 : index
    %c0_18 = arith.constant 0 : index
    %c0_19 = arith.constant 0 : index
    %34 = vector.load %arg5[%c0_16, %c0_17, %c0_18, %c0_19] : memref<1x16x16x128xbf16, #tpu.memory_space<vmem>>, vector<1x16x16x128xbf16>
    %35 = vector.shape_cast %34 : vector<1x16x16x128xbf16> to vector<16x16x128xbf16>
    %36 = vector.shape_cast %35 : vector<16x16x128xbf16> to vector<256x128xbf16>
    %c0_20 = arith.constant 0 : index
    %c0_21 = arith.constant 0 : index
    %37 = vector.load %arg6[%c0_20, %c0_21] : memref<128x128xbf16, #tpu.memory_space<vmem>>, vector<128x128xbf16>
    %cst_22 = arith.constant dense<0.000000e+00> : vector<256x128xf32>
    %38 = tpu.matmul %36, %37, %cst_22 {dimension_numbers = #tpu.dot_dimension_numbers<[1], [0], [0], [1], [0, 0, 1, 1], [], []>} : vector<256x128xbf16>, vector<128x128xbf16>, vector<256x128xf32> -> vector<256x128xf32>
    %39 = vector.shape_cast %38 : vector<256x128xf32> to vector<16x16x128xf32>
    %40 = arith.addf %33, %39 : vector<16x16x128xf32>
    %c0_23 = arith.constant 0 : index
    %c0_24 = arith.constant 0 : index
    %c0_25 = arith.constant 0 : index
    %41 = vector.load %arg8[%c0_23, %c0_24, %c0_25] : memref<16x16x128xf32, #tpu.memory_space<vmem>>, vector<16x16x128xf32>
    tpu.vector_store %arg8[%c0_23, %c0_24, %c0_25], %40 {strides = array<i32>} : memref<16x16x128xf32, #tpu.memory_space<vmem>>, vector<16x16x128xf32>,
    %c0_26 = arith.constant 0 : index
    %c0_27 = arith.constant 0 : index
    %c0_28 = arith.constant 0 : index
    %42 = tpu.strided_load %arg8[%c0_26, %c0_27, %c0_28] {strides = array<i32: 2, 1, 1>} : memref<16x16x128xf32, #tpu.memory_space<vmem>>, vector<8x16x128xf32>
    %c1 = arith.constant 1 : index
    %c0_29 = arith.constant 0 : index
    %c0_30 = arith.constant 0 : index
    %43 = tpu.strided_load %arg8[%c1, %c0_29, %c0_30] {strides = array<i32: 2, 1, 1>} : memref<16x16x128xf32, #tpu.memory_space<vmem>>, vector<8x16x128xf32>
    %44 = arith.maximumf %42, %43 : vector<8x16x128xf32>
    %c0_31 = arith.constant 0 : index
    %c0_32 = arith.constant 0 : index
    %c0_33 = arith.constant 0 : index
    %45 = vector.load %arg9[%c0_31, %c0_32, %c0_33] : memref<8x16x128xf32, #tpu.memory_space<vmem>>, vector<8x16x128xf32>
    tpu.vector_store %arg9[%c0_31, %c0_32, %c0_33], %44 {strides = array<i32>} : memref<8x16x128xf32, #tpu.memory_space<vmem>>, vector<8x16x128xf32>,
    %c0_34 = arith.constant 0 : index
    %c0_35 = arith.constant 0 : index
    %c0_36 = arith.constant 0 : index
    %46 = tpu.strided_load %arg9[%c0_34, %c0_35, %c0_36] {strides = array<i32: 1, 2, 1>} : memref<8x16x128xf32, #tpu.memory_space<vmem>>, vector<8x8x128xf32>
    %c0_37 = arith.constant 0 : index
    %c1_38 = arith.constant 1 : index
    %c0_39 = arith.constant 0 : index
    %47 = tpu.strided_load %arg9[%c0_37, %c1_38, %c0_39] {strides = array<i32: 1, 2, 1>} : memref<8x16x128xf32, #tpu.memory_space<vmem>>, vector<8x8x128xf32>
    %48 = arith.maximumf %46, %47 : vector<8x8x128xf32>
    %49 = arith.truncf %48 : vector<8x8x128xf32> to vector<8x8x128xbf16>
    %c0_40 = arith.constant 0 : index
    %c0_41 = arith.constant 0 : index
    %c0_42 = arith.constant 0 : index
    %c0_43 = arith.constant 0 : index
    %50 = vector.load %arg7[%c0_40, %c0_41, %c0_42, %c0_43] : memref<1x8x8x128xbf16, #tpu.memory_space<vmem>>, vector<1x8x8x128xbf16>
    %51 = vector.shape_cast %50 : vector<1x8x8x128xbf16> to vector<8x8x128xbf16>
    %52 = vector.shape_cast %49 : vector<8x8x128xbf16> to vector<1x8x8x128xbf16>
    tpu.vector_store %arg7[%c0_40, %c0_41, %c0_42, %c0_43], %52 {strides = array<i32>} : memref<1x8x8x128xbf16, #tpu.memory_space<vmem>>, vector<1x8x8x128xbf16>,
    return
  }
  func.func @transform_0(%arg0: i32) -> (i32, i32, i32, i32) {
    %c0_i32 = arith.constant 0 : i32
    %c0_i32_0 = arith.constant 0 : i32
    %c0_i32_1 = arith.constant 0 : i32
    %c0_i32_2 = arith.constant 0 : i32
    return %arg0, %c0_i32, %c0_i32_0, %c0_i32_1 : i32, i32, i32, i32
  }
  func.func @transform_1(%arg0: i32) -> (i32, i32, i32) {
    %c0_i32 = arith.constant 0 : i32
    %c0_i32_0 = arith.constant 0 : i32
    %c0_i32_1 = arith.constant 0 : i32
    %c0_i32_2 = arith.constant 0 : i32
    return %c0_i32, %c0_i32_0, %c0_i32_1 : i32, i32, i32
  }
  func.func @transform_2(%arg0: i32) -> (i32, i32) {
    %c0_i32 = arith.constant 0 : i32
    %c0_i32_0 = arith.constant 0 : i32
    %c0_i32_1 = arith.constant 0 : i32
    return %c0_i32, %c0_i32_0 : i32, i32
  }
  func.func @transform_3(%arg0: i32) -> (i32, i32) {
    %c0_i32 = arith.constant 0 : i32
    %c0_i32_0 = arith.constant 0 : i32
    %c0_i32_1 = arith.constant 0 : i32
    return %c0_i32, %c0_i32_0 : i32, i32
  }
  func.func @transform_4(%arg0: i32) -> (i32, i32, i32, i32) {
    %c0_i32 = arith.constant 0 : i32
    %c0_i32_0 = arith.constant 0 : i32
    %c0_i32_1 = arith.constant 0 : i32
    %c0_i32_2 = arith.constant 0 : i32
    return %arg0, %c0_i32, %c0_i32_0, %c0_i32_1 : i32, i32, i32, i32
  }
  func.func @transform_5(%arg0: i32) -> (i32, i32) {
    %c0_i32 = arith.constant 0 : i32
    %c0_i32_0 = arith.constant 0 : i32
    %c0_i32_1 = arith.constant 0 : i32
    return %c0_i32, %c0_i32_0 : i32, i32
  }
  func.func @transform_6(%arg0: i32) -> (i32, i32, i32, i32) {
    %c0_i32 = arith.constant 0 : i32
    %c0_i32_0 = arith.constant 0 : i32
    %c0_i32_1 = arith.constant 0 : i32
    %c0_i32_2 = arith.constant 0 : i32
    return %arg0, %c0_i32, %c0_i32_0, %c0_i32_1 : i32, i32, i32, i32
  }
}

</mosaic_0001>

<llo_original>
// kernel: res_block_forward.7
$region0: #{res_block_forward.7}
  #allocation0 [shape = 'u32[]', space=smem, size = 0x4, offset = 0x4, fixed_abs, tag = 'smem constant byte address 0x4 - core index']
  #allocation1 [shape = 'u32[144,128]{1,0:T(1,128)}', space=vmem, size = 0x12000, scoped, tag = 'internal scratch']
  #allocation2 [shape = 'f32[16,16,128]{2,1,0:T(8,128)}', space=vmem, size = 0x20000, scoped, tag = 'scratch operand']
  #allocation3 [shape = 'f32[8,16,128]{2,1,0:T(8,128)}', space=vmem, size = 0x10000, scoped, tag = 'scratch operand']
  %s0 = inlined_call_operand.vmem [shape: bf16[2,16,16,128], index: 0, kind: input, shape index: {}]
  %s1 = inlined_call_operand.vmem [shape: f32[2,2,128], index: 1, kind: input, shape index: {}]
  %s2 = inlined_call_operand.vmem [shape: f32[1,128], index: 2, kind: input, shape index: {}]
  %s3 = inlined_call_operand.vmem [shape: f32[1,128], index: 3, kind: input, shape index: {}]
  %s4 = inlined_call_operand.vmem [shape: bf16[2,16,16,128], index: 4, kind: input, shape index: {}]
  %s5 = inlined_call_operand.vmem [shape: bf16[128,128], index: 5, kind: input, shape index: {}]
  %s6 = inlined_call_operand.vmem [shape: bf16[2,8,8,128], index: 6, kind: output, shape index: {}]
  %s7 = sld [smem:[#allocation0]]
  $region57: #{res_block_forward.7} parent=0
    _
  %s9 = ssub.s32 1, %s7
  %s10 = scalar_select 0, %s9, %s7
  loop: start=0, step=1, limit=4
  $region2: #{res_block_forward.7} parent=0 // loop_pre_header
    _
  $region3: #{res_block_forward.7} parent=0 // loop_header
    %s12 = sphi 0, %s16
    %p13 = scmp.ge.s32.totalorder %s12, 4
    %s22 = sphi 0, %s24
    %s25 = sphi 0, %s22
    %s26 = sphi 0, %s25
    %s42 = sphi 0, %s26
    %s46 = sphi 0, %s46
    %s48 = sphi 0, %s46
    %s49 = sphi 0, %s48
    %s63 = sphi 0, %s49
    %s67 = sphi 0, %s67
    %s69 = sphi 0, %s67
    %s70 = sphi 0, %s69
    %s84 = sphi 0, %s70
    %s88 = sphi 0, %s88
    %s90 = sphi 0, %s88
    %s91 = sphi 0, %s90
    %s105 = sphi 0, %s91
    %s111 = sphi 0, %s113
    %s114 = sphi 0, %s111
    %s115 = sphi 0, %s114
    %s131 = sphi 0, %s115
    %s135 = sphi 0, %s135
    %s137 = sphi 0, %s135
    %s138 = sphi 0, %s137
    %s152 = sphi 0, %s138
    %s158 = sphi 0, %s160
    %s161 = sphi 0, %s158
    %s162 = sphi 0, %s161
    %s178 = sphi 0, %s162
  $region4: #{res_block_forward.7} parent=0 // loop_header_branch
    %15 = sbr.rel (%p13) target = $region8
  $region5: #{res_block_forward.7} parent=0 // loop_body
    %s17 = ssub.s32 %s12, 1
    %s18 = ssub.s32 %s12, 2
    %s19 = sadd.s32 %s12, 1
    %s20 = ssub.s32 %s12, %s19
    %p21 = scmp.eq.s32.totalorder %s20, 0
    %s23 = sadd.s32 %s22, 1
    %s24 = scalar_select %p21, %s22, %s23
    %p27 = pneg %p21
    %p28 = scmp.eq.s32.totalorder %s12, 1
    %p29 = por %p27, %p28
    %p30 = scmp.ne.s32.totalorder %s22, %s25
    %p31 = scmp.eq.s32.totalorder %s12, 0
    %p32 = por %p30, %p31
    %p33 = scmp.ne.s32.totalorder %s22, %s25
    %p34 = scmp.eq.s32.totalorder %s17, 1
    %p35 = por %p33, %p34
    %p36 = scmp.ne.s32.totalorder %s25, %s26
    %p37 = scmp.eq.s32.totalorder %s17, 0
    %p38 = por %p36, %p37
    %p39 = scmp.ne.s32.totalorder %s25, %s26
    %p40 = scmp.eq.s32.totalorder %s18, 1
    %p41 = por %p39, %p40
    %p43 = scmp.ne.s32.totalorder %s26, %s42
    %p44 = scmp.eq.s32.totalorder %s18, 0
    %p45 = por %p43, %p44
    %s47 = sadd.s32 %s46, 1
    %p50 = scmp.eq.s32.totalorder %s12, 1
    %p51 = scmp.ne.s32.totalorder %s46, %s48
    %p52 = scmp.eq.s32.totalorder %s12, 0
    %p53 = por %p51, %p52
    %p54 = scmp.ne.s32.totalorder %s46, %s48
    %p55 = scmp.eq.s32.totalorder %s17, 1
    %p56 = por %p54, %p55
    %p57 = scmp.ne.s32.totalorder %s48, %s49
    %p58 = scmp.eq.s32.totalorder %s17, 0
    %p59 = por %p57, %p58
    %p60 = scmp.ne.s32.totalorder %s48, %s49
    %p61 = scmp.eq.s32.totalorder %s18, 1
    %p62 = por %p60, %p61
    %p64 = scmp.ne.s32.totalorder %s49, %s63
    %p65 = scmp.eq.s32.totalorder %s18, 0
    %p66 = por %p64, %p65
    %s68 = sadd.s32 %s67, 1
    %p71 = scmp.eq.s32.totalorder %s12, 1
    %p72 = scmp.ne.s32.totalorder %s67, %s69
    %p73 = scmp.eq.s32.totalorder %s12, 0
    %p74 = por %p72, %p73
    %p75 = scmp.ne.s32.totalorder %s67, %s69
    %p76 = scmp.eq.s32.totalorder %s17, 1
    %p77 = por %p75, %p76
    %p78 = scmp.ne.s32.totalorder %s69, %s70
    %p79 = scmp.eq.s32.totalorder %s17, 0
    %p80 = por %p78, %p79
    %p81 = scmp.ne.s32.totalorder %s69, %s70
    %p82 = scmp.eq.s32.totalorder %s18, 1
    %p83 = por %p81, %p82
    %p85 = scmp.ne.s32.totalorder %s70, %s84
    %p86 = scmp.eq.s32.totalorder %s18, 0
    %p87 = por %p85, %p86
    %s89 = sadd.s32 %s88, 1
    %p92 = scmp.eq.s32.totalorder %s12, 1
    %p93 = scmp.ne.s32.totalorder %s88, %s90
    %p94 = scmp.eq.s32.totalorder %s12, 0
    %p95 = por %p93, %p94
    %p96 = scmp.ne.s32.totalorder %s88, %s90
    %p97 = scmp.eq.s32.totalorder %s17, 1
    %p98 = por %p96, %p97
    %p99 = scmp.ne.s32.totalorder %s90, %s91
    %p100 = scmp.eq.s32.totalorder %s17, 0
    %p101 = por %p99, %p100
    %p102 = scmp.ne.s32.totalorder %s90, %s91
    %p103 = scmp.eq.s32.totalorder %s18, 1
    %p104 = por %p102, %p103
    %p106 = scmp.ne.s32.totalorder %s91, %s105
    %p107 = scmp.eq.s32.totalorder %s18, 0
    %p108 = por %p106, %p107
    %s109 = ssub.s32 %s12, %s19
    %p110 = scmp.eq.s32.totalorder %s109, 0
    %s112 = sadd.s32 %s111, 1
    %s113 = scalar_select %p110, %s111, %s112
    %p116 = pneg %p110
    %p117 = scmp.eq.s32.totalorder %s12, 1
    %p118 = por %p116, %p117
    %p119 = scmp.ne.s32.totalorder %s111, %s114
    %p120 = scmp.eq.s32.totalorder %s12, 0
    %p121 = por %p119, %p120
    %p122 = scmp.ne.s32.totalorder %s111, %s114
    %p123 = scmp.eq.s32.totalorder %s17, 1
    %p124 = por %p122, %p123
    %p125 = scmp.ne.s32.totalorder %s114, %s115
    %p126 = scmp.eq.s32.totalorder %s17, 0
    %p127 = por %p125, %p126
    %p128 = scmp.ne.s32.totalorder %s114, %s115
    %p129 = scmp.eq.s32.totalorder %s18, 1
    %p130 = por %p128, %p129
    %p132 = scmp.ne.s32.totalorder %s115, %s131
    %p133 = scmp.eq.s32.totalorder %s18, 0
    %p134 = por %p132, %p133
    %s136 = sadd.s32 %s135, 1
    %p139 = scmp.eq.s32.totalorder %s12, 1
    %p140 = scmp.ne.s32.totalorder %s135, %s137
    %p141 = scmp.eq.s32.totalorder %s12, 0
    %p142 = por %p140, %p141
    %p143 = scmp.ne.s32.totalorder %s135, %s137
    %p144 = scmp.eq.s32.totalorder %s17, 1
    %p145 = por %p143, %p144
    %p146 = scmp.ne.s32.totalorder %s137, %s138
    %p147 = scmp.eq.s32.totalorder %s17, 0
    %p148 = por %p146, %p147
    %p149 = scmp.ne.s32.totalorder %s137, %s138
    %p150 = scmp.eq.s32.totalorder %s18, 1
    %p151 = por %p149, %p150
    %p153 = scmp.ne.s32.totalorder %s138, %s152
    %p154 = scmp.eq.s32.totalorder %s18, 0
    %p155 = por %p153, %p154
    %s156 = ssub.s32 %s12, %s19
    %p157 = scmp.eq.s32.totalorder %s156, 0
    %s159 = sadd.s32 %s158, 1
    %s160 = scalar_select %p157, %s158, %s159
    %p163 = pneg %p157
    %p164 = scmp.eq.s32.totalorder %s12, 1
    %p165 = por %p163, %p164
    %p166 = scmp.ne.s32.totalorder %s158, %s161
    %p167 = scmp.eq.s32.totalorder %s12, 0
    %p168 = por %p166, %p167
    %p169 = scmp.ne.s32.totalorder %s158, %s161
    %p170 = scmp.eq.s32.totalorder %s17, 1
    %p171 = por %p169, %p170
    %p172 = scmp.ne.s32.totalorder %s161, %s162
    %p173 = scmp.eq.s32.totalorder %s17, 0
    %p174 = por %p172, %p173
    %p175 = scmp.ne.s32.totalorder %s161, %s162
    %p176 = scmp.eq.s32.totalorder %s18, 1
    %p177 = por %p175, %p176
    %p179 = scmp.ne.s32.totalorder %s162, %s178
    %p180 = scmp.eq.s32.totalorder %s18, 0
    %p181 = por %p179, %p180
    %p182 = scmp.le.s32.totalorder 1, %s12
    %p183 = scmp.lt.s32.totalorder %s12, 3
    %p184 = pnand %p182, %p183
    %p185 = pneg %p184
    // Predicated region
    $region9: #{res_block_forward.7} parent=5 // pred_check
      _
    $region10: #{res_block_forward.7} parent=5 // pred_check_branch
      %187 = sbr.rel (%p184) target = $region12
    $region11: #{res_block_forward.7} parent=5 // pred_region
      %s188 = ssub.s32 %s12, 1
      // Predicated region
      $region13: #{res_block_forward.7} parent=11 // pred_check
        %p189 = pneg %p59
      $region14: #{res_block_forward.7} parent=11 // pred_check_branch
        %191 = sbr.rel (%p189) target = $region16
      $region15: #{res_block_forward.7} parent=11 // pred_region
        _
      $region16: #{res_block_forward.7} parent=11 // pred_fallthru
        _
      // Predicated region
      $region17: #{res_block_forward.7} parent=11 // pred_check
        %p192 = pneg %p80
      $region18: #{res_block_forward.7} parent=11 // pred_check_branch
        %194 = sbr.rel (%p192) target = $region20
      $region19: #{res_block_forward.7} parent=11 // pred_region
        _
      $region20: #{res_block_forward.7} parent=11 // pred_fallthru
        _
      // Predicated region
      $region21: #{res_block_forward.7} parent=11 // pred_check
        %p195 = pneg %p101
      $region22: #{res_block_forward.7} parent=11 // pred_check_branch
        %197 = sbr.rel (%p195) target = $region24
      $region23: #{res_block_forward.7} parent=11 // pred_region
        _
      $region24: #{res_block_forward.7} parent=11 // pred_fallthru
        _
      // Predicated region
      $region25: #{res_block_forward.7} parent=11 // pred_check
        %p198 = pneg %p148
      $region26: #{res_block_forward.7} parent=11 // pred_check_branch
        %200 = sbr.rel (%p198) target = $region28
      $region27: #{res_block_forward.7} parent=11 // pred_region
        _
      $region28: #{res_block_forward.7} parent=11 // pred_fallthru
        _
    $region12: #{res_block_forward.7} parent=5 // pred_fallthru
      _
    %p201 = scmp.lt.s32.totalorder %s12, 2
    // Predicated region
    $region29: #{res_block_forward.7} parent=5 // pred_check
      %p202 = pneg %p201
    $region30: #{res_block_forward.7} parent=5 // pred_check_branch
      %204 = sbr.rel (%p202) target = $region32
    $region31: #{res_block_forward.7} parent=5 // pred_region
      // Predicated region
      $region33: #{res_block_forward.7} parent=31 // pred_check
        %p205 = pneg %p32
      $region34: #{res_block_forward.7} parent=31 // pred_check_branch
        %207 = sbr.rel (%p205) target = $region36
      $region35: #{res_block_forward.7} parent=31 // pred_region
        %p208 = scmp.lt.s32.totalorder %s12, 1
        %s209 = scalar_select %p208, %s12, 1
        %s210 = smul.addr %s209, 32
        %s211 = smul.addr %s210, 4
        %s212 = scalar_lea.vmem %s0, %s211
      $region36: #{res_block_forward.7} parent=31 // pred_fallthru
        _
      // Predicated region
      $region37: #{res_block_forward.7} parent=31 // pred_check
        %p213 = pneg %p121
      $region38: #{res_block_forward.7} parent=31 // pred_check_branch
        %215 = sbr.rel (%p213) target = $region40
      $region39: #{res_block_forward.7} parent=31 // pred_region
        %p216 = scmp.lt.s32.totalorder %s12, 1
        %s217 = scalar_select %p216, %s12, 1
        %s218 = smul.addr %s217, 32
        %s219 = smul.addr %s218, 4
        %s220 = scalar_lea.vmem %s4, %s219
      $region40: #{res_block_forward.7} parent=31 // pred_fallthru
        _
    $region32: #{res_block_forward.7} parent=5 // pred_fallthru
      _
    %p221 = scmp.le.s32.totalorder 1, %s12
    %p222 = scmp.lt.s32.totalorder %s12, 3
    %p223 = pnand %p221, %p222
    %p224 = pneg %p223
    // Predicated region
    $region41: #{res_block_forward.7} parent=5 // pred_check
      _
    $region42: #{res_block_forward.7} parent=5 // pred_check_branch
      %226 = sbr.rel (%p223) target = $region44
    $region43: #{res_block_forward.7} parent=5 // pred_region
      %s227 = ssub.s32 %s12, 1
      %p228 = scmp.lt.s32.totalorder %s17, 1
      %s229 = scalar_select %p228, %s17, 1
      %s230 = smul.addr %s229, 32
      %s231 = smul.addr %s230, 4
      %s232 = scalar_lea.vmem %s0, %s231
      %p233 = pneg %p38
      %p234 = pneg %p35
      %p235 = pneg %p59
      %p236 = pneg %p56
      %p237 = pneg %p80
      %p238 = pneg %p77
      %p239 = pneg %p101
      %p240 = pneg %p98
      %p241 = scmp.lt.s32.totalorder %s17, 1
      %s242 = scalar_select %p241, %s17, 1
      %s243 = smul.addr %s242, 32
      %s244 = smul.addr %s243, 4
      %s245 = scalar_lea.vmem %s4, %s244
      %p246 = pneg %p127
      %p247 = pneg %p124
      %p248 = pneg %p148
      %p249 = pneg %p145
      %p250 = pneg %p174
      %p251 = pneg %p171
      %p252 = scmp.lt.s32.totalorder %s17, 1
      %s253 = scalar_select %p252, %s17, 1
      %s254 = smul.addr %s253, 8
      %s255 = smul.addr %s254, 4
      %s256 = scalar_lea.vmem %s6, %s255
      %p257 = scmp.lt.s32.totalorder %s17, 1
      %s258 = scalar_select %p257, %s17, 1
      %s259 = smul.addr %s258, 32
      %s260 = smul.addr %s259, 4
      %s261 = scalar_lea.vmem %s0, %s260
      %p262 = scmp.lt.s32.totalorder %s17, 1
      %s263 = scalar_select %p262, %s17, 1
      %s264 = smul.addr %s263, 32
      %s265 = smul.addr %s264, 4
      %s266 = scalar_lea.vmem %s4, %s265
      %p267 = scmp.lt.s32.totalorder %s17, 1
      %s268 = scalar_select %p267, %s17, 1
      %s269 = smul.addr %s268, 8
      %s270 = smul.addr %s269, 4
      %s271 = scalar_lea.vmem %s6, %s270
      %v273 = vld [vmem:[%s1] sm:$0x3]
      %v274 = vld [vmem:[%s1 + $0x2] sm:$0x3]
      %vm275 = vcmask 1041408
      %v276 = vsel %vm275, %v273, 0.0
      %v277 = vsel %vm275, %v274, 0.0
      %v278 = vadd.f32 %v276, %v277
      %v279 = vmul.f32 %v278, 0.001953125
      %v280 = vmul.f32 %v279, %v279
      %v282 = vrot.slane %v280, 7
      %v284 = vsub.f32 %v279, %v282
      %v285 = vmax.f32 %v284, 0.0
      %v286 = vld [vmem:[%s2] sm:$0x1]
      %v287 = vadd.f32 %v285, 1e-05
      %v288 = vrsqrt.pop %v287
      %v291 = vunpack.c.l.s4 1966171168
      %v292 = vunpack.c.0.s8 %v291
      %v293 = vlaneseq
      %v294 = vshrl.u32 %v293, 7
      %v295 = vsub.s32 %v292, %v294
      %v296 = vrot.slane %v288, %v295
      %v297 = vcombine.high %v296, %v296
      %v299 = vunpack.c.l.s4 1966171168
      %v300 = vunpack.c.0.s8 %v299
      %v301 = vlaneseq
      %v302 = vshrl.u32 %v301, 7
      %v303 = vsub.s32 %v300, %v302
      %v304 = vrot.slane %v297, %v303
      %v306 = vmul.f32 %v286, %v304
      %v307 = vld [vmem:[%s3] sm:$0x1]
      %v308 = vmul.f32 %v279, %v306
      %v309 = vsub.f32 %v307, %v308
      %v310 = vld [vmem:[%s261] sm:$0xf]
      %v311 = vld [vmem:[%s261 + $0x4] sm:$0xf]
      %v312 = vld [vmem:[%s261 + $0x8] sm:$0xf]
      %v313 = vld [vmem:[%s261 + $0xc] sm:$0xf]
      %v314 = vld [vmem:[%s261 + $0x10] sm:$0xf]
      %v315 = vld [vmem:[%s261 + $0x14] sm:$0xf]
      %v316 = vld [vmem:[%s261 + $0x18] sm:$0xf]
      %v317 = vld [vmem:[%s261 + $0x1c] sm:$0xf]
      %v318 = vld [vmem:[%s261 + $0x20] sm:$0xf]
      %v319 = vld [vmem:[%s261 + $0x24] sm:$0xf]
      %v320 = vld [vmem:[%s261 + $0x28] sm:$0xf]
      %v321 = vld [vmem:[%s261 + $0x2c] sm:$0xf]
      %v322 = vld [vmem:[%s261 + $0x30] sm:$0xf]
      %v323 = vld [vmem:[%s261 + $0x34] sm:$0xf]
      %v324 = vld [vmem:[%s261 + $0x38] sm:$0xf]
      %v325 = vld [vmem:[%s261 + $0x3c] sm:$0xf]
      %v326 = vld [vmem:[%s261 + $0x40] sm:$0xf]
      %v327 = vld [vmem:[%s261 + $0x44] sm:$0xf]
      %v328 = vld [vmem:[%s261 + $0x48] sm:$0xf]
      %v329 = vld [vmem:[%s261 + $0x4c] sm:$0xf]
      %v330 = vld [vmem:[%s261 + $0x50] sm:$0xf]
      %v331 = vld [vmem:[%s261 + $0x54] sm:$0xf]
      %v332 = vld [vmem:[%s261 + $0x58] sm:$0xf]
      %v333 = vld [vmem:[%s261 + $0x5c] sm:$0xf]
      %v334 = vld [vmem:[%s261 + $0x60] sm:$0xf]
      %v335 = vld [vmem:[%s261 + $0x64] sm:$0xf]
      %v336 = vld [vmem:[%s261 + $0x68] sm:$0xf]
      %v337 = vld [vmem:[%s261 + $0x6c] sm:$0xf]
      %v338 = vld [vmem:[%s261 + $0x70] sm:$0xf]
      %v339 = vld [vmem:[%s261 + $0x74] sm:$0xf]
      %v340 = vld [vmem:[%s261 + $0x78] sm:$0xf]
      %v341 = vld [vmem:[%s261 + $0x7c] sm:$0xf]
      %v342 = vunpack.c.l.bf16 %v310
      %v343 = vunpack.c.l.bf16 %v311
      %v344 = vunpack.c.l.bf16 %v312
      %v345 = vunpack.c.l.bf16 %v313
      %v346 = vunpack.c.l.bf16 %v314
      %v347 = vunpack.c.l.bf16 %v315
      %v348 = vunpack.c.l.bf16 %v316
      %v349 = vunpack.c.l.bf16 %v317
      %v350 = vunpack.c.l.bf16 %v318
      %v351 = vunpack.c.l.bf16 %v319
      %v352 = vunpack.c.l.bf16 %v320
      %v353 = vunpack.c.l.bf16 %v321
      %v354 = vunpack.c.l.bf16 %v322
      %v355 = vunpack.c.l.bf16 %v323
      %v356 = vunpack.c.l.bf16 %v324
      %v357 = vunpack.c.l.bf16 %v325
      %v358 = vunpack.c.l.bf16 %v326
      %v359 = vunpack.c.l.bf16 %v327
      %v360 = vunpack.c.l.bf16 %v328
      %v361 = vunpack.c.l.bf16 %v329
      %v362 = vunpack.c.l.bf16 %v330
      %v363 = vunpack.c.l.bf16 %v331
      %v364 = vunpack.c.l.bf16 %v332
      %v365 = vunpack.c.l.bf16 %v333
      %v366 = vunpack.c.l.bf16 %v334
      %v367 = vunpack.c.l.bf16 %v335
      %v368 = vunpack.c.l.bf16 %v336
      %v369 = vunpack.c.l.bf16 %v337
      %v370 = vunpack.c.l.bf16 %v338
      %v371 = vunpack.c.l.bf16 %v339
      %v372 = vunpack.c.l.bf16 %v340
      %v373 = vunpack.c.l.bf16 %v341
      %v375 = vlaneseq
      %v376 = vshrl.u32 %v375, 7
      %v377 = vsub.s32 0, %v376
      %v378 = vrot.slane %v306, %v377
      %v380 = vmul.f32 %v342, %v378
      %v381 = vmul.f32 %v343, %v378
      %v382 = vmul.f32 %v344, %v378
      %v383 = vmul.f32 %v345, %v378
      %v384 = vmul.f32 %v346, %v378
      %v385 = vmul.f32 %v347, %v378
      %v386 = vmul.f32 %v348, %v378
      %v387 = vmul.f32 %v349, %v378
      %v388 = vmul.f32 %v350, %v378
      %v389 = vmul.f32 %v351, %v378
      %v390 = vmul.f32 %v352, %v378
      %v391 = vmul.f32 %v353, %v378
      %v392 = vmul.f32 %v354, %v378
      %v393 = vmul.f32 %v355, %v378
      %v394 = vmul.f32 %v356, %v378
      %v395 = vmul.f32 %v357, %v378
      %v396 = vmul.f32 %v358, %v378
      %v397 = vmul.f32 %v359, %v378
      %v398 = vmul.f32 %v360, %v378
      %v399 = vmul.f32 %v361, %v378
      %v400 = vmul.f32 %v362, %v378
      %v401 = vmul.f32 %v363, %v378
      %v402 = vmul.f32 %v364, %v378
      %v403 = vmul.f32 %v365, %v378
      %v404 = vmul.f32 %v366, %v378
      %v405 = vmul.f32 %v367, %v378
      %v406 = vmul.f32 %v368, %v378
      %v407 = vmul.f32 %v369, %v378
      %v408 = vmul.f32 %v370, %v378
      %v409 = vmul.f32 %v371, %v378
      %v410 = vmul.f32 %v372, %v378
      %v411 = vmul.f32 %v373, %v378
      %v413 = vlaneseq
      %v414 = vshrl.u32 %v413, 7
      %v415 = vsub.s32 0, %v414
      %v416 = vrot.slane %v309, %v415
      %v418 = vadd.f32 %v380, %v416
      %v419 = vadd.f32 %v381, %v416
      %v420 = vadd.f32 %v382, %v416
      %v421 = vadd.f32 %v383, %v416
      %v422 = vadd.f32 %v384, %v416
      %v423 = vadd.f32 %v385, %v416
      %v424 = vadd.f32 %v386, %v416
      %v425 = vadd.f32 %v387, %v416
      %v426 = vadd.f32 %v388, %v416
      %v427 = vadd.f32 %v389, %v416
      %v428 = vadd.f32 %v390, %v416
      %v429 = vadd.f32 %v391, %v416
      %v430 = vadd.f32 %v392, %v416
      %v431 = vadd.f32 %v393, %v416
      %v432 = vadd.f32 %v394, %v416
      %v433 = vadd.f32 %v395, %v416
      %v434 = vadd.f32 %v396, %v416
      %v435 = vadd.f32 %v397, %v416
      %v436 = vadd.f32 %v398, %v416
      %v437 = vadd.f32 %v399, %v416
      %v438 = vadd.f32 %v400, %v416
      %v439 = vadd.f32 %v401, %v416
      %v440 = vadd.f32 %v402, %v416
      %v441 = vadd.f32 %v403, %v416
      %v442 = vadd.f32 %v404, %v416
      %v443 = vadd.f32 %v405, %v416
      %v444 = vadd.f32 %v406, %v416
      %v445 = vadd.f32 %v407, %v416
      %v446 = vadd.f32 %v408, %v416
      %v447 = vadd.f32 %v409, %v416
      %v448 = vadd.f32 %v410, %v416
      %v449 = vadd.f32 %v411, %v416
      %vm450 = vcmp.ge.f32.partialorder %v418, 0.0
      %vm451 = vcmp.ge.f32.partialorder %v419, 0.0
      %vm452 = vcmp.ge.f32.partialorder %v420, 0.0
      %vm453 = vcmp.ge.f32.partialorder %v421, 0.0
      %vm454 = vcmp.ge.f32.partialorder %v422, 0.0
      %vm455 = vcmp.ge.f32.partialorder %v423, 0.0
      %vm456 = vcmp.ge.f32.partialorder %v424, 0.0
      %vm457 = vcmp.ge.f32.partialorder %v425, 0.0
      %vm458 = vcmp.ge.f32.partialorder %v426, 0.0
      %vm459 = vcmp.ge.f32.partialorder %v427, 0.0
      %vm460 = vcmp.ge.f32.partialorder %v428, 0.0
      %vm461 = vcmp.ge.f32.partialorder %v429, 0.0
      %vm462 = vcmp.ge.f32.partialorder %v430, 0.0
      %vm463 = vcmp.ge.f32.partialorder %v431, 0.0
      %vm464 = vcmp.ge.f32.partialorder %v432, 0.0
      %vm465 = vcmp.ge.f32.partialorder %v433, 0.0
      %vm466 = vcmp.ge.f32.partialorder %v434, 0.0
      %vm467 = vcmp.ge.f32.partialorder %v435, 0.0
      %vm468 = vcmp.ge.f32.partialorder %v436, 0.0
      %vm469 = vcmp.ge.f32.partialorder %v437, 0.0
      %vm470 = vcmp.ge.f32.partialorder %v438, 0.0
      %vm471 = vcmp.ge.f32.partialorder %v439, 0.0
      %vm472 = vcmp.ge.f32.partialorder %v440, 0.0
      %vm473 = vcmp.ge.f32.partialorder %v441, 0.0
      %vm474 = vcmp.ge.f32.partialorder %v442, 0.0
      %vm475 = vcmp.ge.f32.partialorder %v443, 0.0
      %vm476 = vcmp.ge.f32.partialorder %v444, 0.0
      %vm477 = vcmp.ge.f32.partialorder %v445, 0.0
      %vm478 = vcmp.ge.f32.partialorder %v446, 0.0
      %vm479 = vcmp.ge.f32.partialorder %v447, 0.0
      %vm480 = vcmp.ge.f32.partialorder %v448, 0.0
      %vm481 = vcmp.ge.f32.partialorder %v449, 0.0
      %v482 = vmul.f32 %v418, 0.01
      %v483 = vmul.f32 %v419, 0.01
      %v484 = vmul.f32 %v420, 0.01
      %v485 = vmul.f32 %v421, 0.01
      %v486 = vmul.f32 %v422, 0.01
      %v487 = vmul.f32 %v423, 0.01
      %v488 = vmul.f32 %v424, 0.01
      %v489 = vmul.f32 %v425, 0.01
      %v490 = vmul.f32 %v426, 0.01
      %v491 = vmul.f32 %v427, 0.01
      %v492 = vmul.f32 %v428, 0.01
      %v493 = vmul.f32 %v429, 0.01
      %v494 = vmul.f32 %v430, 0.01
      %v495 = vmul.f32 %v431, 0.01
      %v496 = vmul.f32 %v432, 0.01
      %v497 = vmul.f32 %v433, 0.01
      %v498 = vmul.f32 %v434, 0.01
      %v499 = vmul.f32 %v435, 0.01
      %v500 = vmul.f32 %v436, 0.01
      %v501 = vmul.f32 %v437, 0.01
      %v502 = vmul.f32 %v438, 0.01
      %v503 = vmul.f32 %v439, 0.01
      %v504 = vmul.f32 %v440, 0.01
      %v505 = vmul.f32 %v441, 0.01
      %v506 = vmul.f32 %v442, 0.01
      %v507 = vmul.f32 %v443, 0.01
      %v508 = vmul.f32 %v444, 0.01
      %v509 = vmul.f32 %v445, 0.01
      %v510 = vmul.f32 %v446, 0.01
      %v511 = vmul.f32 %v447, 0.01
      %v512 = vmul.f32 %v448, 0.01
      %v513 = vmul.f32 %v449, 0.01
      %v514 = vsel %vm450, %v418, %v482
      %v515 = vsel %vm451, %v419, %v483
      %v516 = vsel %vm452, %v420, %v484
      %v517 = vsel %vm453, %v421, %v485
      %v518 = vsel %vm454, %v422, %v486
      %v519 = vsel %vm455, %v423, %v487
      %v520 = vsel %vm456, %v424, %v488
      %v521 = vsel %vm457, %v425, %v489
      %v522 = vsel %vm458, %v426, %v490
      %v523 = vsel %vm459, %v427, %v491
      %v524 = vsel %vm460, %v428, %v492
      %v525 = vsel %vm461, %v429, %v493
      %v526 = vsel %vm462, %v430, %v494
      %v527 = vsel %vm463, %v431, %v495
      %v528 = vsel %vm464, %v432, %v496
      %v529 = vsel %vm465, %v433, %v497
      %v530 = vsel %vm466, %v434, %v498
      %v531 = vsel %vm467, %v435, %v499
      %v532 = vsel %vm468, %v436, %v500
      %v533 = vsel %vm469, %v437, %v501
      %v534 = vsel %vm470, %v438, %v502
      %v535 = vsel %vm471, %v439, %v503
      %v536 = vsel %vm472, %v440, %v504
      %v537 = vsel %vm473, %v441, %v505
      %v538 = vsel %vm474, %v442, %v506
      %v539 = vsel %vm475, %v443, %v507
      %v540 = vsel %vm476, %v444, %v508
      %v541 = vsel %vm477, %v445, %v509
      %v542 = vsel %vm478, %v446, %v510
      %v543 = vsel %vm479, %v447, %v511
      %v544 = vsel %vm480, %v448, %v512
      %v545 = vsel %vm481, %v449, %v513
      %v546 = vld [vmem:[%s266] sm:$0xf]
      %v547 = vld [vmem:[%s266 + $0x4] sm:$0xf]
      %v548 = vld [vmem:[%s266 + $0x8] sm:$0xf]
      %v549 = vld [vmem:[%s266 + $0xc] sm:$0xf]
      %v550 = vld [vmem:[%s266 + $0x10] sm:$0xf]
      %v551 = vld [vmem:[%s266 + $0x14] sm:$0xf]
      %v552 = vld [vmem:[%s266 + $0x18] sm:$0xf]
      %v553 = vld [vmem:[%s266 + $0x1c] sm:$0xf]
      %v554 = vld [vmem:[%s266 + $0x20] sm:$0xf]
      %v555 = vld [vmem:[%s266 + $0x24] sm:$0xf]
      %v556 = vld [vmem:[%s266 + $0x28] sm:$0xf]
      %v557 = vld [vmem:[%s266 + $0x2c] sm:$0xf]
      %v558 = vld [vmem:[%s266 + $0x30] sm:$0xf]
      %v559 = vld [vmem:[%s266 + $0x34] sm:$0xf]
      %v560 = vld [vmem:[%s266 + $0x38] sm:$0xf]
      %v561 = vld [vmem:[%s266 + $0x3c] sm:$0xf]
      %v562 = vld [vmem:[%s266 + $0x40] sm:$0xf]
      %v563 = vld [vmem:[%s266 + $0x44] sm:$0xf]
      %v564 = vld [vmem:[%s266 + $0x48] sm:$0xf]
      %v565 = vld [vmem:[%s266 + $0x4c] sm:$0xf]
      %v566 = vld [vmem:[%s266 + $0x50] sm:$0xf]
      %v567 = vld [vmem:[%s266 + $0x54] sm:$0xf]
      %v568 = vld [vmem:[%s266 + $0x58] sm:$0xf]
      %v569 = vld [vmem:[%s266 + $0x5c] sm:$0xf]
      %v570 = vld [vmem:[%s266 + $0x60] sm:$0xf]
      %v571 = vld [vmem:[%s266 + $0x64] sm:$0xf]
      %v572 = vld [vmem:[%s266 + $0x68] sm:$0xf]
      %v573 = vld [vmem:[%s266 + $0x6c] sm:$0xf]
      %v574 = vld [vmem:[%s266 + $0x70] sm:$0xf]
      %v575 = vld [vmem:[%s266 + $0x74] sm:$0xf]
      %v576 = vld [vmem:[%s266 + $0x78] sm:$0xf]
      %v577 = vld [vmem:[%s266 + $0x7c] sm:$0xf]
      %v578 = vld [vmem:[%s5] sm:$0xf]
      %v579 = vld [vmem:[%s5 + $0x4] sm:$0xf]
      %v580 = vld [vmem:[%s5 + $0x8] sm:$0xf]
      %v581 = vld [vmem:[%s5 + $0xc] sm:$0xf]
      %v582 = vld [vmem:[%s5 + $0x10] sm:$0xf]
      %v583 = vld [vmem:[%s5 + $0x14] sm:$0xf]
      %v584 = vld [vmem:[%s5 + $0x18] sm:$0xf]
      %v585 = vld [vmem:[%s5 + $0x1c] sm:$0xf]
      %v586 = vld [vmem:[%s5 + $0x20] sm:$0xf]
      %v587 = vld [vmem:[%s5 + $0x24] sm:$0xf]
      %v588 = vld [vmem:[%s5 + $0x28] sm:$0xf]
      %v589 = vld [vmem:[%s5 + $0x2c] sm:$0xf]
      %v590 = vld [vmem:[%s5 + $0x30] sm:$0xf]
      %v591 = vld [vmem:[%s5 + $0x34] sm:$0xf]
      %v592 = vld [vmem:[%s5 + $0x38] sm:$0xf]
      %v593 = vld [vmem:[%s5 + $0x3c] sm:$0xf]
      %v626 = vunpack.c.l.b16 %v546
      %v627 = vunpack.c.l.b16 %v547
      %v628 = vunpack.c.l.b16 %v548
      %v629 = vunpack.c.l.b16 %v549
      %v630 = vunpack.c.l.b16 %v550
      %v631 = vunpack.c.l.b16 %v551
      %v632 = vunpack.c.l.b16 %v552
      %v633 = vunpack.c.l.b16 %v553
      %v634 = vunpack.c.l.b16 %v554
      %v635 = vunpack.c.l.b16 %v555
      %v636 = vunpack.c.l.b16 %v556
      %v637 = vunpack.c.l.b16 %v557
      %v638 = vunpack.c.l.b16 %v558
      %v639 = vunpack.c.l.b16 %v559
      %v640 = vunpack.c.l.b16 %v560
      %v641 = vunpack.c.l.b16 %v561
      %v642 = vunpack.c.l.b16 %v562
      %v643 = vunpack.c.l.b16 %v563
      %v644 = vunpack.c.l.b16 %v564
      %v645 = vunpack.c.l.b16 %v565
      %v646 = vunpack.c.l.b16 %v566
      %v647 = vunpack.c.l.b16 %v567
      %v648 = vunpack.c.l.b16 %v568
      %v649 = vunpack.c.l.b16 %v569
      %v650 = vunpack.c.l.b16 %v570
      %v651 = vunpack.c.l.b16 %v571
      %v652 = vunpack.c.l.b16 %v572
      %v653 = vunpack.c.l.b16 %v573
      %v654 = vunpack.c.l.b16 %v574
      %v655 = vunpack.c.l.b16 %v575
      %v656 = vunpack.c.l.b16 %v576
      %v657 = vunpack.c.l.b16 %v577
      %v658 = vpack.c.b16 %v627, %v626
      %v659 = vpack.c.b16 %v629, %v628
      %v660 = vpack.c.b16 %v631, %v630
      %v661 = vpack.c.b16 %v633, %v632
      %v662 = vpack.c.b16 %v635, %v634
      %v663 = vpack.c.b16 %v637, %v636
      %v664 = vpack.c.b16 %v639, %v638
      %v665 = vpack.c.b16 %v641, %v640
      %v666 = vpack.c.b16 %v643, %v642
      %v667 = vpack.c.b16 %v645, %v644
      %v668 = vpack.c.b16 %v647, %v646
      %v669 = vpack.c.b16 %v649, %v648
      %v670 = vpack.c.b16 %v651, %v650
      %v671 = vpack.c.b16 %v653, %v652
      %v672 = vpack.c.b16 %v655, %v654
      %v673 = vpack.c.b16 %v657, %v656
      %v706 = vunpack.c.l.b16 %v578
      %v707 = vunpack.c.l.b16 %v579
      %v708 = vunpack.c.l.b16 %v580
      %v709 = vunpack.c.l.b16 %v581
      %v710 = vunpack.c.l.b16 %v582
      %v711 = vunpack.c.l.b16 %v583
      %v712 = vunpack.c.l.b16 %v584
      %v713 = vunpack.c.l.b16 %v585
      %v714 = vunpack.c.l.b16 %v586
      %v715 = vunpack.c.l.b16 %v587
      %v716 = vunpack.c.l.b16 %v588
      %v717 = vunpack.c.l.b16 %v589
      %v718 = vunpack.c.l.b16 %v590
      %v719 = vunpack.c.l.b16 %v591
      %v720 = vunpack.c.l.b16 %v592
      %v721 = vunpack.c.l.b16 %v593
      %v722 = vpack.c.b16 %v707, %v706
      %v723 = vpack.c.b16 %v709, %v708
      %v724 = vpack.c.b16 %v711, %v710
      %v725 = vpack.c.b16 %v713, %v712
      %v726 = vpack.c.b16 %v715, %v714
      %v727 = vpack.c.b16 %v717, %v716
      %v728 = vpack.c.b16 %v719, %v718
      %v729 = vpack.c.b16 %v721, %v720
      %738 = vmatprep.subr.bf16.mxu0 0
      %739 = vmatpush1.bf16.msra.mxu0 %v722
      %740 = vmatprep.subr.bf16.mxu0 0
      %741 = vmatpush1.bf16.msra.mxu0 %v723
      %742 = vmatprep.subr.bf16.mxu0 0
      %743 = vmatpush1.bf16.msra.mxu0 %v724
      %744 = vmatprep.subr.bf16.mxu0 0
      %745 = vmatpush1.bf16.msra.mxu0 %v725
      %746 = vmatprep.subr.bf16.mxu0 0
      %747 = vmatpush1.bf16.msra.mxu0 %v726
      %748 = vmatprep.subr.bf16.mxu0 0
      %749 = vmatpush1.bf16.msra.mxu0 %v727
      %750 = vmatprep.subr.bf16.mxu0 0
      %751 = vmatpush1.bf16.msra.mxu0 %v728
      %752 = vmatprep.subr.bf16.mxu0 0
      %753 = vmatpush1.bf16.msra.mxu0 %v729
      %754 = vmatprep.subr.bf16.mxu0 0
      %755 = vmatpush1.bf16.msra.mxu0 0
      %756 = vmatprep.subr.bf16.mxu0 0
      %757 = vmatpush1.bf16.msra.mxu0 0
      %758 = vmatprep.subr.bf16.mxu0 0
      %759 = vmatpush1.bf16.msra.mxu0 0
      %760 = vmatprep.subr.bf16.mxu0 0
      %761 = vmatpush1.bf16.msra.mxu0 0
      %762 = vmatprep.subr.bf16.mxu0 0
      %763 = vmatpush1.bf16.msra.mxu0 0
      %764 = vmatprep.subr.bf16.mxu0 0
      %765 = vmatpush1.bf16.msra.mxu0 0
      %766 = vmatprep.subr.bf16.mxu0 0
      %767 = vmatpush1.bf16.msra.mxu0 0
      %768 = vmatprep.subr.bf16.mxu0 0
      %769 = vmatpush1.bf16.msra.mxu0 0
      %770 = vmatprep.mubr.bf16.mxu0 0
      %771 = vmatmul.mubr.bf16.gmra.mrb[0].mxu0 %v658
      %v772 = vpop.f32.mrb[0].mxu0
      %v773 = vadd.f32 0.0, %v772
      %v774 = vpop.f32.mrb[0].mxu0
      %v775 = vpop.f32.mrb[0].mxu0
      %v776 = vadd.f32 0.0, %v775
      %v777 = vpop.f32.mrb[0].mxu0
      %778 = vmatprep.mubr.bf16.mxu0 0
      %779 = vmatmul.mubr.bf16.gmra.mrb[0].mxu0 %v659
      %v780 = vpop.f32.mrb[0].mxu0
      %v781 = vadd.f32 0.0, %v780
      %v782 = vpop.f32.mrb[0].mxu0
      %v783 = vpop.f32.mrb[0].mxu0
      %v784 = vadd.f32 0.0, %v783
      %v785 = vpop.f32.mrb[0].mxu0
      %786 = vmatprep.mubr.bf16.mxu0 0
      %787 = vmatmul.mubr.bf16.gmra.mrb[0].mxu0 %v660
      %v788 = vpop.f32.mrb[0].mxu0
      %v789 = vadd.f32 0.0, %v788
      %v790 = vpop.f32.mrb[0].mxu0
      %v791 = vpop.f32.mrb[0].mxu0
      %v792 = vadd.f32 0.0, %v791
      %v793 = vpop.f32.mrb[0].mxu0
      %794 = vmatprep.mubr.bf16.mxu0 0
      %795 = vmatmul.mubr.bf16.gmra.mrb[0].mxu0 %v661
      %v796 = vpop.f32.mrb[0].mxu0
      %v797 = vadd.f32 0.0, %v796
      %v798 = vpop.f32.mrb[0].mxu0
      %v799 = vpop.f32.mrb[0].mxu0
      %v800 = vadd.f32 0.0, %v799
      %v801 = vpop.f32.mrb[0].mxu0
      %802 = vmatprep.mubr.bf16.mxu0 0
      %803 = vmatmul.mubr.bf16.gmra.mrb[0].mxu0 %v662
      %v804 = vpop.f32.mrb[0].mxu0
      %v805 = vadd.f32 0.0, %v804
      %v806 = vpop.f32.mrb[0].mxu0
      %v807 = vpop.f32.mrb[0].mxu0
      %v808 = vadd.f32 0.0, %v807
      %v809 = vpop.f32.mrb[0].mxu0
      %810 = vmatprep.mubr.bf16.mxu0 0
      %811 = vmatmul.mubr.bf16.gmra.mrb[0].mxu0 %v663
      %v812 = vpop.f32.mrb[0].mxu0
      %v813 = vadd.f32 0.0, %v812
      %v814 = vpop.f32.mrb[0].mxu0
      %v815 = vpop.f32.mrb[0].mxu0
      %v816 = vadd.f32 0.0, %v815
      %v817 = vpop.f32.mrb[0].mxu0
      %818 = vmatprep.mubr.bf16.mxu0 0
      %819 = vmatmul.mubr.bf16.gmra.mrb[0].mxu0 %v664
      %v820 = vpop.f32.mrb[0].mxu0
      %v821 = vadd.f32 0.0, %v820
      %v822 = vpop.f32.mrb[0].mxu0
      %v823 = vpop.f32.mrb[0].mxu0
      %v824 = vadd.f32 0.0, %v823
      %v825 = vpop.f32.mrb[0].mxu0
      %826 = vmatprep.mubr.bf16.mxu0 0
      %827 = vmatmul.mubr.bf16.gmra.mrb[0].mxu0 %v665
      %v828 = vpop.f32.mrb[0].mxu0
      %v829 = vadd.f32 0.0, %v828
      %v830 = vpop.f32.mrb[0].mxu0
      %v831 = vpop.f32.mrb[0].mxu0
      %v832 = vadd.f32 0.0, %v831
      %v833 = vpop.f32.mrb[0].mxu0
      %834 = vmatprep.mubr.bf16.mxu0 0
      %835 = vmatmul.mubr.bf16.gmra.mrb[0].mxu0 %v666
      %v836 = vpop.f32.mrb[0].mxu0
      %v837 = vadd.f32 0.0, %v836
      %v838 = vpop.f32.mrb[0].mxu0
      %v839 = vpop.f32.mrb[0].mxu0
      %v840 = vadd.f32 0.0, %v839
      %v841 = vpop.f32.mrb[0].mxu0
      %842 = vmatprep.mubr.bf16.mxu0 0
      %843 = vmatmul.mubr.bf16.gmra.mrb[0].mxu0 %v667
      %v844 = vpop.f32.mrb[0].mxu0
      %v845 = vadd.f32 0.0, %v844
      %v846 = vpop.f32.mrb[0].mxu0
      %v847 = vpop.f32.mrb[0].mxu0
      %v848 = vadd.f32 0.0, %v847
      %v849 = vpop.f32.mrb[0].mxu0
      %850 = vmatprep.mubr.bf16.mxu0 0
      %851 = vmatmul.mubr.bf16.gmra.mrb[0].mxu0 %v668
      %v852 = vpop.f32.mrb[0].mxu0
      %v853 = vadd.f32 0.0, %v852
      %v854 = vpop.f32.mrb[0].mxu0
      %v855 = vpop.f32.mrb[0].mxu0
      %v856 = vadd.f32 0.0, %v855
      %v857 = vpop.f32.mrb[0].mxu0
      %858 = vmatprep.mubr.bf16.mxu0 0
      %859 = vmatmul.mubr.bf16.gmra.mrb[0].mxu0 %v669
      %v860 = vpop.f32.mrb[0].mxu0
      %v861 = vadd.f32 0.0, %v860
      %v862 = vpop.f32.mrb[0].mxu0
      %v863 = vpop.f32.mrb[0].mxu0
      %v864 = vadd.f32 0.0, %v863
      %v865 = vpop.f32.mrb[0].mxu0
      %866 = vmatprep.mubr.bf16.mxu0 0
      %867 = vmatmul.mubr.bf16.gmra.mrb[0].mxu0 %v670
      %v868 = vpop.f32.mrb[0].mxu0
      %v869 = vadd.f32 0.0, %v868
      %v870 = vpop.f32.mrb[0].mxu0
      %v871 = vpop.f32.mrb[0].mxu0
      %v872 = vadd.f32 0.0, %v871
      %v873 = vpop.f32.mrb[0].mxu0
      %874 = vmatprep.mubr.bf16.mxu0 0
      %875 = vmatmul.mubr.bf16.gmra.mrb[0].mxu0 %v671
      %v876 = vpop.f32.mrb[0].mxu0
      %v877 = vadd.f32 0.0, %v876
      %v878 = vpop.f32.mrb[0].mxu0
      %v879 = vpop.f32.mrb[0].mxu0
      %v880 = vadd.f32 0.0, %v879
      %v881 = vpop.f32.mrb[0].mxu0
      %882 = vmatprep.mubr.bf16.mxu0 0
      %883 = vmatmul.mubr.bf16.gmra.mrb[0].mxu0 %v672
      %v884 = vpop.f32.mrb[0].mxu0
      %v885 = vadd.f32 0.0, %v884
      %v886 = vpop.f32.mrb[0].mxu0
      %v887 = vpop.f32.mrb[0].mxu0
      %v888 = vadd.f32 0.0, %v887
      %v889 = vpop.f32.mrb[0].mxu0
      %890 = vmatprep.mubr.bf16.mxu0 0
      %891 = vmatmul.mubr.bf16.gmra.mrb[0].mxu0 %v673
      %v892 = vpop.f32.mrb[0].mxu0
      %v893 = vadd.f32 0.0, %v892
      %v894 = vpop.f32.mrb[0].mxu0
      %v895 = vpop.f32.mrb[0].mxu0
      %v896 = vadd.f32 0.0, %v895
      %v897 = vpop.f32.mrb[0].mxu0
      %898 = vdwg.mxu0
      %v899 = vadd.f32 %v514, %v773
      %v900 = vadd.f32 %v515, %v776
      %v901 = vadd.f32 %v516, %v781
      %v902 = vadd.f32 %v517, %v784
      %v903 = vadd.f32 %v518, %v789
      %v904 = vadd.f32 %v519, %v792
      %v905 = vadd.f32 %v520, %v797
      %v906 = vadd.f32 %v521, %v800
      %v907 = vadd.f32 %v522, %v805
      %v908 = vadd.f32 %v523, %v808
      %v909 = vadd.f32 %v524, %v813
      %v910 = vadd.f32 %v525, %v816
      %v911 = vadd.f32 %v526, %v821
      %v912 = vadd.f32 %v527, %v824
      %v913 = vadd.f32 %v528, %v829
      %v914 = vadd.f32 %v529, %v832
      %v915 = vadd.f32 %v530, %v837
      %v916 = vadd.f32 %v531, %v840
      %v917 = vadd.f32 %v532, %v845
      %v918 = vadd.f32 %v533, %v848
      %v919 = vadd.f32 %v534, %v853
      %v920 = vadd.f32 %v535, %v856
      %v921 = vadd.f32 %v536, %v861
      %v922 = vadd.f32 %v537, %v864
      %v923 = vadd.f32 %v538, %v869
      %v924 = vadd.f32 %v539, %v872
      %v925 = vadd.f32 %v540, %v877
      %v926 = vadd.f32 %v541, %v880
      %v927 = vadd.f32 %v542, %v885
      %v928 = vadd.f32 %v543, %v888
      %v929 = vadd.f32 %v544, %v893
      %v930 = vadd.f32 %v545, %v896
      %931 = vst [vmem:[#allocation2] sm:$0xff] %v899
      %932 = vst [vmem:[#allocation2 + $0x8] sm:$0xff] %v900
      %933 = vst [vmem:[#allocation2 + $0x10] sm:$0xff] %v901
      %934 = vst [vmem:[#allocation2 + $0x18] sm:$0xff] %v902
      %935 = vst [vmem:[#allocation2 + $0x20] sm:$0xff] %v903
      %936 = vst [vmem:[#allocation2 + $0x28] sm:$0xff] %v904
      %937 = vst [vmem:[#allocation2 + $0x30] sm:$0xff] %v905
      %938 = vst [vmem:[#allocation2 + $0x38] sm:$0xff] %v906
      %939 = vst [vmem:[#allocation2 + $0x40] sm:$0xff] %v907
      %940 = vst [vmem:[#allocation2 + $0x48] sm:$0xff] %v908
      %941 = vst [vmem:[#allocation2 + $0x50] sm:$0xff] %v909
      %942 = vst [vmem:[#allocation2 + $0x58] sm:$0xff] %v910
      %943 = vst [vmem:[#allocation2 + $0x60] sm:$0xff] %v911
      %944 = vst [vmem:[#allocation2 + $0x68] sm:$0xff] %v912
      %945 = vst [vmem:[#allocation2 + $0x70] sm:$0xff] %v913
      %946 = vst [vmem:[#allocation2 + $0x78] sm:$0xff] %v914
      %947 = vst [vmem:[#allocation2 + $0x80] sm:$0xff] %v915
      %948 = vst [vmem:[#allocation2 + $0x88] sm:$0xff] %v916
      %949 = vst [vmem:[#allocation2 + $0x90] sm:$0xff] %v917
      %950 = vst [vmem:[#allocation2 + $0x98] sm:$0xff] %v918
      %951 = vst [vmem:[#allocation2 + $0xa0] sm:$0xff] %v919
      %952 = vst [vmem:[#allocation2 + $0xa8] sm:$0xff] %v920
      %953 = vst [vmem:[#allocation2 + $0xb0] sm:$0xff] %v921
      %954 = vst [vmem:[#allocation2 + $0xb8] sm:$0xff] %v922
      %955 = vst [vmem:[#allocation2 + $0xc0] sm:$0xff] %v923
      %956 = vst [vmem:[#allocation2 + $0xc8] sm:$0xff] %v924
      %957 = vst [vmem:[#allocation2 + $0xd0] sm:$0xff] %v925
      %958 = vst [vmem:[#allocation2 + $0xd8] sm:$0xff] %v926
      %959 = vst [vmem:[#allocation2 + $0xe0] sm:$0xff] %v927
      %960 = vst [vmem:[#allocation2 + $0xe8] sm:$0xff] %v928
      %961 = vst [vmem:[#allocation2 + $0xf0] sm:$0xff] %v929
      %962 = vst [vmem:[#allocation2 + $0xf8] sm:$0xff] %v930
      %v963 = vld [vmem:[#allocation2] sm:$0xff]
      %v964 = vld [vmem:[#allocation2 + $0x8] sm:$0xff]
      %v965 = vld [vmem:[#allocation2 + $0x20] sm:$0xff]
      %v966 = vld [vmem:[#allocation2 + $0x28] sm:$0xff]
      %v967 = vld [vmem:[#allocation2 + $0x40] sm:$0xff]
      %v968 = vld [vmem:[#allocation2 + $0x48] sm:$0xff]
      %v969 = vld [vmem:[#allocation2 + $0x60] sm:$0xff]
      %v970 = vld [vmem:[#allocation2 + $0x68] sm:$0xff]
      %v971 = vld [vmem:[#allocation2 + $0x80] sm:$0xff]
      %v972 = vld [vmem:[#allocation2 + $0x88] sm:$0xff]
      %v973 = vld [vmem:[#allocation2 + $0xa0] sm:$0xff]
      %v974 = vld [vmem:[#allocation2 + $0xa8] sm:$0xff]
      %v975 = vld [vmem:[#allocation2 + $0xc0] sm:$0xff]
      %v976 = vld [vmem:[#allocation2 + $0xc8] sm:$0xff]
      %v977 = vld [vmem:[#allocation2 + $0xe0] sm:$0xff]
      %v978 = vld [vmem:[#allocation2 + $0xe8] sm:$0xff]
      %s979 = scalar_lea.vmem [#allocation2], 16
      %v980 = vld [vmem:[%s979] sm:$0xff]
      %v981 = vld [vmem:[%s979 + $0x8] sm:$0xff]
      %v982 = vld [vmem:[%s979 + $0x20] sm:$0xff]
      %v983 = vld [vmem:[%s979 + $0x28] sm:$0xff]
      %v984 = vld [vmem:[%s979 + $0x40] sm:$0xff]
      %v985 = vld [vmem:[%s979 + $0x48] sm:$0xff]
      %v986 = vld [vmem:[%s979 + $0x60] sm:$0xff]
      %v987 = vld [vmem:[%s979 + $0x68] sm:$0xff]
      %v988 = vld [vmem:[%s979 + $0x80] sm:$0xff]
      %v989 = vld [vmem:[%s979 + $0x88] sm:$0xff]
      %v990 = vld [vmem:[%s979 + $0xa0] sm:$0xff]
      %v991 = vld [vmem:[%s979 + $0xa8] sm:$0xff]
      %v992 = vld [vmem:[%s979 + $0xc0] sm:$0xff]
      %v993 = vld [vmem:[%s979 + $0xc8] sm:$0xff]
      %v994 = vld [vmem:[%s979 + $0xe0] sm:$0xff]
      %v995 = vld [vmem:[%s979 + $0xe8] sm:$0xff]
      %v996 = vmax.f32 %v963, %v980
      %v997 = vmax.f32 %v964, %v981
      %v998 = vmax.f32 %v965, %v982
      %v999 = vmax.f32 %v966, %v983
      %v1000 = vmax.f32 %v967, %v984
      %v1001 = vmax.f32 %v968, %v985
      %v1002 = vmax.f32 %v969, %v986
      %v1003 = vmax.f32 %v970, %v987
      %v1004 = vmax.f32 %v971, %v988
      %v1005 = vmax.f32 %v972, %v989
      %v1006 = vmax.f32 %v973, %v990
      %v1007 = vmax.f32 %v974, %v991
      %v1008 = vmax.f32 %v975, %v992
      %v1009 = vmax.f32 %v976, %v993
      %v1010 = vmax.f32 %v977, %v994
      %v1011 = vmax.f32 %v978, %v995
      %1012 = vst [vmem:[#allocation3] sm:$0xff] %v996
      %1013 = vst [vmem:[#allocation3 + $0x8] sm:$0xff] %v997
      %1014 = vst [vmem:[#allocation3 + $0x10] sm:$0xff] %v998
      %1015 = vst [vmem:[#allocation3 + $0x18] sm:$0xff] %v999
      %1016 = vst [vmem:[#allocation3 + $0x20] sm:$0xff] %v1000
      %1017 = vst [vmem:[#allocation3 + $0x28] sm:$0xff] %v1001
      %1018 = vst [vmem:[#allocation3 + $0x30] sm:$0xff] %v1002
      %1019 = vst [vmem:[#allocation3 + $0x38] sm:$0xff] %v1003
      %1020 = vst [vmem:[#allocation3 + $0x40] sm:$0xff] %v1004
      %1021 = vst [vmem:[#allocation3 + $0x48] sm:$0xff] %v1005
      %1022 = vst [vmem:[#allocation3 + $0x50] sm:$0xff] %v1006
      %1023 = vst [vmem:[#allocation3 + $0x58] sm:$0xff] %v1007
      %1024 = vst [vmem:[#allocation3 + $0x60] sm:$0xff] %v1008
      %1025 = vst [vmem:[#allocation3 + $0x68] sm:$0xff] %v1009
      %1026 = vst [vmem:[#allocation3 + $0x70] sm:$0xff] %v1010
      %1027 = vst [vmem:[#allocation3 + $0x78] sm:$0xff] %v1011
      %v1028 = vld [vmem:[#allocation3] ss:$2 sm:$0xff]
      %s1029 = scalar_lea.vmem [#allocation3], 16
      %v1030 = vld [vmem:[%s1029] ss:$2 sm:$0xff]
      %s1031 = scalar_lea.vmem [#allocation3], 32
      %v1032 = vld [vmem:[%s1031] ss:$2 sm:$0xff]
      %s1033 = scalar_lea.vmem [#allocation3], 48
      %v1034 = vld [vmem:[%s1033] ss:$2 sm:$0xff]
      %s1035 = scalar_lea.vmem [#allocation3], 64
      %v1036 = vld [vmem:[%s1035] ss:$2 sm:$0xff]
      %s1037 = scalar_lea.vmem [#allocation3], 80
      %v1038 = vld [vmem:[%s1037] ss:$2 sm:$0xff]
      %s1039 = scalar_lea.vmem [#allocation3], 96
      %v1040 = vld [vmem:[%s1039] ss:$2 sm:$0xff]
      %s1041 = scalar_lea.vmem [#allocation3], 112
      %v1042 = vld [vmem:[%s1041] ss:$2 sm:$0xff]
      %s1043 = scalar_lea.vmem [#allocation3], 1
      %v1044 = vld [vmem:[%s1043] ss:$2 sm:$0xff]
      %s1045 = scalar_lea.vmem [#allocation3], 17
      %v1046 = vld [vmem:[%s1045] ss:$2 sm:$0xff]
      %s1047 = scalar_lea.vmem [#allocation3], 33
      %v1048 = vld [vmem:[%s1047] ss:$2 sm:$0xff]
      %s1049 = scalar_lea.vmem [#allocation3], 49
      %v1050 = vld [vmem:[%s1049] ss:$2 sm:$0xff]
      %s1051 = scalar_lea.vmem [#allocation3], 65
      %v1052 = vld [vmem:[%s1051] ss:$2 sm:$0xff]
      %s1053 = scalar_lea.vmem [#allocation3], 81
      %v1054 = vld [vmem:[%s1053] ss:$2 sm:$0xff]
      %s1055 = scalar_lea.vmem [#allocation3], 97
      %v1056 = vld [vmem:[%s1055] ss:$2 sm:$0xff]
      %s1057 = scalar_lea.vmem [#allocation3], 113
      %v1058 = vld [vmem:[%s1057] ss:$2 sm:$0xff]
      %v1059 = vmax.f32 %v1028, %v1044
      %v1060 = vmax.f32 %v1030, %v1046
      %v1061 = vmax.f32 %v1032, %v1048
      %v1062 = vmax.f32 %v1034, %v1050
      %v1063 = vmax.f32 %v1036, %v1052
      %v1064 = vmax.f32 %v1038, %v1054
      %v1065 = vmax.f32 %v1040, %v1056
      %v1066 = vmax.f32 %v1042, %v1058
      %v1067 = vpack.c.bf16 %v1059, %v1059
      %v1068 = vpack.c.bf16 %v1060, %v1060
      %v1069 = vpack.c.bf16 %v1061, %v1061
      %v1070 = vpack.c.bf16 %v1062, %v1062
      %v1071 = vpack.c.bf16 %v1063, %v1063
      %v1072 = vpack.c.bf16 %v1064, %v1064
      %v1073 = vpack.c.bf16 %v1065, %v1065
      %v1074 = vpack.c.bf16 %v1066, %v1066
      %1075 = vst [vmem:[%s271] sm:$0xf] %v1067
      %1076 = vst [vmem:[%s271 + $0x4] sm:$0xf] %v1068
      %1077 = vst [vmem:[%s271 + $0x8] sm:$0xf] %v1069
      %1078 = vst [vmem:[%s271 + $0xc] sm:$0xf] %v1070
      %1079 = vst [vmem:[%s271 + $0x10] sm:$0xf] %v1071
      %1080 = vst [vmem:[%s271 + $0x14] sm:$0xf] %v1072
      %1081 = vst [vmem:[%s271 + $0x18] sm:$0xf] %v1073
      %1082 = vst [vmem:[%s271 + $0x1c] sm:$0xf] %v1074
      %p1083 = scmp.lt.s32.totalorder %s17, 1
      %s1084 = scalar_select %p1083, %s17, 1
      %s1085 = smul.addr %s1084, 8
      %s1086 = smul.addr %s1085, 4
      %s1087 = scalar_lea.vmem %s6, %s1086
      // Predicated region
      $region45: #{res_block_forward.7} parent=43 // pred_check
        %p1088 = pneg %p171
      $region46: #{res_block_forward.7} parent=43 // pred_check_branch
        %1090 = sbr.rel (%p1088) target = $region48
      $region47: #{res_block_forward.7} parent=43 // pred_region
        _
      $region48: #{res_block_forward.7} parent=43 // pred_fallthru
        _
    $region44: #{res_block_forward.7} parent=5 // pred_fallthru
      _
    %p1091 = scmp.le.s32.totalorder 2, %s12
    // Predicated region
    $region49: #{res_block_forward.7} parent=5 // pred_check
      %p1092 = pneg %p1091
    $region50: #{res_block_forward.7} parent=5 // pred_check_branch
      %1094 = sbr.rel (%p1092) target = $region52
    $region51: #{res_block_forward.7} parent=5 // pred_region
      %s1095 = ssub.s32 %s12, 2
      // Predicated region
      $region53: #{res_block_forward.7} parent=51 // pred_check
        %p1096 = pneg %p177
      $region54: #{res_block_forward.7} parent=51 // pred_check_branch
        %1098 = sbr.rel (%p1096) target = $region56
      $region55: #{res_block_forward.7} parent=51 // pred_region
        %p1099 = scmp.lt.s32.totalorder %s18, 1
        %s1100 = scalar_select %p1099, %s18, 1
        %s1101 = smul.addr %s1100, 8
        %s1102 = smul.addr %s1101, 4
        %s1103 = scalar_lea.vmem %s6, %s1102
      $region56: #{res_block_forward.7} parent=51 // pred_fallthru
        _
    $region52: #{res_block_forward.7} parent=5 // pred_fallthru
      _
  $region6: #{res_block_forward.7} parent=0 // loop_footer
    %s16 = sadd.s32 1, %s12
  $region7: #{res_block_forward.7} parent=0 // loop_footer_branch
    %11 = sbr.rel target = $region3
  $region8: #{res_block_forward.7} parent=0 // loop_exit
    _

// kernel: res_block_forward.4
$region0: #{res_block_forward.4}
  #allocation0 [shape = 'u32[]', space=smem, size = 0x4, offset = 0x4, fixed_abs, tag = 'smem constant byte address 0x4 - core index']
  #allocation1 [shape = 'u32[144,128]{1,0:T(1,128)}', space=vmem, size = 0x12000, scoped, tag = 'internal scratch']
  %s0 = inlined_call_operand.vmem [shape: bf16[2,18,18,128], index: 0, kind: input, shape index: {}]
  %s1 = inlined_call_operand.vmem [shape: bf16[3,384,128], index: 1, kind: input, shape index: {}]
  %s2 = inlined_call_operand.vmem [shape: bf16[2,16,16,128], index: 2, kind: output, shape index: {0}]
  %s3 = inlined_call_operand.vmem [shape: f32[2,2,128], index: 3, kind: output, shape index: {1}]
  %4 = xla_tuple %s2, %s3
  %s5 = sld [smem:[#allocation0]]
  $region49: #{res_block_forward.4} parent=0
    _
  %s7 = ssub.s32 1, %s5
  %s8 = scalar_select 0, %s7, %s5
  loop: start=0, step=1, limit=4
  $region2: #{res_block_forward.4} parent=0 // loop_pre_header
    _
  $region3: #{res_block_forward.4} parent=0 // loop_header
    %s10 = sphi 0, %s14
    %p11 = scmp.ge.s32.totalorder %s10, 4
    %s20 = sphi 0, %s22
    %s23 = sphi 0, %s20
    %s24 = sphi 0, %s23
    %s40 = sphi 0, %s24
    %s44 = sphi 0, %s44
    %s46 = sphi 0, %s44
    %s47 = sphi 0, %s46
    %s61 = sphi 0, %s47
    %s67 = sphi 0, %s69
    %s70 = sphi 0, %s67
    %s71 = sphi 0, %s70
    %s87 = sphi 0, %s71
    %s93 = sphi 0, %s95
    %s96 = sphi 0, %s93
    %s97 = sphi 0, %s96
    %s113 = sphi 0, %s97
  $region4: #{res_block_forward.4} parent=0 // loop_header_branch
    %13 = sbr.rel (%p11) target = $region8
  $region5: #{res_block_forward.4} parent=0 // loop_body
    %s15 = ssub.s32 %s10, 1
    %s16 = ssub.s32 %s10, 2
    %s17 = sadd.s32 %s10, 1
    %s18 = ssub.s32 %s10, %s17
    %p19 = scmp.eq.s32.totalorder %s18, 0
    %s21 = sadd.s32 %s20, 1
    %s22 = scalar_select %p19, %s20, %s21
    %p25 = pneg %p19
    %p26 = scmp.eq.s32.totalorder %s10, 1
    %p27 = por %p25, %p26
    %p28 = scmp.ne.s32.totalorder %s20, %s23
    %p29 = scmp.eq.s32.totalorder %s10, 0
    %p30 = por %p28, %p29
    %p31 = scmp.ne.s32.totalorder %s20, %s23
    %p32 = scmp.eq.s32.totalorder %s15, 1
    %p33 = por %p31, %p32
    %p34 = scmp.ne.s32.totalorder %s23, %s24
    %p35 = scmp.eq.s32.totalorder %s15, 0
    %p36 = por %p34, %p35
    %p37 = scmp.ne.s32.totalorder %s23, %s24
    %p38 = scmp.eq.s32.totalorder %s16, 1
    %p39 = por %p37, %p38
    %p41 = scmp.ne.s32.totalorder %s24, %s40
    %p42 = scmp.eq.s32.totalorder %s16, 0
    %p43 = por %p41, %p42
    %s45 = sadd.s32 %s44, 1
    %p48 = scmp.eq.s32.totalorder %s10, 1
    %p49 = scmp.ne.s32.totalorder %s44, %s46
    %p50 = scmp.eq.s32.totalorder %s10, 0
    %p51 = por %p49, %p50
    %p52 = scmp.ne.s32.totalorder %s44, %s46
    %p53 = scmp.eq.s32.totalorder %s15, 1
    %p54 = por %p52, %p53
    %p55 = scmp.ne.s32.totalorder %s46, %s47
    %p56 = scmp.eq.s32.totalorder %s15, 0
    %p57 = por %p55, %p56
    %p58 = scmp.ne.s32.totalorder %s46, %s47
    %p59 = scmp.eq.s32.totalorder %s16, 1
    %p60 = por %p58, %p59
    %p62 = scmp.ne.s32.totalorder %s47, %s61
    %p63 = scmp.eq.s32.totalorder %s16, 0
    %p64 = por %p62, %p63
    %s65 = ssub.s32 %s10, %s17
    %p66 = scmp.eq.s32.totalorder %s65, 0
    %s68 = sadd.s32 %s67, 1
    %s69 = scalar_select %p66, %s67, %s68
    %p72 = pneg %p66
    %p73 = scmp.eq.s32.totalorder %s10, 1
    %p74 = por %p72, %p73
    %p75 = scmp.ne.s32.totalorder %s67, %s70
    %p76 = scmp.eq.s32.totalorder %s10, 0
    %p77 = por %p75, %p76
    %p78 = scmp.ne.s32.totalorder %s67, %s70
    %p79 = scmp.eq.s32.totalorder %s15, 1
    %p80 = por %p78, %p79
    %p81 = scmp.ne.s32.totalorder %s70, %s71
    %p82 = scmp.eq.s32.totalorder %s15, 0
    %p83 = por %p81, %p82
    %p84 = scmp.ne.s32.totalorder %s70, %s71
    %p85 = scmp.eq.s32.totalorder %s16, 1
    %p86 = por %p84, %p85
    %p88 = scmp.ne.s32.totalorder %s71, %s87
    %p89 = scmp.eq.s32.totalorder %s16, 0
    %p90 = por %p88, %p89
    %s91 = ssub.s32 %s10, %s17
    %p92 = scmp.eq.s32.totalorder %s91, 0
    %s94 = sadd.s32 %s93, 1
    %s95 = scalar_select %p92, %s93, %s94
    %p98 = pneg %p92
    %p99 = scmp.eq.s32.totalorder %s10, 1
    %p100 = por %p98, %p99
    %p101 = scmp.ne.s32.totalorder %s93, %s96
    %p102 = scmp.eq.s32.totalorder %s10, 0
    %p103 = por %p101, %p102
    %p104 = scmp.ne.s32.totalorder %s93, %s96
    %p105 = scmp.eq.s32.totalorder %s15, 1
    %p106 = por %p104, %p105
    %p107 = scmp.ne.s32.totalorder %s96, %s97
    %p108 = scmp.eq.s32.totalorder %s15, 0
    %p109 = por %p107, %p108
    %p110 = scmp.ne.s32.totalorder %s96, %s97
    %p111 = scmp.eq.s32.totalorder %s16, 1
    %p112 = por %p110, %p111
    %p114 = scmp.ne.s32.totalorder %s97, %s113
    %p115 = scmp.eq.s32.totalorder %s16, 0
    %p116 = por %p114, %p115
    %p117 = scmp.le.s32.totalorder 1, %s10
    %p118 = scmp.lt.s32.totalorder %s10, 3
    %p119 = pnand %p117, %p118
    %p120 = pneg %p119
    // Predicated region
    $region9: #{res_block_forward.4} parent=5 // pred_check
      _
    $region10: #{res_block_forward.4} parent=5 // pred_check_branch
      %122 = sbr.rel (%p119) target = $region12
    $region11: #{res_block_forward.4} parent=5 // pred_region
      %s123 = ssub.s32 %s10, 1
      // Predicated region
      $region13: #{res_block_forward.4} parent=11 // pred_check
        %p124 = pneg %p57
      $region14: #{res_block_forward.4} parent=11 // pred_check_branch
        %126 = sbr.rel (%p124) target = $region16
      $region15: #{res_block_forward.4} parent=11 // pred_region
        _
      $region16: #{res_block_forward.4} parent=11 // pred_fallthru
        _
    $region12: #{res_block_forward.4} parent=5 // pred_fallthru
      _
    %p127 = scmp.lt.s32.totalorder %s10, 2
    // Predicated region
    $region17: #{res_block_forward.4} parent=5 // pred_check
      %p128 = pneg %p127
    $region18: #{res_block_forward.4} parent=5 // pred_check_branch
      %130 = sbr.rel (%p128) target = $region20
    $region19: #{res_block_forward.4} parent=5 // pred_region
      // Predicated region
      $region21: #{res_block_forward.4} parent=19 // pred_check
        %p131 = pneg %p30
      $region22: #{res_block_forward.4} parent=19 // pred_check_branch
        %133 = sbr.rel (%p131) target = $region24
      $region23: #{res_block_forward.4} parent=19 // pred_region
        %p134 = scmp.lt.s32.totalorder %s10, 1
        %s135 = scalar_select %p134, %s10, 1
        %s136 = smul.addr %s135, 54
        %s137 = smul.addr %s136, 4
        %s138 = scalar_lea.vmem %s0, %s137
      $region24: #{res_block_forward.4} parent=19 // pred_fallthru
        _
    $region20: #{res_block_forward.4} parent=5 // pred_fallthru
      _
    %p139 = scmp.le.s32.totalorder 1, %s10
    %p140 = scmp.lt.s32.totalorder %s10, 3
    %p141 = pnand %p139, %p140
    %p142 = pneg %p141
    // Predicated region
    $region25: #{res_block_forward.4} parent=5 // pred_check
      _
    $region26: #{res_block_forward.4} parent=5 // pred_check_branch
      %144 = sbr.rel (%p141) target = $region28
    $region27: #{res_block_forward.4} parent=5 // pred_region
      %s145 = ssub.s32 %s10, 1
      %p146 = scmp.lt.s32.totalorder %s15, 1
      %s147 = scalar_select %p146, %s15, 1
      %s148 = smul.addr %s147, 54
      %s149 = smul.addr %s148, 4
      %s150 = scalar_lea.vmem %s0, %s149
      %p151 = pneg %p36
      %p152 = pneg %p33
      %p153 = pneg %p57
      %p154 = pneg %p54
      %p155 = pneg %p83
      %p156 = pneg %p80
      %p157 = scmp.lt.s32.totalorder %s15, 1
      %s158 = scalar_select %p157, %s15, 1
      %s159 = smul.addr %s158, 32
      %s160 = smul.addr %s159, 4
      %s161 = scalar_lea.vmem %s2, %s160
      %p162 = pneg %p109
      %p163 = pneg %p106
      %p164 = scmp.lt.s32.totalorder %s15, 1
      %s165 = scalar_select %p164, %s15, 1
      %s166 = smul.addr %s165, 2
      %s167 = scalar_lea.vmem %s3, %s166
      %p168 = scmp.lt.s32.totalorder %s15, 1
      %s169 = scalar_select %p168, %s15, 1
      %s170 = smul.addr %s169, 54
      %s171 = smul.addr %s170, 4
      %s172 = scalar_lea.vmem %s0, %s171
      %p173 = scmp.lt.s32.totalorder %s15, 1
      %s174 = scalar_select %p173, %s15, 1
      %s175 = smul.addr %s174, 32
      %s176 = smul.addr %s175, 4
      %s177 = scalar_lea.vmem %s2, %s176
      %p178 = scmp.lt.s32.totalorder %s15, 1
      %s179 = scalar_select %p178, %s15, 1
      %s180 = smul.addr %s179, 2
      %s181 = scalar_lea.vmem %s3, %s180
      %v183 = vld [vmem:[%s172] sm:$0xf]
      %v184 = vld [vmem:[%s172 + $0x4] sm:$0xf]
      %v185 = vld [vmem:[%s172 + $0xc] sm:$0xf]
      %v186 = vld [vmem:[%s172 + $0x10] sm:$0xf]
      %v187 = vld [vmem:[%s172 + $0x18] sm:$0xf]
      %v188 = vld [vmem:[%s172 + $0x1c] sm:$0xf]
      %v189 = vld [vmem:[%s172 + $0x24] sm:$0xf]
      %v190 = vld [vmem:[%s172 + $0x28] sm:$0xf]
      %v191 = vld [vmem:[%s172 + $0x30] sm:$0xf]
      %v192 = vld [vmem:[%s172 + $0x34] sm:$0xf]
      %v193 = vld [vmem:[%s172 + $0x3c] sm:$0xf]
      %v194 = vld [vmem:[%s172 + $0x40] sm:$0xf]
      %v195 = vld [vmem:[%s172 + $0x48] sm:$0xf]
      %v196 = vld [vmem:[%s172 + $0x4c] sm:$0xf]
      %v197 = vld [vmem:[%s172 + $0x54] sm:$0xf]
      %v198 = vld [vmem:[%s172 + $0x58] sm:$0xf]
      %v199 = vld [vmem:[%s172 + $0x60] sm:$0xf]
      %v200 = vld [vmem:[%s172 + $0x64] sm:$0xf]
      %v201 = vld [vmem:[%s172 + $0x6c] sm:$0xf]
      %v202 = vld [vmem:[%s172 + $0x70] sm:$0xf]
      %v203 = vld [vmem:[%s172 + $0x78] sm:$0xf]
      %v204 = vld [vmem:[%s172 + $0x7c] sm:$0xf]
      %v205 = vld [vmem:[%s172 + $0x84] sm:$0xf]
      %v206 = vld [vmem:[%s172 + $0x88] sm:$0xf]
      %v207 = vld [vmem:[%s172 + $0x90] sm:$0xf]
      %v208 = vld [vmem:[%s172 + $0x94] sm:$0xf]
      %v209 = vld [vmem:[%s172 + $0x9c] sm:$0xf]
      %v210 = vld [vmem:[%s172 + $0xa0] sm:$0xf]
      %v211 = vld [vmem:[%s172 + $0xa8] sm:$0xf]
      %v212 = vld [vmem:[%s172 + $0xac] sm:$0xf]
      %v213 = vld [vmem:[%s172 + $0xb4] sm:$0xf]
      %v214 = vld [vmem:[%s172 + $0xb8] sm:$0xf]
      %v215 = vld [vmem:[%s172 + $0x8] sm:$0x1]
      %v216 = vld [vmem:[%s172 + $0x14] sm:$0x1]
      %v217 = vld [vmem:[%s172 + $0x20] sm:$0x1]
      %v218 = vld [vmem:[%s172 + $0x2c] sm:$0x1]
      %v219 = vld [vmem:[%s172 + $0x38] sm:$0x1]
      %v220 = vld [vmem:[%s172 + $0x44] sm:$0x1]
      %v221 = vld [vmem:[%s172 + $0x50] sm:$0x1]
      %v222 = vld [vmem:[%s172 + $0x5c] sm:$0x1]
      %v223 = vld [vmem:[%s172 + $0x68] sm:$0x1]
      %v224 = vld [vmem:[%s172 + $0x74] sm:$0x1]
      %v225 = vld [vmem:[%s172 + $0x80] sm:$0x1]
      %v226 = vld [vmem:[%s172 + $0x8c] sm:$0x1]
      %v227 = vld [vmem:[%s172 + $0x98] sm:$0x1]
      %v228 = vld [vmem:[%s172 + $0xa4] sm:$0x1]
      %v229 = vld [vmem:[%s172 + $0xb0] sm:$0x1]
      %v230 = vld [vmem:[%s172 + $0xbc] sm:$0x1]
      %vm231 = vsmask.f32 3328
      %vm232 = vsmask.f32 7440
      %vm233 = vmor %vm231, %vm232
      %v235 = vshrl.u32 %v183, 16
      %v237 = vrot.slane %v235, 4
      %v238 = vshll.u32 %v183, 16
      %v240 = vrot.slane %v238, 5
      %v241 = vor.u32 %v237, %v240
      %v242 = vrot.slane %v241, 4
      %v244 = vshll.u32 %v184, 16
      %v246 = vrot.slane %v244, 5
      %v247 = vsel %vm233, %v242, %v246
      %v248 = vshrl.u32 %v184, 16
      %v250 = vrot.slane %v248, 4
      %v251 = vor.u32 %v250, %v246
      %v252 = vrot.slane %v251, 4
      %v254 = vshll.u32 %v215, 16
      %v256 = vrot.slane %v254, 5
      %v257 = vsel %vm233, %v252, %v256
      %v259 = vshrl.u32 %v185, 16
      %v261 = vrot.slane %v259, 4
      %v262 = vshll.u32 %v185, 16
      %v264 = vrot.slane %v262, 5
      %v265 = vor.u32 %v261, %v264
      %v266 = vrot.slane %v265, 4
      %v268 = vshll.u32 %v186, 16
      %v270 = vrot.slane %v268, 5
      %v271 = vsel %vm233, %v266, %v270
      %v272 = vshrl.u32 %v186, 16
      %v274 = vrot.slane %v272, 4
      %v275 = vor.u32 %v274, %v270
      %v276 = vrot.slane %v275, 4
      %v278 = vshll.u32 %v216, 16
      %v280 = vrot.slane %v278, 5
      %v281 = vsel %vm233, %v276, %v280
      %v283 = vshrl.u32 %v187, 16
      %v285 = vrot.slane %v283, 4
      %v286 = vshll.u32 %v187, 16
      %v288 = vrot.slane %v286, 5
      %v289 = vor.u32 %v285, %v288
      %v290 = vrot.slane %v289, 4
      %v292 = vshll.u32 %v188, 16
      %v294 = vrot.slane %v292, 5
      %v295 = vsel %vm233, %v290, %v294
      %v296 = vshrl.u32 %v188, 16
      %v298 = vrot.slane %v296, 4
      %v299 = vor.u32 %v298, %v294
      %v300 = vrot.slane %v299, 4
      %v302 = vshll.u32 %v217, 16
      %v304 = vrot.slane %v302, 5
      %v305 = vsel %vm233, %v300, %v304
      %v307 = vshrl.u32 %v189, 16
      %v309 = vrot.slane %v307, 4
      %v310 = vshll.u32 %v189, 16
      %v312 = vrot.slane %v310, 5
      %v313 = vor.u32 %v309, %v312
      %v314 = vrot.slane %v313, 4
      %v316 = vshll.u32 %v190, 16
      %v318 = vrot.slane %v316, 5
      %v319 = vsel %vm233, %v314, %v318
      %v320 = vshrl.u32 %v190, 16
      %v322 = vrot.slane %v320, 4
      %v323 = vor.u32 %v322, %v318
      %v324 = vrot.slane %v323, 4
      %v326 = vshll.u32 %v218, 16
      %v328 = vrot.slane %v326, 5
      %v329 = vsel %vm233, %v324, %v328
      %v331 = vshrl.u32 %v191, 16
      %v333 = vrot.slane %v331, 4
      %v334 = vshll.u32 %v191, 16
      %v336 = vrot.slane %v334, 5
      %v337 = vor.u32 %v333, %v336
      %v338 = vrot.slane %v337, 4
      %v340 = vshll.u32 %v192, 16
      %v342 = vrot.slane %v340, 5
      %v343 = vsel %vm233, %v338, %v342
      %v344 = vshrl.u32 %v192, 16
      %v346 = vrot.slane %v344, 4
      %v347 = vor.u32 %v346, %v342
      %v348 = vrot.slane %v347, 4
      %v350 = vshll.u32 %v219, 16
      %v352 = vrot.slane %v350, 5
      %v353 = vsel %vm233, %v348, %v352
      %v355 = vshrl.u32 %v193, 16
      %v357 = vrot.slane %v355, 4
      %v358 = vshll.u32 %v193, 16
      %v360 = vrot.slane %v358, 5
      %v361 = vor.u32 %v357, %v360
      %v362 = vrot.slane %v361, 4
      %v364 = vshll.u32 %v194, 16
      %v366 = vrot.slane %v364, 5
      %v367 = vsel %vm233, %v362, %v366
      %v368 = vshrl.u32 %v194, 16
      %v370 = vrot.slane %v368, 4
      %v371 = vor.u32 %v370, %v366
      %v372 = vrot.slane %v371, 4
      %v374 = vshll.u32 %v220, 16
      %v376 = vrot.slane %v374, 5
      %v377 = vsel %vm233, %v372, %v376
      %v379 = vshrl.u32 %v195, 16
      %v381 = vrot.slane %v379, 4
      %v382 = vshll.u32 %v195, 16
      %v384 = vrot.slane %v382, 5
      %v385 = vor.u32 %v381, %v384
      %v386 = vrot.slane %v385, 4
      %v388 = vshll.u32 %v196, 16
      %v390 = vrot.slane %v388, 5
      %v391 = vsel %vm233, %v386, %v390
      %v392 = vshrl.u32 %v196, 16
      %v394 = vrot.slane %v392, 4
      %v395 = vor.u32 %v394, %v390
      %v396 = vrot.slane %v395, 4
      %v398 = vshll.u32 %v221, 16
      %v400 = vrot.slane %v398, 5
      %v401 = vsel %vm233, %v396, %v400
      %v403 = vshrl.u32 %v197, 16
      %v405 = vrot.slane %v403, 4
      %v406 = vshll.u32 %v197, 16
      %v408 = vrot.slane %v406, 5
      %v409 = vor.u32 %v405, %v408
      %v410 = vrot.slane %v409, 4
      %v412 = vshll.u32 %v198, 16
      %v414 = vrot.slane %v412, 5
      %v415 = vsel %vm233, %v410, %v414
      %v416 = vshrl.u32 %v198, 16
      %v418 = vrot.slane %v416, 4
      %v419 = vor.u32 %v418, %v414
      %v420 = vrot.slane %v419, 4
      %v422 = vshll.u32 %v222, 16
      %v424 = vrot.slane %v422, 5
      %v425 = vsel %vm233, %v420, %v424
      %v427 = vshrl.u32 %v199, 16
      %v429 = vrot.slane %v427, 4
      %v430 = vshll.u32 %v199, 16
      %v432 = vrot.slane %v430, 5
      %v433 = vor.u32 %v429, %v432
      %v434 = vrot.slane %v433, 4
      %v436 = vshll.u32 %v200, 16
      %v438 = vrot.slane %v436, 5
      %v439 = vsel %vm233, %v434, %v438
      %v440 = vshrl.u32 %v200, 16
      %v442 = vrot.slane %v440, 4
      %v443 = vor.u32 %v442, %v438
      %v444 = vrot.slane %v443, 4
      %v446 = vshll.u32 %v223, 16
      %v448 = vrot.slane %v446, 5
      %v449 = vsel %vm233, %v444, %v448
      %v451 = vshrl.u32 %v201, 16
      %v453 = vrot.slane %v451, 4
      %v454 = vshll.u32 %v201, 16
      %v456 = vrot.slane %v454, 5
      %v457 = vor.u32 %v453, %v456
      %v458 = vrot.slane %v457, 4
      %v460 = vshll.u32 %v202, 16
      %v462 = vrot.slane %v460, 5
      %v463 = vsel %vm233, %v458, %v462
      %v464 = vshrl.u32 %v202, 16
      %v466 = vrot.slane %v464, 4
      %v467 = vor.u32 %v466, %v462
      %v468 = vrot.slane %v467, 4
      %v470 = vshll.u32 %v224, 16
      %v472 = vrot.slane %v470, 5
      %v473 = vsel %vm233, %v468, %v472
      %v475 = vshrl.u32 %v203, 16
      %v477 = vrot.slane %v475, 4
      %v478 = vshll.u32 %v203, 16
      %v480 = vrot.slane %v478, 5
      %v481 = vor.u32 %v477, %v480
      %v482 = vrot.slane %v481, 4
      %v484 = vshll.u32 %v204, 16
      %v486 = vrot.slane %v484, 5
      %v487 = vsel %vm233, %v482, %v486
      %v488 = vshrl.u32 %v204, 16
      %v490 = vrot.slane %v488, 4
      %v491 = vor.u32 %v490, %v486
      %v492 = vrot.slane %v491, 4
      %v494 = vshll.u32 %v225, 16
      %v496 = vrot.slane %v494, 5
      %v497 = vsel %vm233, %v492, %v496
      %v499 = vshrl.u32 %v205, 16
      %v501 = vrot.slane %v499, 4
      %v502 = vshll.u32 %v205, 16
      %v504 = vrot.slane %v502, 5
      %v505 = vor.u32 %v501, %v504
      %v506 = vrot.slane %v505, 4
      %v508 = vshll.u32 %v206, 16
      %v510 = vrot.slane %v508, 5
      %v511 = vsel %vm233, %v506, %v510
      %v512 = vshrl.u32 %v206, 16
      %v514 = vrot.slane %v512, 4
      %v515 = vor.u32 %v514, %v510
      %v516 = vrot.slane %v515, 4
      %v518 = vshll.u32 %v226, 16
      %v520 = vrot.slane %v518, 5
      %v521 = vsel %vm233, %v516, %v520
      %v523 = vshrl.u32 %v207, 16
      %v525 = vrot.slane %v523, 4
      %v526 = vshll.u32 %v207, 16
      %v528 = vrot.slane %v526, 5
      %v529 = vor.u32 %v525, %v528
      %v530 = vrot.slane %v529, 4
      %v532 = vshll.u32 %v208, 16
      %v534 = vrot.slane %v532, 5
      %v535 = vsel %vm233, %v530, %v534
      %v536 = vshrl.u32 %v208, 16
      %v538 = vrot.slane %v536, 4
      %v539 = vor.u32 %v538, %v534
      %v540 = vrot.slane %v539, 4
      %v542 = vshll.u32 %v227, 16
      %v544 = vrot.slane %v542, 5
      %v545 = vsel %vm233, %v540, %v544
      %v547 = vshrl.u32 %v209, 16
      %v549 = vrot.slane %v547, 4
      %v550 = vshll.u32 %v209, 16
      %v552 = vrot.slane %v550, 5
      %v553 = vor.u32 %v549, %v552
      %v554 = vrot.slane %v553, 4
      %v556 = vshll.u32 %v210, 16
      %v558 = vrot.slane %v556, 5
      %v559 = vsel %vm233, %v554, %v558
      %v560 = vshrl.u32 %v210, 16
      %v562 = vrot.slane %v560, 4
      %v563 = vor.u32 %v562, %v558
      %v564 = vrot.slane %v563, 4
      %v566 = vshll.u32 %v228, 16
      %v568 = vrot.slane %v566, 5
      %v569 = vsel %vm233, %v564, %v568
      %v571 = vshrl.u32 %v211, 16
      %v573 = vrot.slane %v571, 4
      %v574 = vshll.u32 %v211, 16
      %v576 = vrot.slane %v574, 5
      %v577 = vor.u32 %v573, %v576
      %v578 = vrot.slane %v577, 4
      %v580 = vshll.u32 %v212, 16
      %v582 = vrot.slane %v580, 5
      %v583 = vsel %vm233, %v578, %v582
      %v584 = vshrl.u32 %v212, 16
      %v586 = vrot.slane %v584, 4
      %v587 = vor.u32 %v586, %v582
      %v588 = vrot.slane %v587, 4
      %v590 = vshll.u32 %v229, 16
      %v592 = vrot.slane %v590, 5
      %v593 = vsel %vm233, %v588, %v592
      %v595 = vshrl.u32 %v213, 16
      %v597 = vrot.slane %v595, 4
      %v598 = vshll.u32 %v213, 16
      %v600 = vrot.slane %v598, 5
      %v601 = vor.u32 %v597, %v600
      %v602 = vrot.slane %v601, 4
      %v604 = vshll.u32 %v214, 16
      %v606 = vrot.slane %v604, 5
      %v607 = vsel %vm233, %v602, %v606
      %v608 = vshrl.u32 %v214, 16
      %v610 = vrot.slane %v608, 4
      %v611 = vor.u32 %v610, %v606
      %v612 = vrot.slane %v611, 4
      %v614 = vshll.u32 %v230, 16
      %v616 = vrot.slane %v614, 5
      %v617 = vsel %vm233, %v612, %v616
      %v618 = vld [vmem:[%s172] sm:$0xe]
      %v619 = vld [vmem:[%s172 + $0xc] sm:$0xe]
      %v620 = vld [vmem:[%s172 + $0x18] sm:$0xe]
      %v621 = vld [vmem:[%s172 + $0x24] sm:$0xe]
      %v622 = vld [vmem:[%s172 + $0x30] sm:$0xe]
      %v623 = vld [vmem:[%s172 + $0x3c] sm:$0xe]
      %v624 = vld [vmem:[%s172 + $0x48] sm:$0xe]
      %v625 = vld [vmem:[%s172 + $0x54] sm:$0xe]
      %v626 = vld [vmem:[%s172 + $0x60] sm:$0xe]
      %v627 = vld [vmem:[%s172 + $0x6c] sm:$0xe]
      %v628 = vld [vmem:[%s172 + $0x78] sm:$0xe]
      %v629 = vld [vmem:[%s172 + $0x84] sm:$0xe]
      %v630 = vld [vmem:[%s172 + $0x90] sm:$0xe]
      %v631 = vld [vmem:[%s172 + $0x9c] sm:$0xe]
      %v632 = vld [vmem:[%s172 + $0xa8] sm:$0xe]
      %v633 = vld [vmem:[%s172 + $0xb4] sm:$0xe]
      %vm682 = vcmask 1042432
      %vm683 = vcmask 1046532
      %vm684 = vmor %vm682, %vm683
      %v685 = vrot.slane %v618, 5
      %v686 = vrot.slane %v685, 4
      %v687 = vrot.slane %v184, 5
      %v688 = vsel %vm684, %v686, %v687
      %v689 = vrot.slane %v687, 4
      %v690 = vrot.slane %v215, 5
      %v691 = vsel %vm684, %v689, %v690
      %v692 = vrot.slane %v619, 5
      %v693 = vrot.slane %v692, 4
      %v694 = vrot.slane %v186, 5
      %v695 = vsel %vm684, %v693, %v694
      %v696 = vrot.slane %v694, 4
      %v697 = vrot.slane %v216, 5
      %v698 = vsel %vm684, %v696, %v697
      %v699 = vrot.slane %v620, 5
      %v700 = vrot.slane %v699, 4
      %v701 = vrot.slane %v188, 5
      %v702 = vsel %vm684, %v700, %v701
      %v703 = vrot.slane %v701, 4
      %v704 = vrot.slane %v217, 5
      %v705 = vsel %vm684, %v703, %v704
      %v706 = vrot.slane %v621, 5
      %v707 = vrot.slane %v706, 4
      %v708 = vrot.slane %v190, 5
      %v709 = vsel %vm684, %v707, %v708
      %v710 = vrot.slane %v708, 4
      %v711 = vrot.slane %v218, 5
      %v712 = vsel %vm684, %v710, %v711
      %v713 = vrot.slane %v622, 5
      %v714 = vrot.slane %v713, 4
      %v715 = vrot.slane %v192, 5
      %v716 = vsel %vm684, %v714, %v715
      %v717 = vrot.slane %v715, 4
      %v718 = vrot.slane %v219, 5
      %v719 = vsel %vm684, %v717, %v718
      %v720 = vrot.slane %v623, 5
      %v721 = vrot.slane %v720, 4
      %v722 = vrot.slane %v194, 5
      %v723 = vsel %vm684, %v721, %v722
      %v724 = vrot.slane %v722, 4
      %v725 = vrot.slane %v220, 5
      %v726 = vsel %vm684, %v724, %v725
      %v727 = vrot.slane %v624, 5
      %v728 = vrot.slane %v727, 4
      %v729 = vrot.slane %v196, 5
      %v730 = vsel %vm684, %v728, %v729
      %v731 = vrot.slane %v729, 4
      %v732 = vrot.slane %v221, 5
      %v733 = vsel %vm684, %v731, %v732
      %v734 = vrot.slane %v625, 5
      %v735 = vrot.slane %v734, 4
      %v736 = vrot.slane %v198, 5
      %v737 = vsel %vm684, %v735, %v736
      %v738 = vrot.slane %v736, 4
      %v739 = vrot.slane %v222, 5
      %v740 = vsel %vm684, %v738, %v739
      %v741 = vrot.slane %v626, 5
      %v742 = vrot.slane %v741, 4
      %v743 = vrot.slane %v200, 5
      %v744 = vsel %vm684, %v742, %v743
      %v745 = vrot.slane %v743, 4
      %v746 = vrot.slane %v223, 5
      %v747 = vsel %vm684, %v745, %v746
      %v748 = vrot.slane %v627, 5
      %v749 = vrot.slane %v748, 4
      %v750 = vrot.slane %v202, 5
      %v751 = vsel %vm684, %v749, %v750
      %v752 = vrot.slane %v750, 4
      %v753 = vrot.slane %v224, 5
      %v754 = vsel %vm684, %v752, %v753
      %v755 = vrot.slane %v628, 5
      %v756 = vrot.slane %v755, 4
      %v757 = vrot.slane %v204, 5
      %v758 = vsel %vm684, %v756, %v757
      %v759 = vrot.slane %v757, 4
      %v760 = vrot.slane %v225, 5
      %v761 = vsel %vm684, %v759, %v760
      %v762 = vrot.slane %v629, 5
      %v763 = vrot.slane %v762, 4
      %v764 = vrot.slane %v206, 5
      %v765 = vsel %vm684, %v763, %v764
      %v766 = vrot.slane %v764, 4
      %v767 = vrot.slane %v226, 5
      %v768 = vsel %vm684, %v766, %v767
      %v769 = vrot.slane %v630, 5
      %v770 = vrot.slane %v769, 4
      %v771 = vrot.slane %v208, 5
      %v772 = vsel %vm684, %v770, %v771
      %v773 = vrot.slane %v771, 4
      %v774 = vrot.slane %v227, 5
      %v775 = vsel %vm684, %v773, %v774
      %v776 = vrot.slane %v631, 5
      %v777 = vrot.slane %v776, 4
      %v778 = vrot.slane %v210, 5
      %v779 = vsel %vm684, %v777, %v778
      %v780 = vrot.slane %v778, 4
      %v781 = vrot.slane %v228, 5
      %v782 = vsel %vm684, %v780, %v781
      %v783 = vrot.slane %v632, 5
      %v784 = vrot.slane %v783, 4
      %v785 = vrot.slane %v212, 5
      %v786 = vsel %vm684, %v784, %v785
      %v787 = vrot.slane %v785, 4
      %v788 = vrot.slane %v229, 5
      %v789 = vsel %vm684, %v787, %v788
      %v790 = vrot.slane %v633, 5
      %v791 = vrot.slane %v790, 4
      %v792 = vrot.slane %v214, 5
      %v793 = vsel %vm684, %v791, %v792
      %v794 = vrot.slane %v792, 4
      %v795 = vrot.slane %v230, 5
      %v796 = vsel %vm684, %v794, %v795
      %v813 = vunpack.c.l.b16 %v183
      %v814 = vunpack.c.l.b16 %v184
      %v815 = vunpack.c.l.b16 %v185
      %v816 = vunpack.c.l.b16 %v186
      %v817 = vunpack.c.l.b16 %v187
      %v818 = vunpack.c.l.b16 %v188
      %v819 = vunpack.c.l.b16 %v189
      %v820 = vunpack.c.l.b16 %v190
      %v821 = vunpack.c.l.b16 %v191
      %v822 = vunpack.c.l.b16 %v192
      %v823 = vunpack.c.l.b16 %v193
      %v824 = vunpack.c.l.b16 %v194
      %v825 = vunpack.c.l.b16 %v195
      %v826 = vunpack.c.l.b16 %v196
      %v827 = vunpack.c.l.b16 %v197
      %v828 = vunpack.c.l.b16 %v198
      %v829 = vunpack.c.l.b16 %v199
      %v830 = vunpack.c.l.b16 %v200
      %v831 = vunpack.c.l.b16 %v201
      %v832 = vunpack.c.l.b16 %v202
      %v833 = vunpack.c.l.b16 %v203
      %v834 = vunpack.c.l.b16 %v204
      %v835 = vunpack.c.l.b16 %v205
      %v836 = vunpack.c.l.b16 %v206
      %v837 = vunpack.c.l.b16 %v207
      %v838 = vunpack.c.l.b16 %v208
      %v839 = vunpack.c.l.b16 %v209
      %v840 = vunpack.c.l.b16 %v210
      %v841 = vunpack.c.l.b16 %v211
      %v842 = vunpack.c.l.b16 %v212
      %v843 = vunpack.c.l.b16 %v213
      %v844 = vunpack.c.l.b16 %v214
      %v845 = vpack.c.b16 %v814, %v813
      %v846 = vpack.c.b16 %v816, %v815
      %v847 = vpack.c.b16 %v818, %v817
      %v848 = vpack.c.b16 %v820, %v819
      %v849 = vpack.c.b16 %v822, %v821
      %v850 = vpack.c.b16 %v824, %v823
      %v851 = vpack.c.b16 %v826, %v825
      %v852 = vpack.c.b16 %v828, %v827
      %v853 = vpack.c.b16 %v830, %v829
      %v854 = vpack.c.b16 %v832, %v831
      %v855 = vpack.c.b16 %v834, %v833
      %v856 = vpack.c.b16 %v836, %v835
      %v857 = vpack.c.b16 %v838, %v837
      %v858 = vpack.c.b16 %v840, %v839
      %v859 = vpack.c.b16 %v842, %v841
      %v860 = vpack.c.b16 %v844, %v843
      %v877 = vunpack.c.l.b16 %v247
      %v878 = vunpack.c.l.b16 %v257
      %v879 = vunpack.c.l.b16 %v271
      %v880 = vunpack.c.l.b16 %v281
      %v881 = vunpack.c.l.b16 %v295
      %v882 = vunpack.c.l.b16 %v305
      %v883 = vunpack.c.l.b16 %v319
      %v884 = vunpack.c.l.b16 %v329
      %v885 = vunpack.c.l.b16 %v343
      %v886 = vunpack.c.l.b16 %v353
      %v887 = vunpack.c.l.b16 %v367
      %v888 = vunpack.c.l.b16 %v377
      %v889 = vunpack.c.l.b16 %v391
      %v890 = vunpack.c.l.b16 %v401
      %v891 = vunpack.c.l.b16 %v415
      %v892 = vunpack.c.l.b16 %v425
      %v893 = vunpack.c.l.b16 %v439
      %v894 = vunpack.c.l.b16 %v449
      %v895 = vunpack.c.l.b16 %v463
      %v896 = vunpack.c.l.b16 %v473
      %v897 = vunpack.c.l.b16 %v487
      %v898 = vunpack.c.l.b16 %v497
      %v899 = vunpack.c.l.b16 %v511
      %v900 = vunpack.c.l.b16 %v521
      %v901 = vunpack.c.l.b16 %v535
      %v902 = vunpack.c.l.b16 %v545
      %v903 = vunpack.c.l.b16 %v559
      %v904 = vunpack.c.l.b16 %v569
      %v905 = vunpack.c.l.b16 %v583
      %v906 = vunpack.c.l.b16 %v593
      %v907 = vunpack.c.l.b16 %v607
      %v908 = vunpack.c.l.b16 %v617
      %v909 = vpack.c.b16 %v878, %v877
      %v910 = vpack.c.b16 %v880, %v879
      %v911 = vpack.c.b16 %v882, %v881
      %v912 = vpack.c.b16 %v884, %v883
      %v913 = vpack.c.b16 %v886, %v885
      %v914 = vpack.c.b16 %v888, %v887
      %v915 = vpack.c.b16 %v890, %v889
      %v916 = vpack.c.b16 %v892, %v891
      %v917 = vpack.c.b16 %v894, %v893
      %v918 = vpack.c.b16 %v896, %v895
      %v919 = vpack.c.b16 %v898, %v897
      %v920 = vpack.c.b16 %v900, %v899
      %v921 = vpack.c.b16 %v902, %v901
      %v922 = vpack.c.b16 %v904, %v903
      %v923 = vpack.c.b16 %v906, %v905
      %v924 = vpack.c.b16 %v908, %v907
      %v941 = vunpack.c.l.b16 %v688
      %v942 = vunpack.c.l.b16 %v691
      %v943 = vunpack.c.l.b16 %v695
      %v944 = vunpack.c.l.b16 %v698
      %v945 = vunpack.c.l.b16 %v702
      %v946 = vunpack.c.l.b16 %v705
      %v947 = vunpack.c.l.b16 %v709
      %v948 = vunpack.c.l.b16 %v712
      %v949 = vunpack.c.l.b16 %v716
      %v950 = vunpack.c.l.b16 %v719
      %v951 = vunpack.c.l.b16 %v723
      %v952 = vunpack.c.l.b16 %v726
      %v953 = vunpack.c.l.b16 %v730
      %v954 = vunpack.c.l.b16 %v733
      %v955 = vunpack.c.l.b16 %v737
      %v956 = vunpack.c.l.b16 %v740
      %v957 = vunpack.c.l.b16 %v744
      %v958 = vunpack.c.l.b16 %v747
      %v959 = vunpack.c.l.b16 %v751
      %v960 = vunpack.c.l.b16 %v754
      %v961 = vunpack.c.l.b16 %v758
      %v962 = vunpack.c.l.b16 %v761
      %v963 = vunpack.c.l.b16 %v765
      %v964 = vunpack.c.l.b16 %v768
      %v965 = vunpack.c.l.b16 %v772
      %v966 = vunpack.c.l.b16 %v775
      %v967 = vunpack.c.l.b16 %v779
      %v968 = vunpack.c.l.b16 %v782
      %v969 = vunpack.c.l.b16 %v786
      %v970 = vunpack.c.l.b16 %v789
      %v971 = vunpack.c.l.b16 %v793
      %v972 = vunpack.c.l.b16 %v796
      %v973 = vpack.c.b16 %v942, %v941
      %v974 = vpack.c.b16 %v944, %v943
      %v975 = vpack.c.b16 %v946, %v945
      %v976 = vpack.c.b16 %v948, %v947
      %v977 = vpack.c.b16 %v950, %v949
      %v978 = vpack.c.b16 %v952, %v951
      %v979 = vpack.c.b16 %v954, %v953
      %v980 = vpack.c.b16 %v956, %v955
      %v981 = vpack.c.b16 %v958, %v957
      %v982 = vpack.c.b16 %v960, %v959
      %v983 = vpack.c.b16 %v962, %v961
      %v984 = vpack.c.b16 %v964, %v963
      %v985 = vpack.c.b16 %v966, %v965
      %v986 = vpack.c.b16 %v968, %v967
      %v987 = vpack.c.b16 %v970, %v969
      %v988 = vpack.c.b16 %v972, %v971
      %v1005 = vld [vmem:[%s1] sm:$0xf]
      %v1006 = vld [vmem:[%s1 + $0x4] sm:$0xf]
      %v1007 = vld [vmem:[%s1 + $0x8] sm:$0xf]
      %v1008 = vld [vmem:[%s1 + $0xc] sm:$0xf]
      %v1009 = vld [vmem:[%s1 + $0x10] sm:$0xf]
      %v1010 = vld [vmem:[%s1 + $0x14] sm:$0xf]
      %v1011 = vld [vmem:[%s1 + $0x18] sm:$0xf]
      %v1012 = vld [vmem:[%s1 + $0x1c] sm:$0xf]
      %v1013 = vld [vmem:[%s1 + $0x20] sm:$0xf]
      %v1014 = vld [vmem:[%s1 + $0x24] sm:$0xf]
      %v1015 = vld [vmem:[%s1 + $0x28] sm:$0xf]
      %v1016 = vld [vmem:[%s1 + $0x2c] sm:$0xf]
      %v1017 = vld [vmem:[%s1 + $0x30] sm:$0xf]
      %v1018 = vld [vmem:[%s1 + $0x34] sm:$0xf]
      %v1019 = vld [vmem:[%s1 + $0x38] sm:$0xf]
      %v1020 = vld [vmem:[%s1 + $0x3c] sm:$0xf]
      %v1021 = vld [vmem:[%s1 + $0x40] sm:$0xf]
      %v1022 = vld [vmem:[%s1 + $0x44] sm:$0xf]
      %v1023 = vld [vmem:[%s1 + $0x48] sm:$0xf]
      %v1024 = vld [vmem:[%s1 + $0x4c] sm:$0xf]
      %v1025 = vld [vmem:[%s1 + $0x50] sm:$0xf]
      %v1026 = vld [vmem:[%s1 + $0x54] sm:$0xf]
      %v1027 = vld [vmem:[%s1 + $0x58] sm:$0xf]
      %v1028 = vld [vmem:[%s1 + $0x5c] sm:$0xf]
      %v1029 = vld [vmem:[%s1 + $0x60] sm:$0xf]
      %v1030 = vld [vmem:[%s1 + $0x64] sm:$0xf]
      %v1031 = vld [vmem:[%s1 + $0x68] sm:$0xf]
      %v1032 = vld [vmem:[%s1 + $0x6c] sm:$0xf]
      %v1033 = vld [vmem:[%s1 + $0x70] sm:$0xf]
      %v1034 = vld [vmem:[%s1 + $0x74] sm:$0xf]
      %v1035 = vld [vmem:[%s1 + $0x78] sm:$0xf]
      %v1036 = vld [vmem:[%s1 + $0x7c] sm:$0xf]
      %v1037 = vld [vmem:[%s1 + $0x80] sm:$0xf]
      %v1038 = vld [vmem:[%s1 + $0x84] sm:$0xf]
      %v1039 = vld [vmem:[%s1 + $0x88] sm:$0xf]
      %v1040 = vld [vmem:[%s1 + $0x8c] sm:$0xf]
      %v1041 = vld [vmem:[%s1 + $0x90] sm:$0xf]
      %v1042 = vld [vmem:[%s1 + $0x94] sm:$0xf]
      %v1043 = vld [vmem:[%s1 + $0x98] sm:$0xf]
      %v1044 = vld [vmem:[%s1 + $0x9c] sm:$0xf]
      %v1045 = vld [vmem:[%s1 + $0xa0] sm:$0xf]
      %v1046 = vld [vmem:[%s1 + $0xa4] sm:$0xf]
      %v1047 = vld [vmem:[%s1 + $0xa8] sm:$0xf]
      %v1048 = vld [vmem:[%s1 + $0xac] sm:$0xf]
      %v1049 = vld [vmem:[%s1 + $0xb0] sm:$0xf]
      %v1050 = vld [vmem:[%s1 + $0xb4] sm:$0xf]
      %v1051 = vld [vmem:[%s1 + $0xb8] sm:$0xf]
      %v1052 = vld [vmem:[%s1 + $0xbc] sm:$0xf]
      %s1053 = scalar_lea.vmem %s172, 12
      %v1054 = vld [vmem:[%s1053] sm:$0xf]
      %v1055 = vld [vmem:[%s1053 + $0x4] sm:$0xf]
      %v1056 = vld [vmem:[%s1053 + $0xc] sm:$0xf]
      %v1057 = vld [vmem:[%s1053 + $0x10] sm:$0xf]
      %v1058 = vld [vmem:[%s1053 + $0x18] sm:$0xf]
      %v1059 = vld [vmem:[%s1053 + $0x1c] sm:$0xf]
      %v1060 = vld [vmem:[%s1053 + $0x24] sm:$0xf]
      %v1061 = vld [vmem:[%s1053 + $0x28] sm:$0xf]
      %v1062 = vld [vmem:[%s1053 + $0x30] sm:$0xf]
      %v1063 = vld [vmem:[%s1053 + $0x34] sm:$0xf]
      %v1064 = vld [vmem:[%s1053 + $0x3c] sm:$0xf]
      %v1065 = vld [vmem:[%s1053 + $0x40] sm:$0xf]
      %v1066 = vld [vmem:[%s1053 + $0x48] sm:$0xf]
      %v1067 = vld [vmem:[%s1053 + $0x4c] sm:$0xf]
      %v1068 = vld [vmem:[%s1053 + $0x54] sm:$0xf]
      %v1069 = vld [vmem:[%s1053 + $0x58] sm:$0xf]
      %v1070 = vld [vmem:[%s1053 + $0x60] sm:$0xf]
      %v1071 = vld [vmem:[%s1053 + $0x64] sm:$0xf]
      %v1072 = vld [vmem:[%s1053 + $0x6c] sm:$0xf]
      %v1073 = vld [vmem:[%s1053 + $0x70] sm:$0xf]
      %v1074 = vld [vmem:[%s1053 + $0x78] sm:$0xf]
      %v1075 = vld [vmem:[%s1053 + $0x7c] sm:$0xf]
      %v1076 = vld [vmem:[%s1053 + $0x84] sm:$0xf]
      %v1077 = vld [vmem:[%s1053 + $0x88] sm:$0xf]
      %v1078 = vld [vmem:[%s1053 + $0x90] sm:$0xf]
      %v1079 = vld [vmem:[%s1053 + $0x94] sm:$0xf]
      %v1080 = vld [vmem:[%s1053 + $0x9c] sm:$0xf]
      %v1081 = vld [vmem:[%s1053 + $0xa0] sm:$0xf]
      %v1082 = vld [vmem:[%s1053 + $0xa8] sm:$0xf]
      %v1083 = vld [vmem:[%s1053 + $0xac] sm:$0xf]
      %v1084 = vld [vmem:[%s1053 + $0xb4] sm:$0xf]
      %v1085 = vld [vmem:[%s1053 + $0xb8] sm:$0xf]
      %v1086 = vld [vmem:[%s1053 + $0x8] sm:$0x1]
      %v1087 = vld [vmem:[%s1053 + $0x14] sm:$0x1]
      %v1088 = vld [vmem:[%s1053 + $0x20] sm:$0x1]
      %v1089 = vld [vmem:[%s1053 + $0x2c] sm:$0x1]
      %v1090 = vld [vmem:[%s1053 + $0x38] sm:$0x1]
      %v1091 = vld [vmem:[%s1053 + $0x44] sm:$0x1]
      %v1092 = vld [vmem:[%s1053 + $0x50] sm:$0x1]
      %v1093 = vld [vmem:[%s1053 + $0x5c] sm:$0x1]
      %v1094 = vld [vmem:[%s1053 + $0x68] sm:$0x1]
      %v1095 = vld [vmem:[%s1053 + $0x74] sm:$0x1]
      %v1096 = vld [vmem:[%s1053 + $0x80] sm:$0x1]
      %v1097 = vld [vmem:[%s1053 + $0x8c] sm:$0x1]
      %v1098 = vld [vmem:[%s1053 + $0x98] sm:$0x1]
      %v1099 = vld [vmem:[%s1053 + $0xa4] sm:$0x1]
      %v1100 = vld [vmem:[%s1053 + $0xb0] sm:$0x1]
      %v1101 = vld [vmem:[%s1053 + $0xbc] sm:$0x1]
      %v1103 = vshrl.u32 %v1054, 16
      %v1105 = vrot.slane %v1103, 4
      %v1106 = vshll.u32 %v1054, 16
      %v1108 = vrot.slane %v1106, 5
      %v1109 = vor.u32 %v1105, %v1108
      %v1110 = vrot.slane %v1109, 4
      %v1112 = vshll.u32 %v1055, 16
      %v1114 = vrot.slane %v1112, 5
      %v1115 = vsel %vm233, %v1110, %v1114
      %v1116 = vshrl.u32 %v1055, 16
      %v1118 = vrot.slane %v1116, 4
      %v1119 = vor.u32 %v1118, %v1114
      %v1120 = vrot.slane %v1119, 4
      %v1122 = vshll.u32 %v1086, 16
      %v1124 = vrot.slane %v1122, 5
      %v1125 = vsel %vm233, %v1120, %v1124
      %v1127 = vshrl.u32 %v1056, 16
      %v1129 = vrot.slane %v1127, 4
      %v1130 = vshll.u32 %v1056, 16
      %v1132 = vrot.slane %v1130, 5
      %v1133 = vor.u32 %v1129, %v1132
      %v1134 = vrot.slane %v1133, 4
      %v1136 = vshll.u32 %v1057, 16
      %v1138 = vrot.slane %v1136, 5
      %v1139 = vsel %vm233, %v1134, %v1138
      %v1140 = vshrl.u32 %v1057, 16
      %v1142 = vrot.slane %v1140, 4
      %v1143 = vor.u32 %v1142, %v1138
      %v1144 = vrot.slane %v1143, 4
      %v1146 = vshll.u32 %v1087, 16
      %v1148 = vrot.slane %v1146, 5
      %v1149 = vsel %vm233, %v1144, %v1148
      %v1151 = vshrl.u32 %v1058, 16
      %v1153 = vrot.slane %v1151, 4
      %v1154 = vshll.u32 %v1058, 16
      %v1156 = vrot.slane %v1154, 5
      %v1157 = vor.u32 %v1153, %v1156
      %v1158 = vrot.slane %v1157, 4
      %v1160 = vshll.u32 %v1059, 16
      %v1162 = vrot.slane %v1160, 5
      %v1163 = vsel %vm233, %v1158, %v1162
      %v1164 = vshrl.u32 %v1059, 16
      %v1166 = vrot.slane %v1164, 4
      %v1167 = vor.u32 %v1166, %v1162
      %v1168 = vrot.slane %v1167, 4
      %v1170 = vshll.u32 %v1088, 16
      %v1172 = vrot.slane %v1170, 5
      %v1173 = vsel %vm233, %v1168, %v1172
      %v1175 = vshrl.u32 %v1060, 16
      %v1177 = vrot.slane %v1175, 4
      %v1178 = vshll.u32 %v1060, 16
      %v1180 = vrot.slane %v1178, 5
      %v1181 = vor.u32 %v1177, %v1180
      %v1182 = vrot.slane %v1181, 4
      %v1184 = vshll.u32 %v1061, 16
      %v1186 = vrot.slane %v1184, 5
      %v1187 = vsel %vm233, %v1182, %v1186
      %v1188 = vshrl.u32 %v1061, 16
      %v1190 = vrot.slane %v1188, 4
      %v1191 = vor.u32 %v1190, %v1186
      %v1192 = vrot.slane %v1191, 4
      %v1194 = vshll.u32 %v1089, 16
      %v1196 = vrot.slane %v1194, 5
      %v1197 = vsel %vm233, %v1192, %v1196
      %v1199 = vshrl.u32 %v1062, 16
      %v1201 = vrot.slane %v1199, 4
      %v1202 = vshll.u32 %v1062, 16
      %v1204 = vrot.slane %v1202, 5
      %v1205 = vor.u32 %v1201, %v1204
      %v1206 = vrot.slane %v1205, 4
      %v1208 = vshll.u32 %v1063, 16
      %v1210 = vrot.slane %v1208, 5
      %v1211 = vsel %vm233, %v1206, %v1210
      %v1212 = vshrl.u32 %v1063, 16
      %v1214 = vrot.slane %v1212, 4
      %v1215 = vor.u32 %v1214, %v1210
      %v1216 = vrot.slane %v1215, 4
      %v1218 = vshll.u32 %v1090, 16
      %v1220 = vrot.slane %v1218, 5
      %v1221 = vsel %vm233, %v1216, %v1220
      %v1223 = vshrl.u32 %v1064, 16
      %v1225 = vrot.slane %v1223, 4
      %v1226 = vshll.u32 %v1064, 16
      %v1228 = vrot.slane %v1226, 5
      %v1229 = vor.u32 %v1225, %v1228
      %v1230 = vrot.slane %v1229, 4
      %v1232 = vshll.u32 %v1065, 16
      %v1234 = vrot.slane %v1232, 5
      %v1235 = vsel %vm233, %v1230, %v1234
      %v1236 = vshrl.u32 %v1065, 16
      %v1238 = vrot.slane %v1236, 4
      %v1239 = vor.u32 %v1238, %v1234
      %v1240 = vrot.slane %v1239, 4
      %v1242 = vshll.u32 %v1091, 16
      %v1244 = vrot.slane %v1242, 5
      %v1245 = vsel %vm233, %v1240, %v1244
      %v1247 = vshrl.u32 %v1066, 16
      %v1249 = vrot.slane %v1247, 4
      %v1250 = vshll.u32 %v1066, 16
      %v1252 = vrot.slane %v1250, 5
      %v1253 = vor.u32 %v1249, %v1252
      %v1254 = vrot.slane %v1253, 4
      %v1256 = vshll.u32 %v1067, 16
      %v1258 = vrot.slane %v1256, 5
      %v1259 = vsel %vm233, %v1254, %v1258
      %v1260 = vshrl.u32 %v1067, 16
      %v1262 = vrot.slane %v1260, 4
      %v1263 = vor.u32 %v1262, %v1258
      %v1264 = vrot.slane %v1263, 4
      %v1266 = vshll.u32 %v1092, 16
      %v1268 = vrot.slane %v1266, 5
      %v1269 = vsel %vm233, %v1264, %v1268
      %v1271 = vshrl.u32 %v1068, 16
      %v1273 = vrot.slane %v1271, 4
      %v1274 = vshll.u32 %v1068, 16
      %v1276 = vrot.slane %v1274, 5
      %v1277 = vor.u32 %v1273, %v1276
      %v1278 = vrot.slane %v1277, 4
      %v1280 = vshll.u32 %v1069, 16
      %v1282 = vrot.slane %v1280, 5
      %v1283 = vsel %vm233, %v1278, %v1282
      %v1284 = vshrl.u32 %v1069, 16
      %v1286 = vrot.slane %v1284, 4
      %v1287 = vor.u32 %v1286, %v1282
      %v1288 = vrot.slane %v1287, 4
      %v1290 = vshll.u32 %v1093, 16
      %v1292 = vrot.slane %v1290, 5
      %v1293 = vsel %vm233, %v1288, %v1292
      %v1295 = vshrl.u32 %v1070, 16
      %v1297 = vrot.slane %v1295, 4
      %v1298 = vshll.u32 %v1070, 16
      %v1300 = vrot.slane %v1298, 5
      %v1301 = vor.u32 %v1297, %v1300
      %v1302 = vrot.slane %v1301, 4
      %v1304 = vshll.u32 %v1071, 16
      %v1306 = vrot.slane %v1304, 5
      %v1307 = vsel %vm233, %v1302, %v1306
      %v1308 = vshrl.u32 %v1071, 16
      %v1310 = vrot.slane %v1308, 4
      %v1311 = vor.u32 %v1310, %v1306
      %v1312 = vrot.slane %v1311, 4
      %v1314 = vshll.u32 %v1094, 16
      %v1316 = vrot.slane %v1314, 5
      %v1317 = vsel %vm233, %v1312, %v1316
      %v1319 = vshrl.u32 %v1072, 16
      %v1321 = vrot.slane %v1319, 4
      %v1322 = vshll.u32 %v1072, 16
      %v1324 = vrot.slane %v1322, 5
      %v1325 = vor.u32 %v1321, %v1324
      %v1326 = vrot.slane %v1325, 4
      %v1328 = vshll.u32 %v1073, 16
      %v1330 = vrot.slane %v1328, 5
      %v1331 = vsel %vm233, %v1326, %v1330
      %v1332 = vshrl.u32 %v1073, 16
      %v1334 = vrot.slane %v1332, 4
      %v1335 = vor.u32 %v1334, %v1330
      %v1336 = vrot.slane %v1335, 4
      %v1338 = vshll.u32 %v1095, 16
      %v1340 = vrot.slane %v1338, 5
      %v1341 = vsel %vm233, %v1336, %v1340
      %v1343 = vshrl.u32 %v1074, 16
      %v1345 = vrot.slane %v1343, 4
      %v1346 = vshll.u32 %v1074, 16
      %v1348 = vrot.slane %v1346, 5
      %v1349 = vor.u32 %v1345, %v1348
      %v1350 = vrot.slane %v1349, 4
      %v1352 = vshll.u32 %v1075, 16
      %v1354 = vrot.slane %v1352, 5
      %v1355 = vsel %vm233, %v1350, %v1354
      %v1356 = vshrl.u32 %v1075, 16
      %v1358 = vrot.slane %v1356, 4
      %v1359 = vor.u32 %v1358, %v1354
      %v1360 = vrot.slane %v1359, 4
      %v1362 = vshll.u32 %v1096, 16
      %v1364 = vrot.slane %v1362, 5
      %v1365 = vsel %vm233, %v1360, %v1364
      %v1367 = vshrl.u32 %v1076, 16
      %v1369 = vrot.slane %v1367, 4
      %v1370 = vshll.u32 %v1076, 16
      %v1372 = vrot.slane %v1370, 5
      %v1373 = vor.u32 %v1369, %v1372
      %v1374 = vrot.slane %v1373, 4
      %v1376 = vshll.u32 %v1077, 16
      %v1378 = vrot.slane %v1376, 5
      %v1379 = vsel %vm233, %v1374, %v1378
      %v1380 = vshrl.u32 %v1077, 16
      %v1382 = vrot.slane %v1380, 4
      %v1383 = vor.u32 %v1382, %v1378
      %v1384 = vrot.slane %v1383, 4
      %v1386 = vshll.u32 %v1097, 16
      %v1388 = vrot.slane %v1386, 5
      %v1389 = vsel %vm233, %v1384, %v1388
      %v1391 = vshrl.u32 %v1078, 16
      %v1393 = vrot.slane %v1391, 4
      %v1394 = vshll.u32 %v1078, 16
      %v1396 = vrot.slane %v1394, 5
      %v1397 = vor.u32 %v1393, %v1396
      %v1398 = vrot.slane %v1397, 4
      %v1400 = vshll.u32 %v1079, 16
      %v1402 = vrot.slane %v1400, 5
      %v1403 = vsel %vm233, %v1398, %v1402
      %v1404 = vshrl.u32 %v1079, 16
      %v1406 = vrot.slane %v1404, 4
      %v1407 = vor.u32 %v1406, %v1402
      %v1408 = vrot.slane %v1407, 4
      %v1410 = vshll.u32 %v1098, 16
      %v1412 = vrot.slane %v1410, 5
      %v1413 = vsel %vm233, %v1408, %v1412
      %v1415 = vshrl.u32 %v1080, 16
      %v1417 = vrot.slane %v1415, 4
      %v1418 = vshll.u32 %v1080, 16
      %v1420 = vrot.slane %v1418, 5
      %v1421 = vor.u32 %v1417, %v1420
      %v1422 = vrot.slane %v1421, 4
      %v1424 = vshll.u32 %v1081, 16
      %v1426 = vrot.slane %v1424, 5
      %v1427 = vsel %vm233, %v1422, %v1426
      %v1428 = vshrl.u32 %v1081, 16
      %v1430 = vrot.slane %v1428, 4
      %v1431 = vor.u32 %v1430, %v1426
      %v1432 = vrot.slane %v1431, 4
      %v1434 = vshll.u32 %v1099, 16
      %v1436 = vrot.slane %v1434, 5
      %v1437 = vsel %vm233, %v1432, %v1436
      %v1439 = vshrl.u32 %v1082, 16
      %v1441 = vrot.slane %v1439, 4
      %v1442 = vshll.u32 %v1082, 16
      %v1444 = vrot.slane %v1442, 5
      %v1445 = vor.u32 %v1441, %v1444
      %v1446 = vrot.slane %v1445, 4
      %v1448 = vshll.u32 %v1083, 16
      %v1450 = vrot.slane %v1448, 5
      %v1451 = vsel %vm233, %v1446, %v1450
      %v1452 = vshrl.u32 %v1083, 16
      %v1454 = vrot.slane %v1452, 4
      %v1455 = vor.u32 %v1454, %v1450
      %v1456 = vrot.slane %v1455, 4
      %v1458 = vshll.u32 %v1100, 16
      %v1460 = vrot.slane %v1458, 5
      %v1461 = vsel %vm233, %v1456, %v1460
      %v1463 = vshrl.u32 %v1084, 16
      %v1465 = vrot.slane %v1463, 4
      %v1466 = vshll.u32 %v1084, 16
      %v1468 = vrot.slane %v1466, 5
      %v1469 = vor.u32 %v1465, %v1468
      %v1470 = vrot.slane %v1469, 4
      %v1472 = vshll.u32 %v1085, 16
      %v1474 = vrot.slane %v1472, 5
      %v1475 = vsel %vm233, %v1470, %v1474
      %v1476 = vshrl.u32 %v1085, 16
      %v1478 = vrot.slane %v1476, 4
      %v1479 = vor.u32 %v1478, %v1474
      %v1480 = vrot.slane %v1479, 4
      %v1482 = vshll.u32 %v1101, 16
      %v1484 = vrot.slane %v1482, 5
      %v1485 = vsel %vm233, %v1480, %v1484
      %v1486 = vld [vmem:[%s1053] sm:$0xe]
      %v1487 = vld [vmem:[%s1053 + $0xc] sm:$0xe]
      %v1488 = vld [vmem:[%s1053 + $0x18] sm:$0xe]
      %v1489 = vld [vmem:[%s1053 + $0x24] sm:$0xe]
      %v1490 = vld [vmem:[%s1053 + $0x30] sm:$0xe]
      %v1491 = vld [vmem:[%s1053 + $0x3c] sm:$0xe]
      %v1492 = vld [vmem:[%s1053 + $0x48] sm:$0xe]
      %v1493 = vld [vmem:[%s1053 + $0x54] sm:$0xe]
      %v1494 = vld [vmem:[%s1053 + $0x60] sm:$0xe]
      %v1495 = vld [vmem:[%s1053 + $0x6c] sm:$0xe]
      %v1496 = vld [vmem:[%s1053 + $0x78] sm:$0xe]
      %v1497 = vld [vmem:[%s1053 + $0x84] sm:$0xe]
      %v1498 = vld [vmem:[%s1053 + $0x90] sm:$0xe]
      %v1499 = vld [vmem:[%s1053 + $0x9c] sm:$0xe]
      %v1500 = vld [vmem:[%s1053 + $0xa8] sm:$0xe]
      %v1501 = vld [vmem:[%s1053 + $0xb4] sm:$0xe]
      %v1550 = vrot.slane %v1486, 5
      %v1551 = vrot.slane %v1550, 4
      %v1552 = vrot.slane %v1055, 5
      %v1553 = vsel %vm684, %v1551, %v1552
      %v1554 = vrot.slane %v1552, 4
      %v1555 = vrot.slane %v1086, 5
      %v1556 = vsel %vm684, %v1554, %v1555
      %v1557 = vrot.slane %v1487, 5
      %v1558 = vrot.slane %v1557, 4
      %v1559 = vrot.slane %v1057, 5
      %v1560 = vsel %vm684, %v1558, %v1559
      %v1561 = vrot.slane %v1559, 4
      %v1562 = vrot.slane %v1087, 5
      %v1563 = vsel %vm684, %v1561, %v1562
      %v1564 = vrot.slane %v1488, 5
      %v1565 = vrot.slane %v1564, 4
      %v1566 = vrot.slane %v1059, 5
      %v1567 = vsel %vm684, %v1565, %v1566
      %v1568 = vrot.slane %v1566, 4
      %v1569 = vrot.slane %v1088, 5
      %v1570 = vsel %vm684, %v1568, %v1569
      %v1571 = vrot.slane %v1489, 5
      %v1572 = vrot.slane %v1571, 4
      %v1573 = vrot.slane %v1061, 5
      %v1574 = vsel %vm684, %v1572, %v1573
      %v1575 = vrot.slane %v1573, 4
      %v1576 = vrot.slane %v1089, 5
      %v1577 = vsel %vm684, %v1575, %v1576
      %v1578 = vrot.slane %v1490, 5
      %v1579 = vrot.slane %v1578, 4
      %v1580 = vrot.slane %v1063, 5
      %v1581 = vsel %vm684, %v1579, %v1580
      %v1582 = vrot.slane %v1580, 4
      %v1583 = vrot.slane %v1090, 5
      %v1584 = vsel %vm684, %v1582, %v1583
      %v1585 = vrot.slane %v1491, 5
      %v1586 = vrot.slane %v1585, 4
      %v1587 = vrot.slane %v1065, 5
      %v1588 = vsel %vm684, %v1586, %v1587
      %v1589 = vrot.slane %v1587, 4
      %v1590 = vrot.slane %v1091, 5
      %v1591 = vsel %vm684, %v1589, %v1590
      %v1592 = vrot.slane %v1492, 5
      %v1593 = vrot.slane %v1592, 4
      %v1594 = vrot.slane %v1067, 5
      %v1595 = vsel %vm684, %v1593, %v1594
      %v1596 = vrot.slane %v1594, 4
      %v1597 = vrot.slane %v1092, 5
      %v1598 = vsel %vm684, %v1596, %v1597
      %v1599 = vrot.slane %v1493, 5
      %v1600 = vrot.slane %v1599, 4
      %v1601 = vrot.slane %v1069, 5
      %v1602 = vsel %vm684, %v1600, %v1601
      %v1603 = vrot.slane %v1601, 4
      %v1604 = vrot.slane %v1093, 5
      %v1605 = vsel %vm684, %v1603, %v1604
      %v1606 = vrot.slane %v1494, 5
      %v1607 = vrot.slane %v1606, 4
      %v1608 = vrot.slane %v1071, 5
      %v1609 = vsel %vm684, %v1607, %v1608
      %v1610 = vrot.slane %v1608, 4
      %v1611 = vrot.slane %v1094, 5
      %v1612 = vsel %vm684, %v1610, %v1611
      %v1613 = vrot.slane %v1495, 5
      %v1614 = vrot.slane %v1613, 4
      %v1615 = vrot.slane %v1073, 5
      %v1616 = vsel %vm684, %v1614, %v1615
      %v1617 = vrot.slane %v1615, 4
      %v1618 = vrot.slane %v1095, 5
      %v1619 = vsel %vm684, %v1617, %v1618
      %v1620 = vrot.slane %v1496, 5
      %v1621 = vrot.slane %v1620, 4
      %v1622 = vrot.slane %v1075, 5
      %v1623 = vsel %vm684, %v1621, %v1622
      %v1624 = vrot.slane %v1622, 4
      %v1625 = vrot.slane %v1096, 5
      %v1626 = vsel %vm684, %v1624, %v1625
      %v1627 = vrot.slane %v1497, 5
      %v1628 = vrot.slane %v1627, 4
      %v1629 = vrot.slane %v1077, 5
      %v1630 = vsel %vm684, %v1628, %v1629
      %v1631 = vrot.slane %v1629, 4
      %v1632 = vrot.slane %v1097, 5
      %v1633 = vsel %vm684, %v1631, %v1632
      %v1634 = vrot.slane %v1498, 5
      %v1635 = vrot.slane %v1634, 4
      %v1636 = vrot.slane %v1079, 5
      %v1637 = vsel %vm684, %v1635, %v1636
      %v1638 = vrot.slane %v1636, 4
      %v1639 = vrot.slane %v1098, 5
      %v1640 = vsel %vm684, %v1638, %v1639
      %v1641 = vrot.slane %v1499, 5
      %v1642 = vrot.slane %v1641, 4
      %v1643 = vrot.slane %v1081, 5
      %v1644 = vsel %vm684, %v1642, %v1643
      %v1645 = vrot.slane %v1643, 4
      %v1646 = vrot.slane %v1099, 5
      %v1647 = vsel %vm684, %v1645, %v1646
      %v1648 = vrot.slane %v1500, 5
      %v1649 = vrot.slane %v1648, 4
      %v1650 = vrot.slane %v1083, 5
      %v1651 = vsel %vm684, %v1649, %v1650
      %v1652 = vrot.slane %v1650, 4
      %v1653 = vrot.slane %v1100, 5
      %v1654 = vsel %vm684, %v1652, %v1653
      %v1655 = vrot.slane %v1501, 5
      %v1656 = vrot.slane %v1655, 4
      %v1657 = vrot.slane %v1085, 5
      %v1658 = vsel %vm684, %v1656, %v1657
      %v1659 = vrot.slane %v1657, 4
      %v1660 = vrot.slane %v1101, 5
      %v1661 = vsel %vm684, %v1659, %v1660
      %v1678 = vunpack.c.l.b16 %v1054
      %v1679 = vunpack.c.l.b16 %v1055
      %v1680 = vunpack.c.l.b16 %v1056
      %v1681 = vunpack.c.l.b16 %v1057
      %v1682 = vunpack.c.l.b16 %v1058
      %v1683 = vunpack.c.l.b16 %v1059
      %v1684 = vunpack.c.l.b16 %v1060
      %v1685 = vunpack.c.l.b16 %v1061
      %v1686 = vunpack.c.l.b16 %v1062
      %v1687 = vunpack.c.l.b16 %v1063
      %v1688 = vunpack.c.l.b16 %v1064
      %v1689 = vunpack.c.l.b16 %v1065
      %v1690 = vunpack.c.l.b16 %v1066
      %v1691 = vunpack.c.l.b16 %v1067
      %v1692 = vunpack.c.l.b16 %v1068
      %v1693 = vunpack.c.l.b16 %v1069
      %v1694 = vunpack.c.l.b16 %v1070
      %v1695 = vunpack.c.l.b16 %v1071
      %v1696 = vunpack.c.l.b16 %v1072
      %v1697 = vunpack.c.l.b16 %v1073
      %v1698 = vunpack.c.l.b16 %v1074
      %v1699 = vunpack.c.l.b16 %v1075
      %v1700 = vunpack.c.l.b16 %v1076
      %v1701 = vunpack.c.l.b16 %v1077
      %v1702 = vunpack.c.l.b16 %v1078
      %v1703 = vunpack.c.l.b16 %v1079
      %v1704 = vunpack.c.l.b16 %v1080
      %v1705 = vunpack.c.l.b16 %v1081
      %v1706 = vunpack.c.l.b16 %v1082
      %v1707 = vunpack.c.l.b16 %v1083
      %v1708 = vunpack.c.l.b16 %v1084
      %v1709 = vunpack.c.l.b16 %v1085
      %v1710 = vpack.c.b16 %v1679, %v1678
      %v1711 = vpack.c.b16 %v1681, %v1680
      %v1712 = vpack.c.b16 %v1683, %v1682
      %v1713 = vpack.c.b16 %v1685, %v1684
      %v1714 = vpack.c.b16 %v1687, %v1686
      %v1715 = vpack.c.b16 %v1689, %v1688
      %v1716 = vpack.c.b16 %v1691, %v1690
      %v1717 = vpack.c.b16 %v1693, %v1692
      %v1718 = vpack.c.b16 %v1695, %v1694
      %v1719 = vpack.c.b16 %v1697, %v1696
      %v1720 = vpack.c.b16 %v1699, %v1698
      %v1721 = vpack.c.b16 %v1701, %v1700
      %v1722 = vpack.c.b16 %v1703, %v1702
      %v1723 = vpack.c.b16 %v1705, %v1704
      %v1724 = vpack.c.b16 %v1707, %v1706
      %v1725 = vpack.c.b16 %v1709, %v1708
      %v1742 = vunpack.c.l.b16 %v1115
      %v1743 = vunpack.c.l.b16 %v1125
      %v1744 = vunpack.c.l.b16 %v1139
      %v1745 = vunpack.c.l.b16 %v1149
      %v1746 = vunpack.c.l.b16 %v1163
      %v1747 = vunpack.c.l.b16 %v1173
      %v1748 = vunpack.c.l.b16 %v1187
      %v1749 = vunpack.c.l.b16 %v1197
      %v1750 = vunpack.c.l.b16 %v1211
      %v1751 = vunpack.c.l.b16 %v1221
      %v1752 = vunpack.c.l.b16 %v1235
      %v1753 = vunpack.c.l.b16 %v1245
      %v1754 = vunpack.c.l.b16 %v1259
      %v1755 = vunpack.c.l.b16 %v1269
      %v1756 = vunpack.c.l.b16 %v1283
      %v1757 = vunpack.c.l.b16 %v1293
      %v1758 = vunpack.c.l.b16 %v1307
      %v1759 = vunpack.c.l.b16 %v1317
      %v1760 = vunpack.c.l.b16 %v1331
      %v1761 = vunpack.c.l.b16 %v1341
      %v1762 = vunpack.c.l.b16 %v1355
      %v1763 = vunpack.c.l.b16 %v1365
      %v1764 = vunpack.c.l.b16 %v1379
      %v1765 = vunpack.c.l.b16 %v1389
      %v1766 = vunpack.c.l.b16 %v1403
      %v1767 = vunpack.c.l.b16 %v1413
      %v1768 = vunpack.c.l.b16 %v1427
      %v1769 = vunpack.c.l.b16 %v1437
      %v1770 = vunpack.c.l.b16 %v1451
      %v1771 = vunpack.c.l.b16 %v1461
      %v1772 = vunpack.c.l.b16 %v1475
      %v1773 = vunpack.c.l.b16 %v1485
      %v1774 = vpack.c.b16 %v1743, %v1742
      %v1775 = vpack.c.b16 %v1745, %v1744
      %v1776 = vpack.c.b16 %v1747, %v1746
      %v1777 = vpack.c.b16 %v1749, %v1748
      %v1778 = vpack.c.b16 %v1751, %v1750
      %v1779 = vpack.c.b16 %v1753, %v1752
      %v1780 = vpack.c.b16 %v1755, %v1754
      %v1781 = vpack.c.b16 %v1757, %v1756
      %v1782 = vpack.c.b16 %v1759, %v1758
      %v1783 = vpack.c.b16 %v1761, %v1760
      %v1784 = vpack.c.b16 %v1763, %v1762
      %v1785 = vpack.c.b16 %v1765, %v1764
      %v1786 = vpack.c.b16 %v1767, %v1766
      %v1787 = vpack.c.b16 %v1769, %v1768
      %v1788 = vpack.c.b16 %v1771, %v1770
      %v1789 = vpack.c.b16 %v1773, %v1772
      %v1806 = vunpack.c.l.b16 %v1553
      %v1807 = vunpack.c.l.b16 %v1556
      %v1808 = vunpack.c.l.b16 %v1560
      %v1809 = vunpack.c.l.b16 %v1563
      %v1810 = vunpack.c.l.b16 %v1567
      %v1811 = vunpack.c.l.b16 %v1570
      %v1812 = vunpack.c.l.b16 %v1574
      %v1813 = vunpack.c.l.b16 %v1577
      %v1814 = vunpack.c.l.b16 %v1581
      %v1815 = vunpack.c.l.b16 %v1584
      %v1816 = vunpack.c.l.b16 %v1588
      %v1817 = vunpack.c.l.b16 %v1591
      %v1818 = vunpack.c.l.b16 %v1595
      %v1819 = vunpack.c.l.b16 %v1598
      %v1820 = vunpack.c.l.b16 %v1602
      %v1821 = vunpack.c.l.b16 %v1605
      %v1822 = vunpack.c.l.b16 %v1609
      %v1823 = vunpack.c.l.b16 %v1612
      %v1824 = vunpack.c.l.b16 %v1616
      %v1825 = vunpack.c.l.b16 %v1619
      %v1826 = vunpack.c.l.b16 %v1623
      %v1827 = vunpack.c.l.b16 %v1626
      %v1828 = vunpack.c.l.b16 %v1630
      %v1829 = vunpack.c.l.b16 %v1633
      %v1830 = vunpack.c.l.b16 %v1637
      %v1831 = vunpack.c.l.b16 %v1640
      %v1832 = vunpack.c.l.b16 %v1644
      %v1833 = vunpack.c.l.b16 %v1647
      %v1834 = vunpack.c.l.b16 %v1651
      %v1835 = vunpack.c.l.b16 %v1654
      %v1836 = vunpack.c.l.b16 %v1658
      %v1837 = vunpack.c.l.b16 %v1661
      %v1838 = vpack.c.b16 %v1807, %v1806
      %v1839 = vpack.c.b16 %v1809, %v1808
      %v1840 = vpack.c.b16 %v1811, %v1810
      %v1841 = vpack.c.b16 %v1813, %v1812
      %v1842 = vpack.c.b16 %v1815, %v1814
      %v1843 = vpack.c.b16 %v1817, %v1816
      %v1844 = vpack.c.b16 %v1819, %v1818
      %v1845 = vpack.c.b16 %v1821, %v1820
      %v1846 = vpack.c.b16 %v1823, %v1822
      %v1847 = vpack.c.b16 %v1825, %v1824
      %v1848 = vpack.c.b16 %v1827, %v1826
      %v1849 = vpack.c.b16 %v1829, %v1828
      %v1850 = vpack.c.b16 %v1831, %v1830
      %v1851 = vpack.c.b16 %v1833, %v1832
      %v1852 = vpack.c.b16 %v1835, %v1834
      %v1853 = vpack.c.b16 %v1837, %v1836
      %s1870 = scalar_lea.vmem %s1, 192
      %v1871 = vld [vmem:[%s1870] sm:$0xf]
      %v1872 = vld [vmem:[%s1870 + $0x4] sm:$0xf]
      %v1873 = vld [vmem:[%s1870 + $0x8] sm:$0xf]
      %v1874 = vld [vmem:[%s1870 + $0xc] sm:$0xf]
      %v1875 = vld [vmem:[%s1870 + $0x10] sm:$0xf]
      %v1876 = vld [vmem:[%s1870 + $0x14] sm:$0xf]
      %v1877 = vld [vmem:[%s1870 + $0x18] sm:$0xf]
      %v1878 = vld [vmem:[%s1870 + $0x1c] sm:$0xf]
      %v1879 = vld [vmem:[%s1870 + $0x20] sm:$0xf]
      %v1880 = vld [vmem:[%s1870 + $0x24] sm:$0xf]
      %v1881 = vld [vmem:[%s1870 + $0x28] sm:$0xf]
      %v1882 = vld [vmem:[%s1870 + $0x2c] sm:$0xf]
      %v1883 = vld [vmem:[%s1870 + $0x30] sm:$0xf]
      %v1884 = vld [vmem:[%s1870 + $0x34] sm:$0xf]
      %v1885 = vld [vmem:[%s1870 + $0x38] sm:$0xf]
      %v1886 = vld [vmem:[%s1870 + $0x3c] sm:$0xf]
      %v1887 = vld [vmem:[%s1870 + $0x40] sm:$0xf]
      %v1888 = vld [vmem:[%s1870 + $0x44] sm:$0xf]
      %v1889 = vld [vmem:[%s1870 + $0x48] sm:$0xf]
      %v1890 = vld [vmem:[%s1870 + $0x4c] sm:$0xf]
      %v1891 = vld [vmem:[%s1870 + $0x50] sm:$0xf]
      %v1892 = vld [vmem:[%s1870 + $0x54] sm:$0xf]
      %v1893 = vld [vmem:[%s1870 + $0x58] sm:$0xf]
      %v1894 = vld [vmem:[%s1870 + $0x5c] sm:$0xf]
      %v1895 = vld [vmem:[%s1870 + $0x60] sm:$0xf]
      %v1896 = vld [vmem:[%s1870 + $0x64] sm:$0xf]
      %v1897 = vld [vmem:[%s1870 + $0x68] sm:$0xf]
      %v1898 = vld [vmem:[%s1870 + $0x6c] sm:$0xf]
      %v1899 = vld [vmem:[%s1870 + $0x70] sm:$0xf]
      %v1900 = vld [vmem:[%s1870 + $0x74] sm:$0xf]
      %v1901 = vld [vmem:[%s1870 + $0x78] sm:$0xf]
      %v1902 = vld [vmem:[%s1870 + $0x7c] sm:$0xf]
      %v1903 = vld [vmem:[%s1870 + $0x80] sm:$0xf]
      %v1904 = vld [vmem:[%s1870 + $0x84] sm:$0xf]
      %v1905 = vld [vmem:[%s1870 + $0x88] sm:$0xf]
      %v1906 = vld [vmem:[%s1870 + $0x8c] sm:$0xf]
      %v1907 = vld [vmem:[%s1870 + $0x90] sm:$0xf]
      %v1908 = vld [vmem:[%s1870 + $0x94] sm:$0xf]
      %v1909 = vld [vmem:[%s1870 + $0x98] sm:$0xf]
      %v1910 = vld [vmem:[%s1870 + $0x9c] sm:$0xf]
      %v1911 = vld [vmem:[%s1870 + $0xa0] sm:$0xf]
      %v1912 = vld [vmem:[%s1870 + $0xa4] sm:$0xf]
      %v1913 = vld [vmem:[%s1870 + $0xa8] sm:$0xf]
      %v1914 = vld [vmem:[%s1870 + $0xac] sm:$0xf]
      %v1915 = vld [vmem:[%s1870 + $0xb0] sm:$0xf]
      %v1916 = vld [vmem:[%s1870 + $0xb4] sm:$0xf]
      %v1917 = vld [vmem:[%s1870 + $0xb8] sm:$0xf]
      %v1918 = vld [vmem:[%s1870 + $0xbc] sm:$0xf]
      %v1967 = vunpack.c.l.b16 %v1871
      %v1968 = vunpack.c.l.b16 %v1872
      %v1969 = vunpack.c.l.b16 %v1873
      %v1970 = vunpack.c.l.b16 %v1874
      %v1971 = vunpack.c.l.b16 %v1875
      %v1972 = vunpack.c.l.b16 %v1876
      %v1973 = vunpack.c.l.b16 %v1877
      %v1974 = vunpack.c.l.b16 %v1878
      %v1975 = vunpack.c.l.b16 %v1879
      %v1976 = vunpack.c.l.b16 %v1880
      %v1977 = vunpack.c.l.b16 %v1881
      %v1978 = vunpack.c.l.b16 %v1882
      %v1979 = vunpack.c.l.b16 %v1883
      %v1980 = vunpack.c.l.b16 %v1884
      %v1981 = vunpack.c.l.b16 %v1885
      %v1982 = vunpack.c.l.b16 %v1886
      %v1983 = vunpack.c.l.b16 %v1887
      %v1984 = vunpack.c.l.b16 %v1888
      %v1985 = vunpack.c.l.b16 %v1889
      %v1986 = vunpack.c.l.b16 %v1890
      %v1987 = vunpack.c.l.b16 %v1891
      %v1988 = vunpack.c.l.b16 %v1892
      %v1989 = vunpack.c.l.b16 %v1893
      %v1990 = vunpack.c.l.b16 %v1894
      %v1991 = vunpack.c.l.b16 %v1895
      %v1992 = vunpack.c.l.b16 %v1896
      %v1993 = vunpack.c.l.b16 %v1897
      %v1994 = vunpack.c.l.b16 %v1898
      %v1995 = vunpack.c.l.b16 %v1899
      %v1996 = vunpack.c.l.b16 %v1900
      %v1997 = vunpack.c.l.b16 %v1901
      %v1998 = vunpack.c.l.b16 %v1902
      %v1999 = vunpack.c.l.b16 %v1903
      %v2000 = vunpack.c.l.b16 %v1904
      %v2001 = vunpack.c.l.b16 %v1905
      %v2002 = vunpack.c.l.b16 %v1906
      %v2003 = vunpack.c.l.b16 %v1907
      %v2004 = vunpack.c.l.b16 %v1908
      %v2005 = vunpack.c.l.b16 %v1909
      %v2006 = vunpack.c.l.b16 %v1910
      %v2007 = vunpack.c.l.b16 %v1911
      %v2008 = vunpack.c.l.b16 %v1912
      %v2009 = vunpack.c.l.b16 %v1913
      %v2010 = vunpack.c.l.b16 %v1914
      %v2011 = vunpack.c.l.b16 %v1915
      %v2012 = vunpack.c.l.b16 %v1916
      %v2013 = vunpack.c.l.b16 %v1917
      %v2014 = vunpack.c.l.b16 %v1918
      %v2015 = vpack.c.b16 %v1968, %v1967
      %v2016 = vpack.c.b16 %v1970, %v1969
      %v2017 = vpack.c.b16 %v1972, %v1971
      %v2018 = vpack.c.b16 %v1974, %v1973
      %v2019 = vpack.c.b16 %v1976, %v1975
      %v2020 = vpack.c.b16 %v1978, %v1977
      %v2021 = vpack.c.b16 %v1980, %v1979
      %v2022 = vpack.c.b16 %v1982, %v1981
      %v2023 = vpack.c.b16 %v1984, %v1983
      %v2024 = vpack.c.b16 %v1986, %v1985
      %v2025 = vpack.c.b16 %v1988, %v1987
      %v2026 = vpack.c.b16 %v1990, %v1989
      %v2027 = vpack.c.b16 %v1992, %v1991
      %v2028 = vpack.c.b16 %v1994, %v1993
      %v2029 = vpack.c.b16 %v1996, %v1995
      %v2030 = vpack.c.b16 %v1998, %v1997
      %v2031 = vpack.c.b16 %v2000, %v1999
      %v2032 = vpack.c.b16 %v2002, %v2001
      %v2033 = vpack.c.b16 %v2004, %v2003
      %v2034 = vpack.c.b16 %v2006, %v2005
      %v2035 = vpack.c.b16 %v2008, %v2007
      %v2036 = vpack.c.b16 %v2010, %v2009
      %v2037 = vpack.c.b16 %v2012, %v2011
      %v2038 = vpack.c.b16 %v2014, %v2013
      %2063 = vmatprep.subr.bf16.mxu0 0
      %2064 = vmatpush1.bf16.msra.mxu0 %v2015
      %2065 = vmatprep.subr.bf16.mxu0 0
      %2066 = vmatpush1.bf16.msra.mxu0 %v2016
      %2067 = vmatprep.subr.bf16.mxu0 0
      %2068 = vmatpush1.bf16.msra.mxu0 %v2017
      %2069 = vmatprep.subr.bf16.mxu0 0
      %2070 = vmatpush1.bf16.msra.mxu0 %v2018
      %2071 = vmatprep.subr.bf16.mxu0 0
      %2072 = vmatpush1.bf16.msra.mxu0 %v2019
      %2073 = vmatprep.subr.bf16.mxu0 0
      %2074 = vmatpush1.bf16.msra.mxu0 %v2020
      %2075 = vmatprep.subr.bf16.mxu0 0
      %2076 = vmatpush1.bf16.msra.mxu0 %v2021
      %2077 = vmatprep.subr.bf16.mxu0 0
      %2078 = vmatpush1.bf16.msra.mxu0 %v2022
      %2079 = vmatprep.subr.bf16.mxu0 0
      %2080 = vmatpush1.bf16.msra.mxu0 %v2023
      %2081 = vmatprep.subr.bf16.mxu0 0
      %2082 = vmatpush1.bf16.msra.mxu0 %v2024
      %2083 = vmatprep.subr.bf16.mxu0 0
      %2084 = vmatpush1.bf16.msra.mxu0 %v2025
      %2085 = vmatprep.subr.bf16.mxu0 0
      %2086 = vmatpush1.bf16.msra.mxu0 %v2026
      %2087 = vmatprep.subr.bf16.mxu0 0
      %2088 = vmatpush1.bf16.msra.mxu0 %v2027
      %2089 = vmatprep.subr.bf16.mxu0 0
      %2090 = vmatpush1.bf16.msra.mxu0 %v2028
      %2091 = vmatprep.subr.bf16.mxu0 0
      %2092 = vmatpush1.bf16.msra.mxu0 %v2029
      %2093 = vmatprep.subr.bf16.mxu0 0
      %2094 = vmatpush1.bf16.msra.mxu0 %v2030
      %2095 = vmatprep.mubr.bf16.mxu0 %v1774
      %2096 = vmatmul.mubr.bf16.gmra.mrb[0].mxu0 %v1710
      %v2097 = vpop.f32.mrb[0].mxu0
      %v2098 = vadd.f32 0.0, %v2097
      %v2099 = vpop.f32.mrb[0].mxu0
      %v2100 = vpop.f32.mrb[0].mxu0
      %v2101 = vadd.f32 0.0, %v2100
      %v2102 = vpop.f32.mrb[0].mxu0
      %2103 = vmatprep.mubr.bf16.mxu0 %v1775
      %2104 = vmatmul.mubr.bf16.gmra.mrb[0].mxu0 %v1711
      %v2105 = vpop.f32.mrb[0].mxu0
      %v2106 = vadd.f32 0.0, %v2105
      %v2107 = vpop.f32.mrb[0].mxu0
      %v2108 = vpop.f32.mrb[0].mxu0
      %v2109 = vadd.f32 0.0, %v2108
      %v2110 = vpop.f32.mrb[0].mxu0
      %2111 = vmatprep.mubr.bf16.mxu0 %v1776
      %2112 = vmatmul.mubr.bf16.gmra.mrb[0].mxu0 %v1712
      %v2113 = vpop.f32.mrb[0].mxu0
      %v2114 = vadd.f32 0.0, %v2113
      %v2115 = vpop.f32.mrb[0].mxu0
      %v2116 = vpop.f32.mrb[0].mxu0
      %v2117 = vadd.f32 0.0, %v2116
      %v2118 = vpop.f32.mrb[0].mxu0
      %2119 = vmatprep.mubr.bf16.mxu0 %v1777
      %2120 = vmatmul.mubr.bf16.gmra.mrb[0].mxu0 %v1713
      %v2121 = vpop.f32.mrb[0].mxu0
      %v2122 = vadd.f32 0.0, %v2121
      %v2123 = vpop.f32.mrb[0].mxu0
      %v2124 = vpop.f32.mrb[0].mxu0
      %v2125 = vadd.f32 0.0, %v2124
      %v2126 = vpop.f32.mrb[0].mxu0
      %2127 = vmatprep.mubr.bf16.mxu0 %v1778
      %2128 = vmatmul.mubr.bf16.gmra.mrb[0].mxu0 %v1714
      %v2129 = vpop.f32.mrb[0].mxu0
      %v2130 = vadd.f32 0.0, %v2129
      %v2131 = vpop.f32.mrb[0].mxu0
      %v2132 = vpop.f32.mrb[0].mxu0
      %v2133 = vadd.f32 0.0, %v2132
      %v2134 = vpop.f32.mrb[0].mxu0
      %2135 = vmatprep.mubr.bf16.mxu0 %v1779
      %2136 = vmatmul.mubr.bf16.gmra.mrb[0].mxu0 %v1715
      %v2137 = vpop.f32.mrb[0].mxu0
      %v2138 = vadd.f32 0.0, %v2137
      %v2139 = vpop.f32.mrb[0].mxu0
      %v2140 = vpop.f32.mrb[0].mxu0
      %v2141 = vadd.f32 0.0, %v2140
      %v2142 = vpop.f32.mrb[0].mxu0
      %2143 = vmatprep.mubr.bf16.mxu0 %v1780
      %2144 = vmatmul.mubr.bf16.gmra.mrb[0].mxu0 %v1716
      %v2145 = vpop.f32.mrb[0].mxu0
      %v2146 = vadd.f32 0.0, %v2145
      %v2147 = vpop.f32.mrb[0].mxu0
      %v2148 = vpop.f32.mrb[0].mxu0
      %v2149 = vadd.f32 0.0, %v2148
      %v2150 = vpop.f32.mrb[0].mxu0
      %2151 = vmatprep.mubr.bf16.mxu0 %v1781
      %2152 = vmatmul.mubr.bf16.gmra.mrb[0].mxu0 %v1717
      %v2153 = vpop.f32.mrb[0].mxu0
      %v2154 = vadd.f32 0.0, %v2153
      %v2155 = vpop.f32.mrb[0].mxu0
      %v2156 = vpop.f32.mrb[0].mxu0
      %v2157 = vadd.f32 0.0, %v2156
      %v2158 = vpop.f32.mrb[0].mxu0
      %2159 = vmatprep.mubr.bf16.mxu0 %v1782
      %2160 = vmatmul.mubr.bf16.gmra.mrb[0].mxu0 %v1718
      %v2161 = vpop.f32.mrb[0].mxu0
      %v2162 = vadd.f32 0.0, %v2161
      %v2163 = vpop.f32.mrb[0].mxu0
      %v2164 = vpop.f32.mrb[0].mxu0
      %v2165 = vadd.f32 0.0, %v2164
      %v2166 = vpop.f32.mrb[0].mxu0
      %2167 = vmatprep.mubr.bf16.mxu0 %v1783
      %2168 = vmatmul.mubr.bf16.gmra.mrb[0].mxu0 %v1719
      %v2169 = vpop.f32.mrb[0].mxu0
      %v2170 = vadd.f32 0.0, %v2169
      %v2171 = vpop.f32.mrb[0].mxu0
      %v2172 = vpop.f32.mrb[0].mxu0
      %v2173 = vadd.f32 0.0, %v2172
      %v2174 = vpop.f32.mrb[0].mxu0
      %2175 = vmatprep.mubr.bf16.mxu0 %v1784
      %2176 = vmatmul.mubr.bf16.gmra.mrb[0].mxu0 %v1720
      %v2177 = vpop.f32.mrb[0].mxu0
      %v2178 = vadd.f32 0.0, %v2177
      %v2179 = vpop.f32.mrb[0].mxu0
      %v2180 = vpop.f32.mrb[0].mxu0
      %v2181 = vadd.f32 0.0, %v2180
      %v2182 = vpop.f32.mrb[0].mxu0
      %2183 = vmatprep.mubr.bf16.mxu0 %v1785
      %2184 = vmatmul.mubr.bf16.gmra.mrb[0].mxu0 %v1721
      %v2185 = vpop.f32.mrb[0].mxu0
      %v2186 = vadd.f32 0.0, %v2185
      %v2187 = vpop.f32.mrb[0].mxu0
      %v2188 = vpop.f32.mrb[0].mxu0
      %v2189 = vadd.f32 0.0, %v2188
      %v2190 = vpop.f32.mrb[0].mxu0
      %2191 = vmatprep.mubr.bf16.mxu0 %v1786
      %2192 = vmatmul.mubr.bf16.gmra.mrb[0].mxu0 %v1722
      %v2193 = vpop.f32.mrb[0].mxu0
      %v2194 = vadd.f32 0.0, %v2193
      %v2195 = vpop.f32.mrb[0].mxu0
      %v2196 = vpop.f32.mrb[0].mxu0
      %v2197 = vadd.f32 0.0, %v2196
      %v2198 = vpop.f32.mrb[0].mxu0
      %2199 = vmatprep.mubr.bf16.mxu0 %v1787
      %2200 = vmatmul.mubr.bf16.gmra.mrb[0].mxu0 %v1723
      %v2201 = vpop.f32.mrb[0].mxu0
      %v2202 = vadd.f32 0.0, %v2201
      %v2203 = vpop.f32.mrb[0].mxu0
      %v2204 = vpop.f32.mrb[0].mxu0
      %v2205 = vadd.f32 0.0, %v2204
      %v2206 = vpop.f32.mrb[0].mxu0
      %2207 = vmatprep.mubr.bf16.mxu0 %v1788
      %2208 = vmatmul.mubr.bf16.gmra.mrb[0].mxu0 %v1724
      %v2209 = vpop.f32.mrb[0].mxu0
      %v2210 = vadd.f32 0.0, %v2209
      %v2211 = vpop.f32.mrb[0].mxu0
      %v2212 = vpop.f32.mrb[0].mxu0
      %v2213 = vadd.f32 0.0, %v2212
      %v2214 = vpop.f32.mrb[0].mxu0
      %2215 = vmatprep.mubr.bf16.mxu0 %v1789
      %2216 = vmatmul.mubr.bf16.gmra.mrb[0].mxu0 %v1725
      %v2217 = vpop.f32.mrb[0].mxu0
      %v2218 = vadd.f32 0.0, %v2217
      %v2219 = vpop.f32.mrb[0].mxu0
      %v2220 = vpop.f32.mrb[0].mxu0
      %v2221 = vadd.f32 0.0, %v2220
      %v2222 = vpop.f32.mrb[0].mxu0
      %2223 = vdwg.mxu0
      %2224 = vmatprep.subr.bf16.mxu0 0
      %2225 = vmatpush1.bf16.msra.mxu0 %v2031
      %2226 = vmatprep.subr.bf16.mxu0 0
      %2227 = vmatpush1.bf16.msra.mxu0 %v2032
      %2228 = vmatprep.subr.bf16.mxu0 0
      %2229 = vmatpush1.bf16.msra.mxu0 %v2033
      %2230 = vmatprep.subr.bf16.mxu0 0
      %2231 = vmatpush1.bf16.msra.mxu0 %v2034
      %2232 = vmatprep.subr.bf16.mxu0 0
      %2233 = vmatpush1.bf16.msra.mxu0 %v2035
      %2234 = vmatprep.subr.bf16.mxu0 0
      %2235 = vmatpush1.bf16.msra.mxu0 %v2036
      %2236 = vmatprep.subr.bf16.mxu0 0
      %2237 = vmatpush1.bf16.msra.mxu0 %v2037
      %2238 = vmatprep.subr.bf16.mxu0 0
      %2239 = vmatpush1.bf16.msra.mxu0 %v2038
      %2240 = vmatprep.subr.bf16.mxu0 0
      %2241 = vmatpush1.bf16.msra.mxu0 0
      %2242 = vmatprep.subr.bf16.mxu0 0
      %2243 = vmatpush1.bf16.msra.mxu0 0
      %2244 = vmatprep.subr.bf16.mxu0 0
      %2245 = vmatpush1.bf16.msra.mxu0 0
      %2246 = vmatprep.subr.bf16.mxu0 0
      %2247 = vmatpush1.bf16.msra.mxu0 0
      %2248 = vmatprep.subr.bf16.mxu0 0
      %2249 = vmatpush1.bf16.msra.mxu0 0
      %2250 = vmatprep.subr.bf16.mxu0 0
      %2251 = vmatpush1.bf16.msra.mxu0 0
      %2252 = vmatprep.subr.bf16.mxu0 0
      %2253 = vmatpush1.bf16.msra.mxu0 0
      %2254 = vmatprep.subr.bf16.mxu0 0
      %2255 = vmatpush1.bf16.msra.mxu0 0
      %2256 = vmatprep.mubr.bf16.mxu0 0
      %2257 = vmatmul.mubr.bf16.gmra.mrb[0].mxu0 %v1838
      %v2258 = vpop.f32.mrb[0].mxu0
      %v2259 = vadd.f32 %v2098, %v2258
      %v2260 = vpop.f32.mrb[0].mxu0
      %v2261 = vpop.f32.mrb[0].mxu0
      %v2262 = vadd.f32 %v2101, %v2261
      %v2263 = vpop.f32.mrb[0].mxu0
      %2264 = vmatprep.mubr.bf16.mxu0 0
      %2265 = vmatmul.mubr.bf16.gmra.mrb[0].mxu0 %v1839
      %v2266 = vpop.f32.mrb[0].mxu0
      %v2267 = vadd.f32 %v2106, %v2266
      %v2268 = vpop.f32.mrb[0].mxu0
      %v2269 = vpop.f32.mrb[0].mxu0
      %v2270 = vadd.f32 %v2109, %v2269
      %v2271 = vpop.f32.mrb[0].mxu0
      %2272 = vmatprep.mubr.bf16.mxu0 0
      %2273 = vmatmul.mubr.bf16.gmra.mrb[0].mxu0 %v1840
      %v2274 = vpop.f32.mrb[0].mxu0
      %v2275 = vadd.f32 %v2114, %v2274
      %v2276 = vpop.f32.mrb[0].mxu0
      %v2277 = vpop.f32.mrb[0].mxu0
      %v2278 = vadd.f32 %v2117, %v2277
      %v2279 = vpop.f32.mrb[0].mxu0
      %2280 = vmatprep.mubr.bf16.mxu0 0
      %2281 = vmatmul.mubr.bf16.gmra.mrb[0].mxu0 %v1841
      %v2282 = vpop.f32.mrb[0].mxu0
      %v2283 = vadd.f32 %v2122, %v2282
      %v2284 = vpop.f32.mrb[0].mxu0
      %v2285 = vpop.f32.mrb[0].mxu0
      %v2286 = vadd.f32 %v2125, %v2285
      %v2287 = vpop.f32.mrb[0].mxu0
      %2288 = vmatprep.mubr.bf16.mxu0 0
      %2289 = vmatmul.mubr.bf16.gmra.mrb[0].mxu0 %v1842
      %v2290 = vpop.f32.mrb[0].mxu0
      %v2291 = vadd.f32 %v2130, %v2290
      %v2292 = vpop.f32.mrb[0].mxu0
      %v2293 = vpop.f32.mrb[0].mxu0
      %v2294 = vadd.f32 %v2133, %v2293
      %v2295 = vpop.f32.mrb[0].mxu0
      %2296 = vmatprep.mubr.bf16.mxu0 0
      %2297 = vmatmul.mubr.bf16.gmra.mrb[0].mxu0 %v1843
      %v2298 = vpop.f32.mrb[0].mxu0
      %v2299 = vadd.f32 %v2138, %v2298
      %v2300 = vpop.f32.mrb[0].mxu0
      %v2301 = vpop.f32.mrb[0].mxu0
      %v2302 = vadd.f32 %v2141, %v2301
      %v2303 = vpop.f32.mrb[0].mxu0
      %2304 = vmatprep.mubr.bf16.mxu0 0
      %2305 = vmatmul.mubr.bf16.gmra.mrb[0].mxu0 %v1844
      %v2306 = vpop.f32.mrb[0].mxu0
      %v2307 = vadd.f32 %v2146, %v2306
      %v2308 = vpop.f32.mrb[0].mxu0
      %v2309 = vpop.f32.mrb[0].mxu0
      %v2310 = vadd.f32 %v2149, %v2309
      %v2311 = vpop.f32.mrb[0].mxu0
      %2312 = vmatprep.mubr.bf16.mxu0 0
      %2313 = vmatmul.mubr.bf16.gmra.mrb[0].mxu0 %v1845
      %v2314 = vpop.f32.mrb[0].mxu0
      %v2315 = vadd.f32 %v2154, %v2314
      %v2316 = vpop.f32.mrb[0].mxu0
      %v2317 = vpop.f32.mrb[0].mxu0
      %v2318 = vadd.f32 %v2157, %v2317
      %v2319 = vpop.f32.mrb[0].mxu0
      %2320 = vmatprep.mubr.bf16.mxu0 0
      %2321 = vmatmul.mubr.bf16.gmra.mrb[0].mxu0 %v1846
      %v2322 = vpop.f32.mrb[0].mxu0
      %v2323 = vadd.f32 %v2162, %v2322
      %v2324 = vpop.f32.mrb[0].mxu0
      %v2325 = vpop.f32.mrb[0].mxu0
      %v2326 = vadd.f32 %v2165, %v2325
      %v2327 = vpop.f32.mrb[0].mxu0
      %2328 = vmatprep.mubr.bf16.mxu0 0
      %2329 = vmatmul.mubr.bf16.gmra.mrb[0].mxu0 %v1847
      %v2330 = vpop.f32.mrb[0].mxu0
      %v2331 = vadd.f32 %v2170, %v2330
      %v2332 = vpop.f32.mrb[0].mxu0
      %v2333 = vpop.f32.mrb[0].mxu0
      %v2334 = vadd.f32 %v2173, %v2333
      %v2335 = vpop.f32.mrb[0].mxu0
      %2336 = vmatprep.mubr.bf16.mxu0 0
      %2337 = vmatmul.mubr.bf16.gmra.mrb[0].mxu0 %v1848
      %v2338 = vpop.f32.mrb[0].mxu0
      %v2339 = vadd.f32 %v2178, %v2338
      %v2340 = vpop.f32.mrb[0].mxu0
      %v2341 = vpop.f32.mrb[0].mxu0
      %v2342 = vadd.f32 %v2181, %v2341
      %v2343 = vpop.f32.mrb[0].mxu0
      %2344 = vmatprep.mubr.bf16.mxu0 0
      %2345 = vmatmul.mubr.bf16.gmra.mrb[0].mxu0 %v1849
      %v2346 = vpop.f32.mrb[0].mxu0
      %v2347 = vadd.f32 %v2186, %v2346
      %v2348 = vpop.f32.mrb[0].mxu0
      %v2349 = vpop.f32.mrb[0].mxu0
      %v2350 = vadd.f32 %v2189, %v2349
      %v2351 = vpop.f32.mrb[0].mxu0
      %2352 = vmatprep.mubr.bf16.mxu0 0
      %2353 = vmatmul.mubr.bf16.gmra.mrb[0].mxu0 %v1850
      %v2354 = vpop.f32.mrb[0].mxu0
      %v2355 = vadd.f32 %v2194, %v2354
      %v2356 = vpop.f32.mrb[0].mxu0
      %v2357 = vpop.f32.mrb[0].mxu0
      %v2358 = vadd.f32 %v2197, %v2357
      %v2359 = vpop.f32.mrb[0].mxu0
      %2360 = vmatprep.mubr.bf16.mxu0 0
      %2361 = vmatmul.mubr.bf16.gmra.mrb[0].mxu0 %v1851
      %v2362 = vpop.f32.mrb[0].mxu0
      %v2363 = vadd.f32 %v2202, %v2362
      %v2364 = vpop.f32.mrb[0].mxu0
      %v2365 = vpop.f32.mrb[0].mxu0
      %v2366 = vadd.f32 %v2205, %v2365
      %v2367 = vpop.f32.mrb[0].mxu0
      %2368 = vmatprep.mubr.bf16.mxu0 0
      %2369 = vmatmul.mubr.bf16.gmra.mrb[0].mxu0 %v1852
      %v2370 = vpop.f32.mrb[0].mxu0
      %v2371 = vadd.f32 %v2210, %v2370
      %v2372 = vpop.f32.mrb[0].mxu0
      %v2373 = vpop.f32.mrb[0].mxu0
      %v2374 = vadd.f32 %v2213, %v2373
      %v2375 = vpop.f32.mrb[0].mxu0
      %2376 = vmatprep.mubr.bf16.mxu0 0
      %2377 = vmatmul.mubr.bf16.gmra.mrb[0].mxu0 %v1853
      %v2378 = vpop.f32.mrb[0].mxu0
      %v2379 = vadd.f32 %v2218, %v2378
      %v2380 = vpop.f32.mrb[0].mxu0
      %v2381 = vpop.f32.mrb[0].mxu0
      %v2382 = vadd.f32 %v2221, %v2381
      %v2383 = vpop.f32.mrb[0].mxu0
      %2384 = vdwg.mxu0
      %v2433 = vunpack.c.l.b16 %v1005
      %v2434 = vunpack.c.l.b16 %v1006
      %v2435 = vunpack.c.l.b16 %v1007
      %v2436 = vunpack.c.l.b16 %v1008
      %v2437 = vunpack.c.l.b16 %v1009
      %v2438 = vunpack.c.l.b16 %v1010
      %v2439 = vunpack.c.l.b16 %v1011
      %v2440 = vunpack.c.l.b16 %v1012
      %v2441 = vunpack.c.l.b16 %v1013
      %v2442 = vunpack.c.l.b16 %v1014
      %v2443 = vunpack.c.l.b16 %v1015
      %v2444 = vunpack.c.l.b16 %v1016
      %v2445 = vunpack.c.l.b16 %v1017
      %v2446 = vunpack.c.l.b16 %v1018
      %v2447 = vunpack.c.l.b16 %v1019
      %v2448 = vunpack.c.l.b16 %v1020
      %v2449 = vunpack.c.l.b16 %v1021
      %v2450 = vunpack.c.l.b16 %v1022
      %v2451 = vunpack.c.l.b16 %v1023
      %v2452 = vunpack.c.l.b16 %v1024
      %v2453 = vunpack.c.l.b16 %v1025
      %v2454 = vunpack.c.l.b16 %v1026
      %v2455 = vunpack.c.l.b16 %v1027
      %v2456 = vunpack.c.l.b16 %v1028
      %v2457 = vunpack.c.l.b16 %v1029
      %v2458 = vunpack.c.l.b16 %v1030
      %v2459 = vunpack.c.l.b16 %v1031
      %v2460 = vunpack.c.l.b16 %v1032
      %v2461 = vunpack.c.l.b16 %v1033
      %v2462 = vunpack.c.l.b16 %v1034
      %v2463 = vunpack.c.l.b16 %v1035
      %v2464 = vunpack.c.l.b16 %v1036
      %v2465 = vunpack.c.l.b16 %v1037
      %v2466 = vunpack.c.l.b16 %v1038
      %v2467 = vunpack.c.l.b16 %v1039
      %v2468 = vunpack.c.l.b16 %v1040
      %v2469 = vunpack.c.l.b16 %v1041
      %v2470 = vunpack.c.l.b16 %v1042
      %v2471 = vunpack.c.l.b16 %v1043
      %v2472 = vunpack.c.l.b16 %v1044
      %v2473 = vunpack.c.l.b16 %v1045
      %v2474 = vunpack.c.l.b16 %v1046
      %v2475 = vunpack.c.l.b16 %v1047
      %v2476 = vunpack.c.l.b16 %v1048
      %v2477 = vunpack.c.l.b16 %v1049
      %v2478 = vunpack.c.l.b16 %v1050
      %v2479 = vunpack.c.l.b16 %v1051
      %v2480 = vunpack.c.l.b16 %v1052
      %v2481 = vpack.c.b16 %v2434, %v2433
      %v2482 = vpack.c.b16 %v2436, %v2435
      %v2483 = vpack.c.b16 %v2438, %v2437
      %v2484 = vpack.c.b16 %v2440, %v2439
      %v2485 = vpack.c.b16 %v2442, %v2441
      %v2486 = vpack.c.b16 %v2444, %v2443
      %v2487 = vpack.c.b16 %v2446, %v2445
      %v2488 = vpack.c.b16 %v2448, %v2447
      %v2489 = vpack.c.b16 %v2450, %v2449
      %v2490 = vpack.c.b16 %v2452, %v2451
      %v2491 = vpack.c.b16 %v2454, %v2453
      %v2492 = vpack.c.b16 %v2456, %v2455
      %v2493 = vpack.c.b16 %v2458, %v2457
      %v2494 = vpack.c.b16 %v2460, %v2459
      %v2495 = vpack.c.b16 %v2462, %v2461
      %v2496 = vpack.c.b16 %v2464, %v2463
      %v2497 = vpack.c.b16 %v2466, %v2465
      %v2498 = vpack.c.b16 %v2468, %v2467
      %v2499 = vpack.c.b16 %v2470, %v2469
      %v2500 = vpack.c.b16 %v2472, %v2471
      %v2501 = vpack.c.b16 %v2474, %v2473
      %v2502 = vpack.c.b16 %v2476, %v2475
      %v2503 = vpack.c.b16 %v2478, %v2477
      %v2504 = vpack.c.b16 %v2480, %v2479
      %2529 = vmatprep.subr.bf16.mxu0 0
      %2530 = vmatpush1.bf16.msra.mxu0 %v2481
      %2531 = vmatprep.subr.bf16.mxu0 0
      %2532 = vmatpush1.bf16.msra.mxu0 %v2482
      %2533 = vmatprep.subr.bf16.mxu0 0
      %2534 = vmatpush1.bf16.msra.mxu0 %v2483
      %2535 = vmatprep.subr.bf16.mxu0 0
      %2536 = vmatpush1.bf16.msra.mxu0 %v2484
      %2537 = vmatprep.subr.bf16.mxu0 0
      %2538 = vmatpush1.bf16.msra.mxu0 %v2485
      %2539 = vmatprep.subr.bf16.mxu0 0
      %2540 = vmatpush1.bf16.msra.mxu0 %v2486
      %2541 = vmatprep.subr.bf16.mxu0 0
      %2542 = vmatpush1.bf16.msra.mxu0 %v2487
      %2543 = vmatprep.subr.bf16.mxu0 0
      %2544 = vmatpush1.bf16.msra.mxu0 %v2488
      %2545 = vmatprep.subr.bf16.mxu0 0
      %2546 = vmatpush1.bf16.msra.mxu0 %v2489
      %2547 = vmatprep.subr.bf16.mxu0 0
      %2548 = vmatpush1.bf16.msra.mxu0 %v2490
      %2549 = vmatprep.subr.bf16.mxu0 0
      %2550 = vmatpush1.bf16.msra.mxu0 %v2491
      %2551 = vmatprep.subr.bf16.mxu0 0
      %2552 = vmatpush1.bf16.msra.mxu0 %v2492
      %2553 = vmatprep.subr.bf16.mxu0 0
      %2554 = vmatpush1.bf16.msra.mxu0 %v2493
      %2555 = vmatprep.subr.bf16.mxu0 0
      %2556 = vmatpush1.bf16.msra.mxu0 %v2494
      %2557 = vmatprep.subr.bf16.mxu0 0
      %2558 = vmatpush1.bf16.msra.mxu0 %v2495
      %2559 = vmatprep.subr.bf16.mxu0 0
      %2560 = vmatpush1.bf16.msra.mxu0 %v2496
      %2561 = vmatprep.mubr.bf16.mxu0 %v909
      %2562 = vmatmul.mubr.bf16.gmra.mrb[0].mxu0 %v845
      %v2563 = vpop.f32.mrb[0].mxu0
      %v2564 = vadd.f32 %v2259, %v2563
      %v2565 = vpop.f32.mrb[0].mxu0
      %v2566 = vpop.f32.mrb[0].mxu0
      %v2567 = vadd.f32 %v2262, %v2566
      %v2568 = vpop.f32.mrb[0].mxu0
      %2569 = vmatprep.mubr.bf16.mxu0 %v910
      %2570 = vmatmul.mubr.bf16.gmra.mrb[0].mxu0 %v846
      %v2571 = vpop.f32.mrb[0].mxu0
      %v2572 = vadd.f32 %v2267, %v2571
      %v2573 = vpop.f32.mrb[0].mxu0
      %v2574 = vpop.f32.mrb[0].mxu0
      %v2575 = vadd.f32 %v2270, %v2574
      %v2576 = vpop.f32.mrb[0].mxu0
      %2577 = vmatprep.mubr.bf16.mxu0 %v911
      %2578 = vmatmul.mubr.bf16.gmra.mrb[0].mxu0 %v847
      %v2579 = vpop.f32.mrb[0].mxu0
      %v2580 = vadd.f32 %v2275, %v2579
      %v2581 = vpop.f32.mrb[0].mxu0
      %v2582 = vpop.f32.mrb[0].mxu0
      %v2583 = vadd.f32 %v2278, %v2582
      %v2584 = vpop.f32.mrb[0].mxu0
      %2585 = vmatprep.mubr.bf16.mxu0 %v912
      %2586 = vmatmul.mubr.bf16.gmra.mrb[0].mxu0 %v848
      %v2587 = vpop.f32.mrb[0].mxu0
      %v2588 = vadd.f32 %v2283, %v2587
      %v2589 = vpop.f32.mrb[0].mxu0
      %v2590 = vpop.f32.mrb[0].mxu0
      %v2591 = vadd.f32 %v2286, %v2590
      %v2592 = vpop.f32.mrb[0].mxu0
      %2593 = vmatprep.mubr.bf16.mxu0 %v913
      %2594 = vmatmul.mubr.bf16.gmra.mrb[0].mxu0 %v849
      %v2595 = vpop.f32.mrb[0].mxu0
      %v2596 = vadd.f32 %v2291, %v2595
      %v2597 = vpop.f32.mrb[0].mxu0
      %v2598 = vpop.f32.mrb[0].mxu0
      %v2599 = vadd.f32 %v2294, %v2598
      %v2600 = vpop.f32.mrb[0].mxu0
      %2601 = vmatprep.mubr.bf16.mxu0 %v914
      %2602 = vmatmul.mubr.bf16.gmra.mrb[0].mxu0 %v850
      %v2603 = vpop.f32.mrb[0].mxu0
      %v2604 = vadd.f32 %v2299, %v2603
      %v2605 = vpop.f32.mrb[0].mxu0
      %v2606 = vpop.f32.mrb[0].mxu0
      %v2607 = vadd.f32 %v2302, %v2606
      %v2608 = vpop.f32.mrb[0].mxu0
      %2609 = vmatprep.mubr.bf16.mxu0 %v915
      %2610 = vmatmul.mubr.bf16.gmra.mrb[0].mxu0 %v851
      %v2611 = vpop.f32.mrb[0].mxu0
      %v2612 = vadd.f32 %v2307, %v2611
      %v2613 = vpop.f32.mrb[0].mxu0
      %v2614 = vpop.f32.mrb[0].mxu0
      %v2615 = vadd.f32 %v2310, %v2614
      %v2616 = vpop.f32.mrb[0].mxu0
      %2617 = vmatprep.mubr.bf16.mxu0 %v916
      %2618 = vmatmul.mubr.bf16.gmra.mrb[0].mxu0 %v852
      %v2619 = vpop.f32.mrb[0].mxu0
      %v2620 = vadd.f32 %v2315, %v2619
      %v2621 = vpop.f32.mrb[0].mxu0
      %v2622 = vpop.f32.mrb[0].mxu0
      %v2623 = vadd.f32 %v2318, %v2622
      %v2624 = vpop.f32.mrb[0].mxu0
      %2625 = vmatprep.mubr.bf16.mxu0 %v917
      %2626 = vmatmul.mubr.bf16.gmra.mrb[0].mxu0 %v853
      %v2627 = vpop.f32.mrb[0].mxu0
      %v2628 = vadd.f32 %v2323, %v2627
      %v2629 = vpop.f32.mrb[0].mxu0
      %v2630 = vpop.f32.mrb[0].mxu0
      %v2631 = vadd.f32 %v2326, %v2630
      %v2632 = vpop.f32.mrb[0].mxu0
      %2633 = vmatprep.mubr.bf16.mxu0 %v918
      %2634 = vmatmul.mubr.bf16.gmra.mrb[0].mxu0 %v854
      %v2635 = vpop.f32.mrb[0].mxu0
      %v2636 = vadd.f32 %v2331, %v2635
      %v2637 = vpop.f32.mrb[0].mxu0
      %v2638 = vpop.f32.mrb[0].mxu0
      %v2639 = vadd.f32 %v2334, %v2638
      %v2640 = vpop.f32.mrb[0].mxu0
      %2641 = vmatprep.mubr.bf16.mxu0 %v919
      %2642 = vmatmul.mubr.bf16.gmra.mrb[0].mxu0 %v855
      %v2643 = vpop.f32.mrb[0].mxu0
      %v2644 = vadd.f32 %v2339, %v2643
      %v2645 = vpop.f32.mrb[0].mxu0
      %v2646 = vpop.f32.mrb[0].mxu0
      %v2647 = vadd.f32 %v2342, %v2646
      %v2648 = vpop.f32.mrb[0].mxu0
      %2649 = vmatprep.mubr.bf16.mxu0 %v920
      %2650 = vmatmul.mubr.bf16.gmra.mrb[0].mxu0 %v856
      %v2651 = vpop.f32.mrb[0].mxu0
      %v2652 = vadd.f32 %v2347, %v2651
      %v2653 = vpop.f32.mrb[0].mxu0
      %v2654 = vpop.f32.mrb[0].mxu0
      %v2655 = vadd.f32 %v2350, %v2654
      %v2656 = vpop.f32.mrb[0].mxu0
      %2657 = vmatprep.mubr.bf16.mxu0 %v921
      %2658 = vmatmul.mubr.bf16.gmra.mrb[0].mxu0 %v857
      %v2659 = vpop.f32.mrb[0].mxu0
      %v2660 = vadd.f32 %v2355, %v2659
      %v2661 = vpop.f32.mrb[0].mxu0
      %v2662 = vpop.f32.mrb[0].mxu0
      %v2663 = vadd.f32 %v2358, %v2662
      %v2664 = vpop.f32.mrb[0].mxu0
      %2665 = vmatprep.mubr.bf16.mxu0 %v922
      %2666 = vmatmul.mubr.bf16.gmra.mrb[0].mxu0 %v858
      %v2667 = vpop.f32.mrb[0].mxu0
      %v2668 = vadd.f32 %v2363, %v2667
      %v2669 = vpop.f32.mrb[0].mxu0
      %v2670 = vpop.f32.mrb[0].mxu0
      %v2671 = vadd.f32 %v2366, %v2670
      %v2672 = vpop.f32.mrb[0].mxu0
      %2673 = vmatprep.mubr.bf16.mxu0 %v923
      %2674 = vmatmul.mubr.bf16.gmra.mrb[0].mxu0 %v859
      %v2675 = vpop.f32.mrb[0].mxu0
      %v2676 = vadd.f32 %v2371, %v2675
      %v2677 = vpop.f32.mrb[0].mxu0
      %v2678 = vpop.f32.mrb[0].mxu0
      %v2679 = vadd.f32 %v2374, %v2678
      %v2680 = vpop.f32.mrb[0].mxu0
      %2681 = vmatprep.mubr.bf16.mxu0 %v924
      %2682 = vmatmul.mubr.bf16.gmra.mrb[0].mxu0 %v860
      %v2683 = vpop.f32.mrb[0].mxu0
      %v2684 = vadd.f32 %v2379, %v2683
      %v2685 = vpop.f32.mrb[0].mxu0
      %v2686 = vpop.f32.mrb[0].mxu0
      %v2687 = vadd.f32 %v2382, %v2686
      %v2688 = vpop.f32.mrb[0].mxu0
      %2689 = vdwg.mxu0
      %2690 = vmatprep.subr.bf16.mxu0 0
      %2691 = vmatpush1.bf16.msra.mxu0 %v2497
      %2692 = vmatprep.subr.bf16.mxu0 0
      %2693 = vmatpush1.bf16.msra.mxu0 %v2498
      %2694 = vmatprep.subr.bf16.mxu0 0
      %2695 = vmatpush1.bf16.msra.mxu0 %v2499
      %2696 = vmatprep.subr.bf16.mxu0 0
      %2697 = vmatpush1.bf16.msra.mxu0 %v2500
      %2698 = vmatprep.subr.bf16.mxu0 0
      %2699 = vmatpush1.bf16.msra.mxu0 %v2501
      %2700 = vmatprep.subr.bf16.mxu0 0
      %2701 = vmatpush1.bf16.msra.mxu0 %v2502
      %2702 = vmatprep.subr.bf16.mxu0 0
      %2703 = vmatpush1.bf16.msra.mxu0 %v2503
      %2704 = vmatprep.subr.bf16.mxu0 0
      %2705 = vmatpush1.bf16.msra.mxu0 %v2504
      %2706 = vmatprep.subr.bf16.mxu0 0
      %2707 = vmatpush1.bf16.msra.mxu0 0
      %2708 = vmatprep.subr.bf16.mxu0 0
      %2709 = vmatpush1.bf16.msra.mxu0 0
      %2710 = vmatprep.subr.bf16.mxu0 0
      %2711 = vmatpush1.bf16.msra.mxu0 0
      %2712 = vmatprep.subr.bf16.mxu0 0
      %2713 = vmatpush1.bf16.msra.mxu0 0
      %2714 = vmatprep.subr.bf16.mxu0 0
      %2715 = vmatpush1.bf16.msra.mxu0 0
      %2716 = vmatprep.subr.bf16.mxu0 0
      %2717 = vmatpush1.bf16.msra.mxu0 0
      %2718 = vmatprep.subr.bf16.mxu0 0
      %2719 = vmatpush1.bf16.msra.mxu0 0
      %2720 = vmatprep.subr.bf16.mxu0 0
      %2721 = vmatpush1.bf16.msra.mxu0 0
      %2722 = vmatprep.mubr.bf16.mxu0 0
      %2723 = vmatmul.mubr.bf16.gmra.mrb[0].mxu0 %v973
      %v2724 = vpop.f32.mrb[0].mxu0
      %v2725 = vadd.f32 %v2564, %v2724
      %v2726 = vpop.f32.mrb[0].mxu0
      %v2727 = vpop.f32.mrb[0].mxu0
      %v2728 = vadd.f32 %v2567, %v2727
      %v2729 = vpop.f32.mrb[0].mxu0
      %2730 = vmatprep.mubr.bf16.mxu0 0
      %2731 = vmatmul.mubr.bf16.gmra.mrb[0].mxu0 %v974
      %v2732 = vpop.f32.mrb[0].mxu0
      %v2733 = vadd.f32 %v2572, %v2732
      %v2734 = vpop.f32.mrb[0].mxu0
      %v2735 = vpop.f32.mrb[0].mxu0
      %v2736 = vadd.f32 %v2575, %v2735
      %v2737 = vpop.f32.mrb[0].mxu0
      %2738 = vmatprep.mubr.bf16.mxu0 0
      %2739 = vmatmul.mubr.bf16.gmra.mrb[0].mxu0 %v975
      %v2740 = vpop.f32.mrb[0].mxu0
      %v2741 = vadd.f32 %v2580, %v2740
      %v2742 = vpop.f32.mrb[0].mxu0
      %v2743 = vpop.f32.mrb[0].mxu0
      %v2744 = vadd.f32 %v2583, %v2743
      %v2745 = vpop.f32.mrb[0].mxu0
      %2746 = vmatprep.mubr.bf16.mxu0 0
      %2747 = vmatmul.mubr.bf16.gmra.mrb[0].mxu0 %v976
      %v2748 = vpop.f32.mrb[0].mxu0
      %v2749 = vadd.f32 %v2588, %v2748
      %v2750 = vpop.f32.mrb[0].mxu0
      %v2751 = vpop.f32.mrb[0].mxu0
      %v2752 = vadd.f32 %v2591, %v2751
      %v2753 = vpop.f32.mrb[0].mxu0
      %2754 = vmatprep.mubr.bf16.mxu0 0
      %2755 = vmatmul.mubr.bf16.gmra.mrb[0].mxu0 %v977
      %v2756 = vpop.f32.mrb[0].mxu0
      %v2757 = vadd.f32 %v2596, %v2756
      %v2758 = vpop.f32.mrb[0].mxu0
      %v2759 = vpop.f32.mrb[0].mxu0
      %v2760 = vadd.f32 %v2599, %v2759
      %v2761 = vpop.f32.mrb[0].mxu0
      %2762 = vmatprep.mubr.bf16.mxu0 0
      %2763 = vmatmul.mubr.bf16.gmra.mrb[0].mxu0 %v978
      %v2764 = vpop.f32.mrb[0].mxu0
      %v2765 = vadd.f32 %v2604, %v2764
      %v2766 = vpop.f32.mrb[0].mxu0
      %v2767 = vpop.f32.mrb[0].mxu0
      %v2768 = vadd.f32 %v2607, %v2767
      %v2769 = vpop.f32.mrb[0].mxu0
      %2770 = vmatprep.mubr.bf16.mxu0 0
      %2771 = vmatmul.mubr.bf16.gmra.mrb[0].mxu0 %v979
      %v2772 = vpop.f32.mrb[0].mxu0
      %v2773 = vadd.f32 %v2612, %v2772
      %v2774 = vpop.f32.mrb[0].mxu0
      %v2775 = vpop.f32.mrb[0].mxu0
      %v2776 = vadd.f32 %v2615, %v2775
      %v2777 = vpop.f32.mrb[0].mxu0
      %2778 = vmatprep.mubr.bf16.mxu0 0
      %2779 = vmatmul.mubr.bf16.gmra.mrb[0].mxu0 %v980
      %v2780 = vpop.f32.mrb[0].mxu0
      %v2781 = vadd.f32 %v2620, %v2780
      %v2782 = vpop.f32.mrb[0].mxu0
      %v2783 = vpop.f32.mrb[0].mxu0
      %v2784 = vadd.f32 %v2623, %v2783
      %v2785 = vpop.f32.mrb[0].mxu0
      %2786 = vmatprep.mubr.bf16.mxu0 0
      %2787 = vmatmul.mubr.bf16.gmra.mrb[0].mxu0 %v981
      %v2788 = vpop.f32.mrb[0].mxu0
      %v2789 = vadd.f32 %v2628, %v2788
      %v2790 = vpop.f32.mrb[0].mxu0
      %v2791 = vpop.f32.mrb[0].mxu0
      %v2792 = vadd.f32 %v2631, %v2791
      %v2793 = vpop.f32.mrb[0].mxu0
      %2794 = vmatprep.mubr.bf16.mxu0 0
      %2795 = vmatmul.mubr.bf16.gmra.mrb[0].mxu0 %v982
      %v2796 = vpop.f32.mrb[0].mxu0
      %v2797 = vadd.f32 %v2636, %v2796
      %v2798 = vpop.f32.mrb[0].mxu0
      %v2799 = vpop.f32.mrb[0].mxu0
      %v2800 = vadd.f32 %v2639, %v2799
      %v2801 = vpop.f32.mrb[0].mxu0
      %2802 = vmatprep.mubr.bf16.mxu0 0
      %2803 = vmatmul.mubr.bf16.gmra.mrb[0].mxu0 %v983
      %v2804 = vpop.f32.mrb[0].mxu0
      %v2805 = vadd.f32 %v2644, %v2804
      %v2806 = vpop.f32.mrb[0].mxu0
      %v2807 = vpop.f32.mrb[0].mxu0
      %v2808 = vadd.f32 %v2647, %v2807
      %v2809 = vpop.f32.mrb[0].mxu0
      %2810 = vmatprep.mubr.bf16.mxu0 0
      %2811 = vmatmul.mubr.bf16.gmra.mrb[0].mxu0 %v984
      %v2812 = vpop.f32.mrb[0].mxu0
      %v2813 = vadd.f32 %v2652, %v2812
      %v2814 = vpop.f32.mrb[0].mxu0
      %v2815 = vpop.f32.mrb[0].mxu0
      %v2816 = vadd.f32 %v2655, %v2815
      %v2817 = vpop.f32.mrb[0].mxu0
      %2818 = vmatprep.mubr.bf16.mxu0 0
      %2819 = vmatmul.mubr.bf16.gmra.mrb[0].mxu0 %v985
      %v2820 = vpop.f32.mrb[0].mxu0
      %v2821 = vadd.f32 %v2660, %v2820
      %v2822 = vpop.f32.mrb[0].mxu0
      %v2823 = vpop.f32.mrb[0].mxu0
      %v2824 = vadd.f32 %v2663, %v2823
      %v2825 = vpop.f32.mrb[0].mxu0
      %2826 = vmatprep.mubr.bf16.mxu0 0
      %2827 = vmatmul.mubr.bf16.gmra.mrb[0].mxu0 %v986
      %v2828 = vpop.f32.mrb[0].mxu0
      %v2829 = vadd.f32 %v2668, %v2828
      %v2830 = vpop.f32.mrb[0].mxu0
      %v2831 = vpop.f32.mrb[0].mxu0
      %v2832 = vadd.f32 %v2671, %v2831
      %v2833 = vpop.f32.mrb[0].mxu0
      %2834 = vmatprep.mubr.bf16.mxu0 0
      %2835 = vmatmul.mubr.bf16.gmra.mrb[0].mxu0 %v987
      %v2836 = vpop.f32.mrb[0].mxu0
      %v2837 = vadd.f32 %v2676, %v2836
      %v2838 = vpop.f32.mrb[0].mxu0
      %v2839 = vpop.f32.mrb[0].mxu0
      %v2840 = vadd.f32 %v2679, %v2839
      %v2841 = vpop.f32.mrb[0].mxu0
      %2842 = vmatprep.mubr.bf16.mxu0 0
      %2843 = vmatmul.mubr.bf16.gmra.mrb[0].mxu0 %v988
      %v2844 = vpop.f32.mrb[0].mxu0
      %v2845 = vadd.f32 %v2684, %v2844
      %v2846 = vpop.f32.mrb[0].mxu0
      %v2847 = vpop.f32.mrb[0].mxu0
      %v2848 = vadd.f32 %v2687, %v2847
      %v2849 = vpop.f32.mrb[0].mxu0
      %2850 = vdwg.mxu0
      %s2851 = scalar_lea.vmem %s172, 24
      %v2852 = vld [vmem:[%s2851] sm:$0xf]
      %v2853 = vld [vmem:[%s2851 + $0x4] sm:$0xf]
      %v2854 = vld [vmem:[%s2851 + $0xc] sm:$0xf]
      %v2855 = vld [vmem:[%s2851 + $0x10] sm:$0xf]
      %v2856 = vld [vmem:[%s2851 + $0x18] sm:$0xf]
      %v2857 = vld [vmem:[%s2851 + $0x1c] sm:$0xf]
      %v2858 = vld [vmem:[%s2851 + $0x24] sm:$0xf]
      %v2859 = vld [vmem:[%s2851 + $0x28] sm:$0xf]
      %v2860 = vld [vmem:[%s2851 + $0x30] sm:$0xf]
      %v2861 = vld [vmem:[%s2851 + $0x34] sm:$0xf]
      %v2862 = vld [vmem:[%s2851 + $0x3c] sm:$0xf]
      %v2863 = vld [vmem:[%s2851 + $0x40] sm:$0xf]
      %v2864 = vld [vmem:[%s2851 + $0x48] sm:$0xf]
      %v2865 = vld [vmem:[%s2851 + $0x4c] sm:$0xf]
      %v2866 = vld [vmem:[%s2851 + $0x54] sm:$0xf]
      %v2867 = vld [vmem:[%s2851 + $0x58] sm:$0xf]
      %v2868 = vld [vmem:[%s2851 + $0x60] sm:$0xf]
      %v2869 = vld [vmem:[%s2851 + $0x64] sm:$0xf]
      %v2870 = vld [vmem:[%s2851 + $0x6c] sm:$0xf]
      %v2871 = vld [vmem:[%s2851 + $0x70] sm:$0xf]
      %v2872 = vld [vmem:[%s2851 + $0x78] sm:$0xf]
      %v2873 = vld [vmem:[%s2851 + $0x7c] sm:$0xf]
      %v2874 = vld [vmem:[%s2851 + $0x84] sm:$0xf]
      %v2875 = vld [vmem:[%s2851 + $0x88] sm:$0xf]
      %v2876 = vld [vmem:[%s2851 + $0x90] sm:$0xf]
      %v2877 = vld [vmem:[%s2851 + $0x94] sm:$0xf]
      %v2878 = vld [vmem:[%s2851 + $0x9c] sm:$0xf]
      %v2879 = vld [vmem:[%s2851 + $0xa0] sm:$0xf]
      %v2880 = vld [vmem:[%s2851 + $0xa8] sm:$0xf]
      %v2881 = vld [vmem:[%s2851 + $0xac] sm:$0xf]
      %v2882 = vld [vmem:[%s2851 + $0xb4] sm:$0xf]
      %v2883 = vld [vmem:[%s2851 + $0xb8] sm:$0xf]
      %v2884 = vld [vmem:[%s2851 + $0x8] sm:$0x1]
      %v2885 = vld [vmem:[%s2851 + $0x14] sm:$0x1]
      %v2886 = vld [vmem:[%s2851 + $0x20] sm:$0x1]
      %v2887 = vld [vmem:[%s2851 + $0x2c] sm:$0x1]
      %v2888 = vld [vmem:[%s2851 + $0x38] sm:$0x1]
      %v2889 = vld [vmem:[%s2851 + $0x44] sm:$0x1]
      %v2890 = vld [vmem:[%s2851 + $0x50] sm:$0x1]
      %v2891 = vld [vmem:[%s2851 + $0x5c] sm:$0x1]
      %v2892 = vld [vmem:[%s2851 + $0x68] sm:$0x1]
      %v2893 = vld [vmem:[%s2851 + $0x74] sm:$0x1]
      %v2894 = vld [vmem:[%s2851 + $0x80] sm:$0x1]
      %v2895 = vld [vmem:[%s2851 + $0x8c] sm:$0x1]
      %v2896 = vld [vmem:[%s2851 + $0x98] sm:$0x1]
      %v2897 = vld [vmem:[%s2851 + $0xa4] sm:$0x1]
      %v2898 = vld [vmem:[%s2851 + $0xb0] sm:$0x1]
      %v2899 = vld [vmem:[%s2851 + $0xbc] sm:$0x1]
      %v2901 = vshrl.u32 %v2852, 16
      %v2903 = vrot.slane %v2901, 4
      %v2904 = vshll.u32 %v2852, 16
      %v2906 = vrot.slane %v2904, 5
      %v2907 = vor.u32 %v2903, %v2906
      %v2908 = vrot.slane %v2907, 4
      %v2910 = vshll.u32 %v2853, 16
      %v2912 = vrot.slane %v2910, 5
      %v2913 = vsel %vm233, %v2908, %v2912
      %v2914 = vshrl.u32 %v2853, 16
      %v2916 = vrot.slane %v2914, 4
      %v2917 = vor.u32 %v2916, %v2912
      %v2918 = vrot.slane %v2917, 4
      %v2920 = vshll.u32 %v2884, 16
      %v2922 = vrot.slane %v2920, 5
      %v2923 = vsel %vm233, %v2918, %v2922
      %v2925 = vshrl.u32 %v2854, 16
      %v2927 = vrot.slane %v2925, 4
      %v2928 = vshll.u32 %v2854, 16
      %v2930 = vrot.slane %v2928, 5
      %v2931 = vor.u32 %v2927, %v2930
      %v2932 = vrot.slane %v2931, 4
      %v2934 = vshll.u32 %v2855, 16
      %v2936 = vrot.slane %v2934, 5
      %v2937 = vsel %vm233, %v2932, %v2936
      %v2938 = vshrl.u32 %v2855, 16
      %v2940 = vrot.slane %v2938, 4
      %v2941 = vor.u32 %v2940, %v2936
      %v2942 = vrot.slane %v2941, 4
      %v2944 = vshll.u32 %v2885, 16
      %v2946 = vrot.slane %v2944, 5
      %v2947 = vsel %vm233, %v2942, %v2946
      %v2949 = vshrl.u32 %v2856, 16
      %v2951 = vrot.slane %v2949, 4
      %v2952 = vshll.u32 %v2856, 16
      %v2954 = vrot.slane %v2952, 5
      %v2955 = vor.u32 %v2951, %v2954
      %v2956 = vrot.slane %v2955, 4
      %v2958 = vshll.u32 %v2857, 16
      %v2960 = vrot.slane %v2958, 5
      %v2961 = vsel %vm233, %v2956, %v2960
      %v2962 = vshrl.u32 %v2857, 16
      %v2964 = vrot.slane %v2962, 4
      %v2965 = vor.u32 %v2964, %v2960
      %v2966 = vrot.slane %v2965, 4
      %v2968 = vshll.u32 %v2886, 16
      %v2970 = vrot.slane %v2968, 5
      %v2971 = vsel %vm233, %v2966, %v2970
      %v2973 = vshrl.u32 %v2858, 16
      %v2975 = vrot.slane %v2973, 4
      %v2976 = vshll.u32 %v2858, 16
      %v2978 = vrot.slane %v2976, 5
      %v2979 = vor.u32 %v2975, %v2978
      %v2980 = vrot.slane %v2979, 4
      %v2982 = vshll.u32 %v2859, 16
      %v2984 = vrot.slane %v2982, 5
      %v2985 = vsel %vm233, %v2980, %v2984
      %v2986 = vshrl.u32 %v2859, 16
      %v2988 = vrot.slane %v2986, 4
      %v2989 = vor.u32 %v2988, %v2984
      %v2990 = vrot.slane %v2989, 4
      %v2992 = vshll.u32 %v2887, 16
      %v2994 = vrot.slane %v2992, 5
      %v2995 = vsel %vm233, %v2990, %v2994
      %v2997 = vshrl.u32 %v2860, 16
      %v2999 = vrot.slane %v2997, 4
      %v3000 = vshll.u32 %v2860, 16
      %v3002 = vrot.slane %v3000, 5
      %v3003 = vor.u32 %v2999, %v3002
      %v3004 = vrot.slane %v3003, 4
      %v3006 = vshll.u32 %v2861, 16
      %v3008 = vrot.slane %v3006, 5
      %v3009 = vsel %vm233, %v3004, %v3008
      %v3010 = vshrl.u32 %v2861, 16
      %v3012 = vrot.slane %v3010, 4
      %v3013 = vor.u32 %v3012, %v3008
      %v3014 = vrot.slane %v3013, 4
      %v3016 = vshll.u32 %v2888, 16
      %v3018 = vrot.slane %v3016, 5
      %v3019 = vsel %vm233, %v3014, %v3018
      %v3021 = vshrl.u32 %v2862, 16
      %v3023 = vrot.slane %v3021, 4
      %v3024 = vshll.u32 %v2862, 16
      %v3026 = vrot.slane %v3024, 5
      %v3027 = vor.u32 %v3023, %v3026
      %v3028 = vrot.slane %v3027, 4
      %v3030 = vshll.u32 %v2863, 16
      %v3032 = vrot.slane %v3030, 5
      %v3033 = vsel %vm233, %v3028, %v3032
      %v3034 = vshrl.u32 %v2863, 16
      %v3036 = vrot.slane %v3034, 4
      %v3037 = vor.u32 %v3036, %v3032
      %v3038 = vrot.slane %v3037, 4
      %v3040 = vshll.u32 %v2889, 16
      %v3042 = vrot.slane %v3040, 5
      %v3043 = vsel %vm233, %v3038, %v3042
      %v3045 = vshrl.u32 %v2864, 16
      %v3047 = vrot.slane %v3045, 4
      %v3048 = vshll.u32 %v2864, 16
      %v3050 = vrot.slane %v3048, 5
      %v3051 = vor.u32 %v3047, %v3050
      %v3052 = vrot.slane %v3051, 4
      %v3054 = vshll.u32 %v2865, 16
      %v3056 = vrot.slane %v3054, 5
      %v3057 = vsel %vm233, %v3052, %v3056
      %v3058 = vshrl.u32 %v2865, 16
      %v3060 = vrot.slane %v3058, 4
      %v3061 = vor.u32 %v3060, %v3056
      %v3062 = vrot.slane %v3061, 4
      %v3064 = vshll.u32 %v2890, 16
      %v3066 = vrot.slane %v3064, 5
      %v3067 = vsel %vm233, %v3062, %v3066
      %v3069 = vshrl.u32 %v2866, 16
      %v3071 = vrot.slane %v3069, 4
      %v3072 = vshll.u32 %v2866, 16
      %v3074 = vrot.slane %v3072, 5
      %v3075 = vor.u32 %v3071, %v3074
      %v3076 = vrot.slane %v3075, 4
      %v3078 = vshll.u32 %v2867, 16
      %v3080 = vrot.slane %v3078, 5
      %v3081 = vsel %vm233, %v3076, %v3080
      %v3082 = vshrl.u32 %v2867, 16
      %v3084 = vrot.slane %v3082, 4
      %v3085 = vor.u32 %v3084, %v3080
      %v3086 = vrot.slane %v3085, 4
      %v3088 = vshll.u32 %v2891, 16
      %v3090 = vrot.slane %v3088, 5
      %v3091 = vsel %vm233, %v3086, %v3090
      %v3093 = vshrl.u32 %v2868, 16
      %v3095 = vrot.slane %v3093, 4
      %v3096 = vshll.u32 %v2868, 16
      %v3098 = vrot.slane %v3096, 5
      %v3099 = vor.u32 %v3095, %v3098
      %v3100 = vrot.slane %v3099, 4
      %v3102 = vshll.u32 %v2869, 16
      %v3104 = vrot.slane %v3102, 5
      %v3105 = vsel %vm233, %v3100, %v3104
      %v3106 = vshrl.u32 %v2869, 16
      %v3108 = vrot.slane %v3106, 4
      %v3109 = vor.u32 %v3108, %v3104
      %v3110 = vrot.slane %v3109, 4
      %v3112 = vshll.u32 %v2892, 16
      %v3114 = vrot.slane %v3112, 5
      %v3115 = vsel %vm233, %v3110, %v3114
      %v3117 = vshrl.u32 %v2870, 16
      %v3119 = vrot.slane %v3117, 4
      %v3120 = vshll.u32 %v2870, 16
      %v3122 = vrot.slane %v3120, 5
      %v3123 = vor.u32 %v3119, %v3122
      %v3124 = vrot.slane %v3123, 4
      %v3126 = vshll.u32 %v2871, 16
      %v3128 = vrot.slane %v3126, 5
      %v3129 = vsel %vm233, %v3124, %v3128
      %v3130 = vshrl.u32 %v2871, 16
      %v3132 = vrot.slane %v3130, 4
      %v3133 = vor.u32 %v3132, %v3128
      %v3134 = vrot.slane %v3133, 4
      %v3136 = vshll.u32 %v2893, 16
      %v3138 = vrot.slane %v3136, 5
      %v3139 = vsel %vm233, %v3134, %v3138
      %v3141 = vshrl.u32 %v2872, 16
      %v3143 = vrot.slane %v3141, 4
      %v3144 = vshll.u32 %v2872, 16
      %v3146 = vrot.slane %v3144, 5
      %v3147 = vor.u32 %v3143, %v3146
      %v3148 = vrot.slane %v3147, 4
      %v3150 = vshll.u32 %v2873, 16
      %v3152 = vrot.slane %v3150, 5
      %v3153 = vsel %vm233, %v3148, %v3152
      %v3154 = vshrl.u32 %v2873, 16
      %v3156 = vrot.slane %v3154, 4
      %v3157 = vor.u32 %v3156, %v3152
      %v3158 = vrot.slane %v3157, 4
      %v3160 = vshll.u32 %v2894, 16
      %v3162 = vrot.slane %v3160, 5
      %v3163 = vsel %vm233, %v3158, %v3162
      %v3165 = vshrl.u32 %v2874, 16
      %v3167 = vrot.slane %v3165, 4
      %v3168 = vshll.u32 %v2874, 16
      %v3170 = vrot.slane %v3168, 5
      %v3171 = vor.u32 %v3167, %v3170
      %v3172 = vrot.slane %v3171, 4
      %v3174 = vshll.u32 %v2875, 16
      %v3176 = vrot.slane %v3174, 5
      %v3177 = vsel %vm233, %v3172, %v3176
      %v3178 = vshrl.u32 %v2875, 16
      %v3180 = vrot.slane %v3178, 4
      %v3181 = vor.u32 %v3180, %v3176
      %v3182 = vrot.slane %v3181, 4
      %v3184 = vshll.u32 %v2895, 16
      %v3186 = vrot.slane %v3184, 5
      %v3187 = vsel %vm233, %v3182, %v3186
      %v3189 = vshrl.u32 %v2876, 16
      %v3191 = vrot.slane %v3189, 4
      %v3192 = vshll.u32 %v2876, 16
      %v3194 = vrot.slane %v3192, 5
      %v3195 = vor.u32 %v3191, %v3194
      %v3196 = vrot.slane %v3195, 4
      %v3198 = vshll.u32 %v2877, 16
      %v3200 = vrot.slane %v3198, 5
      %v3201 = vsel %vm233, %v3196, %v3200
      %v3202 = vshrl.u32 %v2877, 16
      %v3204 = vrot.slane %v3202, 4
      %v3205 = vor.u32 %v3204, %v3200
      %v3206 = vrot.slane %v3205, 4
      %v3208 = vshll.u32 %v2896, 16
      %v3210 = vrot.slane %v3208, 5
      %v3211 = vsel %vm233, %v3206, %v3210
      %v3213 = vshrl.u32 %v2878, 16
      %v3215 = vrot.slane %v3213, 4
      %v3216 = vshll.u32 %v2878, 16
      %v3218 = vrot.slane %v3216, 5
      %v3219 = vor.u32 %v3215, %v3218
      %v3220 = vrot.slane %v3219, 4
      %v3222 = vshll.u32 %v2879, 16
      %v3224 = vrot.slane %v3222, 5
      %v3225 = vsel %vm233, %v3220, %v3224
      %v3226 = vshrl.u32 %v2879, 16
      %v3228 = vrot.slane %v3226, 4
      %v3229 = vor.u32 %v3228, %v3224
      %v3230 = vrot.slane %v3229, 4
      %v3232 = vshll.u32 %v2897, 16
      %v3234 = vrot.slane %v3232, 5
      %v3235 = vsel %vm233, %v3230, %v3234
      %v3237 = vshrl.u32 %v2880, 16
      %v3239 = vrot.slane %v3237, 4
      %v3240 = vshll.u32 %v2880, 16
      %v3242 = vrot.slane %v3240, 5
      %v3243 = vor.u32 %v3239, %v3242
      %v3244 = vrot.slane %v3243, 4
      %v3246 = vshll.u32 %v2881, 16
      %v3248 = vrot.slane %v3246, 5
      %v3249 = vsel %vm233, %v3244, %v3248
      %v3250 = vshrl.u32 %v2881, 16
      %v3252 = vrot.slane %v3250, 4
      %v3253 = vor.u32 %v3252, %v3248
      %v3254 = vrot.slane %v3253, 4
      %v3256 = vshll.u32 %v2898, 16
      %v3258 = vrot.slane %v3256, 5
      %v3259 = vsel %vm233, %v3254, %v3258
      %v3261 = vshrl.u32 %v2882, 16
      %v3263 = vrot.slane %v3261, 4
      %v3264 = vshll.u32 %v2882, 16
      %v3266 = vrot.slane %v3264, 5
      %v3267 = vor.u32 %v3263, %v3266
      %v3268 = vrot.slane %v3267, 4
      %v3270 = vshll.u32 %v2883, 16
      %v3272 = vrot.slane %v3270, 5
      %v3273 = vsel %vm233, %v3268, %v3272
      %v3274 = vshrl.u32 %v2883, 16
      %v3276 = vrot.slane %v3274, 4
      %v3277 = vor.u32 %v3276, %v3272
      %v3278 = vrot.slane %v3277, 4
      %v3280 = vshll.u32 %v2899, 16
      %v3282 = vrot.slane %v3280, 5
      %v3283 = vsel %vm233, %v3278, %v3282
      %v3284 = vld [vmem:[%s2851] sm:$0xe]
      %v3285 = vld [vmem:[%s2851 + $0xc] sm:$0xe]
      %v3286 = vld [vmem:[%s2851 + $0x18] sm:$0xe]
      %v3287 = vld [vmem:[%s2851 + $0x24] sm:$0xe]
      %v3288 = vld [vmem:[%s2851 + $0x30] sm:$0xe]
      %v3289 = vld [vmem:[%s2851 + $0x3c] sm:$0xe]
      %v3290 = vld [vmem:[%s2851 + $0x48] sm:$0xe]
      %v3291 = vld [vmem:[%s2851 + $0x54] sm:$0xe]
      %v3292 = vld [vmem:[%s2851 + $0x60] sm:$0xe]
      %v3293 = vld [vmem:[%s2851 + $0x6c] sm:$0xe]
      %v3294 = vld [vmem:[%s2851 + $0x78] sm:$0xe]
      %v3295 = vld [vmem:[%s2851 + $0x84] sm:$0xe]
      %v3296 = vld [vmem:[%s2851 + $0x90] sm:$0xe]
      %v3297 = vld [vmem:[%s2851 + $0x9c] sm:$0xe]
      %v3298 = vld [vmem:[%s2851 + $0xa8] sm:$0xe]
      %v3299 = vld [vmem:[%s2851 + $0xb4] sm:$0xe]
      %v3348 = vrot.slane %v3284, 5
      %v3349 = vrot.slane %v3348, 4
      %v3350 = vrot.slane %v2853, 5
      %v3351 = vsel %vm684, %v3349, %v3350
      %v3352 = vrot.slane %v3350, 4
      %v3353 = vrot.slane %v2884, 5
      %v3354 = vsel %vm684, %v3352, %v3353
      %v3355 = vrot.slane %v3285, 5
      %v3356 = vrot.slane %v3355, 4
      %v3357 = vrot.slane %v2855, 5
      %v3358 = vsel %vm684, %v3356, %v3357
      %v3359 = vrot.slane %v3357, 4
      %v3360 = vrot.slane %v2885, 5
      %v3361 = vsel %vm684, %v3359, %v3360
      %v3362 = vrot.slane %v3286, 5
      %v3363 = vrot.slane %v3362, 4
      %v3364 = vrot.slane %v2857, 5
      %v3365 = vsel %vm684, %v3363, %v3364
      %v3366 = vrot.slane %v3364, 4
      %v3367 = vrot.slane %v2886, 5
      %v3368 = vsel %vm684, %v3366, %v3367
      %v3369 = vrot.slane %v3287, 5
      %v3370 = vrot.slane %v3369, 4
      %v3371 = vrot.slane %v2859, 5
      %v3372 = vsel %vm684, %v3370, %v3371
      %v3373 = vrot.slane %v3371, 4
      %v3374 = vrot.slane %v2887, 5
      %v3375 = vsel %vm684, %v3373, %v3374
      %v3376 = vrot.slane %v3288, 5
      %v3377 = vrot.slane %v3376, 4
      %v3378 = vrot.slane %v2861, 5
      %v3379 = vsel %vm684, %v3377, %v3378
      %v3380 = vrot.slane %v3378, 4
      %v3381 = vrot.slane %v2888, 5
      %v3382 = vsel %vm684, %v3380, %v3381
      %v3383 = vrot.slane %v3289, 5
      %v3384 = vrot.slane %v3383, 4
      %v3385 = vrot.slane %v2863, 5
      %v3386 = vsel %vm684, %v3384, %v3385
      %v3387 = vrot.slane %v3385, 4
      %v3388 = vrot.slane %v2889, 5
      %v3389 = vsel %vm684, %v3387, %v3388
      %v3390 = vrot.slane %v3290, 5
      %v3391 = vrot.slane %v3390, 4
      %v3392 = vrot.slane %v2865, 5
      %v3393 = vsel %vm684, %v3391, %v3392
      %v3394 = vrot.slane %v3392, 4
      %v3395 = vrot.slane %v2890, 5
      %v3396 = vsel %vm684, %v3394, %v3395
      %v3397 = vrot.slane %v3291, 5
      %v3398 = vrot.slane %v3397, 4
      %v3399 = vrot.slane %v2867, 5
      %v3400 = vsel %vm684, %v3398, %v3399
      %v3401 = vrot.slane %v3399, 4
      %v3402 = vrot.slane %v2891, 5
      %v3403 = vsel %vm684, %v3401, %v3402
      %v3404 = vrot.slane %v3292, 5
      %v3405 = vrot.slane %v3404, 4
      %v3406 = vrot.slane %v2869, 5
      %v3407 = vsel %vm684, %v3405, %v3406
      %v3408 = vrot.slane %v3406, 4
      %v3409 = vrot.slane %v2892, 5
      %v3410 = vsel %vm684, %v3408, %v3409
      %v3411 = vrot.slane %v3293, 5
      %v3412 = vrot.slane %v3411, 4
      %v3413 = vrot.slane %v2871, 5
      %v3414 = vsel %vm684, %v3412, %v3413
      %v3415 = vrot.slane %v3413, 4
      %v3416 = vrot.slane %v2893, 5
      %v3417 = vsel %vm684, %v3415, %v3416
      %v3418 = vrot.slane %v3294, 5
      %v3419 = vrot.slane %v3418, 4
      %v3420 = vrot.slane %v2873, 5
      %v3421 = vsel %vm684, %v3419, %v3420
      %v3422 = vrot.slane %v3420, 4
      %v3423 = vrot.slane %v2894, 5
      %v3424 = vsel %vm684, %v3422, %v3423
      %v3425 = vrot.slane %v3295, 5
      %v3426 = vrot.slane %v3425, 4
      %v3427 = vrot.slane %v2875, 5
      %v3428 = vsel %vm684, %v3426, %v3427
      %v3429 = vrot.slane %v3427, 4
      %v3430 = vrot.slane %v2895, 5
      %v3431 = vsel %vm684, %v3429, %v3430
      %v3432 = vrot.slane %v3296, 5
      %v3433 = vrot.slane %v3432, 4
      %v3434 = vrot.slane %v2877, 5
      %v3435 = vsel %vm684, %v3433, %v3434
      %v3436 = vrot.slane %v3434, 4
      %v3437 = vrot.slane %v2896, 5
      %v3438 = vsel %vm684, %v3436, %v3437
      %v3439 = vrot.slane %v3297, 5
      %v3440 = vrot.slane %v3439, 4
      %v3441 = vrot.slane %v2879, 5
      %v3442 = vsel %vm684, %v3440, %v3441
      %v3443 = vrot.slane %v3441, 4
      %v3444 = vrot.slane %v2897, 5
      %v3445 = vsel %vm684, %v3443, %v3444
      %v3446 = vrot.slane %v3298, 5
      %v3447 = vrot.slane %v3446, 4
      %v3448 = vrot.slane %v2881, 5
      %v3449 = vsel %vm684, %v3447, %v3448
      %v3450 = vrot.slane %v3448, 4
      %v3451 = vrot.slane %v2898, 5
      %v3452 = vsel %vm684, %v3450, %v3451
      %v3453 = vrot.slane %v3299, 5
      %v3454 = vrot.slane %v3453, 4
      %v3455 = vrot.slane %v2883, 5
      %v3456 = vsel %vm684, %v3454, %v3455
      %v3457 = vrot.slane %v3455, 4
      %v3458 = vrot.slane %v2899, 5
      %v3459 = vsel %vm684, %v3457, %v3458
      %v3476 = vunpack.c.l.b16 %v2852
      %v3477 = vunpack.c.l.b16 %v2853
      %v3478 = vunpack.c.l.b16 %v2854
      %v3479 = vunpack.c.l.b16 %v2855
      %v3480 = vunpack.c.l.b16 %v2856
      %v3481 = vunpack.c.l.b16 %v2857
      %v3482 = vunpack.c.l.b16 %v2858
      %v3483 = vunpack.c.l.b16 %v2859
      %v3484 = vunpack.c.l.b16 %v2860
      %v3485 = vunpack.c.l.b16 %v2861
      %v3486 = vunpack.c.l.b16 %v2862
      %v3487 = vunpack.c.l.b16 %v2863
      %v3488 = vunpack.c.l.b16 %v2864
      %v3489 = vunpack.c.l.b16 %v2865
      %v3490 = vunpack.c.l.b16 %v2866
      %v3491 = vunpack.c.l.b16 %v2867
      %v3492 = vunpack.c.l.b16 %v2868
      %v3493 = vunpack.c.l.b16 %v2869
      %v3494 = vunpack.c.l.b16 %v2870
      %v3495 = vunpack.c.l.b16 %v2871
      %v3496 = vunpack.c.l.b16 %v2872
      %v3497 = vunpack.c.l.b16 %v2873
      %v3498 = vunpack.c.l.b16 %v2874
      %v3499 = vunpack.c.l.b16 %v2875
      %v3500 = vunpack.c.l.b16 %v2876
      %v3501 = vunpack.c.l.b16 %v2877
      %v3502 = vunpack.c.l.b16 %v2878
      %v3503 = vunpack.c.l.b16 %v2879
      %v3504 = vunpack.c.l.b16 %v2880
      %v3505 = vunpack.c.l.b16 %v2881
      %v3506 = vunpack.c.l.b16 %v2882
      %v3507 = vunpack.c.l.b16 %v2883
      %v3508 = vpack.c.b16 %v3477, %v3476
      %v3509 = vpack.c.b16 %v3479, %v3478
      %v3510 = vpack.c.b16 %v3481, %v3480
      %v3511 = vpack.c.b16 %v3483, %v3482
      %v3512 = vpack.c.b16 %v3485, %v3484
      %v3513 = vpack.c.b16 %v3487, %v3486
      %v3514 = vpack.c.b16 %v3489, %v3488
      %v3515 = vpack.c.b16 %v3491, %v3490
      %v3516 = vpack.c.b16 %v3493, %v3492
      %v3517 = vpack.c.b16 %v3495, %v3494
      %v3518 = vpack.c.b16 %v3497, %v3496
      %v3519 = vpack.c.b16 %v3499, %v3498
      %v3520 = vpack.c.b16 %v3501, %v3500
      %v3521 = vpack.c.b16 %v3503, %v3502
      %v3522 = vpack.c.b16 %v3505, %v3504
      %v3523 = vpack.c.b16 %v3507, %v3506
      %v3540 = vunpack.c.l.b16 %v2913
      %v3541 = vunpack.c.l.b16 %v2923
      %v3542 = vunpack.c.l.b16 %v2937
      %v3543 = vunpack.c.l.b16 %v2947
      %v3544 = vunpack.c.l.b16 %v2961
      %v3545 = vunpack.c.l.b16 %v2971
      %v3546 = vunpack.c.l.b16 %v2985
      %v3547 = vunpack.c.l.b16 %v2995
      %v3548 = vunpack.c.l.b16 %v3009
      %v3549 = vunpack.c.l.b16 %v3019
      %v3550 = vunpack.c.l.b16 %v3033
      %v3551 = vunpack.c.l.b16 %v3043
      %v3552 = vunpack.c.l.b16 %v3057
      %v3553 = vunpack.c.l.b16 %v3067
      %v3554 = vunpack.c.l.b16 %v3081
      %v3555 = vunpack.c.l.b16 %v3091
      %v3556 = vunpack.c.l.b16 %v3105
      %v3557 = vunpack.c.l.b16 %v3115
      %v3558 = vunpack.c.l.b16 %v3129
      %v3559 = vunpack.c.l.b16 %v3139
      %v3560 = vunpack.c.l.b16 %v3153
      %v3561 = vunpack.c.l.b16 %v3163
      %v3562 = vunpack.c.l.b16 %v3177
      %v3563 = vunpack.c.l.b16 %v3187
      %v3564 = vunpack.c.l.b16 %v3201
      %v3565 = vunpack.c.l.b16 %v3211
      %v3566 = vunpack.c.l.b16 %v3225
      %v3567 = vunpack.c.l.b16 %v3235
      %v3568 = vunpack.c.l.b16 %v3249
      %v3569 = vunpack.c.l.b16 %v3259
      %v3570 = vunpack.c.l.b16 %v3273
      %v3571 = vunpack.c.l.b16 %v3283
      %v3572 = vpack.c.b16 %v3541, %v3540
      %v3573 = vpack.c.b16 %v3543, %v3542
      %v3574 = vpack.c.b16 %v3545, %v3544
      %v3575 = vpack.c.b16 %v3547, %v3546
      %v3576 = vpack.c.b16 %v3549, %v3548
      %v3577 = vpack.c.b16 %v3551, %v3550
      %v3578 = vpack.c.b16 %v3553, %v3552
      %v3579 = vpack.c.b16 %v3555, %v3554
      %v3580 = vpack.c.b16 %v3557, %v3556
      %v3581 = vpack.c.b16 %v3559, %v3558
      %v3582 = vpack.c.b16 %v3561, %v3560
      %v3583 = vpack.c.b16 %v3563, %v3562
      %v3584 = vpack.c.b16 %v3565, %v3564
      %v3585 = vpack.c.b16 %v3567, %v3566
      %v3586 = vpack.c.b16 %v3569, %v3568
      %v3587 = vpack.c.b16 %v3571, %v3570
      %v3604 = vunpack.c.l.b16 %v3351
      %v3605 = vunpack.c.l.b16 %v3354
      %v3606 = vunpack.c.l.b16 %v3358
      %v3607 = vunpack.c.l.b16 %v3361
      %v3608 = vunpack.c.l.b16 %v3365
      %v3609 = vunpack.c.l.b16 %v3368
      %v3610 = vunpack.c.l.b16 %v3372
      %v3611 = vunpack.c.l.b16 %v3375
      %v3612 = vunpack.c.l.b16 %v3379
      %v3613 = vunpack.c.l.b16 %v3382
      %v3614 = vunpack.c.l.b16 %v3386
      %v3615 = vunpack.c.l.b16 %v3389
      %v3616 = vunpack.c.l.b16 %v3393
      %v3617 = vunpack.c.l.b16 %v3396
      %v3618 = vunpack.c.l.b16 %v3400
      %v3619 = vunpack.c.l.b16 %v3403
      %v3620 = vunpack.c.l.b16 %v3407
      %v3621 = vunpack.c.l.b16 %v3410
      %v3622 = vunpack.c.l.b16 %v3414
      %v3623 = vunpack.c.l.b16 %v3417
      %v3624 = vunpack.c.l.b16 %v3421
      %v3625 = vunpack.c.l.b16 %v3424
      %v3626 = vunpack.c.l.b16 %v3428
      %v3627 = vunpack.c.l.b16 %v3431
      %v3628 = vunpack.c.l.b16 %v3435
      %v3629 = vunpack.c.l.b16 %v3438
      %v3630 = vunpack.c.l.b16 %v3442
      %v3631 = vunpack.c.l.b16 %v3445
      %v3632 = vunpack.c.l.b16 %v3449
      %v3633 = vunpack.c.l.b16 %v3452
      %v3634 = vunpack.c.l.b16 %v3456
      %v3635 = vunpack.c.l.b16 %v3459
      %v3636 = vpack.c.b16 %v3605, %v3604
      %v3637 = vpack.c.b16 %v3607, %v3606
      %v3638 = vpack.c.b16 %v3609, %v3608
      %v3639 = vpack.c.b16 %v3611, %v3610
      %v3640 = vpack.c.b16 %v3613, %v3612
      %v3641 = vpack.c.b16 %v3615, %v3614
      %v3642 = vpack.c.b16 %v3617, %v3616
      %v3643 = vpack.c.b16 %v3619, %v3618
      %v3644 = vpack.c.b16 %v3621, %v3620
      %v3645 = vpack.c.b16 %v3623, %v3622
      %v3646 = vpack.c.b16 %v3625, %v3624
      %v3647 = vpack.c.b16 %v3627, %v3626
      %v3648 = vpack.c.b16 %v3629, %v3628
      %v3649 = vpack.c.b16 %v3631, %v3630
      %v3650 = vpack.c.b16 %v3633, %v3632
      %v3651 = vpack.c.b16 %v3635, %v3634
      %s3668 = scalar_lea.vmem %s1, 384
      %v3669 = vld [vmem:[%s3668] sm:$0xf]
      %v3670 = vld [vmem:[%s3668 + $0x4] sm:$0xf]
      %v3671 = vld [vmem:[%s3668 + $0x8] sm:$0xf]
      %v3672 = vld [vmem:[%s3668 + $0xc] sm:$0xf]
      %v3673 = vld [vmem:[%s3668 + $0x10] sm:$0xf]
      %v3674 = vld [vmem:[%s3668 + $0x14] sm:$0xf]
      %v3675 = vld [vmem:[%s3668 + $0x18] sm:$0xf]
      %v3676 = vld [vmem:[%s3668 + $0x1c] sm:$0xf]
      %v3677 = vld [vmem:[%s3668 + $0x20] sm:$0xf]
      %v3678 = vld [vmem:[%s3668 + $0x24] sm:$0xf]
      %v3679 = vld [vmem:[%s3668 + $0x28] sm:$0xf]
      %v3680 = vld [vmem:[%s3668 + $0x2c] sm:$0xf]
      %v3681 = vld [vmem:[%s3668 + $0x30] sm:$0xf]
      %v3682 = vld [vmem:[%s3668 + $0x34] sm:$0xf]
      %v3683 = vld [vmem:[%s3668 + $0x38] sm:$0xf]
      %v3684 = vld [vmem:[%s3668 + $0x3c] sm:$0xf]
      %v3685 = vld [vmem:[%s3668 + $0x40] sm:$0xf]
      %v3686 = vld [vmem:[%s3668 + $0x44] sm:$0xf]
      %v3687 = vld [vmem:[%s3668 + $0x48] sm:$0xf]
      %v3688 = vld [vmem:[%s3668 + $0x4c] sm:$0xf]
      %v3689 = vld [vmem:[%s3668 + $0x50] sm:$0xf]
      %v3690 = vld [vmem:[%s3668 + $0x54] sm:$0xf]
      %v3691 = vld [vmem:[%s3668 + $0x58] sm:$0xf]
      %v3692 = vld [vmem:[%s3668 + $0x5c] sm:$0xf]
      %v3693 = vld [vmem:[%s3668 + $0x60] sm:$0xf]
      %v3694 = vld [vmem:[%s3668 + $0x64] sm:$0xf]
      %v3695 = vld [vmem:[%s3668 + $0x68] sm:$0xf]
      %v3696 = vld [vmem:[%s3668 + $0x6c] sm:$0xf]
      %v3697 = vld [vmem:[%s3668 + $0x70] sm:$0xf]
      %v3698 = vld [vmem:[%s3668 + $0x74] sm:$0xf]
      %v3699 = vld [vmem:[%s3668 + $0x78] sm:$0xf]
      %v3700 = vld [vmem:[%s3668 + $0x7c] sm:$0xf]
      %v3701 = vld [vmem:[%s3668 + $0x80] sm:$0xf]
      %v3702 = vld [vmem:[%s3668 + $0x84] sm:$0xf]
      %v3703 = vld [vmem:[%s3668 + $0x88] sm:$0xf]
      %v3704 = vld [vmem:[%s3668 + $0x8c] sm:$0xf]
      %v3705 = vld [vmem:[%s3668 + $0x90] sm:$0xf]
      %v3706 = vld [vmem:[%s3668 + $0x94] sm:$0xf]
      %v3707 = vld [vmem:[%s3668 + $0x98] sm:$0xf]
      %v3708 = vld [vmem:[%s3668 + $0x9c] sm:$0xf]
      %v3709 = vld [vmem:[%s3668 + $0xa0] sm:$0xf]
      %v3710 = vld [vmem:[%s3668 + $0xa4] sm:$0xf]
      %v3711 = vld [vmem:[%s3668 + $0xa8] sm:$0xf]
      %v3712 = vld [vmem:[%s3668 + $0xac] sm:$0xf]
      %v3713 = vld [vmem:[%s3668 + $0xb0] sm:$0xf]
      %v3714 = vld [vmem:[%s3668 + $0xb4] sm:$0xf]
      %v3715 = vld [vmem:[%s3668 + $0xb8] sm:$0xf]
      %v3716 = vld [vmem:[%s3668 + $0xbc] sm:$0xf]
      %v3765 = vunpack.c.l.b16 %v3669
      %v3766 = vunpack.c.l.b16 %v3670
      %v3767 = vunpack.c.l.b16 %v3671
      %v3768 = vunpack.c.l.b16 %v3672
      %v3769 = vunpack.c.l.b16 %v3673
      %v3770 = vunpack.c.l.b16 %v3674
      %v3771 = vunpack.c.l.b16 %v3675
      %v3772 = vunpack.c.l.b16 %v3676
      %v3773 = vunpack.c.l.b16 %v3677
      %v3774 = vunpack.c.l.b16 %v3678
      %v3775 = vunpack.c.l.b16 %v3679
      %v3776 = vunpack.c.l.b16 %v3680
      %v3777 = vunpack.c.l.b16 %v3681
      %v3778 = vunpack.c.l.b16 %v3682
      %v3779 = vunpack.c.l.b16 %v3683
      %v3780 = vunpack.c.l.b16 %v3684
      %v3781 = vunpack.c.l.b16 %v3685
      %v3782 = vunpack.c.l.b16 %v3686
      %v3783 = vunpack.c.l.b16 %v3687
      %v3784 = vunpack.c.l.b16 %v3688
      %v3785 = vunpack.c.l.b16 %v3689
      %v3786 = vunpack.c.l.b16 %v3690
      %v3787 = vunpack.c.l.b16 %v3691
      %v3788 = vunpack.c.l.b16 %v3692
      %v3789 = vunpack.c.l.b16 %v3693
      %v3790 = vunpack.c.l.b16 %v3694
      %v3791 = vunpack.c.l.b16 %v3695
      %v3792 = vunpack.c.l.b16 %v3696
      %v3793 = vunpack.c.l.b16 %v3697
      %v3794 = vunpack.c.l.b16 %v3698
      %v3795 = vunpack.c.l.b16 %v3699
      %v3796 = vunpack.c.l.b16 %v3700
      %v3797 = vunpack.c.l.b16 %v3701
      %v3798 = vunpack.c.l.b16 %v3702
      %v3799 = vunpack.c.l.b16 %v3703
      %v3800 = vunpack.c.l.b16 %v3704
      %v3801 = vunpack.c.l.b16 %v3705
      %v3802 = vunpack.c.l.b16 %v3706
      %v3803 = vunpack.c.l.b16 %v3707
      %v3804 = vunpack.c.l.b16 %v3708
      %v3805 = vunpack.c.l.b16 %v3709
      %v3806 = vunpack.c.l.b16 %v3710
      %v3807 = vunpack.c.l.b16 %v3711
      %v3808 = vunpack.c.l.b16 %v3712
      %v3809 = vunpack.c.l.b16 %v3713
      %v3810 = vunpack.c.l.b16 %v3714
      %v3811 = vunpack.c.l.b16 %v3715
      %v3812 = vunpack.c.l.b16 %v3716
      %v3813 = vpack.c.b16 %v3766, %v3765
      %v3814 = vpack.c.b16 %v3768, %v3767
      %v3815 = vpack.c.b16 %v3770, %v3769
      %v3816 = vpack.c.b16 %v3772, %v3771
      %v3817 = vpack.c.b16 %v3774, %v3773
      %v3818 = vpack.c.b16 %v3776, %v3775
      %v3819 = vpack.c.b16 %v3778, %v3777
      %v3820 = vpack.c.b16 %v3780, %v3779
      %v3821 = vpack.c.b16 %v3782, %v3781
      %v3822 = vpack.c.b16 %v3784, %v3783
      %v3823 = vpack.c.b16 %v3786, %v3785
      %v3824 = vpack.c.b16 %v3788, %v3787
      %v3825 = vpack.c.b16 %v3790, %v3789
      %v3826 = vpack.c.b16 %v3792, %v3791
      %v3827 = vpack.c.b16 %v3794, %v3793
      %v3828 = vpack.c.b16 %v3796, %v3795
      %v3829 = vpack.c.b16 %v3798, %v3797
      %v3830 = vpack.c.b16 %v3800, %v3799
      %v3831 = vpack.c.b16 %v3802, %v3801
      %v3832 = vpack.c.b16 %v3804, %v3803
      %v3833 = vpack.c.b16 %v3806, %v3805
      %v3834 = vpack.c.b16 %v3808, %v3807
      %v3835 = vpack.c.b16 %v3810, %v3809
      %v3836 = vpack.c.b16 %v3812, %v3811
      %3861 = vmatprep.subr.bf16.mxu0 0
      %3862 = vmatpush1.bf16.msra.mxu0 %v3813
      %3863 = vmatprep.subr.bf16.mxu0 0
      %3864 = vmatpush1.bf16.msra.mxu0 %v3814
      %3865 = vmatprep.subr.bf16.mxu0 0
      %3866 = vmatpush1.bf16.msra.mxu0 %v3815
      %3867 = vmatprep.subr.bf16.mxu0 0
      %3868 = vmatpush1.bf16.msra.mxu0 %v3816
      %3869 = vmatprep.subr.bf16.mxu0 0
      %3870 = vmatpush1.bf16.msra.mxu0 %v3817
      %3871 = vmatprep.subr.bf16.mxu0 0
      %3872 = vmatpush1.bf16.msra.mxu0 %v3818
      %3873 = vmatprep.subr.bf16.mxu0 0
      %3874 = vmatpush1.bf16.msra.mxu0 %v3819
      %3875 = vmatprep.subr.bf16.mxu0 0
      %3876 = vmatpush1.bf16.msra.mxu0 %v3820
      %3877 = vmatprep.subr.bf16.mxu0 0
      %3878 = vmatpush1.bf16.msra.mxu0 %v3821
      %3879 = vmatprep.subr.bf16.mxu0 0
      %3880 = vmatpush1.bf16.msra.mxu0 %v3822
      %3881 = vmatprep.subr.bf16.mxu0 0
      %3882 = vmatpush1.bf16.msra.mxu0 %v3823
      %3883 = vmatprep.subr.bf16.mxu0 0
      %3884 = vmatpush1.bf16.msra.mxu0 %v3824
      %3885 = vmatprep.subr.bf16.mxu0 0
      %3886 = vmatpush1.bf16.msra.mxu0 %v3825
      %3887 = vmatprep.subr.bf16.mxu0 0
      %3888 = vmatpush1.bf16.msra.mxu0 %v3826
      %3889 = vmatprep.subr.bf16.mxu0 0
      %3890 = vmatpush1.bf16.msra.mxu0 %v3827
      %3891 = vmatprep.subr.bf16.mxu0 0
      %3892 = vmatpush1.bf16.msra.mxu0 %v3828
      %3893 = vmatprep.mubr.bf16.mxu0 %v3572
      %3894 = vmatmul.mubr.bf16.gmra.mrb[0].mxu0 %v3508
      %v3895 = vpop.f32.mrb[0].mxu0
      %v3896 = vadd.f32 0.0, %v3895
      %v3897 = vpop.f32.mrb[0].mxu0
      %v3898 = vpop.f32.mrb[0].mxu0
      %v3899 = vadd.f32 0.0, %v3898
      %v3900 = vpop.f32.mrb[0].mxu0
      %3901 = vmatprep.mubr.bf16.mxu0 %v3573
      %3902 = vmatmul.mubr.bf16.gmra.mrb[0].mxu0 %v3509
      %v3903 = vpop.f32.mrb[0].mxu0
      %v3904 = vadd.f32 0.0, %v3903
      %v3905 = vpop.f32.mrb[0].mxu0
      %v3906 = vpop.f32.mrb[0].mxu0
      %v3907 = vadd.f32 0.0, %v3906
      %v3908 = vpop.f32.mrb[0].mxu0
      %3909 = vmatprep.mubr.bf16.mxu0 %v3574
      %3910 = vmatmul.mubr.bf16.gmra.mrb[0].mxu0 %v3510
      %v3911 = vpop.f32.mrb[0].mxu0
      %v3912 = vadd.f32 0.0, %v3911
      %v3913 = vpop.f32.mrb[0].mxu0
      %v3914 = vpop.f32.mrb[0].mxu0
      %v3915 = vadd.f32 0.0, %v3914
      %v3916 = vpop.f32.mrb[0].mxu0
      %3917 = vmatprep.mubr.bf16.mxu0 %v3575
      %3918 = vmatmul.mubr.bf16.gmra.mrb[0].mxu0 %v3511
      %v3919 = vpop.f32.mrb[0].mxu0
      %v3920 = vadd.f32 0.0, %v3919
      %v3921 = vpop.f32.mrb[0].mxu0
      %v3922 = vpop.f32.mrb[0].mxu0
      %v3923 = vadd.f32 0.0, %v3922
      %v3924 = vpop.f32.mrb[0].mxu0
      %3925 = vmatprep.mubr.bf16.mxu0 %v3576
      %3926 = vmatmul.mubr.bf16.gmra.mrb[0].mxu0 %v3512
      %v3927 = vpop.f32.mrb[0].mxu0
      %v3928 = vadd.f32 0.0, %v3927
      %v3929 = vpop.f32.mrb[0].mxu0
      %v3930 = vpop.f32.mrb[0].mxu0
      %v3931 = vadd.f32 0.0, %v3930
      %v3932 = vpop.f32.mrb[0].mxu0
      %3933 = vmatprep.mubr.bf16.mxu0 %v3577
      %3934 = vmatmul.mubr.bf16.gmra.mrb[0].mxu0 %v3513
      %v3935 = vpop.f32.mrb[0].mxu0
      %v3936 = vadd.f32 0.0, %v3935
      %v3937 = vpop.f32.mrb[0].mxu0
      %v3938 = vpop.f32.mrb[0].mxu0
      %v3939 = vadd.f32 0.0, %v3938
      %v3940 = vpop.f32.mrb[0].mxu0
      %3941 = vmatprep.mubr.bf16.mxu0 %v3578
      %3942 = vmatmul.mubr.bf16.gmra.mrb[0].mxu0 %v3514
      %v3943 = vpop.f32.mrb[0].mxu0
      %v3944 = vadd.f32 0.0, %v3943
      %v3945 = vpop.f32.mrb[0].mxu0
      %v3946 = vpop.f32.mrb[0].mxu0
      %v3947 = vadd.f32 0.0, %v3946
      %v3948 = vpop.f32.mrb[0].mxu0
      %3949 = vmatprep.mubr.bf16.mxu0 %v3579
      %3950 = vmatmul.mubr.bf16.gmra.mrb[0].mxu0 %v3515
      %v3951 = vpop.f32.mrb[0].mxu0
      %v3952 = vadd.f32 0.0, %v3951
      %v3953 = vpop.f32.mrb[0].mxu0
      %v3954 = vpop.f32.mrb[0].mxu0
      %v3955 = vadd.f32 0.0, %v3954
      %v3956 = vpop.f32.mrb[0].mxu0
      %3957 = vmatprep.mubr.bf16.mxu0 %v3580
      %3958 = vmatmul.mubr.bf16.gmra.mrb[0].mxu0 %v3516
      %v3959 = vpop.f32.mrb[0].mxu0
      %v3960 = vadd.f32 0.0, %v3959
      %v3961 = vpop.f32.mrb[0].mxu0
      %v3962 = vpop.f32.mrb[0].mxu0
      %v3963 = vadd.f32 0.0, %v3962
      %v3964 = vpop.f32.mrb[0].mxu0
      %3965 = vmatprep.mubr.bf16.mxu0 %v3581
      %3966 = vmatmul.mubr.bf16.gmra.mrb[0].mxu0 %v3517
      %v3967 = vpop.f32.mrb[0].mxu0
      %v3968 = vadd.f32 0.0, %v3967
      %v3969 = vpop.f32.mrb[0].mxu0
      %v3970 = vpop.f32.mrb[0].mxu0
      %v3971 = vadd.f32 0.0, %v3970
      %v3972 = vpop.f32.mrb[0].mxu0
      %3973 = vmatprep.mubr.bf16.mxu0 %v3582
      %3974 = vmatmul.mubr.bf16.gmra.mrb[0].mxu0 %v3518
      %v3975 = vpop.f32.mrb[0].mxu0
      %v3976 = vadd.f32 0.0, %v3975
      %v3977 = vpop.f32.mrb[0].mxu0
      %v3978 = vpop.f32.mrb[0].mxu0
      %v3979 = vadd.f32 0.0, %v3978
      %v3980 = vpop.f32.mrb[0].mxu0
      %3981 = vmatprep.mubr.bf16.mxu0 %v3583
      %3982 = vmatmul.mubr.bf16.gmra.mrb[0].mxu0 %v3519
      %v3983 = vpop.f32.mrb[0].mxu0
      %v3984 = vadd.f32 0.0, %v3983
      %v3985 = vpop.f32.mrb[0].mxu0
      %v3986 = vpop.f32.mrb[0].mxu0
      %v3987 = vadd.f32 0.0, %v3986
      %v3988 = vpop.f32.mrb[0].mxu0
      %3989 = vmatprep.mubr.bf16.mxu0 %v3584
      %3990 = vmatmul.mubr.bf16.gmra.mrb[0].mxu0 %v3520
      %v3991 = vpop.f32.mrb[0].mxu0
      %v3992 = vadd.f32 0.0, %v3991
      %v3993 = vpop.f32.mrb[0].mxu0
      %v3994 = vpop.f32.mrb[0].mxu0
      %v3995 = vadd.f32 0.0, %v3994
      %v3996 = vpop.f32.mrb[0].mxu0
      %3997 = vmatprep.mubr.bf16.mxu0 %v3585
      %3998 = vmatmul.mubr.bf16.gmra.mrb[0].mxu0 %v3521
      %v3999 = vpop.f32.mrb[0].mxu0
      %v4000 = vadd.f32 0.0, %v3999
      %v4001 = vpop.f32.mrb[0].mxu0
      %v4002 = vpop.f32.mrb[0].mxu0
      %v4003 = vadd.f32 0.0, %v4002
      %v4004 = vpop.f32.mrb[0].mxu0
      %4005 = vmatprep.mubr.bf16.mxu0 %v3586
      %4006 = vmatmul.mubr.bf16.gmra.mrb[0].mxu0 %v3522
      %v4007 = vpop.f32.mrb[0].mxu0
      %v4008 = vadd.f32 0.0, %v4007
      %v4009 = vpop.f32.mrb[0].mxu0
      %v4010 = vpop.f32.mrb[0].mxu0
      %v4011 = vadd.f32 0.0, %v4010
      %v4012 = vpop.f32.mrb[0].mxu0
      %4013 = vmatprep.mubr.bf16.mxu0 %v3587
      %4014 = vmatmul.mubr.bf16.gmra.mrb[0].mxu0 %v3523
      %v4015 = vpop.f32.mrb[0].mxu0
      %v4016 = vadd.f32 0.0, %v4015
      %v4017 = vpop.f32.mrb[0].mxu0
      %v4018 = vpop.f32.mrb[0].mxu0
      %v4019 = vadd.f32 0.0, %v4018
      %v4020 = vpop.f32.mrb[0].mxu0
      %4021 = vdwg.mxu0
      %4022 = vmatprep.subr.bf16.mxu0 0
      %4023 = vmatpush1.bf16.msra.mxu0 %v3829
      %4024 = vmatprep.subr.bf16.mxu0 0
      %4025 = vmatpush1.bf16.msra.mxu0 %v3830
      %4026 = vmatprep.subr.bf16.mxu0 0
      %4027 = vmatpush1.bf16.msra.mxu0 %v3831
      %4028 = vmatprep.subr.bf16.mxu0 0
      %4029 = vmatpush1.bf16.msra.mxu0 %v3832
      %4030 = vmatprep.subr.bf16.mxu0 0
      %4031 = vmatpush1.bf16.msra.mxu0 %v3833
      %4032 = vmatprep.subr.bf16.mxu0 0
      %4033 = vmatpush1.bf16.msra.mxu0 %v3834
      %4034 = vmatprep.subr.bf16.mxu0 0
      %4035 = vmatpush1.bf16.msra.mxu0 %v3835
      %4036 = vmatprep.subr.bf16.mxu0 0
      %4037 = vmatpush1.bf16.msra.mxu0 %v3836
      %4038 = vmatprep.subr.bf16.mxu0 0
      %4039 = vmatpush1.bf16.msra.mxu0 0
      %4040 = vmatprep.subr.bf16.mxu0 0
      %4041 = vmatpush1.bf16.msra.mxu0 0
      %4042 = vmatprep.subr.bf16.mxu0 0
      %4043 = vmatpush1.bf16.msra.mxu0 0
      %4044 = vmatprep.subr.bf16.mxu0 0
      %4045 = vmatpush1.bf16.msra.mxu0 0
      %4046 = vmatprep.subr.bf16.mxu0 0
      %4047 = vmatpush1.bf16.msra.mxu0 0
      %4048 = vmatprep.subr.bf16.mxu0 0
      %4049 = vmatpush1.bf16.msra.mxu0 0
      %4050 = vmatprep.subr.bf16.mxu0 0
      %4051 = vmatpush1.bf16.msra.mxu0 0
      %4052 = vmatprep.subr.bf16.mxu0 0
      %4053 = vmatpush1.bf16.msra.mxu0 0
      %4054 = vmatprep.mubr.bf16.mxu0 0
      %4055 = vmatmul.mubr.bf16.gmra.mrb[0].mxu0 %v3636
      %v4056 = vpop.f32.mrb[0].mxu0
      %v4057 = vadd.f32 %v3896, %v4056
      %v4058 = vpop.f32.mrb[0].mxu0
      %v4059 = vpop.f32.mrb[0].mxu0
      %v4060 = vadd.f32 %v3899, %v4059
      %v4061 = vpop.f32.mrb[0].mxu0
      %4062 = vmatprep.mubr.bf16.mxu0 0
      %4063 = vmatmul.mubr.bf16.gmra.mrb[0].mxu0 %v3637
      %v4064 = vpop.f32.mrb[0].mxu0
      %v4065 = vadd.f32 %v3904, %v4064
      %v4066 = vpop.f32.mrb[0].mxu0
      %v4067 = vpop.f32.mrb[0].mxu0
      %v4068 = vadd.f32 %v3907, %v4067
      %v4069 = vpop.f32.mrb[0].mxu0
      %4070 = vmatprep.mubr.bf16.mxu0 0
      %4071 = vmatmul.mubr.bf16.gmra.mrb[0].mxu0 %v3638
      %v4072 = vpop.f32.mrb[0].mxu0
      %v4073 = vadd.f32 %v3912, %v4072
      %v4074 = vpop.f32.mrb[0].mxu0
      %v4075 = vpop.f32.mrb[0].mxu0
      %v4076 = vadd.f32 %v3915, %v4075
      %v4077 = vpop.f32.mrb[0].mxu0
      %4078 = vmatprep.mubr.bf16.mxu0 0
      %4079 = vmatmul.mubr.bf16.gmra.mrb[0].mxu0 %v3639
      %v4080 = vpop.f32.mrb[0].mxu0
      %v4081 = vadd.f32 %v3920, %v4080
      %v4082 = vpop.f32.mrb[0].mxu0
      %v4083 = vpop.f32.mrb[0].mxu0
      %v4084 = vadd.f32 %v3923, %v4083
      %v4085 = vpop.f32.mrb[0].mxu0
      %4086 = vmatprep.mubr.bf16.mxu0 0
      %4087 = vmatmul.mubr.bf16.gmra.mrb[0].mxu0 %v3640
      %v4088 = vpop.f32.mrb[0].mxu0
      %v4089 = vadd.f32 %v3928, %v4088
      %v4090 = vpop.f32.mrb[0].mxu0
      %v4091 = vpop.f32.mrb[0].mxu0
      %v4092 = vadd.f32 %v3931, %v4091
      %v4093 = vpop.f32.mrb[0].mxu0
      %4094 = vmatprep.mubr.bf16.mxu0 0
      %4095 = vmatmul.mubr.bf16.gmra.mrb[0].mxu0 %v3641
      %v4096 = vpop.f32.mrb[0].mxu0
      %v4097 = vadd.f32 %v3936, %v4096
      %v4098 = vpop.f32.mrb[0].mxu0
      %v4099 = vpop.f32.mrb[0].mxu0
      %v4100 = vadd.f32 %v3939, %v4099
      %v4101 = vpop.f32.mrb[0].mxu0
      %4102 = vmatprep.mubr.bf16.mxu0 0
      %4103 = vmatmul.mubr.bf16.gmra.mrb[0].mxu0 %v3642
      %v4104 = vpop.f32.mrb[0].mxu0
      %v4105 = vadd.f32 %v3944, %v4104
      %v4106 = vpop.f32.mrb[0].mxu0
      %v4107 = vpop.f32.mrb[0].mxu0
      %v4108 = vadd.f32 %v3947, %v4107
      %v4109 = vpop.f32.mrb[0].mxu0
      %4110 = vmatprep.mubr.bf16.mxu0 0
      %4111 = vmatmul.mubr.bf16.gmra.mrb[0].mxu0 %v3643
      %v4112 = vpop.f32.mrb[0].mxu0
      %v4113 = vadd.f32 %v3952, %v4112
      %v4114 = vpop.f32.mrb[0].mxu0
      %v4115 = vpop.f32.mrb[0].mxu0
      %v4116 = vadd.f32 %v3955, %v4115
      %v4117 = vpop.f32.mrb[0].mxu0
      %4118 = vmatprep.mubr.bf16.mxu0 0
      %4119 = vmatmul.mubr.bf16.gmra.mrb[0].mxu0 %v3644
      %v4120 = vpop.f32.mrb[0].mxu0
      %v4121 = vadd.f32 %v3960, %v4120
      %v4122 = vpop.f32.mrb[0].mxu0
      %v4123 = vpop.f32.mrb[0].mxu0
      %v4124 = vadd.f32 %v3963, %v4123
      %v4125 = vpop.f32.mrb[0].mxu0
      %4126 = vmatprep.mubr.bf16.mxu0 0
      %4127 = vmatmul.mubr.bf16.gmra.mrb[0].mxu0 %v3645
      %v4128 = vpop.f32.mrb[0].mxu0
      %v4129 = vadd.f32 %v3968, %v4128
      %v4130 = vpop.f32.mrb[0].mxu0
      %v4131 = vpop.f32.mrb[0].mxu0
      %v4132 = vadd.f32 %v3971, %v4131
      %v4133 = vpop.f32.mrb[0].mxu0
      %4134 = vmatprep.mubr.bf16.mxu0 0
      %4135 = vmatmul.mubr.bf16.gmra.mrb[0].mxu0 %v3646
      %v4136 = vpop.f32.mrb[0].mxu0
      %v4137 = vadd.f32 %v3976, %v4136
      %v4138 = vpop.f32.mrb[0].mxu0
      %v4139 = vpop.f32.mrb[0].mxu0
      %v4140 = vadd.f32 %v3979, %v4139
      %v4141 = vpop.f32.mrb[0].mxu0
      %4142 = vmatprep.mubr.bf16.mxu0 0
      %4143 = vmatmul.mubr.bf16.gmra.mrb[0].mxu0 %v3647
      %v4144 = vpop.f32.mrb[0].mxu0
      %v4145 = vadd.f32 %v3984, %v4144
      %v4146 = vpop.f32.mrb[0].mxu0
      %v4147 = vpop.f32.mrb[0].mxu0
      %v4148 = vadd.f32 %v3987, %v4147
      %v4149 = vpop.f32.mrb[0].mxu0
      %4150 = vmatprep.mubr.bf16.mxu0 0
      %4151 = vmatmul.mubr.bf16.gmra.mrb[0].mxu0 %v3648
      %v4152 = vpop.f32.mrb[0].mxu0
      %v4153 = vadd.f32 %v3992, %v4152
      %v4154 = vpop.f32.mrb[0].mxu0
      %v4155 = vpop.f32.mrb[0].mxu0
      %v4156 = vadd.f32 %v3995, %v4155
      %v4157 = vpop.f32.mrb[0].mxu0
      %4158 = vmatprep.mubr.bf16.mxu0 0
      %4159 = vmatmul.mubr.bf16.gmra.mrb[0].mxu0 %v3649
      %v4160 = vpop.f32.mrb[0].mxu0
      %v4161 = vadd.f32 %v4000, %v4160
      %v4162 = vpop.f32.mrb[0].mxu0
      %v4163 = vpop.f32.mrb[0].mxu0
      %v4164 = vadd.f32 %v4003, %v4163
      %v4165 = vpop.f32.mrb[0].mxu0
      %4166 = vmatprep.mubr.bf16.mxu0 0
      %4167 = vmatmul.mubr.bf16.gmra.mrb[0].mxu0 %v3650
      %v4168 = vpop.f32.mrb[0].mxu0
      %v4169 = vadd.f32 %v4008, %v4168
      %v4170 = vpop.f32.mrb[0].mxu0
      %v4171 = vpop.f32.mrb[0].mxu0
      %v4172 = vadd.f32 %v4011, %v4171
      %v4173 = vpop.f32.mrb[0].mxu0
      %4174 = vmatprep.mubr.bf16.mxu0 0
      %4175 = vmatmul.mubr.bf16.gmra.mrb[0].mxu0 %v3651
      %v4176 = vpop.f32.mrb[0].mxu0
      %v4177 = vadd.f32 %v4016, %v4176
      %v4178 = vpop.f32.mrb[0].mxu0
      %v4179 = vpop.f32.mrb[0].mxu0
      %v4180 = vadd.f32 %v4019, %v4179
      %v4181 = vpop.f32.mrb[0].mxu0
      %4182 = vdwg.mxu0
      %v4183 = vadd.f32 %v2725, %v4057
      %v4184 = vadd.f32 %v2728, %v4060
      %v4185 = vadd.f32 %v2733, %v4065
      %v4186 = vadd.f32 %v2736, %v4068
      %v4187 = vadd.f32 %v2741, %v4073
      %v4188 = vadd.f32 %v2744, %v4076
      %v4189 = vadd.f32 %v2749, %v4081
      %v4190 = vadd.f32 %v2752, %v4084
      %v4191 = vadd.f32 %v2757, %v4089
      %v4192 = vadd.f32 %v2760, %v4092
      %v4193 = vadd.f32 %v2765, %v4097
      %v4194 = vadd.f32 %v2768, %v4100
      %v4195 = vadd.f32 %v2773, %v4105
      %v4196 = vadd.f32 %v2776, %v4108
      %v4197 = vadd.f32 %v2781, %v4113
      %v4198 = vadd.f32 %v2784, %v4116
      %v4199 = vadd.f32 %v2789, %v4121
      %v4200 = vadd.f32 %v2792, %v4124
      %v4201 = vadd.f32 %v2797, %v4129
      %v4202 = vadd.f32 %v2800, %v4132
      %v4203 = vadd.f32 %v2805, %v4137
      %v4204 = vadd.f32 %v2808, %v4140
      %v4205 = vadd.f32 %v2813, %v4145
      %v4206 = vadd.f32 %v2816, %v4148
      %v4207 = vadd.f32 %v2821, %v4153
      %v4208 = vadd.f32 %v2824, %v4156
      %v4209 = vadd.f32 %v2829, %v4161
      %v4210 = vadd.f32 %v2832, %v4164
      %v4211 = vadd.f32 %v2837, %v4169
      %v4212 = vadd.f32 %v2840, %v4172
      %v4213 = vadd.f32 %v2845, %v4177
      %v4214 = vadd.f32 %v2848, %v4180
      %v4215 = vpack.c.bf16 %v4184, %v4183
      %v4216 = vpack.c.bf16 %v4186, %v4185
      %v4217 = vpack.c.bf16 %v4188, %v4187
      %v4218 = vpack.c.bf16 %v4190, %v4189
      %v4219 = vpack.c.bf16 %v4192, %v4191
      %v4220 = vpack.c.bf16 %v4194, %v4193
      %v4221 = vpack.c.bf16 %v4196, %v4195
      %v4222 = vpack.c.bf16 %v4198, %v4197
      %v4223 = vpack.c.bf16 %v4200, %v4199
      %v4224 = vpack.c.bf16 %v4202, %v4201
      %v4225 = vpack.c.bf16 %v4204, %v4203
      %v4226 = vpack.c.bf16 %v4206, %v4205
      %v4227 = vpack.c.bf16 %v4208, %v4207
      %v4228 = vpack.c.bf16 %v4210, %v4209
      %v4229 = vpack.c.bf16 %v4212, %v4211
      %v4230 = vpack.c.bf16 %v4214, %v4213
      %v4247 = vunpack.c.l.b16 %v4215
      %v4248 = vunpack.c.h.b16 %v4215
      %v4249 = vunpack.c.l.b16 %v4216
      %v4250 = vunpack.c.h.b16 %v4216
      %v4251 = vunpack.c.l.b16 %v4217
      %v4252 = vunpack.c.h.b16 %v4217
      %v4253 = vunpack.c.l.b16 %v4218
      %v4254 = vunpack.c.h.b16 %v4218
      %v4255 = vunpack.c.l.b16 %v4219
      %v4256 = vunpack.c.h.b16 %v4219
      %v4257 = vunpack.c.l.b16 %v4220
      %v4258 = vunpack.c.h.b16 %v4220
      %v4259 = vunpack.c.l.b16 %v4221
      %v4260 = vunpack.c.h.b16 %v4221
      %v4261 = vunpack.c.l.b16 %v4222
      %v4262 = vunpack.c.h.b16 %v4222
      %v4263 = vunpack.c.l.b16 %v4223
      %v4264 = vunpack.c.h.b16 %v4223
      %v4265 = vunpack.c.l.b16 %v4224
      %v4266 = vunpack.c.h.b16 %v4224
      %v4267 = vunpack.c.l.b16 %v4225
      %v4268 = vunpack.c.h.b16 %v4225
      %v4269 = vunpack.c.l.b16 %v4226
      %v4270 = vunpack.c.h.b16 %v4226
      %v4271 = vunpack.c.l.b16 %v4227
      %v4272 = vunpack.c.h.b16 %v4227
      %v4273 = vunpack.c.l.b16 %v4228
      %v4274 = vunpack.c.h.b16 %v4228
      %v4275 = vunpack.c.l.b16 %v4229
      %v4276 = vunpack.c.h.b16 %v4229
      %v4277 = vunpack.c.l.b16 %v4230
      %v4278 = vunpack.c.h.b16 %v4230
      %v4279 = vpack.c.b16 %v4247, %v4247
      %v4280 = vpack.c.b16 %v4248, %v4248
      %v4281 = vpack.c.b16 %v4249, %v4249
      %v4282 = vpack.c.b16 %v4250, %v4250
      %v4283 = vpack.c.b16 %v4251, %v4251
      %v4284 = vpack.c.b16 %v4252, %v4252
      %v4285 = vpack.c.b16 %v4253, %v4253
      %v4286 = vpack.c.b16 %v4254, %v4254
      %v4287 = vpack.c.b16 %v4255, %v4255
      %v4288 = vpack.c.b16 %v4256, %v4256
      %v4289 = vpack.c.b16 %v4257, %v4257
      %v4290 = vpack.c.b16 %v4258, %v4258
      %v4291 = vpack.c.b16 %v4259, %v4259
      %v4292 = vpack.c.b16 %v4260, %v4260
      %v4293 = vpack.c.b16 %v4261, %v4261
      %v4294 = vpack.c.b16 %v4262, %v4262
      %v4295 = vpack.c.b16 %v4263, %v4263
      %v4296 = vpack.c.b16 %v4264, %v4264
      %v4297 = vpack.c.b16 %v4265, %v4265
      %v4298 = vpack.c.b16 %v4266, %v4266
      %v4299 = vpack.c.b16 %v4267, %v4267
      %v4300 = vpack.c.b16 %v4268, %v4268
      %v4301 = vpack.c.b16 %v4269, %v4269
      %v4302 = vpack.c.b16 %v4270, %v4270
      %v4303 = vpack.c.b16 %v4271, %v4271
      %v4304 = vpack.c.b16 %v4272, %v4272
      %v4305 = vpack.c.b16 %v4273, %v4273
      %v4306 = vpack.c.b16 %v4274, %v4274
      %v4307 = vpack.c.b16 %v4275, %v4275
      %v4308 = vpack.c.b16 %v4276, %v4276
      %v4309 = vpack.c.b16 %v4277, %v4277
      %v4310 = vpack.c.b16 %v4278, %v4278
      %4343 = vst [vmem:[%s177] sm:$0xf] %v4279
      %4344 = vst [vmem:[%s177 + $0x4] sm:$0xf] %v4280
      %4345 = vst [vmem:[%s177 + $0x8] sm:$0xf] %v4281
      %4346 = vst [vmem:[%s177 + $0xc] sm:$0xf] %v4282
      %4347 = vst [vmem:[%s177 + $0x10] sm:$0xf] %v4283
      %4348 = vst [vmem:[%s177 + $0x14] sm:$0xf] %v4284
      %4349 = vst [vmem:[%s177 + $0x18] sm:$0xf] %v4285
      %4350 = vst [vmem:[%s177 + $0x1c] sm:$0xf] %v4286
      %4351 = vst [vmem:[%s177 + $0x20] sm:$0xf] %v4287
      %4352 = vst [vmem:[%s177 + $0x24] sm:$0xf] %v4288
      %4353 = vst [vmem:[%s177 + $0x28] sm:$0xf] %v4289
      %4354 = vst [vmem:[%s177 + $0x2c] sm:$0xf] %v4290
      %4355 = vst [vmem:[%s177 + $0x30] sm:$0xf] %v4291
      %4356 = vst [vmem:[%s177 + $0x34] sm:$0xf] %v4292
      %4357 = vst [vmem:[%s177 + $0x38] sm:$0xf] %v4293
      %4358 = vst [vmem:[%s177 + $0x3c] sm:$0xf] %v4294
      %4359 = vst [vmem:[%s177 + $0x40] sm:$0xf] %v4295
      %4360 = vst [vmem:[%s177 + $0x44] sm:$0xf] %v4296
      %4361 = vst [vmem:[%s177 + $0x48] sm:$0xf] %v4297
      %4362 = vst [vmem:[%s177 + $0x4c] sm:$0xf] %v4298
      %4363 = vst [vmem:[%s177 + $0x50] sm:$0xf] %v4299
      %4364 = vst [vmem:[%s177 + $0x54] sm:$0xf] %v4300
      %4365 = vst [vmem:[%s177 + $0x58] sm:$0xf] %v4301
      %4366 = vst [vmem:[%s177 + $0x5c] sm:$0xf] %v4302
      %4367 = vst [vmem:[%s177 + $0x60] sm:$0xf] %v4303
      %4368 = vst [vmem:[%s177 + $0x64] sm:$0xf] %v4304
      %4369 = vst [vmem:[%s177 + $0x68] sm:$0xf] %v4305
      %4370 = vst [vmem:[%s177 + $0x6c] sm:$0xf] %v4306
      %4371 = vst [vmem:[%s177 + $0x70] sm:$0xf] %v4307
      %4372 = vst [vmem:[%s177 + $0x74] sm:$0xf] %v4308
      %4373 = vst [vmem:[%s177 + $0x78] sm:$0xf] %v4309
      %4374 = vst [vmem:[%s177 + $0x7c] sm:$0xf] %v4310
      %v4375 = vadd.f32 %v4183, %v4184
      %v4376 = vadd.f32 %v4375, %v4185
      %v4377 = vadd.f32 %v4376, %v4186
      %v4378 = vadd.f32 %v4377, %v4187
      %v4379 = vadd.f32 %v4378, %v4188
      %v4380 = vadd.f32 %v4379, %v4189
      %v4381 = vadd.f32 %v4380, %v4190
      %v4382 = vadd.f32 %v4381, %v4191
      %v4383 = vadd.f32 %v4382, %v4192
      %v4384 = vadd.f32 %v4383, %v4193
      %v4385 = vadd.f32 %v4384, %v4194
      %v4386 = vadd.f32 %v4385, %v4195
      %v4387 = vadd.f32 %v4386, %v4196
      %v4388 = vadd.f32 %v4387, %v4197
      %v4389 = vadd.f32 %v4388, %v4198
      %v4390 = vadd.f32 %v4389, %v4199
      %v4391 = vadd.f32 %v4390, %v4200
      %v4392 = vadd.f32 %v4391, %v4201
      %v4393 = vadd.f32 %v4392, %v4202
      %v4394 = vadd.f32 %v4393, %v4203
      %v4395 = vadd.f32 %v4394, %v4204
      %v4396 = vadd.f32 %v4395, %v4205
      %v4397 = vadd.f32 %v4396, %v4206
      %v4398 = vadd.f32 %v4397, %v4207
      %v4399 = vadd.f32 %v4398, %v4208
      %v4400 = vadd.f32 %v4399, %v4209
      %v4401 = vadd.f32 %v4400, %v4210
      %v4402 = vadd.f32 %v4401, %v4211
      %v4403 = vadd.f32 %v4402, %v4212
      %v4404 = vadd.f32 %v4403, %v4213
      %v4405 = vadd.f32 %v4404, %v4214
      %v4406 = vrot.slane %v4405, 4
      %v4407 = vadd.f32 %v4405, %v4406
      %v4408 = vrot.slane %v4407, 2
      %v4409 = vadd.f32 %v4407, %v4408
      %v4410 = vrot.slane %v4409, 1
      %v4411 = vadd.f32 %v4409, %v4410
      %4412 = vst [vmem:[%s181] sm:$0x1] %v4411
      %v4413 = vmul.f32 %v4183, %v4183
      %v4414 = vmul.f32 %v4184, %v4184
      %v4415 = vmul.f32 %v4185, %v4185
      %v4416 = vmul.f32 %v4186, %v4186
      %v4417 = vmul.f32 %v4187, %v4187
      %v4418 = vmul.f32 %v4188, %v4188
      %v4419 = vmul.f32 %v4189, %v4189
      %v4420 = vmul.f32 %v4190, %v4190
      %v4421 = vmul.f32 %v4191, %v4191
      %v4422 = vmul.f32 %v4192, %v4192
      %v4423 = vmul.f32 %v4193, %v4193
      %v4424 = vmul.f32 %v4194, %v4194
      %v4425 = vmul.f32 %v4195, %v4195
      %v4426 = vmul.f32 %v4196, %v4196
      %v4427 = vmul.f32 %v4197, %v4197
      %v4428 = vmul.f32 %v4198, %v4198
      %v4429 = vmul.f32 %v4199, %v4199
      %v4430 = vmul.f32 %v4200, %v4200
      %v4431 = vmul.f32 %v4201, %v4201
      %v4432 = vmul.f32 %v4202, %v4202
      %v4433 = vmul.f32 %v4203, %v4203
      %v4434 = vmul.f32 %v4204, %v4204
      %v4435 = vmul.f32 %v4205, %v4205
      %v4436 = vmul.f32 %v4206, %v4206
      %v4437 = vmul.f32 %v4207, %v4207
      %v4438 = vmul.f32 %v4208, %v4208
      %v4439 = vmul.f32 %v4209, %v4209
      %v4440 = vmul.f32 %v4210, %v4210
      %v4441 = vmul.f32 %v4211, %v4211
      %v4442 = vmul.f32 %v4212, %v4212
      %v4443 = vmul.f32 %v4213, %v4213
      %v4444 = vmul.f32 %v4214, %v4214
      %v4445 = vadd.f32 %v4413, %v4414
      %v4446 = vadd.f32 %v4445, %v4415
      %v4447 = vadd.f32 %v4446, %v4416
      %v4448 = vadd.f32 %v4447, %v4417
      %v4449 = vadd.f32 %v4448, %v4418
      %v4450 = vadd.f32 %v4449, %v4419
      %v4451 = vadd.f32 %v4450, %v4420
      %v4452 = vadd.f32 %v4451, %v4421
      %v4453 = vadd.f32 %v4452, %v4422
      %v4454 = vadd.f32 %v4453, %v4423
      %v4455 = vadd.f32 %v4454, %v4424
      %v4456 = vadd.f32 %v4455, %v4425
      %v4457 = vadd.f32 %v4456, %v4426
      %v4458 = vadd.f32 %v4457, %v4427
      %v4459 = vadd.f32 %v4458, %v4428
      %v4460 = vadd.f32 %v4459, %v4429
      %v4461 = vadd.f32 %v4460, %v4430
      %v4462 = vadd.f32 %v4461, %v4431
      %v4463 = vadd.f32 %v4462, %v4432
      %v4464 = vadd.f32 %v4463, %v4433
      %v4465 = vadd.f32 %v4464, %v4434
      %v4466 = vadd.f32 %v4465, %v4435
      %v4467 = vadd.f32 %v4466, %v4436
      %v4468 = vadd.f32 %v4467, %v4437
      %v4469 = vadd.f32 %v4468, %v4438
      %v4470 = vadd.f32 %v4469, %v4439
      %v4471 = vadd.f32 %v4470, %v4440
      %v4472 = vadd.f32 %v4471, %v4441
      %v4473 = vadd.f32 %v4472, %v4442
      %v4474 = vadd.f32 %v4473, %v4443
      %v4475 = vadd.f32 %v4474, %v4444
      %v4476 = vrot.slane %v4475, 4
      %v4477 = vadd.f32 %v4475, %v4476
      %v4478 = vrot.slane %v4477, 2
      %v4479 = vadd.f32 %v4477, %v4478
      %v4480 = vrot.slane %v4479, 1
      %v4481 = vadd.f32 %v4479, %v4480
      %4482 = vst [vmem:[%s181 + $0x1] sm:$0x1] %v4481
      %p4483 = scmp.lt.s32.totalorder %s15, 1
      %s4484 = scalar_select %p4483, %s15, 1
      %s4485 = smul.addr %s4484, 32
      %s4486 = smul.addr %s4485, 4
      %s4487 = scalar_lea.vmem %s2, %s4486
      %p4488 = scmp.lt.s32.totalorder %s15, 1
      %s4489 = scalar_select %p4488, %s15, 1
      %s4490 = smul.addr %s4489, 2
      %s4491 = scalar_lea.vmem %s3, %s4490
      // Predicated region
      $region29: #{res_block_forward.4} parent=27 // pred_check
        %p4492 = pneg %p80
      $region30: #{res_block_forward.4} parent=27 // pred_check_branch
        %4494 = sbr.rel (%p4492) target = $region32
      $region31: #{res_block_forward.4} parent=27 // pred_region
        _
      $region32: #{res_block_forward.4} parent=27 // pred_fallthru
        _
      // Predicated region
      $region33: #{res_block_forward.4} parent=27 // pred_check
        %p4495 = pneg %p106
      $region34: #{res_block_forward.4} parent=27 // pred_check_branch
        %4497 = sbr.rel (%p4495) target = $region36
      $region35: #{res_block_forward.4} parent=27 // pred_region
        _
      $region36: #{res_block_forward.4} parent=27 // pred_fallthru
        _
    $region28: #{res_block_forward.4} parent=5 // pred_fallthru
      _
    %p4498 = scmp.le.s32.totalorder 2, %s10
    // Predicated region
    $region37: #{res_block_forward.4} parent=5 // pred_check
      %p4499 = pneg %p4498
    $region38: #{res_block_forward.4} parent=5 // pred_check_branch
      %4501 = sbr.rel (%p4499) target = $region40
    $region39: #{res_block_forward.4} parent=5 // pred_region
      %s4502 = ssub.s32 %s10, 2
      // Predicated region
      $region41: #{res_block_forward.4} parent=39 // pred_check
        %p4503 = pneg %p86
      $region42: #{res_block_forward.4} parent=39 // pred_check_branch
        %4505 = sbr.rel (%p4503) target = $region44
      $region43: #{res_block_forward.4} parent=39 // pred_region
        %p4506 = scmp.lt.s32.totalorder %s16, 1
        %s4507 = scalar_select %p4506, %s16, 1
        %s4508 = smul.addr %s4507, 32
        %s4509 = smul.addr %s4508, 4
        %s4510 = scalar_lea.vmem %s2, %s4509
      $region44: #{res_block_forward.4} parent=39 // pred_fallthru
        _
      // Predicated region
      $region45: #{res_block_forward.4} parent=39 // pred_check
        %p4511 = pneg %p112
      $region46: #{res_block_forward.4} parent=39 // pred_check_branch
        %4513 = sbr.rel (%p4511) target = $region48
      $region47: #{res_block_forward.4} parent=39 // pred_region
        %p4514 = scmp.lt.s32.totalorder %s16, 1
        %s4515 = scalar_select %p4514, %s16, 1
        %s4516 = smul.addr %s4515, 2
        %s4517 = scalar_lea.vmem %s3, %s4516
      $region48: #{res_block_forward.4} parent=39 // pred_fallthru
        _
    $region40: #{res_block_forward.4} parent=5 // pred_fallthru
      _
  $region6: #{res_block_forward.4} parent=0 // loop_footer
    %s14 = sadd.s32 1, %s10
  $region7: #{res_block_forward.4} parent=0 // loop_footer_branch
    %9 = sbr.rel target = $region3
  $region8: #{res_block_forward.4} parent=0 // loop_exit
    _

// kernel: res_block_forward.5
$region0: #{res_block_forward.5}
  #allocation0 [shape = 'u32[]', space=smem, size = 0x4, offset = 0x4, fixed_abs, tag = 'smem constant byte address 0x4 - core index']
  #allocation1 [shape = 'u32[144,128]{1,0:T(1,128)}', space=vmem, size = 0x12000, scoped, tag = 'internal scratch']
  #allocation2 [shape = 'bf16[18,18,128]{2,1,0:T(8,128)(2,1)}', space=vmem, size = 0x1b000, scoped, tag = 'scratch operand']
  %s0 = inlined_call_operand.vmem [shape: bf16[2,16,16,128], index: 0, kind: input, shape index: {}]
  %s1 = inlined_call_operand.vmem [shape: f32[2,2,128], index: 1, kind: input, shape index: {}]
  %s2 = inlined_call_operand.vmem [shape: f32[1,128], index: 2, kind: input, shape index: {}]
  %s3 = inlined_call_operand.vmem [shape: f32[1,128], index: 3, kind: input, shape index: {}]
  %s4 = inlined_call_operand.vmem [shape: bf16[3,384,128], index: 4, kind: input, shape index: {}]
  %s5 = inlined_call_operand.vmem [shape: bf16[2,16,16,128], index: 5, kind: output, shape index: {0}]
  %s6 = inlined_call_operand.vmem [shape: f32[2,2,128], index: 6, kind: output, shape index: {1}]
  %7 = xla_tuple %s5, %s6
  %s8 = sld [smem:[#allocation0]]
  $region61: #{res_block_forward.5} parent=0
    _
  %s10 = ssub.s32 1, %s8
  %s11 = scalar_select 0, %s10, %s8
  loop: start=0, step=1, limit=4
  $region2: #{res_block_forward.5} parent=0 // loop_pre_header
    _
  $region3: #{res_block_forward.5} parent=0 // loop_header
    %s13 = sphi 0, %s17
    %p14 = scmp.ge.s32.totalorder %s13, 4
    %s23 = sphi 0, %s25
    %s26 = sphi 0, %s23
    %s27 = sphi 0, %s26
    %s43 = sphi 0, %s27
    %s47 = sphi 0, %s47
    %s49 = sphi 0, %s47
    %s50 = sphi 0, %s49
    %s64 = sphi 0, %s50
    %s68 = sphi 0, %s68
    %s70 = sphi 0, %s68
    %s71 = sphi 0, %s70
    %s85 = sphi 0, %s71
    %s89 = sphi 0, %s89
    %s91 = sphi 0, %s89
    %s92 = sphi 0, %s91
    %s106 = sphi 0, %s92
    %s110 = sphi 0, %s110
    %s112 = sphi 0, %s110
    %s113 = sphi 0, %s112
    %s127 = sphi 0, %s113
    %s133 = sphi 0, %s135
    %s136 = sphi 0, %s133
    %s137 = sphi 0, %s136
    %s153 = sphi 0, %s137
    %s159 = sphi 0, %s161
    %s162 = sphi 0, %s159
    %s163 = sphi 0, %s162
    %s179 = sphi 0, %s163
  $region4: #{res_block_forward.5} parent=0 // loop_header_branch
    %16 = sbr.rel (%p14) target = $region8
  $region5: #{res_block_forward.5} parent=0 // loop_body
    %s18 = ssub.s32 %s13, 1
    %s19 = ssub.s32 %s13, 2
    %s20 = sadd.s32 %s13, 1
    %s21 = ssub.s32 %s13, %s20
    %p22 = scmp.eq.s32.totalorder %s21, 0
    %s24 = sadd.s32 %s23, 1
    %s25 = scalar_select %p22, %s23, %s24
    %p28 = pneg %p22
    %p29 = scmp.eq.s32.totalorder %s13, 1
    %p30 = por %p28, %p29
    %p31 = scmp.ne.s32.totalorder %s23, %s26
    %p32 = scmp.eq.s32.totalorder %s13, 0
    %p33 = por %p31, %p32
    %p34 = scmp.ne.s32.totalorder %s23, %s26
    %p35 = scmp.eq.s32.totalorder %s18, 1
    %p36 = por %p34, %p35
    %p37 = scmp.ne.s32.totalorder %s26, %s27
    %p38 = scmp.eq.s32.totalorder %s18, 0
    %p39 = por %p37, %p38
    %p40 = scmp.ne.s32.totalorder %s26, %s27
    %p41 = scmp.eq.s32.totalorder %s19, 1
    %p42 = por %p40, %p41
    %p44 = scmp.ne.s32.totalorder %s27, %s43
    %p45 = scmp.eq.s32.totalorder %s19, 0
    %p46 = por %p44, %p45
    %s48 = sadd.s32 %s47, 1
    %p51 = scmp.eq.s32.totalorder %s13, 1
    %p52 = scmp.ne.s32.totalorder %s47, %s49
    %p53 = scmp.eq.s32.totalorder %s13, 0
    %p54 = por %p52, %p53
    %p55 = scmp.ne.s32.totalorder %s47, %s49
    %p56 = scmp.eq.s32.totalorder %s18, 1
    %p57 = por %p55, %p56
    %p58 = scmp.ne.s32.totalorder %s49, %s50
    %p59 = scmp.eq.s32.totalorder %s18, 0
    %p60 = por %p58, %p59
    %p61 = scmp.ne.s32.totalorder %s49, %s50
    %p62 = scmp.eq.s32.totalorder %s19, 1
    %p63 = por %p61, %p62
    %p65 = scmp.ne.s32.totalorder %s50, %s64
    %p66 = scmp.eq.s32.totalorder %s19, 0
    %p67 = por %p65, %p66
    %s69 = sadd.s32 %s68, 1
    %p72 = scmp.eq.s32.totalorder %s13, 1
    %p73 = scmp.ne.s32.totalorder %s68, %s70
    %p74 = scmp.eq.s32.totalorder %s13, 0
    %p75 = por %p73, %p74
    %p76 = scmp.ne.s32.totalorder %s68, %s70
    %p77 = scmp.eq.s32.totalorder %s18, 1
    %p78 = por %p76, %p77
    %p79 = scmp.ne.s32.totalorder %s70, %s71
    %p80 = scmp.eq.s32.totalorder %s18, 0
    %p81 = por %p79, %p80
    %p82 = scmp.ne.s32.totalorder %s70, %s71
    %p83 = scmp.eq.s32.totalorder %s19, 1
    %p84 = por %p82, %p83
    %p86 = scmp.ne.s32.totalorder %s71, %s85
    %p87 = scmp.eq.s32.totalorder %s19, 0
    %p88 = por %p86, %p87
    %s90 = sadd.s32 %s89, 1
    %p93 = scmp.eq.s32.totalorder %s13, 1
    %p94 = scmp.ne.s32.totalorder %s89, %s91
    %p95 = scmp.eq.s32.totalorder %s13, 0
    %p96 = por %p94, %p95
    %p97 = scmp.ne.s32.totalorder %s89, %s91
    %p98 = scmp.eq.s32.totalorder %s18, 1
    %p99 = por %p97, %p98
    %p100 = scmp.ne.s32.totalorder %s91, %s92
    %p101 = scmp.eq.s32.totalorder %s18, 0
    %p102 = por %p100, %p101
    %p103 = scmp.ne.s32.totalorder %s91, %s92
    %p104 = scmp.eq.s32.totalorder %s19, 1
    %p105 = por %p103, %p104
    %p107 = scmp.ne.s32.totalorder %s92, %s106
    %p108 = scmp.eq.s32.totalorder %s19, 0
    %p109 = por %p107, %p108
    %s111 = sadd.s32 %s110, 1
    %p114 = scmp.eq.s32.totalorder %s13, 1
    %p115 = scmp.ne.s32.totalorder %s110, %s112
    %p116 = scmp.eq.s32.totalorder %s13, 0
    %p117 = por %p115, %p116
    %p118 = scmp.ne.s32.totalorder %s110, %s112
    %p119 = scmp.eq.s32.totalorder %s18, 1
    %p120 = por %p118, %p119
    %p121 = scmp.ne.s32.totalorder %s112, %s113
    %p122 = scmp.eq.s32.totalorder %s18, 0
    %p123 = por %p121, %p122
    %p124 = scmp.ne.s32.totalorder %s112, %s113
    %p125 = scmp.eq.s32.totalorder %s19, 1
    %p126 = por %p124, %p125
    %p128 = scmp.ne.s32.totalorder %s113, %s127
    %p129 = scmp.eq.s32.totalorder %s19, 0
    %p130 = por %p128, %p129
    %s131 = ssub.s32 %s13, %s20
    %p132 = scmp.eq.s32.totalorder %s131, 0
    %s134 = sadd.s32 %s133, 1
    %s135 = scalar_select %p132, %s133, %s134
    %p138 = pneg %p132
    %p139 = scmp.eq.s32.totalorder %s13, 1
    %p140 = por %p138, %p139
    %p141 = scmp.ne.s32.totalorder %s133, %s136
    %p142 = scmp.eq.s32.totalorder %s13, 0
    %p143 = por %p141, %p142
    %p144 = scmp.ne.s32.totalorder %s133, %s136
    %p145 = scmp.eq.s32.totalorder %s18, 1
    %p146 = por %p144, %p145
    %p147 = scmp.ne.s32.totalorder %s136, %s137
    %p148 = scmp.eq.s32.totalorder %s18, 0
    %p149 = por %p147, %p148
    %p150 = scmp.ne.s32.totalorder %s136, %s137
    %p151 = scmp.eq.s32.totalorder %s19, 1
    %p152 = por %p150, %p151
    %p154 = scmp.ne.s32.totalorder %s137, %s153
    %p155 = scmp.eq.s32.totalorder %s19, 0
    %p156 = por %p154, %p155
    %s157 = ssub.s32 %s13, %s20
    %p158 = scmp.eq.s32.totalorder %s157, 0
    %s160 = sadd.s32 %s159, 1
    %s161 = scalar_select %p158, %s159, %s160
    %p164 = pneg %p158
    %p165 = scmp.eq.s32.totalorder %s13, 1
    %p166 = por %p164, %p165
    %p167 = scmp.ne.s32.totalorder %s159, %s162
    %p168 = scmp.eq.s32.totalorder %s13, 0
    %p169 = por %p167, %p168
    %p170 = scmp.ne.s32.totalorder %s159, %s162
    %p171 = scmp.eq.s32.totalorder %s18, 1
    %p172 = por %p170, %p171
    %p173 = scmp.ne.s32.totalorder %s162, %s163
    %p174 = scmp.eq.s32.totalorder %s18, 0
    %p175 = por %p173, %p174
    %p176 = scmp.ne.s32.totalorder %s162, %s163
    %p177 = scmp.eq.s32.totalorder %s19, 1
    %p178 = por %p176, %p177
    %p180 = scmp.ne.s32.totalorder %s163, %s179
    %p181 = scmp.eq.s32.totalorder %s19, 0
    %p182 = por %p180, %p181
    %p183 = scmp.le.s32.totalorder 1, %s13
    %p184 = scmp.lt.s32.totalorder %s13, 3
    %p185 = pnand %p183, %p184
    %p186 = pneg %p185
    // Predicated region
    $region9: #{res_block_forward.5} parent=5 // pred_check
      _
    $region10: #{res_block_forward.5} parent=5 // pred_check_branch
      %188 = sbr.rel (%p185) target = $region12
    $region11: #{res_block_forward.5} parent=5 // pred_region
      %s189 = ssub.s32 %s13, 1
      // Predicated region
      $region13: #{res_block_forward.5} parent=11 // pred_check
        %p190 = pneg %p60
      $region14: #{res_block_forward.5} parent=11 // pred_check_branch
        %192 = sbr.rel (%p190) target = $region16
      $region15: #{res_block_forward.5} parent=11 // pred_region
        _
      $region16: #{res_block_forward.5} parent=11 // pred_fallthru
        _
      // Predicated region
      $region17: #{res_block_forward.5} parent=11 // pred_check
        %p193 = pneg %p81
      $region18: #{res_block_forward.5} parent=11 // pred_check_branch
        %195 = sbr.rel (%p193) target = $region20
      $region19: #{res_block_forward.5} parent=11 // pred_region
        _
      $region20: #{res_block_forward.5} parent=11 // pred_fallthru
        _
      // Predicated region
      $region21: #{res_block_forward.5} parent=11 // pred_check
        %p196 = pneg %p102
      $region22: #{res_block_forward.5} parent=11 // pred_check_branch
        %198 = sbr.rel (%p196) target = $region24
      $region23: #{res_block_forward.5} parent=11 // pred_region
        _
      $region24: #{res_block_forward.5} parent=11 // pred_fallthru
        _
      // Predicated region
      $region25: #{res_block_forward.5} parent=11 // pred_check
        %p199 = pneg %p123
      $region26: #{res_block_forward.5} parent=11 // pred_check_branch
        %201 = sbr.rel (%p199) target = $region28
      $region27: #{res_block_forward.5} parent=11 // pred_region
        _
      $region28: #{res_block_forward.5} parent=11 // pred_fallthru
        _
    $region12: #{res_block_forward.5} parent=5 // pred_fallthru
      _
    %p202 = scmp.lt.s32.totalorder %s13, 2
    // Predicated region
    $region29: #{res_block_forward.5} parent=5 // pred_check
      %p203 = pneg %p202
    $region30: #{res_block_forward.5} parent=5 // pred_check_branch
      %205 = sbr.rel (%p203) target = $region32
    $region31: #{res_block_forward.5} parent=5 // pred_region
      // Predicated region
      $region33: #{res_block_forward.5} parent=31 // pred_check
        %p206 = pneg %p33
      $region34: #{res_block_forward.5} parent=31 // pred_check_branch
        %208 = sbr.rel (%p206) target = $region36
      $region35: #{res_block_forward.5} parent=31 // pred_region
        %p209 = scmp.lt.s32.totalorder %s13, 1
        %s210 = scalar_select %p209, %s13, 1
        %s211 = smul.addr %s210, 32
        %s212 = smul.addr %s211, 4
        %s213 = scalar_lea.vmem %s0, %s212
      $region36: #{res_block_forward.5} parent=31 // pred_fallthru
        _
    $region32: #{res_block_forward.5} parent=5 // pred_fallthru
      _
    %p214 = scmp.le.s32.totalorder 1, %s13
    %p215 = scmp.lt.s32.totalorder %s13, 3
    %p216 = pnand %p214, %p215
    %p217 = pneg %p216
    // Predicated region
    $region37: #{res_block_forward.5} parent=5 // pred_check
      _
    $region38: #{res_block_forward.5} parent=5 // pred_check_branch
      %219 = sbr.rel (%p216) target = $region40
    $region39: #{res_block_forward.5} parent=5 // pred_region
      %s220 = ssub.s32 %s13, 1
      %p221 = scmp.lt.s32.totalorder %s18, 1
      %s222 = scalar_select %p221, %s18, 1
      %s223 = smul.addr %s222, 32
      %s224 = smul.addr %s223, 4
      %s225 = scalar_lea.vmem %s0, %s224
      %p226 = pneg %p39
      %p227 = pneg %p36
      %p228 = pneg %p60
      %p229 = pneg %p57
      %p230 = pneg %p81
      %p231 = pneg %p78
      %p232 = pneg %p102
      %p233 = pneg %p99
      %p234 = pneg %p123
      %p235 = pneg %p120
      %p236 = pneg %p149
      %p237 = pneg %p146
      %p238 = scmp.lt.s32.totalorder %s18, 1
      %s239 = scalar_select %p238, %s18, 1
      %s240 = smul.addr %s239, 32
      %s241 = smul.addr %s240, 4
      %s242 = scalar_lea.vmem %s5, %s241
      %p243 = pneg %p175
      %p244 = pneg %p172
      %p245 = scmp.lt.s32.totalorder %s18, 1
      %s246 = scalar_select %p245, %s18, 1
      %s247 = smul.addr %s246, 2
      %s248 = scalar_lea.vmem %s6, %s247
      %p249 = scmp.lt.s32.totalorder %s18, 1
      %s250 = scalar_select %p249, %s18, 1
      %s251 = smul.addr %s250, 32
      %s252 = smul.addr %s251, 4
      %s253 = scalar_lea.vmem %s0, %s252
      %p254 = scmp.lt.s32.totalorder %s18, 1
      %s255 = scalar_select %p254, %s18, 1
      %s256 = smul.addr %s255, 32
      %s257 = smul.addr %s256, 4
      %s258 = scalar_lea.vmem %s5, %s257
      %p259 = scmp.lt.s32.totalorder %s18, 1
      %s260 = scalar_select %p259, %s18, 1
      %s261 = smul.addr %s260, 2
      %s262 = scalar_lea.vmem %s6, %s261
      %v264 = vld [vmem:[%s1] sm:$0x3]
      %v265 = vld [vmem:[%s1 + $0x2] sm:$0x3]
      %vm266 = vcmask 1041408
      %v267 = vsel %vm266, %v264, 0.0
      %v268 = vsel %vm266, %v265, 0.0
      %v269 = vadd.f32 %v267, %v268
      %v270 = vmul.f32 %v269, 0.001953125
      %v271 = vmul.f32 %v270, %v270
      %v273 = vrot.slane %v271, 7
      %v275 = vsub.f32 %v270, %v273
      %v276 = vmax.f32 %v275, 0.0
      %v277 = vld [vmem:[%s2] sm:$0x1]
      %v278 = vadd.f32 %v276, 1e-05
      %v279 = vrsqrt.pop %v278
      %v282 = vunpack.c.l.s4 1966171168
      %v283 = vunpack.c.0.s8 %v282
      %v284 = vlaneseq
      %v285 = vshrl.u32 %v284, 7
      %v286 = vsub.s32 %v283, %v285
      %v287 = vrot.slane %v279, %v286
      %v288 = vcombine.high %v287, %v287
      %v290 = vunpack.c.l.s4 1966171168
      %v291 = vunpack.c.0.s8 %v290
      %v292 = vlaneseq
      %v293 = vshrl.u32 %v292, 7
      %v294 = vsub.s32 %v291, %v293
      %v295 = vrot.slane %v288, %v294
      %v297 = vmul.f32 %v277, %v295
      %v298 = vld [vmem:[%s3] sm:$0x1]
      %v299 = vmul.f32 %v270, %v297
      %v300 = vsub.f32 %v298, %v299
      %v301 = vld [vmem:[%s253] sm:$0xf]
      %v302 = vld [vmem:[%s253 + $0x4] sm:$0xf]
      %v303 = vld [vmem:[%s253 + $0x8] sm:$0xf]
      %v304 = vld [vmem:[%s253 + $0xc] sm:$0xf]
      %v305 = vld [vmem:[%s253 + $0x10] sm:$0xf]
      %v306 = vld [vmem:[%s253 + $0x14] sm:$0xf]
      %v307 = vld [vmem:[%s253 + $0x18] sm:$0xf]
      %v308 = vld [vmem:[%s253 + $0x1c] sm:$0xf]
      %v309 = vld [vmem:[%s253 + $0x20] sm:$0xf]
      %v310 = vld [vmem:[%s253 + $0x24] sm:$0xf]
      %v311 = vld [vmem:[%s253 + $0x28] sm:$0xf]
      %v312 = vld [vmem:[%s253 + $0x2c] sm:$0xf]
      %v313 = vld [vmem:[%s253 + $0x30] sm:$0xf]
      %v314 = vld [vmem:[%s253 + $0x34] sm:$0xf]
      %v315 = vld [vmem:[%s253 + $0x38] sm:$0xf]
      %v316 = vld [vmem:[%s253 + $0x3c] sm:$0xf]
      %v317 = vld [vmem:[%s253 + $0x40] sm:$0xf]
      %v318 = vld [vmem:[%s253 + $0x44] sm:$0xf]
      %v319 = vld [vmem:[%s253 + $0x48] sm:$0xf]
      %v320 = vld [vmem:[%s253 + $0x4c] sm:$0xf]
      %v321 = vld [vmem:[%s253 + $0x50] sm:$0xf]
      %v322 = vld [vmem:[%s253 + $0x54] sm:$0xf]
      %v323 = vld [vmem:[%s253 + $0x58] sm:$0xf]
      %v324 = vld [vmem:[%s253 + $0x5c] sm:$0xf]
      %v325 = vld [vmem:[%s253 + $0x60] sm:$0xf]
      %v326 = vld [vmem:[%s253 + $0x64] sm:$0xf]
      %v327 = vld [vmem:[%s253 + $0x68] sm:$0xf]
      %v328 = vld [vmem:[%s253 + $0x6c] sm:$0xf]
      %v329 = vld [vmem:[%s253 + $0x70] sm:$0xf]
      %v330 = vld [vmem:[%s253 + $0x74] sm:$0xf]
      %v331 = vld [vmem:[%s253 + $0x78] sm:$0xf]
      %v332 = vld [vmem:[%s253 + $0x7c] sm:$0xf]
      %v333 = vunpack.c.l.bf16 %v301
      %v334 = vunpack.c.l.bf16 %v302
      %v335 = vunpack.c.l.bf16 %v303
      %v336 = vunpack.c.l.bf16 %v304
      %v337 = vunpack.c.l.bf16 %v305
      %v338 = vunpack.c.l.bf16 %v306
      %v339 = vunpack.c.l.bf16 %v307
      %v340 = vunpack.c.l.bf16 %v308
      %v341 = vunpack.c.l.bf16 %v309
      %v342 = vunpack.c.l.bf16 %v310
      %v343 = vunpack.c.l.bf16 %v311
      %v344 = vunpack.c.l.bf16 %v312
      %v345 = vunpack.c.l.bf16 %v313
      %v346 = vunpack.c.l.bf16 %v314
      %v347 = vunpack.c.l.bf16 %v315
      %v348 = vunpack.c.l.bf16 %v316
      %v349 = vunpack.c.l.bf16 %v317
      %v350 = vunpack.c.l.bf16 %v318
      %v351 = vunpack.c.l.bf16 %v319
      %v352 = vunpack.c.l.bf16 %v320
      %v353 = vunpack.c.l.bf16 %v321
      %v354 = vunpack.c.l.bf16 %v322
      %v355 = vunpack.c.l.bf16 %v323
      %v356 = vunpack.c.l.bf16 %v324
      %v357 = vunpack.c.l.bf16 %v325
      %v358 = vunpack.c.l.bf16 %v326
      %v359 = vunpack.c.l.bf16 %v327
      %v360 = vunpack.c.l.bf16 %v328
      %v361 = vunpack.c.l.bf16 %v329
      %v362 = vunpack.c.l.bf16 %v330
      %v363 = vunpack.c.l.bf16 %v331
      %v364 = vunpack.c.l.bf16 %v332
      %v366 = vlaneseq
      %v367 = vshrl.u32 %v366, 7
      %v368 = vsub.s32 0, %v367
      %v369 = vrot.slane %v297, %v368
      %v371 = vmul.f32 %v333, %v369
      %v372 = vmul.f32 %v334, %v369
      %v373 = vmul.f32 %v335, %v369
      %v374 = vmul.f32 %v336, %v369
      %v375 = vmul.f32 %v337, %v369
      %v376 = vmul.f32 %v338, %v369
      %v377 = vmul.f32 %v339, %v369
      %v378 = vmul.f32 %v340, %v369
      %v379 = vmul.f32 %v341, %v369
      %v380 = vmul.f32 %v342, %v369
      %v381 = vmul.f32 %v343, %v369
      %v382 = vmul.f32 %v344, %v369
      %v383 = vmul.f32 %v345, %v369
      %v384 = vmul.f32 %v346, %v369
      %v385 = vmul.f32 %v347, %v369
      %v386 = vmul.f32 %v348, %v369
      %v387 = vmul.f32 %v349, %v369
      %v388 = vmul.f32 %v350, %v369
      %v389 = vmul.f32 %v351, %v369
      %v390 = vmul.f32 %v352, %v369
      %v391 = vmul.f32 %v353, %v369
      %v392 = vmul.f32 %v354, %v369
      %v393 = vmul.f32 %v355, %v369
      %v394 = vmul.f32 %v356, %v369
      %v395 = vmul.f32 %v357, %v369
      %v396 = vmul.f32 %v358, %v369
      %v397 = vmul.f32 %v359, %v369
      %v398 = vmul.f32 %v360, %v369
      %v399 = vmul.f32 %v361, %v369
      %v400 = vmul.f32 %v362, %v369
      %v401 = vmul.f32 %v363, %v369
      %v402 = vmul.f32 %v364, %v369
      %v404 = vlaneseq
      %v405 = vshrl.u32 %v404, 7
      %v406 = vsub.s32 0, %v405
      %v407 = vrot.slane %v300, %v406
      %v409 = vadd.f32 %v371, %v407
      %v410 = vadd.f32 %v372, %v407
      %v411 = vadd.f32 %v373, %v407
      %v412 = vadd.f32 %v374, %v407
      %v413 = vadd.f32 %v375, %v407
      %v414 = vadd.f32 %v376, %v407
      %v415 = vadd.f32 %v377, %v407
      %v416 = vadd.f32 %v378, %v407
      %v417 = vadd.f32 %v379, %v407
      %v418 = vadd.f32 %v380, %v407
      %v419 = vadd.f32 %v381, %v407
      %v420 = vadd.f32 %v382, %v407
      %v421 = vadd.f32 %v383, %v407
      %v422 = vadd.f32 %v384, %v407
      %v423 = vadd.f32 %v385, %v407
      %v424 = vadd.f32 %v386, %v407
      %v425 = vadd.f32 %v387, %v407
      %v426 = vadd.f32 %v388, %v407
      %v427 = vadd.f32 %v389, %v407
      %v428 = vadd.f32 %v390, %v407
      %v429 = vadd.f32 %v391, %v407
      %v430 = vadd.f32 %v392, %v407
      %v431 = vadd.f32 %v393, %v407
      %v432 = vadd.f32 %v394, %v407
      %v433 = vadd.f32 %v395, %v407
      %v434 = vadd.f32 %v396, %v407
      %v435 = vadd.f32 %v397, %v407
      %v436 = vadd.f32 %v398, %v407
      %v437 = vadd.f32 %v399, %v407
      %v438 = vadd.f32 %v400, %v407
      %v439 = vadd.f32 %v401, %v407
      %v440 = vadd.f32 %v402, %v407
      %vm441 = vcmp.ge.f32.partialorder %v409, 0.0
      %vm442 = vcmp.ge.f32.partialorder %v410, 0.0
      %vm443 = vcmp.ge.f32.partialorder %v411, 0.0
      %vm444 = vcmp.ge.f32.partialorder %v412, 0.0
      %vm445 = vcmp.ge.f32.partialorder %v413, 0.0
      %vm446 = vcmp.ge.f32.partialorder %v414, 0.0
      %vm447 = vcmp.ge.f32.partialorder %v415, 0.0
      %vm448 = vcmp.ge.f32.partialorder %v416, 0.0
      %vm449 = vcmp.ge.f32.partialorder %v417, 0.0
      %vm450 = vcmp.ge.f32.partialorder %v418, 0.0
      %vm451 = vcmp.ge.f32.partialorder %v419, 0.0
      %vm452 = vcmp.ge.f32.partialorder %v420, 0.0
      %vm453 = vcmp.ge.f32.partialorder %v421, 0.0
      %vm454 = vcmp.ge.f32.partialorder %v422, 0.0
      %vm455 = vcmp.ge.f32.partialorder %v423, 0.0
      %vm456 = vcmp.ge.f32.partialorder %v424, 0.0
      %vm457 = vcmp.ge.f32.partialorder %v425, 0.0
      %vm458 = vcmp.ge.f32.partialorder %v426, 0.0
      %vm459 = vcmp.ge.f32.partialorder %v427, 0.0
      %vm460 = vcmp.ge.f32.partialorder %v428, 0.0
      %vm461 = vcmp.ge.f32.partialorder %v429, 0.0
      %vm462 = vcmp.ge.f32.partialorder %v430, 0.0
      %vm463 = vcmp.ge.f32.partialorder %v431, 0.0
      %vm464 = vcmp.ge.f32.partialorder %v432, 0.0
      %vm465 = vcmp.ge.f32.partialorder %v433, 0.0
      %vm466 = vcmp.ge.f32.partialorder %v434, 0.0
      %vm467 = vcmp.ge.f32.partialorder %v435, 0.0
      %vm468 = vcmp.ge.f32.partialorder %v436, 0.0
      %vm469 = vcmp.ge.f32.partialorder %v437, 0.0
      %vm470 = vcmp.ge.f32.partialorder %v438, 0.0
      %vm471 = vcmp.ge.f32.partialorder %v439, 0.0
      %vm472 = vcmp.ge.f32.partialorder %v440, 0.0
      %v473 = vmul.f32 %v409, 0.01
      %v474 = vmul.f32 %v410, 0.01
      %v475 = vmul.f32 %v411, 0.01
      %v476 = vmul.f32 %v412, 0.01
      %v477 = vmul.f32 %v413, 0.01
      %v478 = vmul.f32 %v414, 0.01
      %v479 = vmul.f32 %v415, 0.01
      %v480 = vmul.f32 %v416, 0.01
      %v481 = vmul.f32 %v417, 0.01
      %v482 = vmul.f32 %v418, 0.01
      %v483 = vmul.f32 %v419, 0.01
      %v484 = vmul.f32 %v420, 0.01
      %v485 = vmul.f32 %v421, 0.01
      %v486 = vmul.f32 %v422, 0.01
      %v487 = vmul.f32 %v423, 0.01
      %v488 = vmul.f32 %v424, 0.01
      %v489 = vmul.f32 %v425, 0.01
      %v490 = vmul.f32 %v426, 0.01
      %v491 = vmul.f32 %v427, 0.01
      %v492 = vmul.f32 %v428, 0.01
      %v493 = vmul.f32 %v429, 0.01
      %v494 = vmul.f32 %v430, 0.01
      %v495 = vmul.f32 %v431, 0.01
      %v496 = vmul.f32 %v432, 0.01
      %v497 = vmul.f32 %v433, 0.01
      %v498 = vmul.f32 %v434, 0.01
      %v499 = vmul.f32 %v435, 0.01
      %v500 = vmul.f32 %v436, 0.01
      %v501 = vmul.f32 %v437, 0.01
      %v502 = vmul.f32 %v438, 0.01
      %v503 = vmul.f32 %v439, 0.01
      %v504 = vmul.f32 %v440, 0.01
      %v505 = vsel %vm441, %v409, %v473
      %v506 = vsel %vm442, %v410, %v474
      %v507 = vsel %vm443, %v411, %v475
      %v508 = vsel %vm444, %v412, %v476
      %v509 = vsel %vm445, %v413, %v477
      %v510 = vsel %vm446, %v414, %v478
      %v511 = vsel %vm447, %v415, %v479
      %v512 = vsel %vm448, %v416, %v480
      %v513 = vsel %vm449, %v417, %v481
      %v514 = vsel %vm450, %v418, %v482
      %v515 = vsel %vm451, %v419, %v483
      %v516 = vsel %vm452, %v420, %v484
      %v517 = vsel %vm453, %v421, %v485
      %v518 = vsel %vm454, %v422, %v486
      %v519 = vsel %vm455, %v423, %v487
      %v520 = vsel %vm456, %v424, %v488
      %v521 = vsel %vm457, %v425, %v489
      %v522 = vsel %vm458, %v426, %v490
      %v523 = vsel %vm459, %v427, %v491
      %v524 = vsel %vm460, %v428, %v492
      %v525 = vsel %vm461, %v429, %v493
      %v526 = vsel %vm462, %v430, %v494
      %v527 = vsel %vm463, %v431, %v495
      %v528 = vsel %vm464, %v432, %v496
      %v529 = vsel %vm465, %v433, %v497
      %v530 = vsel %vm466, %v434, %v498
      %v531 = vsel %vm467, %v435, %v499
      %v532 = vsel %vm468, %v436, %v500
      %v533 = vsel %vm469, %v437, %v501
      %v534 = vsel %vm470, %v438, %v502
      %v535 = vsel %vm471, %v439, %v503
      %v536 = vsel %vm472, %v440, %v504
      %537 = vst [vmem:[#allocation2] sm:$0xf] 0
      %538 = vst [vmem:[#allocation2 + $0x4] sm:$0xf] 0
      %539 = vst [vmem:[#allocation2 + $0x8] sm:$0x1] 0
      %s540 = scalar_lea.vmem [#allocation2], 204
      %541 = vst [vmem:[%s540] sm:$0xf] 0
      %542 = vst [vmem:[%s540 + $0x4] sm:$0xf] 0
      %543 = vst [vmem:[%s540 + $0x8] sm:$0x1] 0
      %s544 = scalar_lea.vmem [#allocation2], 12
      %vm545 = vcmask 1040384
      %vm546 = vsmask.f32 256
      %vm547 = vmand %vm545, %vm546
      %v548 = vld [vmem:[%s544] sm:$0x1]
      %v549 = vsel %vm547, 0, %v548
      %550 = vst [vmem:[%s544] sm:$0x1] %v549
      %v551 = vld [vmem:[%s544 + $0xc] sm:$0x1]
      %v552 = vsel %vm547, 0, %v551
      %553 = vst [vmem:[%s544 + $0xc] sm:$0x1] %v552
      %v554 = vld [vmem:[%s544 + $0x18] sm:$0x1]
      %v555 = vsel %vm547, 0, %v554
      %556 = vst [vmem:[%s544 + $0x18] sm:$0x1] %v555
      %v557 = vld [vmem:[%s544 + $0x24] sm:$0x1]
      %v558 = vsel %vm547, 0, %v557
      %559 = vst [vmem:[%s544 + $0x24] sm:$0x1] %v558
      %v560 = vld [vmem:[%s544 + $0x30] sm:$0x1]
      %v561 = vsel %vm547, 0, %v560
      %562 = vst [vmem:[%s544 + $0x30] sm:$0x1] %v561
      %v563 = vld [vmem:[%s544 + $0x3c] sm:$0x1]
      %v564 = vsel %vm547, 0, %v563
      %565 = vst [vmem:[%s544 + $0x3c] sm:$0x1] %v564
      %v566 = vld [vmem:[%s544 + $0x48] sm:$0x1]
      %v567 = vsel %vm547, 0, %v566
      %568 = vst [vmem:[%s544 + $0x48] sm:$0x1] %v567
      %v569 = vld [vmem:[%s544 + $0x54] sm:$0x1]
      %v570 = vsel %vm547, 0, %v569
      %571 = vst [vmem:[%s544 + $0x54] sm:$0x1] %v570
      %v572 = vld [vmem:[%s544 + $0x60] sm:$0x1]
      %v573 = vsel %vm547, 0, %v572
      %574 = vst [vmem:[%s544 + $0x60] sm:$0x1] %v573
      %v575 = vld [vmem:[%s544 + $0x6c] sm:$0x1]
      %v576 = vsel %vm547, 0, %v575
      %577 = vst [vmem:[%s544 + $0x6c] sm:$0x1] %v576
      %v578 = vld [vmem:[%s544 + $0x78] sm:$0x1]
      %v579 = vsel %vm547, 0, %v578
      %580 = vst [vmem:[%s544 + $0x78] sm:$0x1] %v579
      %v581 = vld [vmem:[%s544 + $0x84] sm:$0x1]
      %v582 = vsel %vm547, 0, %v581
      %583 = vst [vmem:[%s544 + $0x84] sm:$0x1] %v582
      %v584 = vld [vmem:[%s544 + $0x90] sm:$0x1]
      %v585 = vsel %vm547, 0, %v584
      %586 = vst [vmem:[%s544 + $0x90] sm:$0x1] %v585
      %v587 = vld [vmem:[%s544 + $0x9c] sm:$0x1]
      %v588 = vsel %vm547, 0, %v587
      %589 = vst [vmem:[%s544 + $0x9c] sm:$0x1] %v588
      %v590 = vld [vmem:[%s544 + $0xa8] sm:$0x1]
      %v591 = vsel %vm547, 0, %v590
      %592 = vst [vmem:[%s544 + $0xa8] sm:$0x1] %v591
      %v593 = vld [vmem:[%s544 + $0xb4] sm:$0x1]
      %v594 = vsel %vm547, 0, %v593
      %595 = vst [vmem:[%s544 + $0xb4] sm:$0x1] %v594
      %vm596 = vsmask.f32 7938
      %vm597 = vmand %vm545, %vm596
      %v598 = vld [vmem:[%s544 + $0x8] sm:$0x1]
      %v599 = vsel %vm597, 0, %v598
      %600 = vst [vmem:[%s544 + $0x8] sm:$0x1] %v599
      %v601 = vld [vmem:[%s544 + $0x14] sm:$0x1]
      %v602 = vsel %vm597, 0, %v601
      %603 = vst [vmem:[%s544 + $0x14] sm:$0x1] %v602
      %v604 = vld [vmem:[%s544 + $0x20] sm:$0x1]
      %v605 = vsel %vm597, 0, %v604
      %606 = vst [vmem:[%s544 + $0x20] sm:$0x1] %v605
      %v607 = vld [vmem:[%s544 + $0x2c] sm:$0x1]
      %v608 = vsel %vm597, 0, %v607
      %609 = vst [vmem:[%s544 + $0x2c] sm:$0x1] %v608
      %v610 = vld [vmem:[%s544 + $0x38] sm:$0x1]
      %v611 = vsel %vm597, 0, %v610
      %612 = vst [vmem:[%s544 + $0x38] sm:$0x1] %v611
      %v613 = vld [vmem:[%s544 + $0x44] sm:$0x1]
      %v614 = vsel %vm597, 0, %v613
      %615 = vst [vmem:[%s544 + $0x44] sm:$0x1] %v614
      %v616 = vld [vmem:[%s544 + $0x50] sm:$0x1]
      %v617 = vsel %vm597, 0, %v616
      %618 = vst [vmem:[%s544 + $0x50] sm:$0x1] %v617
      %v619 = vld [vmem:[%s544 + $0x5c] sm:$0x1]
      %v620 = vsel %vm597, 0, %v619
      %621 = vst [vmem:[%s544 + $0x5c] sm:$0x1] %v620
      %v622 = vld [vmem:[%s544 + $0x68] sm:$0x1]
      %v623 = vsel %vm597, 0, %v622
      %624 = vst [vmem:[%s544 + $0x68] sm:$0x1] %v623
      %v625 = vld [vmem:[%s544 + $0x74] sm:$0x1]
      %v626 = vsel %vm597, 0, %v625
      %627 = vst [vmem:[%s544 + $0x74] sm:$0x1] %v626
      %v628 = vld [vmem:[%s544 + $0x80] sm:$0x1]
      %v629 = vsel %vm597, 0, %v628
      %630 = vst [vmem:[%s544 + $0x80] sm:$0x1] %v629
      %v631 = vld [vmem:[%s544 + $0x8c] sm:$0x1]
      %v632 = vsel %vm597, 0, %v631
      %633 = vst [vmem:[%s544 + $0x8c] sm:$0x1] %v632
      %v634 = vld [vmem:[%s544 + $0x98] sm:$0x1]
      %v635 = vsel %vm597, 0, %v634
      %636 = vst [vmem:[%s544 + $0x98] sm:$0x1] %v635
      %v637 = vld [vmem:[%s544 + $0xa4] sm:$0x1]
      %v638 = vsel %vm597, 0, %v637
      %639 = vst [vmem:[%s544 + $0xa4] sm:$0x1] %v638
      %v640 = vld [vmem:[%s544 + $0xb0] sm:$0x1]
      %v641 = vsel %vm597, 0, %v640
      %642 = vst [vmem:[%s544 + $0xb0] sm:$0x1] %v641
      %v643 = vld [vmem:[%s544 + $0xbc] sm:$0x1]
      %v644 = vsel %vm597, 0, %v643
      %645 = vst [vmem:[%s544 + $0xbc] sm:$0x1] %v644
      %v646 = vpack.c.bf16 %v506, %v505
      %v647 = vpack.c.bf16 %v508, %v507
      %v648 = vpack.c.bf16 %v510, %v509
      %v649 = vpack.c.bf16 %v512, %v511
      %v650 = vpack.c.bf16 %v514, %v513
      %v651 = vpack.c.bf16 %v516, %v515
      %v652 = vpack.c.bf16 %v518, %v517
      %v653 = vpack.c.bf16 %v520, %v519
      %v654 = vpack.c.bf16 %v522, %v521
      %v655 = vpack.c.bf16 %v524, %v523
      %v656 = vpack.c.bf16 %v526, %v525
      %v657 = vpack.c.bf16 %v528, %v527
      %v658 = vpack.c.bf16 %v530, %v529
      %v659 = vpack.c.bf16 %v532, %v531
      %v660 = vpack.c.bf16 %v534, %v533
      %v661 = vpack.c.bf16 %v536, %v535
      %v678 = vunpack.c.l.b16 %v646
      %v679 = vunpack.c.h.b16 %v646
      %v680 = vunpack.c.l.b16 %v647
      %v681 = vunpack.c.h.b16 %v647
      %v682 = vunpack.c.l.b16 %v648
      %v683 = vunpack.c.h.b16 %v648
      %v684 = vunpack.c.l.b16 %v649
      %v685 = vunpack.c.h.b16 %v649
      %v686 = vunpack.c.l.b16 %v650
      %v687 = vunpack.c.h.b16 %v650
      %v688 = vunpack.c.l.b16 %v651
      %v689 = vunpack.c.h.b16 %v651
      %v690 = vunpack.c.l.b16 %v652
      %v691 = vunpack.c.h.b16 %v652
      %v692 = vunpack.c.l.b16 %v653
      %v693 = vunpack.c.h.b16 %v653
      %v694 = vunpack.c.l.b16 %v654
      %v695 = vunpack.c.h.b16 %v654
      %v696 = vunpack.c.l.b16 %v655
      %v697 = vunpack.c.h.b16 %v655
      %v698 = vunpack.c.l.b16 %v656
      %v699 = vunpack.c.h.b16 %v656
      %v700 = vunpack.c.l.b16 %v657
      %v701 = vunpack.c.h.b16 %v657
      %v702 = vunpack.c.l.b16 %v658
      %v703 = vunpack.c.h.b16 %v658
      %v704 = vunpack.c.l.b16 %v659
      %v705 = vunpack.c.h.b16 %v659
      %v706 = vunpack.c.l.b16 %v660
      %v707 = vunpack.c.h.b16 %v660
      %v708 = vunpack.c.l.b16 %v661
      %v709 = vunpack.c.h.b16 %v661
      %v710 = vpack.c.b16 %v678, %v678
      %v711 = vpack.c.b16 %v679, %v679
      %v712 = vpack.c.b16 %v680, %v680
      %v713 = vpack.c.b16 %v681, %v681
      %v714 = vpack.c.b16 %v682, %v682
      %v715 = vpack.c.b16 %v683, %v683
      %v716 = vpack.c.b16 %v684, %v684
      %v717 = vpack.c.b16 %v685, %v685
      %v718 = vpack.c.b16 %v686, %v686
      %v719 = vpack.c.b16 %v687, %v687
      %v720 = vpack.c.b16 %v688, %v688
      %v721 = vpack.c.b16 %v689, %v689
      %v722 = vpack.c.b16 %v690, %v690
      %v723 = vpack.c.b16 %v691, %v691
      %v724 = vpack.c.b16 %v692, %v692
      %v725 = vpack.c.b16 %v693, %v693
      %v726 = vpack.c.b16 %v694, %v694
      %v727 = vpack.c.b16 %v695, %v695
      %v728 = vpack.c.b16 %v696, %v696
      %v729 = vpack.c.b16 %v697, %v697
      %v730 = vpack.c.b16 %v698, %v698
      %v731 = vpack.c.b16 %v699, %v699
      %v732 = vpack.c.b16 %v700, %v700
      %v733 = vpack.c.b16 %v701, %v701
      %v734 = vpack.c.b16 %v702, %v702
      %v735 = vpack.c.b16 %v703, %v703
      %v736 = vpack.c.b16 %v704, %v704
      %v737 = vpack.c.b16 %v705, %v705
      %v738 = vpack.c.b16 %v706, %v706
      %v739 = vpack.c.b16 %v707, %v707
      %v740 = vpack.c.b16 %v708, %v708
      %v741 = vpack.c.b16 %v709, %v709
      %vm742 = vsmask.f32 4368
      %vm743 = vmor %vm546, %vm742
      %v745 = vshrl.u32 %v710, 16
      %v747 = vrot.slane %v745, 7
      %v748 = vshll.u32 %v710, 16
      %v750 = vor.u32 %v747, %v748
      %v751 = vrot.slane %v747, 4
      %v753 = vshrl.u32 %v711, 16
      %v755 = vrot.slane %v753, 7
      %v756 = vshll.u32 %v711, 16
      %v758 = vor.u32 %v755, %v756
      %v759 = vsel %vm743, %v751, %v758
      %v760 = vrot.slane %v755, 4
      %v762 = vshrl.u32 %v712, 16
      %v764 = vrot.slane %v762, 7
      %v765 = vshll.u32 %v712, 16
      %v767 = vor.u32 %v764, %v765
      %v768 = vrot.slane %v764, 4
      %v770 = vshrl.u32 %v713, 16
      %v772 = vrot.slane %v770, 7
      %v773 = vshll.u32 %v713, 16
      %v775 = vor.u32 %v772, %v773
      %v776 = vsel %vm743, %v768, %v775
      %v777 = vrot.slane %v772, 4
      %v779 = vshrl.u32 %v714, 16
      %v781 = vrot.slane %v779, 7
      %v782 = vshll.u32 %v714, 16
      %v784 = vor.u32 %v781, %v782
      %v785 = vrot.slane %v781, 4
      %v787 = vshrl.u32 %v715, 16
      %v789 = vrot.slane %v787, 7
      %v790 = vshll.u32 %v715, 16
      %v792 = vor.u32 %v789, %v790
      %v793 = vsel %vm743, %v785, %v792
      %v794 = vrot.slane %v789, 4
      %v796 = vshrl.u32 %v716, 16
      %v798 = vrot.slane %v796, 7
      %v799 = vshll.u32 %v716, 16
      %v801 = vor.u32 %v798, %v799
      %v802 = vrot.slane %v798, 4
      %v804 = vshrl.u32 %v717, 16
      %v806 = vrot.slane %v804, 7
      %v807 = vshll.u32 %v717, 16
      %v809 = vor.u32 %v806, %v807
      %v810 = vsel %vm743, %v802, %v809
      %v811 = vrot.slane %v806, 4
      %v813 = vshrl.u32 %v718, 16
      %v815 = vrot.slane %v813, 7
      %v816 = vshll.u32 %v718, 16
      %v818 = vor.u32 %v815, %v816
      %v819 = vrot.slane %v815, 4
      %v821 = vshrl.u32 %v719, 16
      %v823 = vrot.slane %v821, 7
      %v824 = vshll.u32 %v719, 16
      %v826 = vor.u32 %v823, %v824
      %v827 = vsel %vm743, %v819, %v826
      %v828 = vrot.slane %v823, 4
      %v830 = vshrl.u32 %v720, 16
      %v832 = vrot.slane %v830, 7
      %v833 = vshll.u32 %v720, 16
      %v835 = vor.u32 %v832, %v833
      %v836 = vrot.slane %v832, 4
      %v838 = vshrl.u32 %v721, 16
      %v840 = vrot.slane %v838, 7
      %v841 = vshll.u32 %v721, 16
      %v843 = vor.u32 %v840, %v841
      %v844 = vsel %vm743, %v836, %v843
      %v845 = vrot.slane %v840, 4
      %v847 = vshrl.u32 %v722, 16
      %v849 = vrot.slane %v847, 7
      %v850 = vshll.u32 %v722, 16
      %v852 = vor.u32 %v849, %v850
      %v853 = vrot.slane %v849, 4
      %v855 = vshrl.u32 %v723, 16
      %v857 = vrot.slane %v855, 7
      %v858 = vshll.u32 %v723, 16
      %v860 = vor.u32 %v857, %v858
      %v861 = vsel %vm743, %v853, %v860
      %v862 = vrot.slane %v857, 4
      %v864 = vshrl.u32 %v724, 16
      %v866 = vrot.slane %v864, 7
      %v867 = vshll.u32 %v724, 16
      %v869 = vor.u32 %v866, %v867
      %v870 = vrot.slane %v866, 4
      %v872 = vshrl.u32 %v725, 16
      %v874 = vrot.slane %v872, 7
      %v875 = vshll.u32 %v725, 16
      %v877 = vor.u32 %v874, %v875
      %v878 = vsel %vm743, %v870, %v877
      %v879 = vrot.slane %v874, 4
      %v881 = vshrl.u32 %v726, 16
      %v883 = vrot.slane %v881, 7
      %v884 = vshll.u32 %v726, 16
      %v886 = vor.u32 %v883, %v884
      %v887 = vrot.slane %v883, 4
      %v889 = vshrl.u32 %v727, 16
      %v891 = vrot.slane %v889, 7
      %v892 = vshll.u32 %v727, 16
      %v894 = vor.u32 %v891, %v892
      %v895 = vsel %vm743, %v887, %v894
      %v896 = vrot.slane %v891, 4
      %v898 = vshrl.u32 %v728, 16
      %v900 = vrot.slane %v898, 7
      %v901 = vshll.u32 %v728, 16
      %v903 = vor.u32 %v900, %v901
      %v904 = vrot.slane %v900, 4
      %v906 = vshrl.u32 %v729, 16
      %v908 = vrot.slane %v906, 7
      %v909 = vshll.u32 %v729, 16
      %v911 = vor.u32 %v908, %v909
      %v912 = vsel %vm743, %v904, %v911
      %v913 = vrot.slane %v908, 4
      %v915 = vshrl.u32 %v730, 16
      %v917 = vrot.slane %v915, 7
      %v918 = vshll.u32 %v730, 16
      %v920 = vor.u32 %v917, %v918
      %v921 = vrot.slane %v917, 4
      %v923 = vshrl.u32 %v731, 16
      %v925 = vrot.slane %v923, 7
      %v926 = vshll.u32 %v731, 16
      %v928 = vor.u32 %v925, %v926
      %v929 = vsel %vm743, %v921, %v928
      %v930 = vrot.slane %v925, 4
      %v932 = vshrl.u32 %v732, 16
      %v934 = vrot.slane %v932, 7
      %v935 = vshll.u32 %v732, 16
      %v937 = vor.u32 %v934, %v935
      %v938 = vrot.slane %v934, 4
      %v940 = vshrl.u32 %v733, 16
      %v942 = vrot.slane %v940, 7
      %v943 = vshll.u32 %v733, 16
      %v945 = vor.u32 %v942, %v943
      %v946 = vsel %vm743, %v938, %v945
      %v947 = vrot.slane %v942, 4
      %v949 = vshrl.u32 %v734, 16
      %v951 = vrot.slane %v949, 7
      %v952 = vshll.u32 %v734, 16
      %v954 = vor.u32 %v951, %v952
      %v955 = vrot.slane %v951, 4
      %v957 = vshrl.u32 %v735, 16
      %v959 = vrot.slane %v957, 7
      %v960 = vshll.u32 %v735, 16
      %v962 = vor.u32 %v959, %v960
      %v963 = vsel %vm743, %v955, %v962
      %v964 = vrot.slane %v959, 4
      %v966 = vshrl.u32 %v736, 16
      %v968 = vrot.slane %v966, 7
      %v969 = vshll.u32 %v736, 16
      %v971 = vor.u32 %v968, %v969
      %v972 = vrot.slane %v968, 4
      %v974 = vshrl.u32 %v737, 16
      %v976 = vrot.slane %v974, 7
      %v977 = vshll.u32 %v737, 16
      %v979 = vor.u32 %v976, %v977
      %v980 = vsel %vm743, %v972, %v979
      %v981 = vrot.slane %v976, 4
      %v983 = vshrl.u32 %v738, 16
      %v985 = vrot.slane %v983, 7
      %v986 = vshll.u32 %v738, 16
      %v988 = vor.u32 %v985, %v986
      %v989 = vrot.slane %v985, 4
      %v991 = vshrl.u32 %v739, 16
      %v993 = vrot.slane %v991, 7
      %v994 = vshll.u32 %v739, 16
      %v996 = vor.u32 %v993, %v994
      %v997 = vsel %vm743, %v989, %v996
      %v998 = vrot.slane %v993, 4
      %v1000 = vshrl.u32 %v740, 16
      %v1002 = vrot.slane %v1000, 7
      %v1003 = vshll.u32 %v740, 16
      %v1005 = vor.u32 %v1002, %v1003
      %v1006 = vrot.slane %v1002, 4
      %v1008 = vshrl.u32 %v741, 16
      %v1010 = vrot.slane %v1008, 7
      %v1011 = vshll.u32 %v741, 16
      %v1013 = vor.u32 %v1010, %v1011
      %v1014 = vsel %vm743, %v1006, %v1013
      %v1015 = vrot.slane %v1010, 4
      %vm1064 = vcmask 1043456
      %vm1065 = vmand %vm1064, %vm596
      %v1066 = vld [vmem:[%s544] sm:$0xf]
      %v1067 = vsel %vm1065, %v750, %v1066
      %1068 = vst [vmem:[%s544] sm:$0xf] %v1067
      %1069 = vst [vmem:[%s544 + $0x4] sm:$0xf] %v759
      %v1070 = vld [vmem:[%s544 + $0x8] sm:$0x1]
      %v1071 = vsel %vm547, %v760, %v1070
      %1072 = vst [vmem:[%s544 + $0x8] sm:$0x1] %v1071
      %v1073 = vld [vmem:[%s544 + $0xc] sm:$0xf]
      %v1074 = vsel %vm1065, %v767, %v1073
      %1075 = vst [vmem:[%s544 + $0xc] sm:$0xf] %v1074
      %1076 = vst [vmem:[%s544 + $0x10] sm:$0xf] %v776
      %v1077 = vld [vmem:[%s544 + $0x14] sm:$0x1]
      %v1078 = vsel %vm547, %v777, %v1077
      %1079 = vst [vmem:[%s544 + $0x14] sm:$0x1] %v1078
      %v1080 = vld [vmem:[%s544 + $0x18] sm:$0xf]
      %v1081 = vsel %vm1065, %v784, %v1080
      %1082 = vst [vmem:[%s544 + $0x18] sm:$0xf] %v1081
      %1083 = vst [vmem:[%s544 + $0x1c] sm:$0xf] %v793
      %v1084 = vld [vmem:[%s544 + $0x20] sm:$0x1]
      %v1085 = vsel %vm547, %v794, %v1084
      %1086 = vst [vmem:[%s544 + $0x20] sm:$0x1] %v1085
      %v1087 = vld [vmem:[%s544 + $0x24] sm:$0xf]
      %v1088 = vsel %vm1065, %v801, %v1087
      %1089 = vst [vmem:[%s544 + $0x24] sm:$0xf] %v1088
      %1090 = vst [vmem:[%s544 + $0x28] sm:$0xf] %v810
      %v1091 = vld [vmem:[%s544 + $0x2c] sm:$0x1]
      %v1092 = vsel %vm547, %v811, %v1091
      %1093 = vst [vmem:[%s544 + $0x2c] sm:$0x1] %v1092
      %v1094 = vld [vmem:[%s544 + $0x30] sm:$0xf]
      %v1095 = vsel %vm1065, %v818, %v1094
      %1096 = vst [vmem:[%s544 + $0x30] sm:$0xf] %v1095
      %1097 = vst [vmem:[%s544 + $0x34] sm:$0xf] %v827
      %v1098 = vld [vmem:[%s544 + $0x38] sm:$0x1]
      %v1099 = vsel %vm547, %v828, %v1098
      %1100 = vst [vmem:[%s544 + $0x38] sm:$0x1] %v1099
      %v1101 = vld [vmem:[%s544 + $0x3c] sm:$0xf]
      %v1102 = vsel %vm1065, %v835, %v1101
      %1103 = vst [vmem:[%s544 + $0x3c] sm:$0xf] %v1102
      %1104 = vst [vmem:[%s544 + $0x40] sm:$0xf] %v844
      %v1105 = vld [vmem:[%s544 + $0x44] sm:$0x1]
      %v1106 = vsel %vm547, %v845, %v1105
      %1107 = vst [vmem:[%s544 + $0x44] sm:$0x1] %v1106
      %v1108 = vld [vmem:[%s544 + $0x48] sm:$0xf]
      %v1109 = vsel %vm1065, %v852, %v1108
      %1110 = vst [vmem:[%s544 + $0x48] sm:$0xf] %v1109
      %1111 = vst [vmem:[%s544 + $0x4c] sm:$0xf] %v861
      %v1112 = vld [vmem:[%s544 + $0x50] sm:$0x1]
      %v1113 = vsel %vm547, %v862, %v1112
      %1114 = vst [vmem:[%s544 + $0x50] sm:$0x1] %v1113
      %v1115 = vld [vmem:[%s544 + $0x54] sm:$0xf]
      %v1116 = vsel %vm1065, %v869, %v1115
      %1117 = vst [vmem:[%s544 + $0x54] sm:$0xf] %v1116
      %1118 = vst [vmem:[%s544 + $0x58] sm:$0xf] %v878
      %v1119 = vld [vmem:[%s544 + $0x5c] sm:$0x1]
      %v1120 = vsel %vm547, %v879, %v1119
      %1121 = vst [vmem:[%s544 + $0x5c] sm:$0x1] %v1120
      %v1122 = vld [vmem:[%s544 + $0x60] sm:$0xf]
      %v1123 = vsel %vm1065, %v886, %v1122
      %1124 = vst [vmem:[%s544 + $0x60] sm:$0xf] %v1123
      %1125 = vst [vmem:[%s544 + $0x64] sm:$0xf] %v895
      %v1126 = vld [vmem:[%s544 + $0x68] sm:$0x1]
      %v1127 = vsel %vm547, %v896, %v1126
      %1128 = vst [vmem:[%s544 + $0x68] sm:$0x1] %v1127
      %v1129 = vld [vmem:[%s544 + $0x6c] sm:$0xf]
      %v1130 = vsel %vm1065, %v903, %v1129
      %1131 = vst [vmem:[%s544 + $0x6c] sm:$0xf] %v1130
      %1132 = vst [vmem:[%s544 + $0x70] sm:$0xf] %v912
      %v1133 = vld [vmem:[%s544 + $0x74] sm:$0x1]
      %v1134 = vsel %vm547, %v913, %v1133
      %1135 = vst [vmem:[%s544 + $0x74] sm:$0x1] %v1134
      %v1136 = vld [vmem:[%s544 + $0x78] sm:$0xf]
      %v1137 = vsel %vm1065, %v920, %v1136
      %1138 = vst [vmem:[%s544 + $0x78] sm:$0xf] %v1137
      %1139 = vst [vmem:[%s544 + $0x7c] sm:$0xf] %v929
      %v1140 = vld [vmem:[%s544 + $0x80] sm:$0x1]
      %v1141 = vsel %vm547, %v930, %v1140
      %1142 = vst [vmem:[%s544 + $0x80] sm:$0x1] %v1141
      %v1143 = vld [vmem:[%s544 + $0x84] sm:$0xf]
      %v1144 = vsel %vm1065, %v937, %v1143
      %1145 = vst [vmem:[%s544 + $0x84] sm:$0xf] %v1144
      %1146 = vst [vmem:[%s544 + $0x88] sm:$0xf] %v946
      %v1147 = vld [vmem:[%s544 + $0x8c] sm:$0x1]
      %v1148 = vsel %vm547, %v947, %v1147
      %1149 = vst [vmem:[%s544 + $0x8c] sm:$0x1] %v1148
      %v1150 = vld [vmem:[%s544 + $0x90] sm:$0xf]
      %v1151 = vsel %vm1065, %v954, %v1150
      %1152 = vst [vmem:[%s544 + $0x90] sm:$0xf] %v1151
      %1153 = vst [vmem:[%s544 + $0x94] sm:$0xf] %v963
      %v1154 = vld [vmem:[%s544 + $0x98] sm:$0x1]
      %v1155 = vsel %vm547, %v964, %v1154
      %1156 = vst [vmem:[%s544 + $0x98] sm:$0x1] %v1155
      %v1157 = vld [vmem:[%s544 + $0x9c] sm:$0xf]
      %v1158 = vsel %vm1065, %v971, %v1157
      %1159 = vst [vmem:[%s544 + $0x9c] sm:$0xf] %v1158
      %1160 = vst [vmem:[%s544 + $0xa0] sm:$0xf] %v980
      %v1161 = vld [vmem:[%s544 + $0xa4] sm:$0x1]
      %v1162 = vsel %vm547, %v981, %v1161
      %1163 = vst [vmem:[%s544 + $0xa4] sm:$0x1] %v1162
      %v1164 = vld [vmem:[%s544 + $0xa8] sm:$0xf]
      %v1165 = vsel %vm1065, %v988, %v1164
      %1166 = vst [vmem:[%s544 + $0xa8] sm:$0xf] %v1165
      %1167 = vst [vmem:[%s544 + $0xac] sm:$0xf] %v997
      %v1168 = vld [vmem:[%s544 + $0xb0] sm:$0x1]
      %v1169 = vsel %vm547, %v998, %v1168
      %1170 = vst [vmem:[%s544 + $0xb0] sm:$0x1] %v1169
      %v1171 = vld [vmem:[%s544 + $0xb4] sm:$0xf]
      %v1172 = vsel %vm1065, %v1005, %v1171
      %1173 = vst [vmem:[%s544 + $0xb4] sm:$0xf] %v1172
      %1174 = vst [vmem:[%s544 + $0xb8] sm:$0xf] %v1014
      %v1175 = vld [vmem:[%s544 + $0xbc] sm:$0x1]
      %v1176 = vsel %vm547, %v1015, %v1175
      %1177 = vst [vmem:[%s544 + $0xbc] sm:$0x1] %v1176
      %v1178 = vld [vmem:[#allocation2] sm:$0xf]
      %v1179 = vld [vmem:[#allocation2 + $0x4] sm:$0xf]
      %v1180 = vld [vmem:[#allocation2 + $0xc] sm:$0xf]
      %v1181 = vld [vmem:[#allocation2 + $0x10] sm:$0xf]
      %v1182 = vld [vmem:[#allocation2 + $0x18] sm:$0xf]
      %v1183 = vld [vmem:[#allocation2 + $0x1c] sm:$0xf]
      %v1184 = vld [vmem:[#allocation2 + $0x24] sm:$0xf]
      %v1185 = vld [vmem:[#allocation2 + $0x28] sm:$0xf]
      %v1186 = vld [vmem:[#allocation2 + $0x30] sm:$0xf]
      %v1187 = vld [vmem:[#allocation2 + $0x34] sm:$0xf]
      %v1188 = vld [vmem:[#allocation2 + $0x3c] sm:$0xf]
      %v1189 = vld [vmem:[#allocation2 + $0x40] sm:$0xf]
      %v1190 = vld [vmem:[#allocation2 + $0x48] sm:$0xf]
      %v1191 = vld [vmem:[#allocation2 + $0x4c] sm:$0xf]
      %v1192 = vld [vmem:[#allocation2 + $0x54] sm:$0xf]
      %v1193 = vld [vmem:[#allocation2 + $0x58] sm:$0xf]
      %v1194 = vld [vmem:[#allocation2 + $0x60] sm:$0xf]
      %v1195 = vld [vmem:[#allocation2 + $0x64] sm:$0xf]
      %v1196 = vld [vmem:[#allocation2 + $0x6c] sm:$0xf]
      %v1197 = vld [vmem:[#allocation2 + $0x70] sm:$0xf]
      %v1198 = vld [vmem:[#allocation2 + $0x78] sm:$0xf]
      %v1199 = vld [vmem:[#allocation2 + $0x7c] sm:$0xf]
      %v1200 = vld [vmem:[#allocation2 + $0x84] sm:$0xf]
      %v1201 = vld [vmem:[#allocation2 + $0x88] sm:$0xf]
      %v1202 = vld [vmem:[#allocation2 + $0x90] sm:$0xf]
      %v1203 = vld [vmem:[#allocation2 + $0x94] sm:$0xf]
      %v1204 = vld [vmem:[#allocation2 + $0x9c] sm:$0xf]
      %v1205 = vld [vmem:[#allocation2 + $0xa0] sm:$0xf]
      %v1206 = vld [vmem:[#allocation2 + $0xa8] sm:$0xf]
      %v1207 = vld [vmem:[#allocation2 + $0xac] sm:$0xf]
      %v1208 = vld [vmem:[#allocation2 + $0xb4] sm:$0xf]
      %v1209 = vld [vmem:[#allocation2 + $0xb8] sm:$0xf]
      %v1210 = vld [vmem:[#allocation2 + $0x8] sm:$0x1]
      %v1211 = vld [vmem:[#allocation2 + $0x14] sm:$0x1]
      %v1212 = vld [vmem:[#allocation2 + $0x20] sm:$0x1]
      %v1213 = vld [vmem:[#allocation2 + $0x2c] sm:$0x1]
      %v1214 = vld [vmem:[#allocation2 + $0x38] sm:$0x1]
      %v1215 = vld [vmem:[#allocation2 + $0x44] sm:$0x1]
      %v1216 = vld [vmem:[#allocation2 + $0x50] sm:$0x1]
      %v1217 = vld [vmem:[#allocation2 + $0x5c] sm:$0x1]
      %v1218 = vld [vmem:[#allocation2 + $0x68] sm:$0x1]
      %v1219 = vld [vmem:[#allocation2 + $0x74] sm:$0x1]
      %v1220 = vld [vmem:[#allocation2 + $0x80] sm:$0x1]
      %v1221 = vld [vmem:[#allocation2 + $0x8c] sm:$0x1]
      %v1222 = vld [vmem:[#allocation2 + $0x98] sm:$0x1]
      %v1223 = vld [vmem:[#allocation2 + $0xa4] sm:$0x1]
      %v1224 = vld [vmem:[#allocation2 + $0xb0] sm:$0x1]
      %v1225 = vld [vmem:[#allocation2 + $0xbc] sm:$0x1]
      %vm1226 = vsmask.f32 3328
      %vm1227 = vsmask.f32 7440
      %vm1228 = vmor %vm1226, %vm1227
      %v1230 = vshrl.u32 %v1178, 16
      %v1232 = vrot.slane %v1230, 4
      %v1233 = vshll.u32 %v1178, 16
      %v1235 = vrot.slane %v1233, 5
      %v1236 = vor.u32 %v1232, %v1235
      %v1237 = vrot.slane %v1236, 4
      %v1239 = vshll.u32 %v1179, 16
      %v1241 = vrot.slane %v1239, 5
      %v1242 = vsel %vm1228, %v1237, %v1241
      %v1243 = vshrl.u32 %v1179, 16
      %v1245 = vrot.slane %v1243, 4
      %v1246 = vor.u32 %v1245, %v1241
      %v1247 = vrot.slane %v1246, 4
      %v1249 = vshll.u32 %v1210, 16
      %v1251 = vrot.slane %v1249, 5
      %v1252 = vsel %vm1228, %v1247, %v1251
      %v1254 = vshrl.u32 %v1180, 16
      %v1256 = vrot.slane %v1254, 4
      %v1257 = vshll.u32 %v1180, 16
      %v1259 = vrot.slane %v1257, 5
      %v1260 = vor.u32 %v1256, %v1259
      %v1261 = vrot.slane %v1260, 4
      %v1263 = vshll.u32 %v1181, 16
      %v1265 = vrot.slane %v1263, 5
      %v1266 = vsel %vm1228, %v1261, %v1265
      %v1267 = vshrl.u32 %v1181, 16
      %v1269 = vrot.slane %v1267, 4
      %v1270 = vor.u32 %v1269, %v1265
      %v1271 = vrot.slane %v1270, 4
      %v1273 = vshll.u32 %v1211, 16
      %v1275 = vrot.slane %v1273, 5
      %v1276 = vsel %vm1228, %v1271, %v1275
      %v1278 = vshrl.u32 %v1182, 16
      %v1280 = vrot.slane %v1278, 4
      %v1281 = vshll.u32 %v1182, 16
      %v1283 = vrot.slane %v1281, 5
      %v1284 = vor.u32 %v1280, %v1283
      %v1285 = vrot.slane %v1284, 4
      %v1287 = vshll.u32 %v1183, 16
      %v1289 = vrot.slane %v1287, 5
      %v1290 = vsel %vm1228, %v1285, %v1289
      %v1291 = vshrl.u32 %v1183, 16
      %v1293 = vrot.slane %v1291, 4
      %v1294 = vor.u32 %v1293, %v1289
      %v1295 = vrot.slane %v1294, 4
      %v1297 = vshll.u32 %v1212, 16
      %v1299 = vrot.slane %v1297, 5
      %v1300 = vsel %vm1228, %v1295, %v1299
      %v1302 = vshrl.u32 %v1184, 16
      %v1304 = vrot.slane %v1302, 4
      %v1305 = vshll.u32 %v1184, 16
      %v1307 = vrot.slane %v1305, 5
      %v1308 = vor.u32 %v1304, %v1307
      %v1309 = vrot.slane %v1308, 4
      %v1311 = vshll.u32 %v1185, 16
      %v1313 = vrot.slane %v1311, 5
      %v1314 = vsel %vm1228, %v1309, %v1313
      %v1315 = vshrl.u32 %v1185, 16
      %v1317 = vrot.slane %v1315, 4
      %v1318 = vor.u32 %v1317, %v1313
      %v1319 = vrot.slane %v1318, 4
      %v1321 = vshll.u32 %v1213, 16
      %v1323 = vrot.slane %v1321, 5
      %v1324 = vsel %vm1228, %v1319, %v1323
      %v1326 = vshrl.u32 %v1186, 16
      %v1328 = vrot.slane %v1326, 4
      %v1329 = vshll.u32 %v1186, 16
      %v1331 = vrot.slane %v1329, 5
      %v1332 = vor.u32 %v1328, %v1331
      %v1333 = vrot.slane %v1332, 4
      %v1335 = vshll.u32 %v1187, 16
      %v1337 = vrot.slane %v1335, 5
      %v1338 = vsel %vm1228, %v1333, %v1337
      %v1339 = vshrl.u32 %v1187, 16
      %v1341 = vrot.slane %v1339, 4
      %v1342 = vor.u32 %v1341, %v1337
      %v1343 = vrot.slane %v1342, 4
      %v1345 = vshll.u32 %v1214, 16
      %v1347 = vrot.slane %v1345, 5
      %v1348 = vsel %vm1228, %v1343, %v1347
      %v1350 = vshrl.u32 %v1188, 16
      %v1352 = vrot.slane %v1350, 4
      %v1353 = vshll.u32 %v1188, 16
      %v1355 = vrot.slane %v1353, 5
      %v1356 = vor.u32 %v1352, %v1355
      %v1357 = vrot.slane %v1356, 4
      %v1359 = vshll.u32 %v1189, 16
      %v1361 = vrot.slane %v1359, 5
      %v1362 = vsel %vm1228, %v1357, %v1361
      %v1363 = vshrl.u32 %v1189, 16
      %v1365 = vrot.slane %v1363, 4
      %v1366 = vor.u32 %v1365, %v1361
      %v1367 = vrot.slane %v1366, 4
      %v1369 = vshll.u32 %v1215, 16
      %v1371 = vrot.slane %v1369, 5
      %v1372 = vsel %vm1228, %v1367, %v1371
      %v1374 = vshrl.u32 %v1190, 16
      %v1376 = vrot.slane %v1374, 4
      %v1377 = vshll.u32 %v1190, 16
      %v1379 = vrot.slane %v1377, 5
      %v1380 = vor.u32 %v1376, %v1379
      %v1381 = vrot.slane %v1380, 4
      %v1383 = vshll.u32 %v1191, 16
      %v1385 = vrot.slane %v1383, 5
      %v1386 = vsel %vm1228, %v1381, %v1385
      %v1387 = vshrl.u32 %v1191, 16
      %v1389 = vrot.slane %v1387, 4
      %v1390 = vor.u32 %v1389, %v1385
      %v1391 = vrot.slane %v1390, 4
      %v1393 = vshll.u32 %v1216, 16
      %v1395 = vrot.slane %v1393, 5
      %v1396 = vsel %vm1228, %v1391, %v1395
      %v1398 = vshrl.u32 %v1192, 16
      %v1400 = vrot.slane %v1398, 4
      %v1401 = vshll.u32 %v1192, 16
      %v1403 = vrot.slane %v1401, 5
      %v1404 = vor.u32 %v1400, %v1403
      %v1405 = vrot.slane %v1404, 4
      %v1407 = vshll.u32 %v1193, 16
      %v1409 = vrot.slane %v1407, 5
      %v1410 = vsel %vm1228, %v1405, %v1409
      %v1411 = vshrl.u32 %v1193, 16
      %v1413 = vrot.slane %v1411, 4
      %v1414 = vor.u32 %v1413, %v1409
      %v1415 = vrot.slane %v1414, 4
      %v1417 = vshll.u32 %v1217, 16
      %v1419 = vrot.slane %v1417, 5
      %v1420 = vsel %vm1228, %v1415, %v1419
      %v1422 = vshrl.u32 %v1194, 16
      %v1424 = vrot.slane %v1422, 4
      %v1425 = vshll.u32 %v1194, 16
      %v1427 = vrot.slane %v1425, 5
      %v1428 = vor.u32 %v1424, %v1427
      %v1429 = vrot.slane %v1428, 4
      %v1431 = vshll.u32 %v1195, 16
      %v1433 = vrot.slane %v1431, 5
      %v1434 = vsel %vm1228, %v1429, %v1433
      %v1435 = vshrl.u32 %v1195, 16
      %v1437 = vrot.slane %v1435, 4
      %v1438 = vor.u32 %v1437, %v1433
      %v1439 = vrot.slane %v1438, 4
      %v1441 = vshll.u32 %v1218, 16
      %v1443 = vrot.slane %v1441, 5
      %v1444 = vsel %vm1228, %v1439, %v1443
      %v1446 = vshrl.u32 %v1196, 16
      %v1448 = vrot.slane %v1446, 4
      %v1449 = vshll.u32 %v1196, 16
      %v1451 = vrot.slane %v1449, 5
      %v1452 = vor.u32 %v1448, %v1451
      %v1453 = vrot.slane %v1452, 4
      %v1455 = vshll.u32 %v1197, 16
      %v1457 = vrot.slane %v1455, 5
      %v1458 = vsel %vm1228, %v1453, %v1457
      %v1459 = vshrl.u32 %v1197, 16
      %v1461 = vrot.slane %v1459, 4
      %v1462 = vor.u32 %v1461, %v1457
      %v1463 = vrot.slane %v1462, 4
      %v1465 = vshll.u32 %v1219, 16
      %v1467 = vrot.slane %v1465, 5
      %v1468 = vsel %vm1228, %v1463, %v1467
      %v1470 = vshrl.u32 %v1198, 16
      %v1472 = vrot.slane %v1470, 4
      %v1473 = vshll.u32 %v1198, 16
      %v1475 = vrot.slane %v1473, 5
      %v1476 = vor.u32 %v1472, %v1475
      %v1477 = vrot.slane %v1476, 4
      %v1479 = vshll.u32 %v1199, 16
      %v1481 = vrot.slane %v1479, 5
      %v1482 = vsel %vm1228, %v1477, %v1481
      %v1483 = vshrl.u32 %v1199, 16
      %v1485 = vrot.slane %v1483, 4
      %v1486 = vor.u32 %v1485, %v1481
      %v1487 = vrot.slane %v1486, 4
      %v1489 = vshll.u32 %v1220, 16
      %v1491 = vrot.slane %v1489, 5
      %v1492 = vsel %vm1228, %v1487, %v1491
      %v1494 = vshrl.u32 %v1200, 16
      %v1496 = vrot.slane %v1494, 4
      %v1497 = vshll.u32 %v1200, 16
      %v1499 = vrot.slane %v1497, 5
      %v1500 = vor.u32 %v1496, %v1499
      %v1501 = vrot.slane %v1500, 4
      %v1503 = vshll.u32 %v1201, 16
      %v1505 = vrot.slane %v1503, 5
      %v1506 = vsel %vm1228, %v1501, %v1505
      %v1507 = vshrl.u32 %v1201, 16
      %v1509 = vrot.slane %v1507, 4
      %v1510 = vor.u32 %v1509, %v1505
      %v1511 = vrot.slane %v1510, 4
      %v1513 = vshll.u32 %v1221, 16
      %v1515 = vrot.slane %v1513, 5
      %v1516 = vsel %vm1228, %v1511, %v1515
      %v1518 = vshrl.u32 %v1202, 16
      %v1520 = vrot.slane %v1518, 4
      %v1521 = vshll.u32 %v1202, 16
      %v1523 = vrot.slane %v1521, 5
      %v1524 = vor.u32 %v1520, %v1523
      %v1525 = vrot.slane %v1524, 4
      %v1527 = vshll.u32 %v1203, 16
      %v1529 = vrot.slane %v1527, 5
      %v1530 = vsel %vm1228, %v1525, %v1529
      %v1531 = vshrl.u32 %v1203, 16
      %v1533 = vrot.slane %v1531, 4
      %v1534 = vor.u32 %v1533, %v1529
      %v1535 = vrot.slane %v1534, 4
      %v1537 = vshll.u32 %v1222, 16
      %v1539 = vrot.slane %v1537, 5
      %v1540 = vsel %vm1228, %v1535, %v1539
      %v1542 = vshrl.u32 %v1204, 16
      %v1544 = vrot.slane %v1542, 4
      %v1545 = vshll.u32 %v1204, 16
      %v1547 = vrot.slane %v1545, 5
      %v1548 = vor.u32 %v1544, %v1547
      %v1549 = vrot.slane %v1548, 4
      %v1551 = vshll.u32 %v1205, 16
      %v1553 = vrot.slane %v1551, 5
      %v1554 = vsel %vm1228, %v1549, %v1553
      %v1555 = vshrl.u32 %v1205, 16
      %v1557 = vrot.slane %v1555, 4
      %v1558 = vor.u32 %v1557, %v1553
      %v1559 = vrot.slane %v1558, 4
      %v1561 = vshll.u32 %v1223, 16
      %v1563 = vrot.slane %v1561, 5
      %v1564 = vsel %vm1228, %v1559, %v1563
      %v1566 = vshrl.u32 %v1206, 16
      %v1568 = vrot.slane %v1566, 4
      %v1569 = vshll.u32 %v1206, 16
      %v1571 = vrot.slane %v1569, 5
      %v1572 = vor.u32 %v1568, %v1571
      %v1573 = vrot.slane %v1572, 4
      %v1575 = vshll.u32 %v1207, 16
      %v1577 = vrot.slane %v1575, 5
      %v1578 = vsel %vm1228, %v1573, %v1577
      %v1579 = vshrl.u32 %v1207, 16
      %v1581 = vrot.slane %v1579, 4
      %v1582 = vor.u32 %v1581, %v1577
      %v1583 = vrot.slane %v1582, 4
      %v1585 = vshll.u32 %v1224, 16
      %v1587 = vrot.slane %v1585, 5
      %v1588 = vsel %vm1228, %v1583, %v1587
      %v1590 = vshrl.u32 %v1208, 16
      %v1592 = vrot.slane %v1590, 4
      %v1593 = vshll.u32 %v1208, 16
      %v1595 = vrot.slane %v1593, 5
      %v1596 = vor.u32 %v1592, %v1595
      %v1597 = vrot.slane %v1596, 4
      %v1599 = vshll.u32 %v1209, 16
      %v1601 = vrot.slane %v1599, 5
      %v1602 = vsel %vm1228, %v1597, %v1601
      %v1603 = vshrl.u32 %v1209, 16
      %v1605 = vrot.slane %v1603, 4
      %v1606 = vor.u32 %v1605, %v1601
      %v1607 = vrot.slane %v1606, 4
      %v1609 = vshll.u32 %v1225, 16
      %v1611 = vrot.slane %v1609, 5
      %v1612 = vsel %vm1228, %v1607, %v1611
      %v1613 = vld [vmem:[#allocation2] sm:$0xe]
      %v1614 = vld [vmem:[#allocation2 + $0xc] sm:$0xe]
      %v1615 = vld [vmem:[#allocation2 + $0x18] sm:$0xe]
      %v1616 = vld [vmem:[#allocation2 + $0x24] sm:$0xe]
      %v1617 = vld [vmem:[#allocation2 + $0x30] sm:$0xe]
      %v1618 = vld [vmem:[#allocation2 + $0x3c] sm:$0xe]
      %v1619 = vld [vmem:[#allocation2 + $0x48] sm:$0xe]
      %v1620 = vld [vmem:[#allocation2 + $0x54] sm:$0xe]
      %v1621 = vld [vmem:[#allocation2 + $0x60] sm:$0xe]
      %v1622 = vld [vmem:[#allocation2 + $0x6c] sm:$0xe]
      %v1623 = vld [vmem:[#allocation2 + $0x78] sm:$0xe]
      %v1624 = vld [vmem:[#allocation2 + $0x84] sm:$0xe]
      %v1625 = vld [vmem:[#allocation2 + $0x90] sm:$0xe]
      %v1626 = vld [vmem:[#allocation2 + $0x9c] sm:$0xe]
      %v1627 = vld [vmem:[#allocation2 + $0xa8] sm:$0xe]
      %v1628 = vld [vmem:[#allocation2 + $0xb4] sm:$0xe]
      %vm1677 = vcmask 1042432
      %vm1678 = vcmask 1046532
      %vm1679 = vmor %vm1677, %vm1678
      %v1680 = vrot.slane %v1613, 5
      %v1681 = vrot.slane %v1680, 4
      %v1682 = vrot.slane %v1179, 5
      %v1683 = vsel %vm1679, %v1681, %v1682
      %v1684 = vrot.slane %v1682, 4
      %v1685 = vrot.slane %v1210, 5
      %v1686 = vsel %vm1679, %v1684, %v1685
      %v1687 = vrot.slane %v1614, 5
      %v1688 = vrot.slane %v1687, 4
      %v1689 = vrot.slane %v1181, 5
      %v1690 = vsel %vm1679, %v1688, %v1689
      %v1691 = vrot.slane %v1689, 4
      %v1692 = vrot.slane %v1211, 5
      %v1693 = vsel %vm1679, %v1691, %v1692
      %v1694 = vrot.slane %v1615, 5
      %v1695 = vrot.slane %v1694, 4
      %v1696 = vrot.slane %v1183, 5
      %v1697 = vsel %vm1679, %v1695, %v1696
      %v1698 = vrot.slane %v1696, 4
      %v1699 = vrot.slane %v1212, 5
      %v1700 = vsel %vm1679, %v1698, %v1699
      %v1701 = vrot.slane %v1616, 5
      %v1702 = vrot.slane %v1701, 4
      %v1703 = vrot.slane %v1185, 5
      %v1704 = vsel %vm1679, %v1702, %v1703
      %v1705 = vrot.slane %v1703, 4
      %v1706 = vrot.slane %v1213, 5
      %v1707 = vsel %vm1679, %v1705, %v1706
      %v1708 = vrot.slane %v1617, 5
      %v1709 = vrot.slane %v1708, 4
      %v1710 = vrot.slane %v1187, 5
      %v1711 = vsel %vm1679, %v1709, %v1710
      %v1712 = vrot.slane %v1710, 4
      %v1713 = vrot.slane %v1214, 5
      %v1714 = vsel %vm1679, %v1712, %v1713
      %v1715 = vrot.slane %v1618, 5
      %v1716 = vrot.slane %v1715, 4
      %v1717 = vrot.slane %v1189, 5
      %v1718 = vsel %vm1679, %v1716, %v1717
      %v1719 = vrot.slane %v1717, 4
      %v1720 = vrot.slane %v1215, 5
      %v1721 = vsel %vm1679, %v1719, %v1720
      %v1722 = vrot.slane %v1619, 5
      %v1723 = vrot.slane %v1722, 4
      %v1724 = vrot.slane %v1191, 5
      %v1725 = vsel %vm1679, %v1723, %v1724
      %v1726 = vrot.slane %v1724, 4
      %v1727 = vrot.slane %v1216, 5
      %v1728 = vsel %vm1679, %v1726, %v1727
      %v1729 = vrot.slane %v1620, 5
      %v1730 = vrot.slane %v1729, 4
      %v1731 = vrot.slane %v1193, 5
      %v1732 = vsel %vm1679, %v1730, %v1731
      %v1733 = vrot.slane %v1731, 4
      %v1734 = vrot.slane %v1217, 5
      %v1735 = vsel %vm1679, %v1733, %v1734
      %v1736 = vrot.slane %v1621, 5
      %v1737 = vrot.slane %v1736, 4
      %v1738 = vrot.slane %v1195, 5
      %v1739 = vsel %vm1679, %v1737, %v1738
      %v1740 = vrot.slane %v1738, 4
      %v1741 = vrot.slane %v1218, 5
      %v1742 = vsel %vm1679, %v1740, %v1741
      %v1743 = vrot.slane %v1622, 5
      %v1744 = vrot.slane %v1743, 4
      %v1745 = vrot.slane %v1197, 5
      %v1746 = vsel %vm1679, %v1744, %v1745
      %v1747 = vrot.slane %v1745, 4
      %v1748 = vrot.slane %v1219, 5
      %v1749 = vsel %vm1679, %v1747, %v1748
      %v1750 = vrot.slane %v1623, 5
      %v1751 = vrot.slane %v1750, 4
      %v1752 = vrot.slane %v1199, 5
      %v1753 = vsel %vm1679, %v1751, %v1752
      %v1754 = vrot.slane %v1752, 4
      %v1755 = vrot.slane %v1220, 5
      %v1756 = vsel %vm1679, %v1754, %v1755
      %v1757 = vrot.slane %v1624, 5
      %v1758 = vrot.slane %v1757, 4
      %v1759 = vrot.slane %v1201, 5
      %v1760 = vsel %vm1679, %v1758, %v1759
      %v1761 = vrot.slane %v1759, 4
      %v1762 = vrot.slane %v1221, 5
      %v1763 = vsel %vm1679, %v1761, %v1762
      %v1764 = vrot.slane %v1625, 5
      %v1765 = vrot.slane %v1764, 4
      %v1766 = vrot.slane %v1203, 5
      %v1767 = vsel %vm1679, %v1765, %v1766
      %v1768 = vrot.slane %v1766, 4
      %v1769 = vrot.slane %v1222, 5
      %v1770 = vsel %vm1679, %v1768, %v1769
      %v1771 = vrot.slane %v1626, 5
      %v1772 = vrot.slane %v1771, 4
      %v1773 = vrot.slane %v1205, 5
      %v1774 = vsel %vm1679, %v1772, %v1773
      %v1775 = vrot.slane %v1773, 4
      %v1776 = vrot.slane %v1223, 5
      %v1777 = vsel %vm1679, %v1775, %v1776
      %v1778 = vrot.slane %v1627, 5
      %v1779 = vrot.slane %v1778, 4
      %v1780 = vrot.slane %v1207, 5
      %v1781 = vsel %vm1679, %v1779, %v1780
      %v1782 = vrot.slane %v1780, 4
      %v1783 = vrot.slane %v1224, 5
      %v1784 = vsel %vm1679, %v1782, %v1783
      %v1785 = vrot.slane %v1628, 5
      %v1786 = vrot.slane %v1785, 4
      %v1787 = vrot.slane %v1209, 5
      %v1788 = vsel %vm1679, %v1786, %v1787
      %v1789 = vrot.slane %v1787, 4
      %v1790 = vrot.slane %v1225, 5
      %v1791 = vsel %vm1679, %v1789, %v1790
      %v1808 = vunpack.c.l.b16 %v1178
      %v1809 = vunpack.c.l.b16 %v1179
      %v1810 = vunpack.c.l.b16 %v1180
      %v1811 = vunpack.c.l.b16 %v1181
      %v1812 = vunpack.c.l.b16 %v1182
      %v1813 = vunpack.c.l.b16 %v1183
      %v1814 = vunpack.c.l.b16 %v1184
      %v1815 = vunpack.c.l.b16 %v1185
      %v1816 = vunpack.c.l.b16 %v1186
      %v1817 = vunpack.c.l.b16 %v1187
      %v1818 = vunpack.c.l.b16 %v1188
      %v1819 = vunpack.c.l.b16 %v1189
      %v1820 = vunpack.c.l.b16 %v1190
      %v1821 = vunpack.c.l.b16 %v1191
      %v1822 = vunpack.c.l.b16 %v1192
      %v1823 = vunpack.c.l.b16 %v1193
      %v1824 = vunpack.c.l.b16 %v1194
      %v1825 = vunpack.c.l.b16 %v1195
      %v1826 = vunpack.c.l.b16 %v1196
      %v1827 = vunpack.c.l.b16 %v1197
      %v1828 = vunpack.c.l.b16 %v1198
      %v1829 = vunpack.c.l.b16 %v1199
      %v1830 = vunpack.c.l.b16 %v1200
      %v1831 = vunpack.c.l.b16 %v1201
      %v1832 = vunpack.c.l.b16 %v1202
      %v1833 = vunpack.c.l.b16 %v1203
      %v1834 = vunpack.c.l.b16 %v1204
      %v1835 = vunpack.c.l.b16 %v1205
      %v1836 = vunpack.c.l.b16 %v1206
      %v1837 = vunpack.c.l.b16 %v1207
      %v1838 = vunpack.c.l.b16 %v1208
      %v1839 = vunpack.c.l.b16 %v1209
      %v1840 = vpack.c.b16 %v1809, %v1808
      %v1841 = vpack.c.b16 %v1811, %v1810
      %v1842 = vpack.c.b16 %v1813, %v1812
      %v1843 = vpack.c.b16 %v1815, %v1814
      %v1844 = vpack.c.b16 %v1817, %v1816
      %v1845 = vpack.c.b16 %v1819, %v1818
      %v1846 = vpack.c.b16 %v1821, %v1820
      %v1847 = vpack.c.b16 %v1823, %v1822
      %v1848 = vpack.c.b16 %v1825, %v1824
      %v1849 = vpack.c.b16 %v1827, %v1826
      %v1850 = vpack.c.b16 %v1829, %v1828
      %v1851 = vpack.c.b16 %v1831, %v1830
      %v1852 = vpack.c.b16 %v1833, %v1832
      %v1853 = vpack.c.b16 %v1835, %v1834
      %v1854 = vpack.c.b16 %v1837, %v1836
      %v1855 = vpack.c.b16 %v1839, %v1838
      %v1872 = vunpack.c.l.b16 %v1242
      %v1873 = vunpack.c.l.b16 %v1252
      %v1874 = vunpack.c.l.b16 %v1266
      %v1875 = vunpack.c.l.b16 %v1276
      %v1876 = vunpack.c.l.b16 %v1290
      %v1877 = vunpack.c.l.b16 %v1300
      %v1878 = vunpack.c.l.b16 %v1314
      %v1879 = vunpack.c.l.b16 %v1324
      %v1880 = vunpack.c.l.b16 %v1338
      %v1881 = vunpack.c.l.b16 %v1348
      %v1882 = vunpack.c.l.b16 %v1362
      %v1883 = vunpack.c.l.b16 %v1372
      %v1884 = vunpack.c.l.b16 %v1386
      %v1885 = vunpack.c.l.b16 %v1396
      %v1886 = vunpack.c.l.b16 %v1410
      %v1887 = vunpack.c.l.b16 %v1420
      %v1888 = vunpack.c.l.b16 %v1434
      %v1889 = vunpack.c.l.b16 %v1444
      %v1890 = vunpack.c.l.b16 %v1458
      %v1891 = vunpack.c.l.b16 %v1468
      %v1892 = vunpack.c.l.b16 %v1482
      %v1893 = vunpack.c.l.b16 %v1492
      %v1894 = vunpack.c.l.b16 %v1506
      %v1895 = vunpack.c.l.b16 %v1516
      %v1896 = vunpack.c.l.b16 %v1530
      %v1897 = vunpack.c.l.b16 %v1540
      %v1898 = vunpack.c.l.b16 %v1554
      %v1899 = vunpack.c.l.b16 %v1564
      %v1900 = vunpack.c.l.b16 %v1578
      %v1901 = vunpack.c.l.b16 %v1588
      %v1902 = vunpack.c.l.b16 %v1602
      %v1903 = vunpack.c.l.b16 %v1612
      %v1904 = vpack.c.b16 %v1873, %v1872
      %v1905 = vpack.c.b16 %v1875, %v1874
      %v1906 = vpack.c.b16 %v1877, %v1876
      %v1907 = vpack.c.b16 %v1879, %v1878
      %v1908 = vpack.c.b16 %v1881, %v1880
      %v1909 = vpack.c.b16 %v1883, %v1882
      %v1910 = vpack.c.b16 %v1885, %v1884
      %v1911 = vpack.c.b16 %v1887, %v1886
      %v1912 = vpack.c.b16 %v1889, %v1888
      %v1913 = vpack.c.b16 %v1891, %v1890
      %v1914 = vpack.c.b16 %v1893, %v1892
      %v1915 = vpack.c.b16 %v1895, %v1894
      %v1916 = vpack.c.b16 %v1897, %v1896
      %v1917 = vpack.c.b16 %v1899, %v1898
      %v1918 = vpack.c.b16 %v1901, %v1900
      %v1919 = vpack.c.b16 %v1903, %v1902
      %v1936 = vunpack.c.l.b16 %v1683
      %v1937 = vunpack.c.l.b16 %v1686
      %v1938 = vunpack.c.l.b16 %v1690
      %v1939 = vunpack.c.l.b16 %v1693
      %v1940 = vunpack.c.l.b16 %v1697
      %v1941 = vunpack.c.l.b16 %v1700
      %v1942 = vunpack.c.l.b16 %v1704
      %v1943 = vunpack.c.l.b16 %v1707
      %v1944 = vunpack.c.l.b16 %v1711
      %v1945 = vunpack.c.l.b16 %v1714
      %v1946 = vunpack.c.l.b16 %v1718
      %v1947 = vunpack.c.l.b16 %v1721
      %v1948 = vunpack.c.l.b16 %v1725
      %v1949 = vunpack.c.l.b16 %v1728
      %v1950 = vunpack.c.l.b16 %v1732
      %v1951 = vunpack.c.l.b16 %v1735
      %v1952 = vunpack.c.l.b16 %v1739
      %v1953 = vunpack.c.l.b16 %v1742
      %v1954 = vunpack.c.l.b16 %v1746
      %v1955 = vunpack.c.l.b16 %v1749
      %v1956 = vunpack.c.l.b16 %v1753
      %v1957 = vunpack.c.l.b16 %v1756
      %v1958 = vunpack.c.l.b16 %v1760
      %v1959 = vunpack.c.l.b16 %v1763
      %v1960 = vunpack.c.l.b16 %v1767
      %v1961 = vunpack.c.l.b16 %v1770
      %v1962 = vunpack.c.l.b16 %v1774
      %v1963 = vunpack.c.l.b16 %v1777
      %v1964 = vunpack.c.l.b16 %v1781
      %v1965 = vunpack.c.l.b16 %v1784
      %v1966 = vunpack.c.l.b16 %v1788
      %v1967 = vunpack.c.l.b16 %v1791
      %v1968 = vpack.c.b16 %v1937, %v1936
      %v1969 = vpack.c.b16 %v1939, %v1938
      %v1970 = vpack.c.b16 %v1941, %v1940
      %v1971 = vpack.c.b16 %v1943, %v1942
      %v1972 = vpack.c.b16 %v1945, %v1944
      %v1973 = vpack.c.b16 %v1947, %v1946
      %v1974 = vpack.c.b16 %v1949, %v1948
      %v1975 = vpack.c.b16 %v1951, %v1950
      %v1976 = vpack.c.b16 %v1953, %v1952
      %v1977 = vpack.c.b16 %v1955, %v1954
      %v1978 = vpack.c.b16 %v1957, %v1956
      %v1979 = vpack.c.b16 %v1959, %v1958
      %v1980 = vpack.c.b16 %v1961, %v1960
      %v1981 = vpack.c.b16 %v1963, %v1962
      %v1982 = vpack.c.b16 %v1965, %v1964
      %v1983 = vpack.c.b16 %v1967, %v1966
      %v2000 = vld [vmem:[%s4] sm:$0xf]
      %v2001 = vld [vmem:[%s4 + $0x4] sm:$0xf]
      %v2002 = vld [vmem:[%s4 + $0x8] sm:$0xf]
      %v2003 = vld [vmem:[%s4 + $0xc] sm:$0xf]
      %v2004 = vld [vmem:[%s4 + $0x10] sm:$0xf]
      %v2005 = vld [vmem:[%s4 + $0x14] sm:$0xf]
      %v2006 = vld [vmem:[%s4 + $0x18] sm:$0xf]
      %v2007 = vld [vmem:[%s4 + $0x1c] sm:$0xf]
      %v2008 = vld [vmem:[%s4 + $0x20] sm:$0xf]
      %v2009 = vld [vmem:[%s4 + $0x24] sm:$0xf]
      %v2010 = vld [vmem:[%s4 + $0x28] sm:$0xf]
      %v2011 = vld [vmem:[%s4 + $0x2c] sm:$0xf]
      %v2012 = vld [vmem:[%s4 + $0x30] sm:$0xf]
      %v2013 = vld [vmem:[%s4 + $0x34] sm:$0xf]
      %v2014 = vld [vmem:[%s4 + $0x38] sm:$0xf]
      %v2015 = vld [vmem:[%s4 + $0x3c] sm:$0xf]
      %v2016 = vld [vmem:[%s4 + $0x40] sm:$0xf]
      %v2017 = vld [vmem:[%s4 + $0x44] sm:$0xf]
      %v2018 = vld [vmem:[%s4 + $0x48] sm:$0xf]
      %v2019 = vld [vmem:[%s4 + $0x4c] sm:$0xf]
      %v2020 = vld [vmem:[%s4 + $0x50] sm:$0xf]
      %v2021 = vld [vmem:[%s4 + $0x54] sm:$0xf]
      %v2022 = vld [vmem:[%s4 + $0x58] sm:$0xf]
      %v2023 = vld [vmem:[%s4 + $0x5c] sm:$0xf]
      %v2024 = vld [vmem:[%s4 + $0x60] sm:$0xf]
      %v2025 = vld [vmem:[%s4 + $0x64] sm:$0xf]
      %v2026 = vld [vmem:[%s4 + $0x68] sm:$0xf]
      %v2027 = vld [vmem:[%s4 + $0x6c] sm:$0xf]
      %v2028 = vld [vmem:[%s4 + $0x70] sm:$0xf]
      %v2029 = vld [vmem:[%s4 + $0x74] sm:$0xf]
      %v2030 = vld [vmem:[%s4 + $0x78] sm:$0xf]
      %v2031 = vld [vmem:[%s4 + $0x7c] sm:$0xf]
      %v2032 = vld [vmem:[%s4 + $0x80] sm:$0xf]
      %v2033 = vld [vmem:[%s4 + $0x84] sm:$0xf]
      %v2034 = vld [vmem:[%s4 + $0x88] sm:$0xf]
      %v2035 = vld [vmem:[%s4 + $0x8c] sm:$0xf]
      %v2036 = vld [vmem:[%s4 + $0x90] sm:$0xf]
      %v2037 = vld [vmem:[%s4 + $0x94] sm:$0xf]
      %v2038 = vld [vmem:[%s4 + $0x98] sm:$0xf]
      %v2039 = vld [vmem:[%s4 + $0x9c] sm:$0xf]
      %v2040 = vld [vmem:[%s4 + $0xa0] sm:$0xf]
      %v2041 = vld [vmem:[%s4 + $0xa4] sm:$0xf]
      %v2042 = vld [vmem:[%s4 + $0xa8] sm:$0xf]
      %v2043 = vld [vmem:[%s4 + $0xac] sm:$0xf]
      %v2044 = vld [vmem:[%s4 + $0xb0] sm:$0xf]
      %v2045 = vld [vmem:[%s4 + $0xb4] sm:$0xf]
      %v2046 = vld [vmem:[%s4 + $0xb8] sm:$0xf]
      %v2047 = vld [vmem:[%s4 + $0xbc] sm:$0xf]
      %v2048 = vld [vmem:[%s544] sm:$0xf]
      %v2049 = vld [vmem:[%s544 + $0x4] sm:$0xf]
      %v2050 = vld [vmem:[%s544 + $0xc] sm:$0xf]
      %v2051 = vld [vmem:[%s544 + $0x10] sm:$0xf]
      %v2052 = vld [vmem:[%s544 + $0x18] sm:$0xf]
      %v2053 = vld [vmem:[%s544 + $0x1c] sm:$0xf]
      %v2054 = vld [vmem:[%s544 + $0x24] sm:$0xf]
      %v2055 = vld [vmem:[%s544 + $0x28] sm:$0xf]
      %v2056 = vld [vmem:[%s544 + $0x30] sm:$0xf]
      %v2057 = vld [vmem:[%s544 + $0x34] sm:$0xf]
      %v2058 = vld [vmem:[%s544 + $0x3c] sm:$0xf]
      %v2059 = vld [vmem:[%s544 + $0x40] sm:$0xf]
      %v2060 = vld [vmem:[%s544 + $0x48] sm:$0xf]
      %v2061 = vld [vmem:[%s544 + $0x4c] sm:$0xf]
      %v2062 = vld [vmem:[%s544 + $0x54] sm:$0xf]
      %v2063 = vld [vmem:[%s544 + $0x58] sm:$0xf]
      %v2064 = vld [vmem:[%s544 + $0x60] sm:$0xf]
      %v2065 = vld [vmem:[%s544 + $0x64] sm:$0xf]
      %v2066 = vld [vmem:[%s544 + $0x6c] sm:$0xf]
      %v2067 = vld [vmem:[%s544 + $0x70] sm:$0xf]
      %v2068 = vld [vmem:[%s544 + $0x78] sm:$0xf]
      %v2069 = vld [vmem:[%s544 + $0x7c] sm:$0xf]
      %v2070 = vld [vmem:[%s544 + $0x84] sm:$0xf]
      %v2071 = vld [vmem:[%s544 + $0x88] sm:$0xf]
      %v2072 = vld [vmem:[%s544 + $0x90] sm:$0xf]
      %v2073 = vld [vmem:[%s544 + $0x94] sm:$0xf]
      %v2074 = vld [vmem:[%s544 + $0x9c] sm:$0xf]
      %v2075 = vld [vmem:[%s544 + $0xa0] sm:$0xf]
      %v2076 = vld [vmem:[%s544 + $0xa8] sm:$0xf]
      %v2077 = vld [vmem:[%s544 + $0xac] sm:$0xf]
      %v2078 = vld [vmem:[%s544 + $0xb4] sm:$0xf]
      %v2079 = vld [vmem:[%s544 + $0xb8] sm:$0xf]
      %v2080 = vld [vmem:[%s544 + $0x8] sm:$0x1]
      %v2081 = vld [vmem:[%s544 + $0x14] sm:$0x1]
      %v2082 = vld [vmem:[%s544 + $0x20] sm:$0x1]
      %v2083 = vld [vmem:[%s544 + $0x2c] sm:$0x1]
      %v2084 = vld [vmem:[%s544 + $0x38] sm:$0x1]
      %v2085 = vld [vmem:[%s544 + $0x44] sm:$0x1]
      %v2086 = vld [vmem:[%s544 + $0x50] sm:$0x1]
      %v2087 = vld [vmem:[%s544 + $0x5c] sm:$0x1]
      %v2088 = vld [vmem:[%s544 + $0x68] sm:$0x1]
      %v2089 = vld [vmem:[%s544 + $0x74] sm:$0x1]
      %v2090 = vld [vmem:[%s544 + $0x80] sm:$0x1]
      %v2091 = vld [vmem:[%s544 + $0x8c] sm:$0x1]
      %v2092 = vld [vmem:[%s544 + $0x98] sm:$0x1]
      %v2093 = vld [vmem:[%s544 + $0xa4] sm:$0x1]
      %v2094 = vld [vmem:[%s544 + $0xb0] sm:$0x1]
      %v2095 = vld [vmem:[%s544 + $0xbc] sm:$0x1]
      %v2097 = vshrl.u32 %v2048, 16
      %v2099 = vrot.slane %v2097, 4
      %v2100 = vshll.u32 %v2048, 16
      %v2102 = vrot.slane %v2100, 5
      %v2103 = vor.u32 %v2099, %v2102
      %v2104 = vrot.slane %v2103, 4
      %v2106 = vshll.u32 %v2049, 16
      %v2108 = vrot.slane %v2106, 5
      %v2109 = vsel %vm1228, %v2104, %v2108
      %v2110 = vshrl.u32 %v2049, 16
      %v2112 = vrot.slane %v2110, 4
      %v2113 = vor.u32 %v2112, %v2108
      %v2114 = vrot.slane %v2113, 4
      %v2116 = vshll.u32 %v2080, 16
      %v2118 = vrot.slane %v2116, 5
      %v2119 = vsel %vm1228, %v2114, %v2118
      %v2121 = vshrl.u32 %v2050, 16
      %v2123 = vrot.slane %v2121, 4
      %v2124 = vshll.u32 %v2050, 16
      %v2126 = vrot.slane %v2124, 5
      %v2127 = vor.u32 %v2123, %v2126
      %v2128 = vrot.slane %v2127, 4
      %v2130 = vshll.u32 %v2051, 16
      %v2132 = vrot.slane %v2130, 5
      %v2133 = vsel %vm1228, %v2128, %v2132
      %v2134 = vshrl.u32 %v2051, 16
      %v2136 = vrot.slane %v2134, 4
      %v2137 = vor.u32 %v2136, %v2132
      %v2138 = vrot.slane %v2137, 4
      %v2140 = vshll.u32 %v2081, 16
      %v2142 = vrot.slane %v2140, 5
      %v2143 = vsel %vm1228, %v2138, %v2142
      %v2145 = vshrl.u32 %v2052, 16
      %v2147 = vrot.slane %v2145, 4
      %v2148 = vshll.u32 %v2052, 16
      %v2150 = vrot.slane %v2148, 5
      %v2151 = vor.u32 %v2147, %v2150
      %v2152 = vrot.slane %v2151, 4
      %v2154 = vshll.u32 %v2053, 16
      %v2156 = vrot.slane %v2154, 5
      %v2157 = vsel %vm1228, %v2152, %v2156
      %v2158 = vshrl.u32 %v2053, 16
      %v2160 = vrot.slane %v2158, 4
      %v2161 = vor.u32 %v2160, %v2156
      %v2162 = vrot.slane %v2161, 4
      %v2164 = vshll.u32 %v2082, 16
      %v2166 = vrot.slane %v2164, 5
      %v2167 = vsel %vm1228, %v2162, %v2166
      %v2169 = vshrl.u32 %v2054, 16
      %v2171 = vrot.slane %v2169, 4
      %v2172 = vshll.u32 %v2054, 16
      %v2174 = vrot.slane %v2172, 5
      %v2175 = vor.u32 %v2171, %v2174
      %v2176 = vrot.slane %v2175, 4
      %v2178 = vshll.u32 %v2055, 16
      %v2180 = vrot.slane %v2178, 5
      %v2181 = vsel %vm1228, %v2176, %v2180
      %v2182 = vshrl.u32 %v2055, 16
      %v2184 = vrot.slane %v2182, 4
      %v2185 = vor.u32 %v2184, %v2180
      %v2186 = vrot.slane %v2185, 4
      %v2188 = vshll.u32 %v2083, 16
      %v2190 = vrot.slane %v2188, 5
      %v2191 = vsel %vm1228, %v2186, %v2190
      %v2193 = vshrl.u32 %v2056, 16
      %v2195 = vrot.slane %v2193, 4
      %v2196 = vshll.u32 %v2056, 16
      %v2198 = vrot.slane %v2196, 5
      %v2199 = vor.u32 %v2195, %v2198
      %v2200 = vrot.slane %v2199, 4
      %v2202 = vshll.u32 %v2057, 16
      %v2204 = vrot.slane %v2202, 5
      %v2205 = vsel %vm1228, %v2200, %v2204
      %v2206 = vshrl.u32 %v2057, 16
      %v2208 = vrot.slane %v2206, 4
      %v2209 = vor.u32 %v2208, %v2204
      %v2210 = vrot.slane %v2209, 4
      %v2212 = vshll.u32 %v2084, 16
      %v2214 = vrot.slane %v2212, 5
      %v2215 = vsel %vm1228, %v2210, %v2214
      %v2217 = vshrl.u32 %v2058, 16
      %v2219 = vrot.slane %v2217, 4
      %v2220 = vshll.u32 %v2058, 16
      %v2222 = vrot.slane %v2220, 5
      %v2223 = vor.u32 %v2219, %v2222
      %v2224 = vrot.slane %v2223, 4
      %v2226 = vshll.u32 %v2059, 16
      %v2228 = vrot.slane %v2226, 5
      %v2229 = vsel %vm1228, %v2224, %v2228
      %v2230 = vshrl.u32 %v2059, 16
      %v2232 = vrot.slane %v2230, 4
      %v2233 = vor.u32 %v2232, %v2228
      %v2234 = vrot.slane %v2233, 4
      %v2236 = vshll.u32 %v2085, 16
      %v2238 = vrot.slane %v2236, 5
      %v2239 = vsel %vm1228, %v2234, %v2238
      %v2241 = vshrl.u32 %v2060, 16
      %v2243 = vrot.slane %v2241, 4
      %v2244 = vshll.u32 %v2060, 16
      %v2246 = vrot.slane %v2244, 5
      %v2247 = vor.u32 %v2243, %v2246
      %v2248 = vrot.slane %v2247, 4
      %v2250 = vshll.u32 %v2061, 16
      %v2252 = vrot.slane %v2250, 5
      %v2253 = vsel %vm1228, %v2248, %v2252
      %v2254 = vshrl.u32 %v2061, 16
      %v2256 = vrot.slane %v2254, 4
      %v2257 = vor.u32 %v2256, %v2252
      %v2258 = vrot.slane %v2257, 4
      %v2260 = vshll.u32 %v2086, 16
      %v2262 = vrot.slane %v2260, 5
      %v2263 = vsel %vm1228, %v2258, %v2262
      %v2265 = vshrl.u32 %v2062, 16
      %v2267 = vrot.slane %v2265, 4
      %v2268 = vshll.u32 %v2062, 16
      %v2270 = vrot.slane %v2268, 5
      %v2271 = vor.u32 %v2267, %v2270
      %v2272 = vrot.slane %v2271, 4
      %v2274 = vshll.u32 %v2063, 16
      %v2276 = vrot.slane %v2274, 5
      %v2277 = vsel %vm1228, %v2272, %v2276
      %v2278 = vshrl.u32 %v2063, 16
      %v2280 = vrot.slane %v2278, 4
      %v2281 = vor.u32 %v2280, %v2276
      %v2282 = vrot.slane %v2281, 4
      %v2284 = vshll.u32 %v2087, 16
      %v2286 = vrot.slane %v2284, 5
      %v2287 = vsel %vm1228, %v2282, %v2286
      %v2289 = vshrl.u32 %v2064, 16
      %v2291 = vrot.slane %v2289, 4
      %v2292 = vshll.u32 %v2064, 16
      %v2294 = vrot.slane %v2292, 5
      %v2295 = vor.u32 %v2291, %v2294
      %v2296 = vrot.slane %v2295, 4
      %v2298 = vshll.u32 %v2065, 16
      %v2300 = vrot.slane %v2298, 5
      %v2301 = vsel %vm1228, %v2296, %v2300
      %v2302 = vshrl.u32 %v2065, 16
      %v2304 = vrot.slane %v2302, 4
      %v2305 = vor.u32 %v2304, %v2300
      %v2306 = vrot.slane %v2305, 4
      %v2308 = vshll.u32 %v2088, 16
      %v2310 = vrot.slane %v2308, 5
      %v2311 = vsel %vm1228, %v2306, %v2310
      %v2313 = vshrl.u32 %v2066, 16
      %v2315 = vrot.slane %v2313, 4
      %v2316 = vshll.u32 %v2066, 16
      %v2318 = vrot.slane %v2316, 5
      %v2319 = vor.u32 %v2315, %v2318
      %v2320 = vrot.slane %v2319, 4
      %v2322 = vshll.u32 %v2067, 16
      %v2324 = vrot.slane %v2322, 5
      %v2325 = vsel %vm1228, %v2320, %v2324
      %v2326 = vshrl.u32 %v2067, 16
      %v2328 = vrot.slane %v2326, 4
      %v2329 = vor.u32 %v2328, %v2324
      %v2330 = vrot.slane %v2329, 4
      %v2332 = vshll.u32 %v2089, 16
      %v2334 = vrot.slane %v2332, 5
      %v2335 = vsel %vm1228, %v2330, %v2334
      %v2337 = vshrl.u32 %v2068, 16
      %v2339 = vrot.slane %v2337, 4
      %v2340 = vshll.u32 %v2068, 16
      %v2342 = vrot.slane %v2340, 5
      %v2343 = vor.u32 %v2339, %v2342
      %v2344 = vrot.slane %v2343, 4
      %v2346 = vshll.u32 %v2069, 16
      %v2348 = vrot.slane %v2346, 5
      %v2349 = vsel %vm1228, %v2344, %v2348
      %v2350 = vshrl.u32 %v2069, 16
      %v2352 = vrot.slane %v2350, 4
      %v2353 = vor.u32 %v2352, %v2348
      %v2354 = vrot.slane %v2353, 4
      %v2356 = vshll.u32 %v2090, 16
      %v2358 = vrot.slane %v2356, 5
      %v2359 = vsel %vm1228, %v2354, %v2358
      %v2361 = vshrl.u32 %v2070, 16
      %v2363 = vrot.slane %v2361, 4
      %v2364 = vshll.u32 %v2070, 16
      %v2366 = vrot.slane %v2364, 5
      %v2367 = vor.u32 %v2363, %v2366
      %v2368 = vrot.slane %v2367, 4
      %v2370 = vshll.u32 %v2071, 16
      %v2372 = vrot.slane %v2370, 5
      %v2373 = vsel %vm1228, %v2368, %v2372
      %v2374 = vshrl.u32 %v2071, 16
      %v2376 = vrot.slane %v2374, 4
      %v2377 = vor.u32 %v2376, %v2372
      %v2378 = vrot.slane %v2377, 4
      %v2380 = vshll.u32 %v2091, 16
      %v2382 = vrot.slane %v2380, 5
      %v2383 = vsel %vm1228, %v2378, %v2382
      %v2385 = vshrl.u32 %v2072, 16
      %v2387 = vrot.slane %v2385, 4
      %v2388 = vshll.u32 %v2072, 16
      %v2390 = vrot.slane %v2388, 5
      %v2391 = vor.u32 %v2387, %v2390
      %v2392 = vrot.slane %v2391, 4
      %v2394 = vshll.u32 %v2073, 16
      %v2396 = vrot.slane %v2394, 5
      %v2397 = vsel %vm1228, %v2392, %v2396
      %v2398 = vshrl.u32 %v2073, 16
      %v2400 = vrot.slane %v2398, 4
      %v2401 = vor.u32 %v2400, %v2396
      %v2402 = vrot.slane %v2401, 4
      %v2404 = vshll.u32 %v2092, 16
      %v2406 = vrot.slane %v2404, 5
      %v2407 = vsel %vm1228, %v2402, %v2406
      %v2409 = vshrl.u32 %v2074, 16
      %v2411 = vrot.slane %v2409, 4
      %v2412 = vshll.u32 %v2074, 16
      %v2414 = vrot.slane %v2412, 5
      %v2415 = vor.u32 %v2411, %v2414
      %v2416 = vrot.slane %v2415, 4
      %v2418 = vshll.u32 %v2075, 16
      %v2420 = vrot.slane %v2418, 5
      %v2421 = vsel %vm1228, %v2416, %v2420
      %v2422 = vshrl.u32 %v2075, 16
      %v2424 = vrot.slane %v2422, 4
      %v2425 = vor.u32 %v2424, %v2420
      %v2426 = vrot.slane %v2425, 4
      %v2428 = vshll.u32 %v2093, 16
      %v2430 = vrot.slane %v2428, 5
      %v2431 = vsel %vm1228, %v2426, %v2430
      %v2433 = vshrl.u32 %v2076, 16
      %v2435 = vrot.slane %v2433, 4
      %v2436 = vshll.u32 %v2076, 16
      %v2438 = vrot.slane %v2436, 5
      %v2439 = vor.u32 %v2435, %v2438
      %v2440 = vrot.slane %v2439, 4
      %v2442 = vshll.u32 %v2077, 16
      %v2444 = vrot.slane %v2442, 5
      %v2445 = vsel %vm1228, %v2440, %v2444
      %v2446 = vshrl.u32 %v2077, 16
      %v2448 = vrot.slane %v2446, 4
      %v2449 = vor.u32 %v2448, %v2444
      %v2450 = vrot.slane %v2449, 4
      %v2452 = vshll.u32 %v2094, 16
      %v2454 = vrot.slane %v2452, 5
      %v2455 = vsel %vm1228, %v2450, %v2454
      %v2457 = vshrl.u32 %v2078, 16
      %v2459 = vrot.slane %v2457, 4
      %v2460 = vshll.u32 %v2078, 16
      %v2462 = vrot.slane %v2460, 5
      %v2463 = vor.u32 %v2459, %v2462
      %v2464 = vrot.slane %v2463, 4
      %v2466 = vshll.u32 %v2079, 16
      %v2468 = vrot.slane %v2466, 5
      %v2469 = vsel %vm1228, %v2464, %v2468
      %v2470 = vshrl.u32 %v2079, 16
      %v2472 = vrot.slane %v2470, 4
      %v2473 = vor.u32 %v2472, %v2468
      %v2474 = vrot.slane %v2473, 4
      %v2476 = vshll.u32 %v2095, 16
      %v2478 = vrot.slane %v2476, 5
      %v2479 = vsel %vm1228, %v2474, %v2478
      %v2480 = vld [vmem:[%s544] sm:$0xe]
      %v2481 = vld [vmem:[%s544 + $0xc] sm:$0xe]
      %v2482 = vld [vmem:[%s544 + $0x18] sm:$0xe]
      %v2483 = vld [vmem:[%s544 + $0x24] sm:$0xe]
      %v2484 = vld [vmem:[%s544 + $0x30] sm:$0xe]
      %v2485 = vld [vmem:[%s544 + $0x3c] sm:$0xe]
      %v2486 = vld [vmem:[%s544 + $0x48] sm:$0xe]
      %v2487 = vld [vmem:[%s544 + $0x54] sm:$0xe]
      %v2488 = vld [vmem:[%s544 + $0x60] sm:$0xe]
      %v2489 = vld [vmem:[%s544 + $0x6c] sm:$0xe]
      %v2490 = vld [vmem:[%s544 + $0x78] sm:$0xe]
      %v2491 = vld [vmem:[%s544 + $0x84] sm:$0xe]
      %v2492 = vld [vmem:[%s544 + $0x90] sm:$0xe]
      %v2493 = vld [vmem:[%s544 + $0x9c] sm:$0xe]
      %v2494 = vld [vmem:[%s544 + $0xa8] sm:$0xe]
      %v2495 = vld [vmem:[%s544 + $0xb4] sm:$0xe]
      %v2544 = vrot.slane %v2480, 5
      %v2545 = vrot.slane %v2544, 4
      %v2546 = vrot.slane %v2049, 5
      %v2547 = vsel %vm1679, %v2545, %v2546
      %v2548 = vrot.slane %v2546, 4
      %v2549 = vrot.slane %v2080, 5
      %v2550 = vsel %vm1679, %v2548, %v2549
      %v2551 = vrot.slane %v2481, 5
      %v2552 = vrot.slane %v2551, 4
      %v2553 = vrot.slane %v2051, 5
      %v2554 = vsel %vm1679, %v2552, %v2553
      %v2555 = vrot.slane %v2553, 4
      %v2556 = vrot.slane %v2081, 5
      %v2557 = vsel %vm1679, %v2555, %v2556
      %v2558 = vrot.slane %v2482, 5
      %v2559 = vrot.slane %v2558, 4
      %v2560 = vrot.slane %v2053, 5
      %v2561 = vsel %vm1679, %v2559, %v2560
      %v2562 = vrot.slane %v2560, 4
      %v2563 = vrot.slane %v2082, 5
      %v2564 = vsel %vm1679, %v2562, %v2563
      %v2565 = vrot.slane %v2483, 5
      %v2566 = vrot.slane %v2565, 4
      %v2567 = vrot.slane %v2055, 5
      %v2568 = vsel %vm1679, %v2566, %v2567
      %v2569 = vrot.slane %v2567, 4
      %v2570 = vrot.slane %v2083, 5
      %v2571 = vsel %vm1679, %v2569, %v2570
      %v2572 = vrot.slane %v2484, 5
      %v2573 = vrot.slane %v2572, 4
      %v2574 = vrot.slane %v2057, 5
      %v2575 = vsel %vm1679, %v2573, %v2574
      %v2576 = vrot.slane %v2574, 4
      %v2577 = vrot.slane %v2084, 5
      %v2578 = vsel %vm1679, %v2576, %v2577
      %v2579 = vrot.slane %v2485, 5
      %v2580 = vrot.slane %v2579, 4
      %v2581 = vrot.slane %v2059, 5
      %v2582 = vsel %vm1679, %v2580, %v2581
      %v2583 = vrot.slane %v2581, 4
      %v2584 = vrot.slane %v2085, 5
      %v2585 = vsel %vm1679, %v2583, %v2584
      %v2586 = vrot.slane %v2486, 5
      %v2587 = vrot.slane %v2586, 4
      %v2588 = vrot.slane %v2061, 5
      %v2589 = vsel %vm1679, %v2587, %v2588
      %v2590 = vrot.slane %v2588, 4
      %v2591 = vrot.slane %v2086, 5
      %v2592 = vsel %vm1679, %v2590, %v2591
      %v2593 = vrot.slane %v2487, 5
      %v2594 = vrot.slane %v2593, 4
      %v2595 = vrot.slane %v2063, 5
      %v2596 = vsel %vm1679, %v2594, %v2595
      %v2597 = vrot.slane %v2595, 4
      %v2598 = vrot.slane %v2087, 5
      %v2599 = vsel %vm1679, %v2597, %v2598
      %v2600 = vrot.slane %v2488, 5
      %v2601 = vrot.slane %v2600, 4
      %v2602 = vrot.slane %v2065, 5
      %v2603 = vsel %vm1679, %v2601, %v2602
      %v2604 = vrot.slane %v2602, 4
      %v2605 = vrot.slane %v2088, 5
      %v2606 = vsel %vm1679, %v2604, %v2605
      %v2607 = vrot.slane %v2489, 5
      %v2608 = vrot.slane %v2607, 4
      %v2609 = vrot.slane %v2067, 5
      %v2610 = vsel %vm1679, %v2608, %v2609
      %v2611 = vrot.slane %v2609, 4
      %v2612 = vrot.slane %v2089, 5
      %v2613 = vsel %vm1679, %v2611, %v2612
      %v2614 = vrot.slane %v2490, 5
      %v2615 = vrot.slane %v2614, 4
      %v2616 = vrot.slane %v2069, 5
      %v2617 = vsel %vm1679, %v2615, %v2616
      %v2618 = vrot.slane %v2616, 4
      %v2619 = vrot.slane %v2090, 5
      %v2620 = vsel %vm1679, %v2618, %v2619
      %v2621 = vrot.slane %v2491, 5
      %v2622 = vrot.slane %v2621, 4
      %v2623 = vrot.slane %v2071, 5
      %v2624 = vsel %vm1679, %v2622, %v2623
      %v2625 = vrot.slane %v2623, 4
      %v2626 = vrot.slane %v2091, 5
      %v2627 = vsel %vm1679, %v2625, %v2626
      %v2628 = vrot.slane %v2492, 5
      %v2629 = vrot.slane %v2628, 4
      %v2630 = vrot.slane %v2073, 5
      %v2631 = vsel %vm1679, %v2629, %v2630
      %v2632 = vrot.slane %v2630, 4
      %v2633 = vrot.slane %v2092, 5
      %v2634 = vsel %vm1679, %v2632, %v2633
      %v2635 = vrot.slane %v2493, 5
      %v2636 = vrot.slane %v2635, 4
      %v2637 = vrot.slane %v2075, 5
      %v2638 = vsel %vm1679, %v2636, %v2637
      %v2639 = vrot.slane %v2637, 4
      %v2640 = vrot.slane %v2093, 5
      %v2641 = vsel %vm1679, %v2639, %v2640
      %v2642 = vrot.slane %v2494, 5
      %v2643 = vrot.slane %v2642, 4
      %v2644 = vrot.slane %v2077, 5
      %v2645 = vsel %vm1679, %v2643, %v2644
      %v2646 = vrot.slane %v2644, 4
      %v2647 = vrot.slane %v2094, 5
      %v2648 = vsel %vm1679, %v2646, %v2647
      %v2649 = vrot.slane %v2495, 5
      %v2650 = vrot.slane %v2649, 4
      %v2651 = vrot.slane %v2079, 5
      %v2652 = vsel %vm1679, %v2650, %v2651
      %v2653 = vrot.slane %v2651, 4
      %v2654 = vrot.slane %v2095, 5
      %v2655 = vsel %vm1679, %v2653, %v2654
      %v2672 = vunpack.c.l.b16 %v2048
      %v2673 = vunpack.c.l.b16 %v2049
      %v2674 = vunpack.c.l.b16 %v2050
      %v2675 = vunpack.c.l.b16 %v2051
      %v2676 = vunpack.c.l.b16 %v2052
      %v2677 = vunpack.c.l.b16 %v2053
      %v2678 = vunpack.c.l.b16 %v2054
      %v2679 = vunpack.c.l.b16 %v2055
      %v2680 = vunpack.c.l.b16 %v2056
      %v2681 = vunpack.c.l.b16 %v2057
      %v2682 = vunpack.c.l.b16 %v2058
      %v2683 = vunpack.c.l.b16 %v2059
      %v2684 = vunpack.c.l.b16 %v2060
      %v2685 = vunpack.c.l.b16 %v2061
      %v2686 = vunpack.c.l.b16 %v2062
      %v2687 = vunpack.c.l.b16 %v2063
      %v2688 = vunpack.c.l.b16 %v2064
      %v2689 = vunpack.c.l.b16 %v2065
      %v2690 = vunpack.c.l.b16 %v2066
      %v2691 = vunpack.c.l.b16 %v2067
      %v2692 = vunpack.c.l.b16 %v2068
      %v2693 = vunpack.c.l.b16 %v2069
      %v2694 = vunpack.c.l.b16 %v2070
      %v2695 = vunpack.c.l.b16 %v2071
      %v2696 = vunpack.c.l.b16 %v2072
      %v2697 = vunpack.c.l.b16 %v2073
      %v2698 = vunpack.c.l.b16 %v2074
      %v2699 = vunpack.c.l.b16 %v2075
      %v2700 = vunpack.c.l.b16 %v2076
      %v2701 = vunpack.c.l.b16 %v2077
      %v2702 = vunpack.c.l.b16 %v2078
      %v2703 = vunpack.c.l.b16 %v2079
      %v2704 = vpack.c.b16 %v2673, %v2672
      %v2705 = vpack.c.b16 %v2675, %v2674
      %v2706 = vpack.c.b16 %v2677, %v2676
      %v2707 = vpack.c.b16 %v2679, %v2678
      %v2708 = vpack.c.b16 %v2681, %v2680
      %v2709 = vpack.c.b16 %v2683, %v2682
      %v2710 = vpack.c.b16 %v2685, %v2684
      %v2711 = vpack.c.b16 %v2687, %v2686
      %v2712 = vpack.c.b16 %v2689, %v2688
      %v2713 = vpack.c.b16 %v2691, %v2690
      %v2714 = vpack.c.b16 %v2693, %v2692
      %v2715 = vpack.c.b16 %v2695, %v2694
      %v2716 = vpack.c.b16 %v2697, %v2696
      %v2717 = vpack.c.b16 %v2699, %v2698
      %v2718 = vpack.c.b16 %v2701, %v2700
      %v2719 = vpack.c.b16 %v2703, %v2702
      %v2736 = vunpack.c.l.b16 %v2109
      %v2737 = vunpack.c.l.b16 %v2119
      %v2738 = vunpack.c.l.b16 %v2133
      %v2739 = vunpack.c.l.b16 %v2143
      %v2740 = vunpack.c.l.b16 %v2157
      %v2741 = vunpack.c.l.b16 %v2167
      %v2742 = vunpack.c.l.b16 %v2181
      %v2743 = vunpack.c.l.b16 %v2191
      %v2744 = vunpack.c.l.b16 %v2205
      %v2745 = vunpack.c.l.b16 %v2215
      %v2746 = vunpack.c.l.b16 %v2229
      %v2747 = vunpack.c.l.b16 %v2239
      %v2748 = vunpack.c.l.b16 %v2253
      %v2749 = vunpack.c.l.b16 %v2263
      %v2750 = vunpack.c.l.b16 %v2277
      %v2751 = vunpack.c.l.b16 %v2287
      %v2752 = vunpack.c.l.b16 %v2301
      %v2753 = vunpack.c.l.b16 %v2311
      %v2754 = vunpack.c.l.b16 %v2325
      %v2755 = vunpack.c.l.b16 %v2335
      %v2756 = vunpack.c.l.b16 %v2349
      %v2757 = vunpack.c.l.b16 %v2359
      %v2758 = vunpack.c.l.b16 %v2373
      %v2759 = vunpack.c.l.b16 %v2383
      %v2760 = vunpack.c.l.b16 %v2397
      %v2761 = vunpack.c.l.b16 %v2407
      %v2762 = vunpack.c.l.b16 %v2421
      %v2763 = vunpack.c.l.b16 %v2431
      %v2764 = vunpack.c.l.b16 %v2445
      %v2765 = vunpack.c.l.b16 %v2455
      %v2766 = vunpack.c.l.b16 %v2469
      %v2767 = vunpack.c.l.b16 %v2479
      %v2768 = vpack.c.b16 %v2737, %v2736
      %v2769 = vpack.c.b16 %v2739, %v2738
      %v2770 = vpack.c.b16 %v2741, %v2740
      %v2771 = vpack.c.b16 %v2743, %v2742
      %v2772 = vpack.c.b16 %v2745, %v2744
      %v2773 = vpack.c.b16 %v2747, %v2746
      %v2774 = vpack.c.b16 %v2749, %v2748
      %v2775 = vpack.c.b16 %v2751, %v2750
      %v2776 = vpack.c.b16 %v2753, %v2752
      %v2777 = vpack.c.b16 %v2755, %v2754
      %v2778 = vpack.c.b16 %v2757, %v2756
      %v2779 = vpack.c.b16 %v2759, %v2758
      %v2780 = vpack.c.b16 %v2761, %v2760
      %v2781 = vpack.c.b16 %v2763, %v2762
      %v2782 = vpack.c.b16 %v2765, %v2764
      %v2783 = vpack.c.b16 %v2767, %v2766
      %v2800 = vunpack.c.l.b16 %v2547
      %v2801 = vunpack.c.l.b16 %v2550
      %v2802 = vunpack.c.l.b16 %v2554
      %v2803 = vunpack.c.l.b16 %v2557
      %v2804 = vunpack.c.l.b16 %v2561
      %v2805 = vunpack.c.l.b16 %v2564
      %v2806 = vunpack.c.l.b16 %v2568
      %v2807 = vunpack.c.l.b16 %v2571
      %v2808 = vunpack.c.l.b16 %v2575
      %v2809 = vunpack.c.l.b16 %v2578
      %v2810 = vunpack.c.l.b16 %v2582
      %v2811 = vunpack.c.l.b16 %v2585
      %v2812 = vunpack.c.l.b16 %v2589
      %v2813 = vunpack.c.l.b16 %v2592
      %v2814 = vunpack.c.l.b16 %v2596
      %v2815 = vunpack.c.l.b16 %v2599
      %v2816 = vunpack.c.l.b16 %v2603
      %v2817 = vunpack.c.l.b16 %v2606
      %v2818 = vunpack.c.l.b16 %v2610
      %v2819 = vunpack.c.l.b16 %v2613
      %v2820 = vunpack.c.l.b16 %v2617
      %v2821 = vunpack.c.l.b16 %v2620
      %v2822 = vunpack.c.l.b16 %v2624
      %v2823 = vunpack.c.l.b16 %v2627
      %v2824 = vunpack.c.l.b16 %v2631
      %v2825 = vunpack.c.l.b16 %v2634
      %v2826 = vunpack.c.l.b16 %v2638
      %v2827 = vunpack.c.l.b16 %v2641
      %v2828 = vunpack.c.l.b16 %v2645
      %v2829 = vunpack.c.l.b16 %v2648
      %v2830 = vunpack.c.l.b16 %v2652
      %v2831 = vunpack.c.l.b16 %v2655
      %v2832 = vpack.c.b16 %v2801, %v2800
      %v2833 = vpack.c.b16 %v2803, %v2802
      %v2834 = vpack.c.b16 %v2805, %v2804
      %v2835 = vpack.c.b16 %v2807, %v2806
      %v2836 = vpack.c.b16 %v2809, %v2808
      %v2837 = vpack.c.b16 %v2811, %v2810
      %v2838 = vpack.c.b16 %v2813, %v2812
      %v2839 = vpack.c.b16 %v2815, %v2814
      %v2840 = vpack.c.b16 %v2817, %v2816
      %v2841 = vpack.c.b16 %v2819, %v2818
      %v2842 = vpack.c.b16 %v2821, %v2820
      %v2843 = vpack.c.b16 %v2823, %v2822
      %v2844 = vpack.c.b16 %v2825, %v2824
      %v2845 = vpack.c.b16 %v2827, %v2826
      %v2846 = vpack.c.b16 %v2829, %v2828
      %v2847 = vpack.c.b16 %v2831, %v2830
      %s2864 = scalar_lea.vmem %s4, 192
      %v2865 = vld [vmem:[%s2864] sm:$0xf]
      %v2866 = vld [vmem:[%s2864 + $0x4] sm:$0xf]
      %v2867 = vld [vmem:[%s2864 + $0x8] sm:$0xf]
      %v2868 = vld [vmem:[%s2864 + $0xc] sm:$0xf]
      %v2869 = vld [vmem:[%s2864 + $0x10] sm:$0xf]
      %v2870 = vld [vmem:[%s2864 + $0x14] sm:$0xf]
      %v2871 = vld [vmem:[%s2864 + $0x18] sm:$0xf]
      %v2872 = vld [vmem:[%s2864 + $0x1c] sm:$0xf]
      %v2873 = vld [vmem:[%s2864 + $0x20] sm:$0xf]
      %v2874 = vld [vmem:[%s2864 + $0x24] sm:$0xf]
      %v2875 = vld [vmem:[%s2864 + $0x28] sm:$0xf]
      %v2876 = vld [vmem:[%s2864 + $0x2c] sm:$0xf]
      %v2877 = vld [vmem:[%s2864 + $0x30] sm:$0xf]
      %v2878 = vld [vmem:[%s2864 + $0x34] sm:$0xf]
      %v2879 = vld [vmem:[%s2864 + $0x38] sm:$0xf]
      %v2880 = vld [vmem:[%s2864 + $0x3c] sm:$0xf]
      %v2881 = vld [vmem:[%s2864 + $0x40] sm:$0xf]
      %v2882 = vld [vmem:[%s2864 + $0x44] sm:$0xf]
      %v2883 = vld [vmem:[%s2864 + $0x48] sm:$0xf]
      %v2884 = vld [vmem:[%s2864 + $0x4c] sm:$0xf]
      %v2885 = vld [vmem:[%s2864 + $0x50] sm:$0xf]
      %v2886 = vld [vmem:[%s2864 + $0x54] sm:$0xf]
      %v2887 = vld [vmem:[%s2864 + $0x58] sm:$0xf]
      %v2888 = vld [vmem:[%s2864 + $0x5c] sm:$0xf]
      %v2889 = vld [vmem:[%s2864 + $0x60] sm:$0xf]
      %v2890 = vld [vmem:[%s2864 + $0x64] sm:$0xf]
      %v2891 = vld [vmem:[%s2864 + $0x68] sm:$0xf]
      %v2892 = vld [vmem:[%s2864 + $0x6c] sm:$0xf]
      %v2893 = vld [vmem:[%s2864 + $0x70] sm:$0xf]
      %v2894 = vld [vmem:[%s2864 + $0x74] sm:$0xf]
      %v2895 = vld [vmem:[%s2864 + $0x78] sm:$0xf]
      %v2896 = vld [vmem:[%s2864 + $0x7c] sm:$0xf]
      %v2897 = vld [vmem:[%s2864 + $0x80] sm:$0xf]
      %v2898 = vld [vmem:[%s2864 + $0x84] sm:$0xf]
      %v2899 = vld [vmem:[%s2864 + $0x88] sm:$0xf]
      %v2900 = vld [vmem:[%s2864 + $0x8c] sm:$0xf]
      %v2901 = vld [vmem:[%s2864 + $0x90] sm:$0xf]
      %v2902 = vld [vmem:[%s2864 + $0x94] sm:$0xf]
      %v2903 = vld [vmem:[%s2864 + $0x98] sm:$0xf]
      %v2904 = vld [vmem:[%s2864 + $0x9c] sm:$0xf]
      %v2905 = vld [vmem:[%s2864 + $0xa0] sm:$0xf]
      %v2906 = vld [vmem:[%s2864 + $0xa4] sm:$0xf]
      %v2907 = vld [vmem:[%s2864 + $0xa8] sm:$0xf]
      %v2908 = vld [vmem:[%s2864 + $0xac] sm:$0xf]
      %v2909 = vld [vmem:[%s2864 + $0xb0] sm:$0xf]
      %v2910 = vld [vmem:[%s2864 + $0xb4] sm:$0xf]
      %v2911 = vld [vmem:[%s2864 + $0xb8] sm:$0xf]
      %v2912 = vld [vmem:[%s2864 + $0xbc] sm:$0xf]
      %v2961 = vunpack.c.l.b16 %v2865
      %v2962 = vunpack.c.l.b16 %v2866
      %v2963 = vunpack.c.l.b16 %v2867
      %v2964 = vunpack.c.l.b16 %v2868
      %v2965 = vunpack.c.l.b16 %v2869
      %v2966 = vunpack.c.l.b16 %v2870
      %v2967 = vunpack.c.l.b16 %v2871
      %v2968 = vunpack.c.l.b16 %v2872
      %v2969 = vunpack.c.l.b16 %v2873
      %v2970 = vunpack.c.l.b16 %v2874
      %v2971 = vunpack.c.l.b16 %v2875
      %v2972 = vunpack.c.l.b16 %v2876
      %v2973 = vunpack.c.l.b16 %v2877
      %v2974 = vunpack.c.l.b16 %v2878
      %v2975 = vunpack.c.l.b16 %v2879
      %v2976 = vunpack.c.l.b16 %v2880
      %v2977 = vunpack.c.l.b16 %v2881
      %v2978 = vunpack.c.l.b16 %v2882
      %v2979 = vunpack.c.l.b16 %v2883
      %v2980 = vunpack.c.l.b16 %v2884
      %v2981 = vunpack.c.l.b16 %v2885
      %v2982 = vunpack.c.l.b16 %v2886
      %v2983 = vunpack.c.l.b16 %v2887
      %v2984 = vunpack.c.l.b16 %v2888
      %v2985 = vunpack.c.l.b16 %v2889
      %v2986 = vunpack.c.l.b16 %v2890
      %v2987 = vunpack.c.l.b16 %v2891
      %v2988 = vunpack.c.l.b16 %v2892
      %v2989 = vunpack.c.l.b16 %v2893
      %v2990 = vunpack.c.l.b16 %v2894
      %v2991 = vunpack.c.l.b16 %v2895
      %v2992 = vunpack.c.l.b16 %v2896
      %v2993 = vunpack.c.l.b16 %v2897
      %v2994 = vunpack.c.l.b16 %v2898
      %v2995 = vunpack.c.l.b16 %v2899
      %v2996 = vunpack.c.l.b16 %v2900
      %v2997 = vunpack.c.l.b16 %v2901
      %v2998 = vunpack.c.l.b16 %v2902
      %v2999 = vunpack.c.l.b16 %v2903
      %v3000 = vunpack.c.l.b16 %v2904
      %v3001 = vunpack.c.l.b16 %v2905
      %v3002 = vunpack.c.l.b16 %v2906
      %v3003 = vunpack.c.l.b16 %v2907
      %v3004 = vunpack.c.l.b16 %v2908
      %v3005 = vunpack.c.l.b16 %v2909
      %v3006 = vunpack.c.l.b16 %v2910
      %v3007 = vunpack.c.l.b16 %v2911
      %v3008 = vunpack.c.l.b16 %v2912
      %v3009 = vpack.c.b16 %v2962, %v2961
      %v3010 = vpack.c.b16 %v2964, %v2963
      %v3011 = vpack.c.b16 %v2966, %v2965
      %v3012 = vpack.c.b16 %v2968, %v2967
      %v3013 = vpack.c.b16 %v2970, %v2969
      %v3014 = vpack.c.b16 %v2972, %v2971
      %v3015 = vpack.c.b16 %v2974, %v2973
      %v3016 = vpack.c.b16 %v2976, %v2975
      %v3017 = vpack.c.b16 %v2978, %v2977
      %v3018 = vpack.c.b16 %v2980, %v2979
      %v3019 = vpack.c.b16 %v2982, %v2981
      %v3020 = vpack.c.b16 %v2984, %v2983
      %v3021 = vpack.c.b16 %v2986, %v2985
      %v3022 = vpack.c.b16 %v2988, %v2987
      %v3023 = vpack.c.b16 %v2990, %v2989
      %v3024 = vpack.c.b16 %v2992, %v2991
      %v3025 = vpack.c.b16 %v2994, %v2993
      %v3026 = vpack.c.b16 %v2996, %v2995
      %v3027 = vpack.c.b16 %v2998, %v2997
      %v3028 = vpack.c.b16 %v3000, %v2999
      %v3029 = vpack.c.b16 %v3002, %v3001
      %v3030 = vpack.c.b16 %v3004, %v3003
      %v3031 = vpack.c.b16 %v3006, %v3005
      %v3032 = vpack.c.b16 %v3008, %v3007
      %3057 = vmatprep.subr.bf16.mxu0 0
      %3058 = vmatpush1.bf16.msra.mxu0 %v3009
      %3059 = vmatprep.subr.bf16.mxu0 0
      %3060 = vmatpush1.bf16.msra.mxu0 %v3010
      %3061 = vmatprep.subr.bf16.mxu0 0
      %3062 = vmatpush1.bf16.msra.mxu0 %v3011
      %3063 = vmatprep.subr.bf16.mxu0 0
      %3064 = vmatpush1.bf16.msra.mxu0 %v3012
      %3065 = vmatprep.subr.bf16.mxu0 0
      %3066 = vmatpush1.bf16.msra.mxu0 %v3013
      %3067 = vmatprep.subr.bf16.mxu0 0
      %3068 = vmatpush1.bf16.msra.mxu0 %v3014
      %3069 = vmatprep.subr.bf16.mxu0 0
      %3070 = vmatpush1.bf16.msra.mxu0 %v3015
      %3071 = vmatprep.subr.bf16.mxu0 0
      %3072 = vmatpush1.bf16.msra.mxu0 %v3016
      %3073 = vmatprep.subr.bf16.mxu0 0
      %3074 = vmatpush1.bf16.msra.mxu0 %v3017
      %3075 = vmatprep.subr.bf16.mxu0 0
      %3076 = vmatpush1.bf16.msra.mxu0 %v3018
      %3077 = vmatprep.subr.bf16.mxu0 0
      %3078 = vmatpush1.bf16.msra.mxu0 %v3019
      %3079 = vmatprep.subr.bf16.mxu0 0
      %3080 = vmatpush1.bf16.msra.mxu0 %v3020
      %3081 = vmatprep.subr.bf16.mxu0 0
      %3082 = vmatpush1.bf16.msra.mxu0 %v3021
      %3083 = vmatprep.subr.bf16.mxu0 0
      %3084 = vmatpush1.bf16.msra.mxu0 %v3022
      %3085 = vmatprep.subr.bf16.mxu0 0
      %3086 = vmatpush1.bf16.msra.mxu0 %v3023
      %3087 = vmatprep.subr.bf16.mxu0 0
      %3088 = vmatpush1.bf16.msra.mxu0 %v3024
      %3089 = vmatprep.mubr.bf16.mxu0 %v2768
      %3090 = vmatmul.mubr.bf16.gmra.mrb[0].mxu0 %v2704
      %v3091 = vpop.f32.mrb[0].mxu0
      %v3092 = vadd.f32 0.0, %v3091
      %v3093 = vpop.f32.mrb[0].mxu0
      %v3094 = vpop.f32.mrb[0].mxu0
      %v3095 = vadd.f32 0.0, %v3094
      %v3096 = vpop.f32.mrb[0].mxu0
      %3097 = vmatprep.mubr.bf16.mxu0 %v2769
      %3098 = vmatmul.mubr.bf16.gmra.mrb[0].mxu0 %v2705
      %v3099 = vpop.f32.mrb[0].mxu0
      %v3100 = vadd.f32 0.0, %v3099
      %v3101 = vpop.f32.mrb[0].mxu0
      %v3102 = vpop.f32.mrb[0].mxu0
      %v3103 = vadd.f32 0.0, %v3102
      %v3104 = vpop.f32.mrb[0].mxu0
      %3105 = vmatprep.mubr.bf16.mxu0 %v2770
      %3106 = vmatmul.mubr.bf16.gmra.mrb[0].mxu0 %v2706
      %v3107 = vpop.f32.mrb[0].mxu0
      %v3108 = vadd.f32 0.0, %v3107
      %v3109 = vpop.f32.mrb[0].mxu0
      %v3110 = vpop.f32.mrb[0].mxu0
      %v3111 = vadd.f32 0.0, %v3110
      %v3112 = vpop.f32.mrb[0].mxu0
      %3113 = vmatprep.mubr.bf16.mxu0 %v2771
      %3114 = vmatmul.mubr.bf16.gmra.mrb[0].mxu0 %v2707
      %v3115 = vpop.f32.mrb[0].mxu0
      %v3116 = vadd.f32 0.0, %v3115
      %v3117 = vpop.f32.mrb[0].mxu0
      %v3118 = vpop.f32.mrb[0].mxu0
      %v3119 = vadd.f32 0.0, %v3118
      %v3120 = vpop.f32.mrb[0].mxu0
      %3121 = vmatprep.mubr.bf16.mxu0 %v2772
      %3122 = vmatmul.mubr.bf16.gmra.mrb[0].mxu0 %v2708
      %v3123 = vpop.f32.mrb[0].mxu0
      %v3124 = vadd.f32 0.0, %v3123
      %v3125 = vpop.f32.mrb[0].mxu0
      %v3126 = vpop.f32.mrb[0].mxu0
      %v3127 = vadd.f32 0.0, %v3126
      %v3128 = vpop.f32.mrb[0].mxu0
      %3129 = vmatprep.mubr.bf16.mxu0 %v2773
      %3130 = vmatmul.mubr.bf16.gmra.mrb[0].mxu0 %v2709
      %v3131 = vpop.f32.mrb[0].mxu0
      %v3132 = vadd.f32 0.0, %v3131
      %v3133 = vpop.f32.mrb[0].mxu0
      %v3134 = vpop.f32.mrb[0].mxu0
      %v3135 = vadd.f32 0.0, %v3134
      %v3136 = vpop.f32.mrb[0].mxu0
      %3137 = vmatprep.mubr.bf16.mxu0 %v2774
      %3138 = vmatmul.mubr.bf16.gmra.mrb[0].mxu0 %v2710
      %v3139 = vpop.f32.mrb[0].mxu0
      %v3140 = vadd.f32 0.0, %v3139
      %v3141 = vpop.f32.mrb[0].mxu0
      %v3142 = vpop.f32.mrb[0].mxu0
      %v3143 = vadd.f32 0.0, %v3142
      %v3144 = vpop.f32.mrb[0].mxu0
      %3145 = vmatprep.mubr.bf16.mxu0 %v2775
      %3146 = vmatmul.mubr.bf16.gmra.mrb[0].mxu0 %v2711
      %v3147 = vpop.f32.mrb[0].mxu0
      %v3148 = vadd.f32 0.0, %v3147
      %v3149 = vpop.f32.mrb[0].mxu0
      %v3150 = vpop.f32.mrb[0].mxu0
      %v3151 = vadd.f32 0.0, %v3150
      %v3152 = vpop.f32.mrb[0].mxu0
      %3153 = vmatprep.mubr.bf16.mxu0 %v2776
      %3154 = vmatmul.mubr.bf16.gmra.mrb[0].mxu0 %v2712
      %v3155 = vpop.f32.mrb[0].mxu0
      %v3156 = vadd.f32 0.0, %v3155
      %v3157 = vpop.f32.mrb[0].mxu0
      %v3158 = vpop.f32.mrb[0].mxu0
      %v3159 = vadd.f32 0.0, %v3158
      %v3160 = vpop.f32.mrb[0].mxu0
      %3161 = vmatprep.mubr.bf16.mxu0 %v2777
      %3162 = vmatmul.mubr.bf16.gmra.mrb[0].mxu0 %v2713
      %v3163 = vpop.f32.mrb[0].mxu0
      %v3164 = vadd.f32 0.0, %v3163
      %v3165 = vpop.f32.mrb[0].mxu0
      %v3166 = vpop.f32.mrb[0].mxu0
      %v3167 = vadd.f32 0.0, %v3166
      %v3168 = vpop.f32.mrb[0].mxu0
      %3169 = vmatprep.mubr.bf16.mxu0 %v2778
      %3170 = vmatmul.mubr.bf16.gmra.mrb[0].mxu0 %v2714
      %v3171 = vpop.f32.mrb[0].mxu0
      %v3172 = vadd.f32 0.0, %v3171
      %v3173 = vpop.f32.mrb[0].mxu0
      %v3174 = vpop.f32.mrb[0].mxu0
      %v3175 = vadd.f32 0.0, %v3174
      %v3176 = vpop.f32.mrb[0].mxu0
      %3177 = vmatprep.mubr.bf16.mxu0 %v2779
      %3178 = vmatmul.mubr.bf16.gmra.mrb[0].mxu0 %v2715
      %v3179 = vpop.f32.mrb[0].mxu0
      %v3180 = vadd.f32 0.0, %v3179
      %v3181 = vpop.f32.mrb[0].mxu0
      %v3182 = vpop.f32.mrb[0].mxu0
      %v3183 = vadd.f32 0.0, %v3182
      %v3184 = vpop.f32.mrb[0].mxu0
      %3185 = vmatprep.mubr.bf16.mxu0 %v2780
      %3186 = vmatmul.mubr.bf16.gmra.mrb[0].mxu0 %v2716
      %v3187 = vpop.f32.mrb[0].mxu0
      %v3188 = vadd.f32 0.0, %v3187
      %v3189 = vpop.f32.mrb[0].mxu0
      %v3190 = vpop.f32.mrb[0].mxu0
      %v3191 = vadd.f32 0.0, %v3190
      %v3192 = vpop.f32.mrb[0].mxu0
      %3193 = vmatprep.mubr.bf16.mxu0 %v2781
      %3194 = vmatmul.mubr.bf16.gmra.mrb[0].mxu0 %v2717
      %v3195 = vpop.f32.mrb[0].mxu0
      %v3196 = vadd.f32 0.0, %v3195
      %v3197 = vpop.f32.mrb[0].mxu0
      %v3198 = vpop.f32.mrb[0].mxu0
      %v3199 = vadd.f32 0.0, %v3198
      %v3200 = vpop.f32.mrb[0].mxu0
      %3201 = vmatprep.mubr.bf16.mxu0 %v2782
      %3202 = vmatmul.mubr.bf16.gmra.mrb[0].mxu0 %v2718
      %v3203 = vpop.f32.mrb[0].mxu0
      %v3204 = vadd.f32 0.0, %v3203
      %v3205 = vpop.f32.mrb[0].mxu0
      %v3206 = vpop.f32.mrb[0].mxu0
      %v3207 = vadd.f32 0.0, %v3206
      %v3208 = vpop.f32.mrb[0].mxu0
      %3209 = vmatprep.mubr.bf16.mxu0 %v2783
      %3210 = vmatmul.mubr.bf16.gmra.mrb[0].mxu0 %v2719
      %v3211 = vpop.f32.mrb[0].mxu0
      %v3212 = vadd.f32 0.0, %v3211
      %v3213 = vpop.f32.mrb[0].mxu0
      %v3214 = vpop.f32.mrb[0].mxu0
      %v3215 = vadd.f32 0.0, %v3214
      %v3216 = vpop.f32.mrb[0].mxu0
      %3217 = vdwg.mxu0
      %3218 = vmatprep.subr.bf16.mxu0 0
      %3219 = vmatpush1.bf16.msra.mxu0 %v3025
      %3220 = vmatprep.subr.bf16.mxu0 0
      %3221 = vmatpush1.bf16.msra.mxu0 %v3026
      %3222 = vmatprep.subr.bf16.mxu0 0
      %3223 = vmatpush1.bf16.msra.mxu0 %v3027
      %3224 = vmatprep.subr.bf16.mxu0 0
      %3225 = vmatpush1.bf16.msra.mxu0 %v3028
      %3226 = vmatprep.subr.bf16.mxu0 0
      %3227 = vmatpush1.bf16.msra.mxu0 %v3029
      %3228 = vmatprep.subr.bf16.mxu0 0
      %3229 = vmatpush1.bf16.msra.mxu0 %v3030
      %3230 = vmatprep.subr.bf16.mxu0 0
      %3231 = vmatpush1.bf16.msra.mxu0 %v3031
      %3232 = vmatprep.subr.bf16.mxu0 0
      %3233 = vmatpush1.bf16.msra.mxu0 %v3032
      %3234 = vmatprep.subr.bf16.mxu0 0
      %3235 = vmatpush1.bf16.msra.mxu0 0
      %3236 = vmatprep.subr.bf16.mxu0 0
      %3237 = vmatpush1.bf16.msra.mxu0 0
      %3238 = vmatprep.subr.bf16.mxu0 0
      %3239 = vmatpush1.bf16.msra.mxu0 0
      %3240 = vmatprep.subr.bf16.mxu0 0
      %3241 = vmatpush1.bf16.msra.mxu0 0
      %3242 = vmatprep.subr.bf16.mxu0 0
      %3243 = vmatpush1.bf16.msra.mxu0 0
      %3244 = vmatprep.subr.bf16.mxu0 0
      %3245 = vmatpush1.bf16.msra.mxu0 0
      %3246 = vmatprep.subr.bf16.mxu0 0
      %3247 = vmatpush1.bf16.msra.mxu0 0
      %3248 = vmatprep.subr.bf16.mxu0 0
      %3249 = vmatpush1.bf16.msra.mxu0 0
      %3250 = vmatprep.mubr.bf16.mxu0 0
      %3251 = vmatmul.mubr.bf16.gmra.mrb[0].mxu0 %v2832
      %v3252 = vpop.f32.mrb[0].mxu0
      %v3253 = vadd.f32 %v3092, %v3252
      %v3254 = vpop.f32.mrb[0].mxu0
      %v3255 = vpop.f32.mrb[0].mxu0
      %v3256 = vadd.f32 %v3095, %v3255
      %v3257 = vpop.f32.mrb[0].mxu0
      %3258 = vmatprep.mubr.bf16.mxu0 0
      %3259 = vmatmul.mubr.bf16.gmra.mrb[0].mxu0 %v2833
      %v3260 = vpop.f32.mrb[0].mxu0
      %v3261 = vadd.f32 %v3100, %v3260
      %v3262 = vpop.f32.mrb[0].mxu0
      %v3263 = vpop.f32.mrb[0].mxu0
      %v3264 = vadd.f32 %v3103, %v3263
      %v3265 = vpop.f32.mrb[0].mxu0
      %3266 = vmatprep.mubr.bf16.mxu0 0
      %3267 = vmatmul.mubr.bf16.gmra.mrb[0].mxu0 %v2834
      %v3268 = vpop.f32.mrb[0].mxu0
      %v3269 = vadd.f32 %v3108, %v3268
      %v3270 = vpop.f32.mrb[0].mxu0
      %v3271 = vpop.f32.mrb[0].mxu0
      %v3272 = vadd.f32 %v3111, %v3271
      %v3273 = vpop.f32.mrb[0].mxu0
      %3274 = vmatprep.mubr.bf16.mxu0 0
      %3275 = vmatmul.mubr.bf16.gmra.mrb[0].mxu0 %v2835
      %v3276 = vpop.f32.mrb[0].mxu0
      %v3277 = vadd.f32 %v3116, %v3276
      %v3278 = vpop.f32.mrb[0].mxu0
      %v3279 = vpop.f32.mrb[0].mxu0
      %v3280 = vadd.f32 %v3119, %v3279
      %v3281 = vpop.f32.mrb[0].mxu0
      %3282 = vmatprep.mubr.bf16.mxu0 0
      %3283 = vmatmul.mubr.bf16.gmra.mrb[0].mxu0 %v2836
      %v3284 = vpop.f32.mrb[0].mxu0
      %v3285 = vadd.f32 %v3124, %v3284
      %v3286 = vpop.f32.mrb[0].mxu0
      %v3287 = vpop.f32.mrb[0].mxu0
      %v3288 = vadd.f32 %v3127, %v3287
      %v3289 = vpop.f32.mrb[0].mxu0
      %3290 = vmatprep.mubr.bf16.mxu0 0
      %3291 = vmatmul.mubr.bf16.gmra.mrb[0].mxu0 %v2837
      %v3292 = vpop.f32.mrb[0].mxu0
      %v3293 = vadd.f32 %v3132, %v3292
      %v3294 = vpop.f32.mrb[0].mxu0
      %v3295 = vpop.f32.mrb[0].mxu0
      %v3296 = vadd.f32 %v3135, %v3295
      %v3297 = vpop.f32.mrb[0].mxu0
      %3298 = vmatprep.mubr.bf16.mxu0 0
      %3299 = vmatmul.mubr.bf16.gmra.mrb[0].mxu0 %v2838
      %v3300 = vpop.f32.mrb[0].mxu0
      %v3301 = vadd.f32 %v3140, %v3300
      %v3302 = vpop.f32.mrb[0].mxu0
      %v3303 = vpop.f32.mrb[0].mxu0
      %v3304 = vadd.f32 %v3143, %v3303
      %v3305 = vpop.f32.mrb[0].mxu0
      %3306 = vmatprep.mubr.bf16.mxu0 0
      %3307 = vmatmul.mubr.bf16.gmra.mrb[0].mxu0 %v2839
      %v3308 = vpop.f32.mrb[0].mxu0
      %v3309 = vadd.f32 %v3148, %v3308
      %v3310 = vpop.f32.mrb[0].mxu0
      %v3311 = vpop.f32.mrb[0].mxu0
      %v3312 = vadd.f32 %v3151, %v3311
      %v3313 = vpop.f32.mrb[0].mxu0
      %3314 = vmatprep.mubr.bf16.mxu0 0
      %3315 = vmatmul.mubr.bf16.gmra.mrb[0].mxu0 %v2840
      %v3316 = vpop.f32.mrb[0].mxu0
      %v3317 = vadd.f32 %v3156, %v3316
      %v3318 = vpop.f32.mrb[0].mxu0
      %v3319 = vpop.f32.mrb[0].mxu0
      %v3320 = vadd.f32 %v3159, %v3319
      %v3321 = vpop.f32.mrb[0].mxu0
      %3322 = vmatprep.mubr.bf16.mxu0 0
      %3323 = vmatmul.mubr.bf16.gmra.mrb[0].mxu0 %v2841
      %v3324 = vpop.f32.mrb[0].mxu0
      %v3325 = vadd.f32 %v3164, %v3324
      %v3326 = vpop.f32.mrb[0].mxu0
      %v3327 = vpop.f32.mrb[0].mxu0
      %v3328 = vadd.f32 %v3167, %v3327
      %v3329 = vpop.f32.mrb[0].mxu0
      %3330 = vmatprep.mubr.bf16.mxu0 0
      %3331 = vmatmul.mubr.bf16.gmra.mrb[0].mxu0 %v2842
      %v3332 = vpop.f32.mrb[0].mxu0
      %v3333 = vadd.f32 %v3172, %v3332
      %v3334 = vpop.f32.mrb[0].mxu0
      %v3335 = vpop.f32.mrb[0].mxu0
      %v3336 = vadd.f32 %v3175, %v3335
      %v3337 = vpop.f32.mrb[0].mxu0
      %3338 = vmatprep.mubr.bf16.mxu0 0
      %3339 = vmatmul.mubr.bf16.gmra.mrb[0].mxu0 %v2843
      %v3340 = vpop.f32.mrb[0].mxu0
      %v3341 = vadd.f32 %v3180, %v3340
      %v3342 = vpop.f32.mrb[0].mxu0
      %v3343 = vpop.f32.mrb[0].mxu0
      %v3344 = vadd.f32 %v3183, %v3343
      %v3345 = vpop.f32.mrb[0].mxu0
      %3346 = vmatprep.mubr.bf16.mxu0 0
      %3347 = vmatmul.mubr.bf16.gmra.mrb[0].mxu0 %v2844
      %v3348 = vpop.f32.mrb[0].mxu0
      %v3349 = vadd.f32 %v3188, %v3348
      %v3350 = vpop.f32.mrb[0].mxu0
      %v3351 = vpop.f32.mrb[0].mxu0
      %v3352 = vadd.f32 %v3191, %v3351
      %v3353 = vpop.f32.mrb[0].mxu0
      %3354 = vmatprep.mubr.bf16.mxu0 0
      %3355 = vmatmul.mubr.bf16.gmra.mrb[0].mxu0 %v2845
      %v3356 = vpop.f32.mrb[0].mxu0
      %v3357 = vadd.f32 %v3196, %v3356
      %v3358 = vpop.f32.mrb[0].mxu0
      %v3359 = vpop.f32.mrb[0].mxu0
      %v3360 = vadd.f32 %v3199, %v3359
      %v3361 = vpop.f32.mrb[0].mxu0
      %3362 = vmatprep.mubr.bf16.mxu0 0
      %3363 = vmatmul.mubr.bf16.gmra.mrb[0].mxu0 %v2846
      %v3364 = vpop.f32.mrb[0].mxu0
      %v3365 = vadd.f32 %v3204, %v3364
      %v3366 = vpop.f32.mrb[0].mxu0
      %v3367 = vpop.f32.mrb[0].mxu0
      %v3368 = vadd.f32 %v3207, %v3367
      %v3369 = vpop.f32.mrb[0].mxu0
      %3370 = vmatprep.mubr.bf16.mxu0 0
      %3371 = vmatmul.mubr.bf16.gmra.mrb[0].mxu0 %v2847
      %v3372 = vpop.f32.mrb[0].mxu0
      %v3373 = vadd.f32 %v3212, %v3372
      %v3374 = vpop.f32.mrb[0].mxu0
      %v3375 = vpop.f32.mrb[0].mxu0
      %v3376 = vadd.f32 %v3215, %v3375
      %v3377 = vpop.f32.mrb[0].mxu0
      %3378 = vdwg.mxu0
      %v3427 = vunpack.c.l.b16 %v2000
      %v3428 = vunpack.c.l.b16 %v2001
      %v3429 = vunpack.c.l.b16 %v2002
      %v3430 = vunpack.c.l.b16 %v2003
      %v3431 = vunpack.c.l.b16 %v2004
      %v3432 = vunpack.c.l.b16 %v2005
      %v3433 = vunpack.c.l.b16 %v2006
      %v3434 = vunpack.c.l.b16 %v2007
      %v3435 = vunpack.c.l.b16 %v2008
      %v3436 = vunpack.c.l.b16 %v2009
      %v3437 = vunpack.c.l.b16 %v2010
      %v3438 = vunpack.c.l.b16 %v2011
      %v3439 = vunpack.c.l.b16 %v2012
      %v3440 = vunpack.c.l.b16 %v2013
      %v3441 = vunpack.c.l.b16 %v2014
      %v3442 = vunpack.c.l.b16 %v2015
      %v3443 = vunpack.c.l.b16 %v2016
      %v3444 = vunpack.c.l.b16 %v2017
      %v3445 = vunpack.c.l.b16 %v2018
      %v3446 = vunpack.c.l.b16 %v2019
      %v3447 = vunpack.c.l.b16 %v2020
      %v3448 = vunpack.c.l.b16 %v2021
      %v3449 = vunpack.c.l.b16 %v2022
      %v3450 = vunpack.c.l.b16 %v2023
      %v3451 = vunpack.c.l.b16 %v2024
      %v3452 = vunpack.c.l.b16 %v2025
      %v3453 = vunpack.c.l.b16 %v2026
      %v3454 = vunpack.c.l.b16 %v2027
      %v3455 = vunpack.c.l.b16 %v2028
      %v3456 = vunpack.c.l.b16 %v2029
      %v3457 = vunpack.c.l.b16 %v2030
      %v3458 = vunpack.c.l.b16 %v2031
      %v3459 = vunpack.c.l.b16 %v2032
      %v3460 = vunpack.c.l.b16 %v2033
      %v3461 = vunpack.c.l.b16 %v2034
      %v3462 = vunpack.c.l.b16 %v2035
      %v3463 = vunpack.c.l.b16 %v2036
      %v3464 = vunpack.c.l.b16 %v2037
      %v3465 = vunpack.c.l.b16 %v2038
      %v3466 = vunpack.c.l.b16 %v2039
      %v3467 = vunpack.c.l.b16 %v2040
      %v3468 = vunpack.c.l.b16 %v2041
      %v3469 = vunpack.c.l.b16 %v2042
      %v3470 = vunpack.c.l.b16 %v2043
      %v3471 = vunpack.c.l.b16 %v2044
      %v3472 = vunpack.c.l.b16 %v2045
      %v3473 = vunpack.c.l.b16 %v2046
      %v3474 = vunpack.c.l.b16 %v2047
      %v3475 = vpack.c.b16 %v3428, %v3427
      %v3476 = vpack.c.b16 %v3430, %v3429
      %v3477 = vpack.c.b16 %v3432, %v3431
      %v3478 = vpack.c.b16 %v3434, %v3433
      %v3479 = vpack.c.b16 %v3436, %v3435
      %v3480 = vpack.c.b16 %v3438, %v3437
      %v3481 = vpack.c.b16 %v3440, %v3439
      %v3482 = vpack.c.b16 %v3442, %v3441
      %v3483 = vpack.c.b16 %v3444, %v3443
      %v3484 = vpack.c.b16 %v3446, %v3445
      %v3485 = vpack.c.b16 %v3448, %v3447
      %v3486 = vpack.c.b16 %v3450, %v3449
      %v3487 = vpack.c.b16 %v3452, %v3451
      %v3488 = vpack.c.b16 %v3454, %v3453
      %v3489 = vpack.c.b16 %v3456, %v3455
      %v3490 = vpack.c.b16 %v3458, %v3457
      %v3491 = vpack.c.b16 %v3460, %v3459
      %v3492 = vpack.c.b16 %v3462, %v3461
      %v3493 = vpack.c.b16 %v3464, %v3463
      %v3494 = vpack.c.b16 %v3466, %v3465
      %v3495 = vpack.c.b16 %v3468, %v3467
      %v3496 = vpack.c.b16 %v3470, %v3469
      %v3497 = vpack.c.b16 %v3472, %v3471
      %v3498 = vpack.c.b16 %v3474, %v3473
      %3523 = vmatprep.subr.bf16.mxu0 0
      %3524 = vmatpush1.bf16.msra.mxu0 %v3475
      %3525 = vmatprep.subr.bf16.mxu0 0
      %3526 = vmatpush1.bf16.msra.mxu0 %v3476
      %3527 = vmatprep.subr.bf16.mxu0 0
      %3528 = vmatpush1.bf16.msra.mxu0 %v3477
      %3529 = vmatprep.subr.bf16.mxu0 0
      %3530 = vmatpush1.bf16.msra.mxu0 %v3478
      %3531 = vmatprep.subr.bf16.mxu0 0
      %3532 = vmatpush1.bf16.msra.mxu0 %v3479
      %3533 = vmatprep.subr.bf16.mxu0 0
      %3534 = vmatpush1.bf16.msra.mxu0 %v3480
      %3535 = vmatprep.subr.bf16.mxu0 0
      %3536 = vmatpush1.bf16.msra.mxu0 %v3481
      %3537 = vmatprep.subr.bf16.mxu0 0
      %3538 = vmatpush1.bf16.msra.mxu0 %v3482
      %3539 = vmatprep.subr.bf16.mxu0 0
      %3540 = vmatpush1.bf16.msra.mxu0 %v3483
      %3541 = vmatprep.subr.bf16.mxu0 0
      %3542 = vmatpush1.bf16.msra.mxu0 %v3484
      %3543 = vmatprep.subr.bf16.mxu0 0
      %3544 = vmatpush1.bf16.msra.mxu0 %v3485
      %3545 = vmatprep.subr.bf16.mxu0 0
      %3546 = vmatpush1.bf16.msra.mxu0 %v3486
      %3547 = vmatprep.subr.bf16.mxu0 0
      %3548 = vmatpush1.bf16.msra.mxu0 %v3487
      %3549 = vmatprep.subr.bf16.mxu0 0
      %3550 = vmatpush1.bf16.msra.mxu0 %v3488
      %3551 = vmatprep.subr.bf16.mxu0 0
      %3552 = vmatpush1.bf16.msra.mxu0 %v3489
      %3553 = vmatprep.subr.bf16.mxu0 0
      %3554 = vmatpush1.bf16.msra.mxu0 %v3490
      %3555 = vmatprep.mubr.bf16.mxu0 %v1904
      %3556 = vmatmul.mubr.bf16.gmra.mrb[0].mxu0 %v1840
      %v3557 = vpop.f32.mrb[0].mxu0
      %v3558 = vadd.f32 %v3253, %v3557
      %v3559 = vpop.f32.mrb[0].mxu0
      %v3560 = vpop.f32.mrb[0].mxu0
      %v3561 = vadd.f32 %v3256, %v3560
      %v3562 = vpop.f32.mrb[0].mxu0
      %3563 = vmatprep.mubr.bf16.mxu0 %v1905
      %3564 = vmatmul.mubr.bf16.gmra.mrb[0].mxu0 %v1841
      %v3565 = vpop.f32.mrb[0].mxu0
      %v3566 = vadd.f32 %v3261, %v3565
      %v3567 = vpop.f32.mrb[0].mxu0
      %v3568 = vpop.f32.mrb[0].mxu0
      %v3569 = vadd.f32 %v3264, %v3568
      %v3570 = vpop.f32.mrb[0].mxu0
      %3571 = vmatprep.mubr.bf16.mxu0 %v1906
      %3572 = vmatmul.mubr.bf16.gmra.mrb[0].mxu0 %v1842
      %v3573 = vpop.f32.mrb[0].mxu0
      %v3574 = vadd.f32 %v3269, %v3573
      %v3575 = vpop.f32.mrb[0].mxu0
      %v3576 = vpop.f32.mrb[0].mxu0
      %v3577 = vadd.f32 %v3272, %v3576
      %v3578 = vpop.f32.mrb[0].mxu0
      %3579 = vmatprep.mubr.bf16.mxu0 %v1907
      %3580 = vmatmul.mubr.bf16.gmra.mrb[0].mxu0 %v1843
      %v3581 = vpop.f32.mrb[0].mxu0
      %v3582 = vadd.f32 %v3277, %v3581
      %v3583 = vpop.f32.mrb[0].mxu0
      %v3584 = vpop.f32.mrb[0].mxu0
      %v3585 = vadd.f32 %v3280, %v3584
      %v3586 = vpop.f32.mrb[0].mxu0
      %3587 = vmatprep.mubr.bf16.mxu0 %v1908
      %3588 = vmatmul.mubr.bf16.gmra.mrb[0].mxu0 %v1844
      %v3589 = vpop.f32.mrb[0].mxu0
      %v3590 = vadd.f32 %v3285, %v3589
      %v3591 = vpop.f32.mrb[0].mxu0
      %v3592 = vpop.f32.mrb[0].mxu0
      %v3593 = vadd.f32 %v3288, %v3592
      %v3594 = vpop.f32.mrb[0].mxu0
      %3595 = vmatprep.mubr.bf16.mxu0 %v1909
      %3596 = vmatmul.mubr.bf16.gmra.mrb[0].mxu0 %v1845
      %v3597 = vpop.f32.mrb[0].mxu0
      %v3598 = vadd.f32 %v3293, %v3597
      %v3599 = vpop.f32.mrb[0].mxu0
      %v3600 = vpop.f32.mrb[0].mxu0
      %v3601 = vadd.f32 %v3296, %v3600
      %v3602 = vpop.f32.mrb[0].mxu0
      %3603 = vmatprep.mubr.bf16.mxu0 %v1910
      %3604 = vmatmul.mubr.bf16.gmra.mrb[0].mxu0 %v1846
      %v3605 = vpop.f32.mrb[0].mxu0
      %v3606 = vadd.f32 %v3301, %v3605
      %v3607 = vpop.f32.mrb[0].mxu0
      %v3608 = vpop.f32.mrb[0].mxu0
      %v3609 = vadd.f32 %v3304, %v3608
      %v3610 = vpop.f32.mrb[0].mxu0
      %3611 = vmatprep.mubr.bf16.mxu0 %v1911
      %3612 = vmatmul.mubr.bf16.gmra.mrb[0].mxu0 %v1847
      %v3613 = vpop.f32.mrb[0].mxu0
      %v3614 = vadd.f32 %v3309, %v3613
      %v3615 = vpop.f32.mrb[0].mxu0
      %v3616 = vpop.f32.mrb[0].mxu0
      %v3617 = vadd.f32 %v3312, %v3616
      %v3618 = vpop.f32.mrb[0].mxu0
      %3619 = vmatprep.mubr.bf16.mxu0 %v1912
      %3620 = vmatmul.mubr.bf16.gmra.mrb[0].mxu0 %v1848
      %v3621 = vpop.f32.mrb[0].mxu0
      %v3622 = vadd.f32 %v3317, %v3621
      %v3623 = vpop.f32.mrb[0].mxu0
      %v3624 = vpop.f32.mrb[0].mxu0
      %v3625 = vadd.f32 %v3320, %v3624
      %v3626 = vpop.f32.mrb[0].mxu0
      %3627 = vmatprep.mubr.bf16.mxu0 %v1913
      %3628 = vmatmul.mubr.bf16.gmra.mrb[0].mxu0 %v1849
      %v3629 = vpop.f32.mrb[0].mxu0
      %v3630 = vadd.f32 %v3325, %v3629
      %v3631 = vpop.f32.mrb[0].mxu0
      %v3632 = vpop.f32.mrb[0].mxu0
      %v3633 = vadd.f32 %v3328, %v3632
      %v3634 = vpop.f32.mrb[0].mxu0
      %3635 = vmatprep.mubr.bf16.mxu0 %v1914
      %3636 = vmatmul.mubr.bf16.gmra.mrb[0].mxu0 %v1850
      %v3637 = vpop.f32.mrb[0].mxu0
      %v3638 = vadd.f32 %v3333, %v3637
      %v3639 = vpop.f32.mrb[0].mxu0
      %v3640 = vpop.f32.mrb[0].mxu0
      %v3641 = vadd.f32 %v3336, %v3640
      %v3642 = vpop.f32.mrb[0].mxu0
      %3643 = vmatprep.mubr.bf16.mxu0 %v1915
      %3644 = vmatmul.mubr.bf16.gmra.mrb[0].mxu0 %v1851
      %v3645 = vpop.f32.mrb[0].mxu0
      %v3646 = vadd.f32 %v3341, %v3645
      %v3647 = vpop.f32.mrb[0].mxu0
      %v3648 = vpop.f32.mrb[0].mxu0
      %v3649 = vadd.f32 %v3344, %v3648
      %v3650 = vpop.f32.mrb[0].mxu0
      %3651 = vmatprep.mubr.bf16.mxu0 %v1916
      %3652 = vmatmul.mubr.bf16.gmra.mrb[0].mxu0 %v1852
      %v3653 = vpop.f32.mrb[0].mxu0
      %v3654 = vadd.f32 %v3349, %v3653
      %v3655 = vpop.f32.mrb[0].mxu0
      %v3656 = vpop.f32.mrb[0].mxu0
      %v3657 = vadd.f32 %v3352, %v3656
      %v3658 = vpop.f32.mrb[0].mxu0
      %3659 = vmatprep.mubr.bf16.mxu0 %v1917
      %3660 = vmatmul.mubr.bf16.gmra.mrb[0].mxu0 %v1853
      %v3661 = vpop.f32.mrb[0].mxu0
      %v3662 = vadd.f32 %v3357, %v3661
      %v3663 = vpop.f32.mrb[0].mxu0
      %v3664 = vpop.f32.mrb[0].mxu0
      %v3665 = vadd.f32 %v3360, %v3664
      %v3666 = vpop.f32.mrb[0].mxu0
      %3667 = vmatprep.mubr.bf16.mxu0 %v1918
      %3668 = vmatmul.mubr.bf16.gmra.mrb[0].mxu0 %v1854
      %v3669 = vpop.f32.mrb[0].mxu0
      %v3670 = vadd.f32 %v3365, %v3669
      %v3671 = vpop.f32.mrb[0].mxu0
      %v3672 = vpop.f32.mrb[0].mxu0
      %v3673 = vadd.f32 %v3368, %v3672
      %v3674 = vpop.f32.mrb[0].mxu0
      %3675 = vmatprep.mubr.bf16.mxu0 %v1919
      %3676 = vmatmul.mubr.bf16.gmra.mrb[0].mxu0 %v1855
      %v3677 = vpop.f32.mrb[0].mxu0
      %v3678 = vadd.f32 %v3373, %v3677
      %v3679 = vpop.f32.mrb[0].mxu0
      %v3680 = vpop.f32.mrb[0].mxu0
      %v3681 = vadd.f32 %v3376, %v3680
      %v3682 = vpop.f32.mrb[0].mxu0
      %3683 = vdwg.mxu0
      %3684 = vmatprep.subr.bf16.mxu0 0
      %3685 = vmatpush1.bf16.msra.mxu0 %v3491
      %3686 = vmatprep.subr.bf16.mxu0 0
      %3687 = vmatpush1.bf16.msra.mxu0 %v3492
      %3688 = vmatprep.subr.bf16.mxu0 0
      %3689 = vmatpush1.bf16.msra.mxu0 %v3493
      %3690 = vmatprep.subr.bf16.mxu0 0
      %3691 = vmatpush1.bf16.msra.mxu0 %v3494
      %3692 = vmatprep.subr.bf16.mxu0 0
      %3693 = vmatpush1.bf16.msra.mxu0 %v3495
      %3694 = vmatprep.subr.bf16.mxu0 0
      %3695 = vmatpush1.bf16.msra.mxu0 %v3496
      %3696 = vmatprep.subr.bf16.mxu0 0
      %3697 = vmatpush1.bf16.msra.mxu0 %v3497
      %3698 = vmatprep.subr.bf16.mxu0 0
      %3699 = vmatpush1.bf16.msra.mxu0 %v3498
      %3700 = vmatprep.subr.bf16.mxu0 0
      %3701 = vmatpush1.bf16.msra.mxu0 0
      %3702 = vmatprep.subr.bf16.mxu0 0
      %3703 = vmatpush1.bf16.msra.mxu0 0
      %3704 = vmatprep.subr.bf16.mxu0 0
      %3705 = vmatpush1.bf16.msra.mxu0 0
      %3706 = vmatprep.subr.bf16.mxu0 0
      %3707 = vmatpush1.bf16.msra.mxu0 0
      %3708 = vmatprep.subr.bf16.mxu0 0
      %3709 = vmatpush1.bf16.msra.mxu0 0
      %3710 = vmatprep.subr.bf16.mxu0 0
      %3711 = vmatpush1.bf16.msra.mxu0 0
      %3712 = vmatprep.subr.bf16.mxu0 0
      %3713 = vmatpush1.bf16.msra.mxu0 0
      %3714 = vmatprep.subr.bf16.mxu0 0
      %3715 = vmatpush1.bf16.msra.mxu0 0
      %3716 = vmatprep.mubr.bf16.mxu0 0
      %3717 = vmatmul.mubr.bf16.gmra.mrb[0].mxu0 %v1968
      %v3718 = vpop.f32.mrb[0].mxu0
      %v3719 = vadd.f32 %v3558, %v3718
      %v3720 = vpop.f32.mrb[0].mxu0
      %v3721 = vpop.f32.mrb[0].mxu0
      %v3722 = vadd.f32 %v3561, %v3721
      %v3723 = vpop.f32.mrb[0].mxu0
      %3724 = vmatprep.mubr.bf16.mxu0 0
      %3725 = vmatmul.mubr.bf16.gmra.mrb[0].mxu0 %v1969
      %v3726 = vpop.f32.mrb[0].mxu0
      %v3727 = vadd.f32 %v3566, %v3726
      %v3728 = vpop.f32.mrb[0].mxu0
      %v3729 = vpop.f32.mrb[0].mxu0
      %v3730 = vadd.f32 %v3569, %v3729
      %v3731 = vpop.f32.mrb[0].mxu0
      %3732 = vmatprep.mubr.bf16.mxu0 0
      %3733 = vmatmul.mubr.bf16.gmra.mrb[0].mxu0 %v1970
      %v3734 = vpop.f32.mrb[0].mxu0
      %v3735 = vadd.f32 %v3574, %v3734
      %v3736 = vpop.f32.mrb[0].mxu0
      %v3737 = vpop.f32.mrb[0].mxu0
      %v3738 = vadd.f32 %v3577, %v3737
      %v3739 = vpop.f32.mrb[0].mxu0
      %3740 = vmatprep.mubr.bf16.mxu0 0
      %3741 = vmatmul.mubr.bf16.gmra.mrb[0].mxu0 %v1971
      %v3742 = vpop.f32.mrb[0].mxu0
      %v3743 = vadd.f32 %v3582, %v3742
      %v3744 = vpop.f32.mrb[0].mxu0
      %v3745 = vpop.f32.mrb[0].mxu0
      %v3746 = vadd.f32 %v3585, %v3745
      %v3747 = vpop.f32.mrb[0].mxu0
      %3748 = vmatprep.mubr.bf16.mxu0 0
      %3749 = vmatmul.mubr.bf16.gmra.mrb[0].mxu0 %v1972
      %v3750 = vpop.f32.mrb[0].mxu0
      %v3751 = vadd.f32 %v3590, %v3750
      %v3752 = vpop.f32.mrb[0].mxu0
      %v3753 = vpop.f32.mrb[0].mxu0
      %v3754 = vadd.f32 %v3593, %v3753
      %v3755 = vpop.f32.mrb[0].mxu0
      %3756 = vmatprep.mubr.bf16.mxu0 0
      %3757 = vmatmul.mubr.bf16.gmra.mrb[0].mxu0 %v1973
      %v3758 = vpop.f32.mrb[0].mxu0
      %v3759 = vadd.f32 %v3598, %v3758
      %v3760 = vpop.f32.mrb[0].mxu0
      %v3761 = vpop.f32.mrb[0].mxu0
      %v3762 = vadd.f32 %v3601, %v3761
      %v3763 = vpop.f32.mrb[0].mxu0
      %3764 = vmatprep.mubr.bf16.mxu0 0
      %3765 = vmatmul.mubr.bf16.gmra.mrb[0].mxu0 %v1974
      %v3766 = vpop.f32.mrb[0].mxu0
      %v3767 = vadd.f32 %v3606, %v3766
      %v3768 = vpop.f32.mrb[0].mxu0
      %v3769 = vpop.f32.mrb[0].mxu0
      %v3770 = vadd.f32 %v3609, %v3769
      %v3771 = vpop.f32.mrb[0].mxu0
      %3772 = vmatprep.mubr.bf16.mxu0 0
      %3773 = vmatmul.mubr.bf16.gmra.mrb[0].mxu0 %v1975
      %v3774 = vpop.f32.mrb[0].mxu0
      %v3775 = vadd.f32 %v3614, %v3774
      %v3776 = vpop.f32.mrb[0].mxu0
      %v3777 = vpop.f32.mrb[0].mxu0
      %v3778 = vadd.f32 %v3617, %v3777
      %v3779 = vpop.f32.mrb[0].mxu0
      %3780 = vmatprep.mubr.bf16.mxu0 0
      %3781 = vmatmul.mubr.bf16.gmra.mrb[0].mxu0 %v1976
      %v3782 = vpop.f32.mrb[0].mxu0
      %v3783 = vadd.f32 %v3622, %v3782
      %v3784 = vpop.f32.mrb[0].mxu0
      %v3785 = vpop.f32.mrb[0].mxu0
      %v3786 = vadd.f32 %v3625, %v3785
      %v3787 = vpop.f32.mrb[0].mxu0
      %3788 = vmatprep.mubr.bf16.mxu0 0
      %3789 = vmatmul.mubr.bf16.gmra.mrb[0].mxu0 %v1977
      %v3790 = vpop.f32.mrb[0].mxu0
      %v3791 = vadd.f32 %v3630, %v3790
      %v3792 = vpop.f32.mrb[0].mxu0
      %v3793 = vpop.f32.mrb[0].mxu0
      %v3794 = vadd.f32 %v3633, %v3793
      %v3795 = vpop.f32.mrb[0].mxu0
      %3796 = vmatprep.mubr.bf16.mxu0 0
      %3797 = vmatmul.mubr.bf16.gmra.mrb[0].mxu0 %v1978
      %v3798 = vpop.f32.mrb[0].mxu0
      %v3799 = vadd.f32 %v3638, %v3798
      %v3800 = vpop.f32.mrb[0].mxu0
      %v3801 = vpop.f32.mrb[0].mxu0
      %v3802 = vadd.f32 %v3641, %v3801
      %v3803 = vpop.f32.mrb[0].mxu0
      %3804 = vmatprep.mubr.bf16.mxu0 0
      %3805 = vmatmul.mubr.bf16.gmra.mrb[0].mxu0 %v1979
      %v3806 = vpop.f32.mrb[0].mxu0
      %v3807 = vadd.f32 %v3646, %v3806
      %v3808 = vpop.f32.mrb[0].mxu0
      %v3809 = vpop.f32.mrb[0].mxu0
      %v3810 = vadd.f32 %v3649, %v3809
      %v3811 = vpop.f32.mrb[0].mxu0
      %3812 = vmatprep.mubr.bf16.mxu0 0
      %3813 = vmatmul.mubr.bf16.gmra.mrb[0].mxu0 %v1980
      %v3814 = vpop.f32.mrb[0].mxu0
      %v3815 = vadd.f32 %v3654, %v3814
      %v3816 = vpop.f32.mrb[0].mxu0
      %v3817 = vpop.f32.mrb[0].mxu0
      %v3818 = vadd.f32 %v3657, %v3817
      %v3819 = vpop.f32.mrb[0].mxu0
      %3820 = vmatprep.mubr.bf16.mxu0 0
      %3821 = vmatmul.mubr.bf16.gmra.mrb[0].mxu0 %v1981
      %v3822 = vpop.f32.mrb[0].mxu0
      %v3823 = vadd.f32 %v3662, %v3822
      %v3824 = vpop.f32.mrb[0].mxu0
      %v3825 = vpop.f32.mrb[0].mxu0
      %v3826 = vadd.f32 %v3665, %v3825
      %v3827 = vpop.f32.mrb[0].mxu0
      %3828 = vmatprep.mubr.bf16.mxu0 0
      %3829 = vmatmul.mubr.bf16.gmra.mrb[0].mxu0 %v1982
      %v3830 = vpop.f32.mrb[0].mxu0
      %v3831 = vadd.f32 %v3670, %v3830
      %v3832 = vpop.f32.mrb[0].mxu0
      %v3833 = vpop.f32.mrb[0].mxu0
      %v3834 = vadd.f32 %v3673, %v3833
      %v3835 = vpop.f32.mrb[0].mxu0
      %3836 = vmatprep.mubr.bf16.mxu0 0
      %3837 = vmatmul.mubr.bf16.gmra.mrb[0].mxu0 %v1983
      %v3838 = vpop.f32.mrb[0].mxu0
      %v3839 = vadd.f32 %v3678, %v3838
      %v3840 = vpop.f32.mrb[0].mxu0
      %v3841 = vpop.f32.mrb[0].mxu0
      %v3842 = vadd.f32 %v3681, %v3841
      %v3843 = vpop.f32.mrb[0].mxu0
      %3844 = vdwg.mxu0
      %s3845 = scalar_lea.vmem [#allocation2], 24
      %v3846 = vld [vmem:[%s3845] sm:$0xf]
      %v3847 = vld [vmem:[%s3845 + $0x4] sm:$0xf]
      %v3848 = vld [vmem:[%s3845 + $0xc] sm:$0xf]
      %v3849 = vld [vmem:[%s3845 + $0x10] sm:$0xf]
      %v3850 = vld [vmem:[%s3845 + $0x18] sm:$0xf]
      %v3851 = vld [vmem:[%s3845 + $0x1c] sm:$0xf]
      %v3852 = vld [vmem:[%s3845 + $0x24] sm:$0xf]
      %v3853 = vld [vmem:[%s3845 + $0x28] sm:$0xf]
      %v3854 = vld [vmem:[%s3845 + $0x30] sm:$0xf]
      %v3855 = vld [vmem:[%s3845 + $0x34] sm:$0xf]
      %v3856 = vld [vmem:[%s3845 + $0x3c] sm:$0xf]
      %v3857 = vld [vmem:[%s3845 + $0x40] sm:$0xf]
      %v3858 = vld [vmem:[%s3845 + $0x48] sm:$0xf]
      %v3859 = vld [vmem:[%s3845 + $0x4c] sm:$0xf]
      %v3860 = vld [vmem:[%s3845 + $0x54] sm:$0xf]
      %v3861 = vld [vmem:[%s3845 + $0x58] sm:$0xf]
      %v3862 = vld [vmem:[%s3845 + $0x60] sm:$0xf]
      %v3863 = vld [vmem:[%s3845 + $0x64] sm:$0xf]
      %v3864 = vld [vmem:[%s3845 + $0x6c] sm:$0xf]
      %v3865 = vld [vmem:[%s3845 + $0x70] sm:$0xf]
      %v3866 = vld [vmem:[%s3845 + $0x78] sm:$0xf]
      %v3867 = vld [vmem:[%s3845 + $0x7c] sm:$0xf]
      %v3868 = vld [vmem:[%s3845 + $0x84] sm:$0xf]
      %v3869 = vld [vmem:[%s3845 + $0x88] sm:$0xf]
      %v3870 = vld [vmem:[%s3845 + $0x90] sm:$0xf]
      %v3871 = vld [vmem:[%s3845 + $0x94] sm:$0xf]
      %v3872 = vld [vmem:[%s3845 + $0x9c] sm:$0xf]
      %v3873 = vld [vmem:[%s3845 + $0xa0] sm:$0xf]
      %v3874 = vld [vmem:[%s3845 + $0xa8] sm:$0xf]
      %v3875 = vld [vmem:[%s3845 + $0xac] sm:$0xf]
      %v3876 = vld [vmem:[%s3845 + $0xb4] sm:$0xf]
      %v3877 = vld [vmem:[%s3845 + $0xb8] sm:$0xf]
      %v3878 = vld [vmem:[%s3845 + $0x8] sm:$0x1]
      %v3879 = vld [vmem:[%s3845 + $0x14] sm:$0x1]
      %v3880 = vld [vmem:[%s3845 + $0x20] sm:$0x1]
      %v3881 = vld [vmem:[%s3845 + $0x2c] sm:$0x1]
      %v3882 = vld [vmem:[%s3845 + $0x38] sm:$0x1]
      %v3883 = vld [vmem:[%s3845 + $0x44] sm:$0x1]
      %v3884 = vld [vmem:[%s3845 + $0x50] sm:$0x1]
      %v3885 = vld [vmem:[%s3845 + $0x5c] sm:$0x1]
      %v3886 = vld [vmem:[%s3845 + $0x68] sm:$0x1]
      %v3887 = vld [vmem:[%s3845 + $0x74] sm:$0x1]
      %v3888 = vld [vmem:[%s3845 + $0x80] sm:$0x1]
      %v3889 = vld [vmem:[%s3845 + $0x8c] sm:$0x1]
      %v3890 = vld [vmem:[%s3845 + $0x98] sm:$0x1]
      %v3891 = vld [vmem:[%s3845 + $0xa4] sm:$0x1]
      %v3892 = vld [vmem:[%s3845 + $0xb0] sm:$0x1]
      %v3893 = vld [vmem:[%s3845 + $0xbc] sm:$0x1]
      %v3895 = vshrl.u32 %v3846, 16
      %v3897 = vrot.slane %v3895, 4
      %v3898 = vshll.u32 %v3846, 16
      %v3900 = vrot.slane %v3898, 5
      %v3901 = vor.u32 %v3897, %v3900
      %v3902 = vrot.slane %v3901, 4
      %v3904 = vshll.u32 %v3847, 16
      %v3906 = vrot.slane %v3904, 5
      %v3907 = vsel %vm1228, %v3902, %v3906
      %v3908 = vshrl.u32 %v3847, 16
      %v3910 = vrot.slane %v3908, 4
      %v3911 = vor.u32 %v3910, %v3906
      %v3912 = vrot.slane %v3911, 4
      %v3914 = vshll.u32 %v3878, 16
      %v3916 = vrot.slane %v3914, 5
      %v3917 = vsel %vm1228, %v3912, %v3916
      %v3919 = vshrl.u32 %v3848, 16
      %v3921 = vrot.slane %v3919, 4
      %v3922 = vshll.u32 %v3848, 16
      %v3924 = vrot.slane %v3922, 5
      %v3925 = vor.u32 %v3921, %v3924
      %v3926 = vrot.slane %v3925, 4
      %v3928 = vshll.u32 %v3849, 16
      %v3930 = vrot.slane %v3928, 5
      %v3931 = vsel %vm1228, %v3926, %v3930
      %v3932 = vshrl.u32 %v3849, 16
      %v3934 = vrot.slane %v3932, 4
      %v3935 = vor.u32 %v3934, %v3930
      %v3936 = vrot.slane %v3935, 4
      %v3938 = vshll.u32 %v3879, 16
      %v3940 = vrot.slane %v3938, 5
      %v3941 = vsel %vm1228, %v3936, %v3940
      %v3943 = vshrl.u32 %v3850, 16
      %v3945 = vrot.slane %v3943, 4
      %v3946 = vshll.u32 %v3850, 16
      %v3948 = vrot.slane %v3946, 5
      %v3949 = vor.u32 %v3945, %v3948
      %v3950 = vrot.slane %v3949, 4
      %v3952 = vshll.u32 %v3851, 16
      %v3954 = vrot.slane %v3952, 5
      %v3955 = vsel %vm1228, %v3950, %v3954
      %v3956 = vshrl.u32 %v3851, 16
      %v3958 = vrot.slane %v3956, 4
      %v3959 = vor.u32 %v3958, %v3954
      %v3960 = vrot.slane %v3959, 4
      %v3962 = vshll.u32 %v3880, 16
      %v3964 = vrot.slane %v3962, 5
      %v3965 = vsel %vm1228, %v3960, %v3964
      %v3967 = vshrl.u32 %v3852, 16
      %v3969 = vrot.slane %v3967, 4
      %v3970 = vshll.u32 %v3852, 16
      %v3972 = vrot.slane %v3970, 5
      %v3973 = vor.u32 %v3969, %v3972
      %v3974 = vrot.slane %v3973, 4
      %v3976 = vshll.u32 %v3853, 16
      %v3978 = vrot.slane %v3976, 5
      %v3979 = vsel %vm1228, %v3974, %v3978
      %v3980 = vshrl.u32 %v3853, 16
      %v3982 = vrot.slane %v3980, 4
      %v3983 = vor.u32 %v3982, %v3978
      %v3984 = vrot.slane %v3983, 4
      %v3986 = vshll.u32 %v3881, 16
      %v3988 = vrot.slane %v3986, 5
      %v3989 = vsel %vm1228, %v3984, %v3988
      %v3991 = vshrl.u32 %v3854, 16
      %v3993 = vrot.slane %v3991, 4
      %v3994 = vshll.u32 %v3854, 16
      %v3996 = vrot.slane %v3994, 5
      %v3997 = vor.u32 %v3993, %v3996
      %v3998 = vrot.slane %v3997, 4
      %v4000 = vshll.u32 %v3855, 16
      %v4002 = vrot.slane %v4000, 5
      %v4003 = vsel %vm1228, %v3998, %v4002
      %v4004 = vshrl.u32 %v3855, 16
      %v4006 = vrot.slane %v4004, 4
      %v4007 = vor.u32 %v4006, %v4002
      %v4008 = vrot.slane %v4007, 4
      %v4010 = vshll.u32 %v3882, 16
      %v4012 = vrot.slane %v4010, 5
      %v4013 = vsel %vm1228, %v4008, %v4012
      %v4015 = vshrl.u32 %v3856, 16
      %v4017 = vrot.slane %v4015, 4
      %v4018 = vshll.u32 %v3856, 16
      %v4020 = vrot.slane %v4018, 5
      %v4021 = vor.u32 %v4017, %v4020
      %v4022 = vrot.slane %v4021, 4
      %v4024 = vshll.u32 %v3857, 16
      %v4026 = vrot.slane %v4024, 5
      %v4027 = vsel %vm1228, %v4022, %v4026
      %v4028 = vshrl.u32 %v3857, 16
      %v4030 = vrot.slane %v4028, 4
      %v4031 = vor.u32 %v4030, %v4026
      %v4032 = vrot.slane %v4031, 4
      %v4034 = vshll.u32 %v3883, 16
      %v4036 = vrot.slane %v4034, 5
      %v4037 = vsel %vm1228, %v4032, %v4036
      %v4039 = vshrl.u32 %v3858, 16
      %v4041 = vrot.slane %v4039, 4
      %v4042 = vshll.u32 %v3858, 16
      %v4044 = vrot.slane %v4042, 5
      %v4045 = vor.u32 %v4041, %v4044
      %v4046 = vrot.slane %v4045, 4
      %v4048 = vshll.u32 %v3859, 16
      %v4050 = vrot.slane %v4048, 5
      %v4051 = vsel %vm1228, %v4046, %v4050
      %v4052 = vshrl.u32 %v3859, 16
      %v4054 = vrot.slane %v4052, 4
      %v4055 = vor.u32 %v4054, %v4050
      %v4056 = vrot.slane %v4055, 4
      %v4058 = vshll.u32 %v3884, 16
      %v4060 = vrot.slane %v4058, 5
      %v4061 = vsel %vm1228, %v4056, %v4060
      %v4063 = vshrl.u32 %v3860, 16
      %v4065 = vrot.slane %v4063, 4
      %v4066 = vshll.u32 %v3860, 16
      %v4068 = vrot.slane %v4066, 5
      %v4069 = vor.u32 %v4065, %v4068
      %v4070 = vrot.slane %v4069, 4
      %v4072 = vshll.u32 %v3861, 16
      %v4074 = vrot.slane %v4072, 5
      %v4075 = vsel %vm1228, %v4070, %v4074
      %v4076 = vshrl.u32 %v3861, 16
      %v4078 = vrot.slane %v4076, 4
      %v4079 = vor.u32 %v4078, %v4074
      %v4080 = vrot.slane %v4079, 4
      %v4082 = vshll.u32 %v3885, 16
      %v4084 = vrot.slane %v4082, 5
      %v4085 = vsel %vm1228, %v4080, %v4084
      %v4087 = vshrl.u32 %v3862, 16
      %v4089 = vrot.slane %v4087, 4
      %v4090 = vshll.u32 %v3862, 16
      %v4092 = vrot.slane %v4090, 5
      %v4093 = vor.u32 %v4089, %v4092
      %v4094 = vrot.slane %v4093, 4
      %v4096 = vshll.u32 %v3863, 16
      %v4098 = vrot.slane %v4096, 5
      %v4099 = vsel %vm1228, %v4094, %v4098
      %v4100 = vshrl.u32 %v3863, 16
      %v4102 = vrot.slane %v4100, 4
      %v4103 = vor.u32 %v4102, %v4098
      %v4104 = vrot.slane %v4103, 4
      %v4106 = vshll.u32 %v3886, 16
      %v4108 = vrot.slane %v4106, 5
      %v4109 = vsel %vm1228, %v4104, %v4108
      %v4111 = vshrl.u32 %v3864, 16
      %v4113 = vrot.slane %v4111, 4
      %v4114 = vshll.u32 %v3864, 16
      %v4116 = vrot.slane %v4114, 5
      %v4117 = vor.u32 %v4113, %v4116
      %v4118 = vrot.slane %v4117, 4
      %v4120 = vshll.u32 %v3865, 16
      %v4122 = vrot.slane %v4120, 5
      %v4123 = vsel %vm1228, %v4118, %v4122
      %v4124 = vshrl.u32 %v3865, 16
      %v4126 = vrot.slane %v4124, 4
      %v4127 = vor.u32 %v4126, %v4122
      %v4128 = vrot.slane %v4127, 4
      %v4130 = vshll.u32 %v3887, 16
      %v4132 = vrot.slane %v4130, 5
      %v4133 = vsel %vm1228, %v4128, %v4132
      %v4135 = vshrl.u32 %v3866, 16
      %v4137 = vrot.slane %v4135, 4
      %v4138 = vshll.u32 %v3866, 16
      %v4140 = vrot.slane %v4138, 5
      %v4141 = vor.u32 %v4137, %v4140
      %v4142 = vrot.slane %v4141, 4
      %v4144 = vshll.u32 %v3867, 16
      %v4146 = vrot.slane %v4144, 5
      %v4147 = vsel %vm1228, %v4142, %v4146
      %v4148 = vshrl.u32 %v3867, 16
      %v4150 = vrot.slane %v4148, 4
      %v4151 = vor.u32 %v4150, %v4146
      %v4152 = vrot.slane %v4151, 4
      %v4154 = vshll.u32 %v3888, 16
      %v4156 = vrot.slane %v4154, 5
      %v4157 = vsel %vm1228, %v4152, %v4156
      %v4159 = vshrl.u32 %v3868, 16
      %v4161 = vrot.slane %v4159, 4
      %v4162 = vshll.u32 %v3868, 16
      %v4164 = vrot.slane %v4162, 5
      %v4165 = vor.u32 %v4161, %v4164
      %v4166 = vrot.slane %v4165, 4
      %v4168 = vshll.u32 %v3869, 16
      %v4170 = vrot.slane %v4168, 5
      %v4171 = vsel %vm1228, %v4166, %v4170
      %v4172 = vshrl.u32 %v3869, 16
      %v4174 = vrot.slane %v4172, 4
      %v4175 = vor.u32 %v4174, %v4170
      %v4176 = vrot.slane %v4175, 4
      %v4178 = vshll.u32 %v3889, 16
      %v4180 = vrot.slane %v4178, 5
      %v4181 = vsel %vm1228, %v4176, %v4180
      %v4183 = vshrl.u32 %v3870, 16
      %v4185 = vrot.slane %v4183, 4
      %v4186 = vshll.u32 %v3870, 16
      %v4188 = vrot.slane %v4186, 5
      %v4189 = vor.u32 %v4185, %v4188
      %v4190 = vrot.slane %v4189, 4
      %v4192 = vshll.u32 %v3871, 16
      %v4194 = vrot.slane %v4192, 5
      %v4195 = vsel %vm1228, %v4190, %v4194
      %v4196 = vshrl.u32 %v3871, 16
      %v4198 = vrot.slane %v4196, 4
      %v4199 = vor.u32 %v4198, %v4194
      %v4200 = vrot.slane %v4199, 4
      %v4202 = vshll.u32 %v3890, 16
      %v4204 = vrot.slane %v4202, 5
      %v4205 = vsel %vm1228, %v4200, %v4204
      %v4207 = vshrl.u32 %v3872, 16
      %v4209 = vrot.slane %v4207, 4
      %v4210 = vshll.u32 %v3872, 16
      %v4212 = vrot.slane %v4210, 5
      %v4213 = vor.u32 %v4209, %v4212
      %v4214 = vrot.slane %v4213, 4
      %v4216 = vshll.u32 %v3873, 16
      %v4218 = vrot.slane %v4216, 5
      %v4219 = vsel %vm1228, %v4214, %v4218
      %v4220 = vshrl.u32 %v3873, 16
      %v4222 = vrot.slane %v4220, 4
      %v4223 = vor.u32 %v4222, %v4218
      %v4224 = vrot.slane %v4223, 4
      %v4226 = vshll.u32 %v3891, 16
      %v4228 = vrot.slane %v4226, 5
      %v4229 = vsel %vm1228, %v4224, %v4228
      %v4231 = vshrl.u32 %v3874, 16
      %v4233 = vrot.slane %v4231, 4
      %v4234 = vshll.u32 %v3874, 16
      %v4236 = vrot.slane %v4234, 5
      %v4237 = vor.u32 %v4233, %v4236
      %v4238 = vrot.slane %v4237, 4
      %v4240 = vshll.u32 %v3875, 16
      %v4242 = vrot.slane %v4240, 5
      %v4243 = vsel %vm1228, %v4238, %v4242
      %v4244 = vshrl.u32 %v3875, 16
      %v4246 = vrot.slane %v4244, 4
      %v4247 = vor.u32 %v4246, %v4242
      %v4248 = vrot.slane %v4247, 4
      %v4250 = vshll.u32 %v3892, 16
      %v4252 = vrot.slane %v4250, 5
      %v4253 = vsel %vm1228, %v4248, %v4252
      %v4255 = vshrl.u32 %v3876, 16
      %v4257 = vrot.slane %v4255, 4
      %v4258 = vshll.u32 %v3876, 16
      %v4260 = vrot.slane %v4258, 5
      %v4261 = vor.u32 %v4257, %v4260
      %v4262 = vrot.slane %v4261, 4
      %v4264 = vshll.u32 %v3877, 16
      %v4266 = vrot.slane %v4264, 5
      %v4267 = vsel %vm1228, %v4262, %v4266
      %v4268 = vshrl.u32 %v3877, 16
      %v4270 = vrot.slane %v4268, 4
      %v4271 = vor.u32 %v4270, %v4266
      %v4272 = vrot.slane %v4271, 4
      %v4274 = vshll.u32 %v3893, 16
      %v4276 = vrot.slane %v4274, 5
      %v4277 = vsel %vm1228, %v4272, %v4276
      %v4278 = vld [vmem:[%s3845] sm:$0xe]
      %v4279 = vld [vmem:[%s3845 + $0xc] sm:$0xe]
      %v4280 = vld [vmem:[%s3845 + $0x18] sm:$0xe]
      %v4281 = vld [vmem:[%s3845 + $0x24] sm:$0xe]
      %v4282 = vld [vmem:[%s3845 + $0x30] sm:$0xe]
      %v4283 = vld [vmem:[%s3845 + $0x3c] sm:$0xe]
      %v4284 = vld [vmem:[%s3845 + $0x48] sm:$0xe]
      %v4285 = vld [vmem:[%s3845 + $0x54] sm:$0xe]
      %v4286 = vld [vmem:[%s3845 + $0x60] sm:$0xe]
      %v4287 = vld [vmem:[%s3845 + $0x6c] sm:$0xe]
      %v4288 = vld [vmem:[%s3845 + $0x78] sm:$0xe]
      %v4289 = vld [vmem:[%s3845 + $0x84] sm:$0xe]
      %v4290 = vld [vmem:[%s3845 + $0x90] sm:$0xe]
      %v4291 = vld [vmem:[%s3845 + $0x9c] sm:$0xe]
      %v4292 = vld [vmem:[%s3845 + $0xa8] sm:$0xe]
      %v4293 = vld [vmem:[%s3845 + $0xb4] sm:$0xe]
      %v4342 = vrot.slane %v4278, 5
      %v4343 = vrot.slane %v4342, 4
      %v4344 = vrot.slane %v3847, 5
      %v4345 = vsel %vm1679, %v4343, %v4344
      %v4346 = vrot.slane %v4344, 4
      %v4347 = vrot.slane %v3878, 5
      %v4348 = vsel %vm1679, %v4346, %v4347
      %v4349 = vrot.slane %v4279, 5
      %v4350 = vrot.slane %v4349, 4
      %v4351 = vrot.slane %v3849, 5
      %v4352 = vsel %vm1679, %v4350, %v4351
      %v4353 = vrot.slane %v4351, 4
      %v4354 = vrot.slane %v3879, 5
      %v4355 = vsel %vm1679, %v4353, %v4354
      %v4356 = vrot.slane %v4280, 5
      %v4357 = vrot.slane %v4356, 4
      %v4358 = vrot.slane %v3851, 5
      %v4359 = vsel %vm1679, %v4357, %v4358
      %v4360 = vrot.slane %v4358, 4
      %v4361 = vrot.slane %v3880, 5
      %v4362 = vsel %vm1679, %v4360, %v4361
      %v4363 = vrot.slane %v4281, 5
      %v4364 = vrot.slane %v4363, 4
      %v4365 = vrot.slane %v3853, 5
      %v4366 = vsel %vm1679, %v4364, %v4365
      %v4367 = vrot.slane %v4365, 4
      %v4368 = vrot.slane %v3881, 5
      %v4369 = vsel %vm1679, %v4367, %v4368
      %v4370 = vrot.slane %v4282, 5
      %v4371 = vrot.slane %v4370, 4
      %v4372 = vrot.slane %v3855, 5
      %v4373 = vsel %vm1679, %v4371, %v4372
      %v4374 = vrot.slane %v4372, 4
      %v4375 = vrot.slane %v3882, 5
      %v4376 = vsel %vm1679, %v4374, %v4375
      %v4377 = vrot.slane %v4283, 5
      %v4378 = vrot.slane %v4377, 4
      %v4379 = vrot.slane %v3857, 5
      %v4380 = vsel %vm1679, %v4378, %v4379
      %v4381 = vrot.slane %v4379, 4
      %v4382 = vrot.slane %v3883, 5
      %v4383 = vsel %vm1679, %v4381, %v4382
      %v4384 = vrot.slane %v4284, 5
      %v4385 = vrot.slane %v4384, 4
      %v4386 = vrot.slane %v3859, 5
      %v4387 = vsel %vm1679, %v4385, %v4386
      %v4388 = vrot.slane %v4386, 4
      %v4389 = vrot.slane %v3884, 5
      %v4390 = vsel %vm1679, %v4388, %v4389
      %v4391 = vrot.slane %v4285, 5
      %v4392 = vrot.slane %v4391, 4
      %v4393 = vrot.slane %v3861, 5
      %v4394 = vsel %vm1679, %v4392, %v4393
      %v4395 = vrot.slane %v4393, 4
      %v4396 = vrot.slane %v3885, 5
      %v4397 = vsel %vm1679, %v4395, %v4396
      %v4398 = vrot.slane %v4286, 5
      %v4399 = vrot.slane %v4398, 4
      %v4400 = vrot.slane %v3863, 5
      %v4401 = vsel %vm1679, %v4399, %v4400
      %v4402 = vrot.slane %v4400, 4
      %v4403 = vrot.slane %v3886, 5
      %v4404 = vsel %vm1679, %v4402, %v4403
      %v4405 = vrot.slane %v4287, 5
      %v4406 = vrot.slane %v4405, 4
      %v4407 = vrot.slane %v3865, 5
      %v4408 = vsel %vm1679, %v4406, %v4407
      %v4409 = vrot.slane %v4407, 4
      %v4410 = vrot.slane %v3887, 5
      %v4411 = vsel %vm1679, %v4409, %v4410
      %v4412 = vrot.slane %v4288, 5
      %v4413 = vrot.slane %v4412, 4
      %v4414 = vrot.slane %v3867, 5
      %v4415 = vsel %vm1679, %v4413, %v4414
      %v4416 = vrot.slane %v4414, 4
      %v4417 = vrot.slane %v3888, 5
      %v4418 = vsel %vm1679, %v4416, %v4417
      %v4419 = vrot.slane %v4289, 5
      %v4420 = vrot.slane %v4419, 4
      %v4421 = vrot.slane %v3869, 5
      %v4422 = vsel %vm1679, %v4420, %v4421
      %v4423 = vrot.slane %v4421, 4
      %v4424 = vrot.slane %v3889, 5
      %v4425 = vsel %vm1679, %v4423, %v4424
      %v4426 = vrot.slane %v4290, 5
      %v4427 = vrot.slane %v4426, 4
      %v4428 = vrot.slane %v3871, 5
      %v4429 = vsel %vm1679, %v4427, %v4428
      %v4430 = vrot.slane %v4428, 4
      %v4431 = vrot.slane %v3890, 5
      %v4432 = vsel %vm1679, %v4430, %v4431
      %v4433 = vrot.slane %v4291, 5
      %v4434 = vrot.slane %v4433, 4
      %v4435 = vrot.slane %v3873, 5
      %v4436 = vsel %vm1679, %v4434, %v4435
      %v4437 = vrot.slane %v4435, 4
      %v4438 = vrot.slane %v3891, 5
      %v4439 = vsel %vm1679, %v4437, %v4438
      %v4440 = vrot.slane %v4292, 5
      %v4441 = vrot.slane %v4440, 4
      %v4442 = vrot.slane %v3875, 5
      %v4443 = vsel %vm1679, %v4441, %v4442
      %v4444 = vrot.slane %v4442, 4
      %v4445 = vrot.slane %v3892, 5
      %v4446 = vsel %vm1679, %v4444, %v4445
      %v4447 = vrot.slane %v4293, 5
      %v4448 = vrot.slane %v4447, 4
      %v4449 = vrot.slane %v3877, 5
      %v4450 = vsel %vm1679, %v4448, %v4449
      %v4451 = vrot.slane %v4449, 4
      %v4452 = vrot.slane %v3893, 5
      %v4453 = vsel %vm1679, %v4451, %v4452
      %v4470 = vunpack.c.l.b16 %v3846
      %v4471 = vunpack.c.l.b16 %v3847
      %v4472 = vunpack.c.l.b16 %v3848
      %v4473 = vunpack.c.l.b16 %v3849
      %v4474 = vunpack.c.l.b16 %v3850
      %v4475 = vunpack.c.l.b16 %v3851
      %v4476 = vunpack.c.l.b16 %v3852
      %v4477 = vunpack.c.l.b16 %v3853
      %v4478 = vunpack.c.l.b16 %v3854
      %v4479 = vunpack.c.l.b16 %v3855
      %v4480 = vunpack.c.l.b16 %v3856
      %v4481 = vunpack.c.l.b16 %v3857
      %v4482 = vunpack.c.l.b16 %v3858
      %v4483 = vunpack.c.l.b16 %v3859
      %v4484 = vunpack.c.l.b16 %v3860
      %v4485 = vunpack.c.l.b16 %v3861
      %v4486 = vunpack.c.l.b16 %v3862
      %v4487 = vunpack.c.l.b16 %v3863
      %v4488 = vunpack.c.l.b16 %v3864
      %v4489 = vunpack.c.l.b16 %v3865
      %v4490 = vunpack.c.l.b16 %v3866
      %v4491 = vunpack.c.l.b16 %v3867
      %v4492 = vunpack.c.l.b16 %v3868
      %v4493 = vunpack.c.l.b16 %v3869
      %v4494 = vunpack.c.l.b16 %v3870
      %v4495 = vunpack.c.l.b16 %v3871
      %v4496 = vunpack.c.l.b16 %v3872
      %v4497 = vunpack.c.l.b16 %v3873
      %v4498 = vunpack.c.l.b16 %v3874
      %v4499 = vunpack.c.l.b16 %v3875
      %v4500 = vunpack.c.l.b16 %v3876
      %v4501 = vunpack.c.l.b16 %v3877
      %v4502 = vpack.c.b16 %v4471, %v4470
      %v4503 = vpack.c.b16 %v4473, %v4472
      %v4504 = vpack.c.b16 %v4475, %v4474
      %v4505 = vpack.c.b16 %v4477, %v4476
      %v4506 = vpack.c.b16 %v4479, %v4478
      %v4507 = vpack.c.b16 %v4481, %v4480
      %v4508 = vpack.c.b16 %v4483, %v4482
      %v4509 = vpack.c.b16 %v4485, %v4484
      %v4510 = vpack.c.b16 %v4487, %v4486
      %v4511 = vpack.c.b16 %v4489, %v4488
      %v4512 = vpack.c.b16 %v4491, %v4490
      %v4513 = vpack.c.b16 %v4493, %v4492
      %v4514 = vpack.c.b16 %v4495, %v4494
      %v4515 = vpack.c.b16 %v4497, %v4496
      %v4516 = vpack.c.b16 %v4499, %v4498
      %v4517 = vpack.c.b16 %v4501, %v4500
      %v4534 = vunpack.c.l.b16 %v3907
      %v4535 = vunpack.c.l.b16 %v3917
      %v4536 = vunpack.c.l.b16 %v3931
      %v4537 = vunpack.c.l.b16 %v3941
      %v4538 = vunpack.c.l.b16 %v3955
      %v4539 = vunpack.c.l.b16 %v3965
      %v4540 = vunpack.c.l.b16 %v3979
      %v4541 = vunpack.c.l.b16 %v3989
      %v4542 = vunpack.c.l.b16 %v4003
      %v4543 = vunpack.c.l.b16 %v4013
      %v4544 = vunpack.c.l.b16 %v4027
      %v4545 = vunpack.c.l.b16 %v4037
      %v4546 = vunpack.c.l.b16 %v4051
      %v4547 = vunpack.c.l.b16 %v4061
      %v4548 = vunpack.c.l.b16 %v4075
      %v4549 = vunpack.c.l.b16 %v4085
      %v4550 = vunpack.c.l.b16 %v4099
      %v4551 = vunpack.c.l.b16 %v4109
      %v4552 = vunpack.c.l.b16 %v4123
      %v4553 = vunpack.c.l.b16 %v4133
      %v4554 = vunpack.c.l.b16 %v4147
      %v4555 = vunpack.c.l.b16 %v4157
      %v4556 = vunpack.c.l.b16 %v4171
      %v4557 = vunpack.c.l.b16 %v4181
      %v4558 = vunpack.c.l.b16 %v4195
      %v4559 = vunpack.c.l.b16 %v4205
      %v4560 = vunpack.c.l.b16 %v4219
      %v4561 = vunpack.c.l.b16 %v4229
      %v4562 = vunpack.c.l.b16 %v4243
      %v4563 = vunpack.c.l.b16 %v4253
      %v4564 = vunpack.c.l.b16 %v4267
      %v4565 = vunpack.c.l.b16 %v4277
      %v4566 = vpack.c.b16 %v4535, %v4534
      %v4567 = vpack.c.b16 %v4537, %v4536
      %v4568 = vpack.c.b16 %v4539, %v4538
      %v4569 = vpack.c.b16 %v4541, %v4540
      %v4570 = vpack.c.b16 %v4543, %v4542
      %v4571 = vpack.c.b16 %v4545, %v4544
      %v4572 = vpack.c.b16 %v4547, %v4546
      %v4573 = vpack.c.b16 %v4549, %v4548
      %v4574 = vpack.c.b16 %v4551, %v4550
      %v4575 = vpack.c.b16 %v4553, %v4552
      %v4576 = vpack.c.b16 %v4555, %v4554
      %v4577 = vpack.c.b16 %v4557, %v4556
      %v4578 = vpack.c.b16 %v4559, %v4558
      %v4579 = vpack.c.b16 %v4561, %v4560
      %v4580 = vpack.c.b16 %v4563, %v4562
      %v4581 = vpack.c.b16 %v4565, %v4564
      %v4598 = vunpack.c.l.b16 %v4345
      %v4599 = vunpack.c.l.b16 %v4348
      %v4600 = vunpack.c.l.b16 %v4352
      %v4601 = vunpack.c.l.b16 %v4355
      %v4602 = vunpack.c.l.b16 %v4359
      %v4603 = vunpack.c.l.b16 %v4362
      %v4604 = vunpack.c.l.b16 %v4366
      %v4605 = vunpack.c.l.b16 %v4369
      %v4606 = vunpack.c.l.b16 %v4373
      %v4607 = vunpack.c.l.b16 %v4376
      %v4608 = vunpack.c.l.b16 %v4380
      %v4609 = vunpack.c.l.b16 %v4383
      %v4610 = vunpack.c.l.b16 %v4387
      %v4611 = vunpack.c.l.b16 %v4390
      %v4612 = vunpack.c.l.b16 %v4394
      %v4613 = vunpack.c.l.b16 %v4397
      %v4614 = vunpack.c.l.b16 %v4401
      %v4615 = vunpack.c.l.b16 %v4404
      %v4616 = vunpack.c.l.b16 %v4408
      %v4617 = vunpack.c.l.b16 %v4411
      %v4618 = vunpack.c.l.b16 %v4415
      %v4619 = vunpack.c.l.b16 %v4418
      %v4620 = vunpack.c.l.b16 %v4422
      %v4621 = vunpack.c.l.b16 %v4425
      %v4622 = vunpack.c.l.b16 %v4429
      %v4623 = vunpack.c.l.b16 %v4432
      %v4624 = vunpack.c.l.b16 %v4436
      %v4625 = vunpack.c.l.b16 %v4439
      %v4626 = vunpack.c.l.b16 %v4443
      %v4627 = vunpack.c.l.b16 %v4446
      %v4628 = vunpack.c.l.b16 %v4450
      %v4629 = vunpack.c.l.b16 %v4453
      %v4630 = vpack.c.b16 %v4599, %v4598
      %v4631 = vpack.c.b16 %v4601, %v4600
      %v4632 = vpack.c.b16 %v4603, %v4602
      %v4633 = vpack.c.b16 %v4605, %v4604
      %v4634 = vpack.c.b16 %v4607, %v4606
      %v4635 = vpack.c.b16 %v4609, %v4608
      %v4636 = vpack.c.b16 %v4611, %v4610
      %v4637 = vpack.c.b16 %v4613, %v4612
      %v4638 = vpack.c.b16 %v4615, %v4614
      %v4639 = vpack.c.b16 %v4617, %v4616
      %v4640 = vpack.c.b16 %v4619, %v4618
      %v4641 = vpack.c.b16 %v4621, %v4620
      %v4642 = vpack.c.b16 %v4623, %v4622
      %v4643 = vpack.c.b16 %v4625, %v4624
      %v4644 = vpack.c.b16 %v4627, %v4626
      %v4645 = vpack.c.b16 %v4629, %v4628
      %s4662 = scalar_lea.vmem %s4, 384
      %v4663 = vld [vmem:[%s4662] sm:$0xf]
      %v4664 = vld [vmem:[%s4662 + $0x4] sm:$0xf]
      %v4665 = vld [vmem:[%s4662 + $0x8] sm:$0xf]
      %v4666 = vld [vmem:[%s4662 + $0xc] sm:$0xf]
      %v4667 = vld [vmem:[%s4662 + $0x10] sm:$0xf]
      %v4668 = vld [vmem:[%s4662 + $0x14] sm:$0xf]
      %v4669 = vld [vmem:[%s4662 + $0x18] sm:$0xf]
      %v4670 = vld [vmem:[%s4662 + $0x1c] sm:$0xf]
      %v4671 = vld [vmem:[%s4662 + $0x20] sm:$0xf]
      %v4672 = vld [vmem:[%s4662 + $0x24] sm:$0xf]
      %v4673 = vld [vmem:[%s4662 + $0x28] sm:$0xf]
      %v4674 = vld [vmem:[%s4662 + $0x2c] sm:$0xf]
      %v4675 = vld [vmem:[%s4662 + $0x30] sm:$0xf]
      %v4676 = vld [vmem:[%s4662 + $0x34] sm:$0xf]
      %v4677 = vld [vmem:[%s4662 + $0x38] sm:$0xf]
      %v4678 = vld [vmem:[%s4662 + $0x3c] sm:$0xf]
      %v4679 = vld [vmem:[%s4662 + $0x40] sm:$0xf]
      %v4680 = vld [vmem:[%s4662 + $0x44] sm:$0xf]
      %v4681 = vld [vmem:[%s4662 + $0x48] sm:$0xf]
      %v4682 = vld [vmem:[%s4662 + $0x4c] sm:$0xf]
      %v4683 = vld [vmem:[%s4662 + $0x50] sm:$0xf]
      %v4684 = vld [vmem:[%s4662 + $0x54] sm:$0xf]
      %v4685 = vld [vmem:[%s4662 + $0x58] sm:$0xf]
      %v4686 = vld [vmem:[%s4662 + $0x5c] sm:$0xf]
      %v4687 = vld [vmem:[%s4662 + $0x60] sm:$0xf]
      %v4688 = vld [vmem:[%s4662 + $0x64] sm:$0xf]
      %v4689 = vld [vmem:[%s4662 + $0x68] sm:$0xf]
      %v4690 = vld [vmem:[%s4662 + $0x6c] sm:$0xf]
      %v4691 = vld [vmem:[%s4662 + $0x70] sm:$0xf]
      %v4692 = vld [vmem:[%s4662 + $0x74] sm:$0xf]
      %v4693 = vld [vmem:[%s4662 + $0x78] sm:$0xf]
      %v4694 = vld [vmem:[%s4662 + $0x7c] sm:$0xf]
      %v4695 = vld [vmem:[%s4662 + $0x80] sm:$0xf]
      %v4696 = vld [vmem:[%s4662 + $0x84] sm:$0xf]
      %v4697 = vld [vmem:[%s4662 + $0x88] sm:$0xf]
      %v4698 = vld [vmem:[%s4662 + $0x8c] sm:$0xf]
      %v4699 = vld [vmem:[%s4662 + $0x90] sm:$0xf]
      %v4700 = vld [vmem:[%s4662 + $0x94] sm:$0xf]
      %v4701 = vld [vmem:[%s4662 + $0x98] sm:$0xf]
      %v4702 = vld [vmem:[%s4662 + $0x9c] sm:$0xf]
      %v4703 = vld [vmem:[%s4662 + $0xa0] sm:$0xf]
      %v4704 = vld [vmem:[%s4662 + $0xa4] sm:$0xf]
      %v4705 = vld [vmem:[%s4662 + $0xa8] sm:$0xf]
      %v4706 = vld [vmem:[%s4662 + $0xac] sm:$0xf]
      %v4707 = vld [vmem:[%s4662 + $0xb0] sm:$0xf]
      %v4708 = vld [vmem:[%s4662 + $0xb4] sm:$0xf]
      %v4709 = vld [vmem:[%s4662 + $0xb8] sm:$0xf]
      %v4710 = vld [vmem:[%s4662 + $0xbc] sm:$0xf]
      %v4759 = vunpack.c.l.b16 %v4663
      %v4760 = vunpack.c.l.b16 %v4664
      %v4761 = vunpack.c.l.b16 %v4665
      %v4762 = vunpack.c.l.b16 %v4666
      %v4763 = vunpack.c.l.b16 %v4667
      %v4764 = vunpack.c.l.b16 %v4668
      %v4765 = vunpack.c.l.b16 %v4669
      %v4766 = vunpack.c.l.b16 %v4670
      %v4767 = vunpack.c.l.b16 %v4671
      %v4768 = vunpack.c.l.b16 %v4672
      %v4769 = vunpack.c.l.b16 %v4673
      %v4770 = vunpack.c.l.b16 %v4674
      %v4771 = vunpack.c.l.b16 %v4675
      %v4772 = vunpack.c.l.b16 %v4676
      %v4773 = vunpack.c.l.b16 %v4677
      %v4774 = vunpack.c.l.b16 %v4678
      %v4775 = vunpack.c.l.b16 %v4679
      %v4776 = vunpack.c.l.b16 %v4680
      %v4777 = vunpack.c.l.b16 %v4681
      %v4778 = vunpack.c.l.b16 %v4682
      %v4779 = vunpack.c.l.b16 %v4683
      %v4780 = vunpack.c.l.b16 %v4684
      %v4781 = vunpack.c.l.b16 %v4685
      %v4782 = vunpack.c.l.b16 %v4686
      %v4783 = vunpack.c.l.b16 %v4687
      %v4784 = vunpack.c.l.b16 %v4688
      %v4785 = vunpack.c.l.b16 %v4689
      %v4786 = vunpack.c.l.b16 %v4690
      %v4787 = vunpack.c.l.b16 %v4691
      %v4788 = vunpack.c.l.b16 %v4692
      %v4789 = vunpack.c.l.b16 %v4693
      %v4790 = vunpack.c.l.b16 %v4694
      %v4791 = vunpack.c.l.b16 %v4695
      %v4792 = vunpack.c.l.b16 %v4696
      %v4793 = vunpack.c.l.b16 %v4697
      %v4794 = vunpack.c.l.b16 %v4698
      %v4795 = vunpack.c.l.b16 %v4699
      %v4796 = vunpack.c.l.b16 %v4700
      %v4797 = vunpack.c.l.b16 %v4701
      %v4798 = vunpack.c.l.b16 %v4702
      %v4799 = vunpack.c.l.b16 %v4703
      %v4800 = vunpack.c.l.b16 %v4704
      %v4801 = vunpack.c.l.b16 %v4705
      %v4802 = vunpack.c.l.b16 %v4706
      %v4803 = vunpack.c.l.b16 %v4707
      %v4804 = vunpack.c.l.b16 %v4708
      %v4805 = vunpack.c.l.b16 %v4709
      %v4806 = vunpack.c.l.b16 %v4710
      %v4807 = vpack.c.b16 %v4760, %v4759
      %v4808 = vpack.c.b16 %v4762, %v4761
      %v4809 = vpack.c.b16 %v4764, %v4763
      %v4810 = vpack.c.b16 %v4766, %v4765
      %v4811 = vpack.c.b16 %v4768, %v4767
      %v4812 = vpack.c.b16 %v4770, %v4769
      %v4813 = vpack.c.b16 %v4772, %v4771
      %v4814 = vpack.c.b16 %v4774, %v4773
      %v4815 = vpack.c.b16 %v4776, %v4775
      %v4816 = vpack.c.b16 %v4778, %v4777
      %v4817 = vpack.c.b16 %v4780, %v4779
      %v4818 = vpack.c.b16 %v4782, %v4781
      %v4819 = vpack.c.b16 %v4784, %v4783
      %v4820 = vpack.c.b16 %v4786, %v4785
      %v4821 = vpack.c.b16 %v4788, %v4787
      %v4822 = vpack.c.b16 %v4790, %v4789
      %v4823 = vpack.c.b16 %v4792, %v4791
      %v4824 = vpack.c.b16 %v4794, %v4793
      %v4825 = vpack.c.b16 %v4796, %v4795
      %v4826 = vpack.c.b16 %v4798, %v4797
      %v4827 = vpack.c.b16 %v4800, %v4799
      %v4828 = vpack.c.b16 %v4802, %v4801
      %v4829 = vpack.c.b16 %v4804, %v4803
      %v4830 = vpack.c.b16 %v4806, %v4805
      %4855 = vmatprep.subr.bf16.mxu0 0
      %4856 = vmatpush1.bf16.msra.mxu0 %v4807
      %4857 = vmatprep.subr.bf16.mxu0 0
      %4858 = vmatpush1.bf16.msra.mxu0 %v4808
      %4859 = vmatprep.subr.bf16.mxu0 0
      %4860 = vmatpush1.bf16.msra.mxu0 %v4809
      %4861 = vmatprep.subr.bf16.mxu0 0
      %4862 = vmatpush1.bf16.msra.mxu0 %v4810
      %4863 = vmatprep.subr.bf16.mxu0 0
      %4864 = vmatpush1.bf16.msra.mxu0 %v4811
      %4865 = vmatprep.subr.bf16.mxu0 0
      %4866 = vmatpush1.bf16.msra.mxu0 %v4812
      %4867 = vmatprep.subr.bf16.mxu0 0
      %4868 = vmatpush1.bf16.msra.mxu0 %v4813
      %4869 = vmatprep.subr.bf16.mxu0 0
      %4870 = vmatpush1.bf16.msra.mxu0 %v4814
      %4871 = vmatprep.subr.bf16.mxu0 0
      %4872 = vmatpush1.bf16.msra.mxu0 %v4815
      %4873 = vmatprep.subr.bf16.mxu0 0
      %4874 = vmatpush1.bf16.msra.mxu0 %v4816
      %4875 = vmatprep.subr.bf16.mxu0 0
      %4876 = vmatpush1.bf16.msra.mxu0 %v4817
      %4877 = vmatprep.subr.bf16.mxu0 0
      %4878 = vmatpush1.bf16.msra.mxu0 %v4818
      %4879 = vmatprep.subr.bf16.mxu0 0
      %4880 = vmatpush1.bf16.msra.mxu0 %v4819
      %4881 = vmatprep.subr.bf16.mxu0 0
      %4882 = vmatpush1.bf16.msra.mxu0 %v4820
      %4883 = vmatprep.subr.bf16.mxu0 0
      %4884 = vmatpush1.bf16.msra.mxu0 %v4821
      %4885 = vmatprep.subr.bf16.mxu0 0
      %4886 = vmatpush1.bf16.msra.mxu0 %v4822
      %4887 = vmatprep.mubr.bf16.mxu0 %v4566
      %4888 = vmatmul.mubr.bf16.gmra.mrb[0].mxu0 %v4502
      %v4889 = vpop.f32.mrb[0].mxu0
      %v4890 = vadd.f32 0.0, %v4889
      %v4891 = vpop.f32.mrb[0].mxu0
      %v4892 = vpop.f32.mrb[0].mxu0
      %v4893 = vadd.f32 0.0, %v4892
      %v4894 = vpop.f32.mrb[0].mxu0
      %4895 = vmatprep.mubr.bf16.mxu0 %v4567
      %4896 = vmatmul.mubr.bf16.gmra.mrb[0].mxu0 %v4503
      %v4897 = vpop.f32.mrb[0].mxu0
      %v4898 = vadd.f32 0.0, %v4897
      %v4899 = vpop.f32.mrb[0].mxu0
      %v4900 = vpop.f32.mrb[0].mxu0
      %v4901 = vadd.f32 0.0, %v4900
      %v4902 = vpop.f32.mrb[0].mxu0
      %4903 = vmatprep.mubr.bf16.mxu0 %v4568
      %4904 = vmatmul.mubr.bf16.gmra.mrb[0].mxu0 %v4504
      %v4905 = vpop.f32.mrb[0].mxu0
      %v4906 = vadd.f32 0.0, %v4905
      %v4907 = vpop.f32.mrb[0].mxu0
      %v4908 = vpop.f32.mrb[0].mxu0
      %v4909 = vadd.f32 0.0, %v4908
      %v4910 = vpop.f32.mrb[0].mxu0
      %4911 = vmatprep.mubr.bf16.mxu0 %v4569
      %4912 = vmatmul.mubr.bf16.gmra.mrb[0].mxu0 %v4505
      %v4913 = vpop.f32.mrb[0].mxu0
      %v4914 = vadd.f32 0.0, %v4913
      %v4915 = vpop.f32.mrb[0].mxu0
      %v4916 = vpop.f32.mrb[0].mxu0
      %v4917 = vadd.f32 0.0, %v4916
      %v4918 = vpop.f32.mrb[0].mxu0
      %4919 = vmatprep.mubr.bf16.mxu0 %v4570
      %4920 = vmatmul.mubr.bf16.gmra.mrb[0].mxu0 %v4506
      %v4921 = vpop.f32.mrb[0].mxu0
      %v4922 = vadd.f32 0.0, %v4921
      %v4923 = vpop.f32.mrb[0].mxu0
      %v4924 = vpop.f32.mrb[0].mxu0
      %v4925 = vadd.f32 0.0, %v4924
      %v4926 = vpop.f32.mrb[0].mxu0
      %4927 = vmatprep.mubr.bf16.mxu0 %v4571
      %4928 = vmatmul.mubr.bf16.gmra.mrb[0].mxu0 %v4507
      %v4929 = vpop.f32.mrb[0].mxu0
      %v4930 = vadd.f32 0.0, %v4929
      %v4931 = vpop.f32.mrb[0].mxu0
      %v4932 = vpop.f32.mrb[0].mxu0
      %v4933 = vadd.f32 0.0, %v4932
      %v4934 = vpop.f32.mrb[0].mxu0
      %4935 = vmatprep.mubr.bf16.mxu0 %v4572
      %4936 = vmatmul.mubr.bf16.gmra.mrb[0].mxu0 %v4508
      %v4937 = vpop.f32.mrb[0].mxu0
      %v4938 = vadd.f32 0.0, %v4937
      %v4939 = vpop.f32.mrb[0].mxu0
      %v4940 = vpop.f32.mrb[0].mxu0
      %v4941 = vadd.f32 0.0, %v4940
      %v4942 = vpop.f32.mrb[0].mxu0
      %4943 = vmatprep.mubr.bf16.mxu0 %v4573
      %4944 = vmatmul.mubr.bf16.gmra.mrb[0].mxu0 %v4509
      %v4945 = vpop.f32.mrb[0].mxu0
      %v4946 = vadd.f32 0.0, %v4945
      %v4947 = vpop.f32.mrb[0].mxu0
      %v4948 = vpop.f32.mrb[0].mxu0
      %v4949 = vadd.f32 0.0, %v4948
      %v4950 = vpop.f32.mrb[0].mxu0
      %4951 = vmatprep.mubr.bf16.mxu0 %v4574
      %4952 = vmatmul.mubr.bf16.gmra.mrb[0].mxu0 %v4510
      %v4953 = vpop.f32.mrb[0].mxu0
      %v4954 = vadd.f32 0.0, %v4953
      %v4955 = vpop.f32.mrb[0].mxu0
      %v4956 = vpop.f32.mrb[0].mxu0
      %v4957 = vadd.f32 0.0, %v4956
      %v4958 = vpop.f32.mrb[0].mxu0
      %4959 = vmatprep.mubr.bf16.mxu0 %v4575
      %4960 = vmatmul.mubr.bf16.gmra.mrb[0].mxu0 %v4511
      %v4961 = vpop.f32.mrb[0].mxu0
      %v4962 = vadd.f32 0.0, %v4961
      %v4963 = vpop.f32.mrb[0].mxu0
      %v4964 = vpop.f32.mrb[0].mxu0
      %v4965 = vadd.f32 0.0, %v4964
      %v4966 = vpop.f32.mrb[0].mxu0
      %4967 = vmatprep.mubr.bf16.mxu0 %v4576
      %4968 = vmatmul.mubr.bf16.gmra.mrb[0].mxu0 %v4512
      %v4969 = vpop.f32.mrb[0].mxu0
      %v4970 = vadd.f32 0.0, %v4969
      %v4971 = vpop.f32.mrb[0].mxu0
      %v4972 = vpop.f32.mrb[0].mxu0
      %v4973 = vadd.f32 0.0, %v4972
      %v4974 = vpop.f32.mrb[0].mxu0
      %4975 = vmatprep.mubr.bf16.mxu0 %v4577
      %4976 = vmatmul.mubr.bf16.gmra.mrb[0].mxu0 %v4513
      %v4977 = vpop.f32.mrb[0].mxu0
      %v4978 = vadd.f32 0.0, %v4977
      %v4979 = vpop.f32.mrb[0].mxu0
      %v4980 = vpop.f32.mrb[0].mxu0
      %v4981 = vadd.f32 0.0, %v4980
      %v4982 = vpop.f32.mrb[0].mxu0
      %4983 = vmatprep.mubr.bf16.mxu0 %v4578
      %4984 = vmatmul.mubr.bf16.gmra.mrb[0].mxu0 %v4514
      %v4985 = vpop.f32.mrb[0].mxu0
      %v4986 = vadd.f32 0.0, %v4985
      %v4987 = vpop.f32.mrb[0].mxu0
      %v4988 = vpop.f32.mrb[0].mxu0
      %v4989 = vadd.f32 0.0, %v4988
      %v4990 = vpop.f32.mrb[0].mxu0
      %4991 = vmatprep.mubr.bf16.mxu0 %v4579
      %4992 = vmatmul.mubr.bf16.gmra.mrb[0].mxu0 %v4515
      %v4993 = vpop.f32.mrb[0].mxu0
      %v4994 = vadd.f32 0.0, %v4993
      %v4995 = vpop.f32.mrb[0].mxu0
      %v4996 = vpop.f32.mrb[0].mxu0
      %v4997 = vadd.f32 0.0, %v4996
      %v4998 = vpop.f32.mrb[0].mxu0
      %4999 = vmatprep.mubr.bf16.mxu0 %v4580
      %5000 = vmatmul.mubr.bf16.gmra.mrb[0].mxu0 %v4516
      %v5001 = vpop.f32.mrb[0].mxu0
      %v5002 = vadd.f32 0.0, %v5001
      %v5003 = vpop.f32.mrb[0].mxu0
      %v5004 = vpop.f32.mrb[0].mxu0
      %v5005 = vadd.f32 0.0, %v5004
      %v5006 = vpop.f32.mrb[0].mxu0
      %5007 = vmatprep.mubr.bf16.mxu0 %v4581
      %5008 = vmatmul.mubr.bf16.gmra.mrb[0].mxu0 %v4517
      %v5009 = vpop.f32.mrb[0].mxu0
      %v5010 = vadd.f32 0.0, %v5009
      %v5011 = vpop.f32.mrb[0].mxu0
      %v5012 = vpop.f32.mrb[0].mxu0
      %v5013 = vadd.f32 0.0, %v5012
      %v5014 = vpop.f32.mrb[0].mxu0
      %5015 = vdwg.mxu0
      %5016 = vmatprep.subr.bf16.mxu0 0
      %5017 = vmatpush1.bf16.msra.mxu0 %v4823
      %5018 = vmatprep.subr.bf16.mxu0 0
      %5019 = vmatpush1.bf16.msra.mxu0 %v4824
      %5020 = vmatprep.subr.bf16.mxu0 0
      %5021 = vmatpush1.bf16.msra.mxu0 %v4825
      %5022 = vmatprep.subr.bf16.mxu0 0
      %5023 = vmatpush1.bf16.msra.mxu0 %v4826
      %5024 = vmatprep.subr.bf16.mxu0 0
      %5025 = vmatpush1.bf16.msra.mxu0 %v4827
      %5026 = vmatprep.subr.bf16.mxu0 0
      %5027 = vmatpush1.bf16.msra.mxu0 %v4828
      %5028 = vmatprep.subr.bf16.mxu0 0
      %5029 = vmatpush1.bf16.msra.mxu0 %v4829
      %5030 = vmatprep.subr.bf16.mxu0 0
      %5031 = vmatpush1.bf16.msra.mxu0 %v4830
      %5032 = vmatprep.subr.bf16.mxu0 0
      %5033 = vmatpush1.bf16.msra.mxu0 0
      %5034 = vmatprep.subr.bf16.mxu0 0
      %5035 = vmatpush1.bf16.msra.mxu0 0
      %5036 = vmatprep.subr.bf16.mxu0 0
      %5037 = vmatpush1.bf16.msra.mxu0 0
      %5038 = vmatprep.subr.bf16.mxu0 0
      %5039 = vmatpush1.bf16.msra.mxu0 0
      %5040 = vmatprep.subr.bf16.mxu0 0
      %5041 = vmatpush1.bf16.msra.mxu0 0
      %5042 = vmatprep.subr.bf16.mxu0 0
      %5043 = vmatpush1.bf16.msra.mxu0 0
      %5044 = vmatprep.subr.bf16.mxu0 0
      %5045 = vmatpush1.bf16.msra.mxu0 0
      %5046 = vmatprep.subr.bf16.mxu0 0
      %5047 = vmatpush1.bf16.msra.mxu0 0
      %5048 = vmatprep.mubr.bf16.mxu0 0
      %5049 = vmatmul.mubr.bf16.gmra.mrb[0].mxu0 %v4630
      %v5050 = vpop.f32.mrb[0].mxu0
      %v5051 = vadd.f32 %v4890, %v5050
      %v5052 = vpop.f32.mrb[0].mxu0
      %v5053 = vpop.f32.mrb[0].mxu0
      %v5054 = vadd.f32 %v4893, %v5053
      %v5055 = vpop.f32.mrb[0].mxu0
      %5056 = vmatprep.mubr.bf16.mxu0 0
      %5057 = vmatmul.mubr.bf16.gmra.mrb[0].mxu0 %v4631
      %v5058 = vpop.f32.mrb[0].mxu0
      %v5059 = vadd.f32 %v4898, %v5058
      %v5060 = vpop.f32.mrb[0].mxu0
      %v5061 = vpop.f32.mrb[0].mxu0
      %v5062 = vadd.f32 %v4901, %v5061
      %v5063 = vpop.f32.mrb[0].mxu0
      %5064 = vmatprep.mubr.bf16.mxu0 0
      %5065 = vmatmul.mubr.bf16.gmra.mrb[0].mxu0 %v4632
      %v5066 = vpop.f32.mrb[0].mxu0
      %v5067 = vadd.f32 %v4906, %v5066
      %v5068 = vpop.f32.mrb[0].mxu0
      %v5069 = vpop.f32.mrb[0].mxu0
      %v5070 = vadd.f32 %v4909, %v5069
      %v5071 = vpop.f32.mrb[0].mxu0
      %5072 = vmatprep.mubr.bf16.mxu0 0
      %5073 = vmatmul.mubr.bf16.gmra.mrb[0].mxu0 %v4633
      %v5074 = vpop.f32.mrb[0].mxu0
      %v5075 = vadd.f32 %v4914, %v5074
      %v5076 = vpop.f32.mrb[0].mxu0
      %v5077 = vpop.f32.mrb[0].mxu0
      %v5078 = vadd.f32 %v4917, %v5077
      %v5079 = vpop.f32.mrb[0].mxu0
      %5080 = vmatprep.mubr.bf16.mxu0 0
      %5081 = vmatmul.mubr.bf16.gmra.mrb[0].mxu0 %v4634
      %v5082 = vpop.f32.mrb[0].mxu0
      %v5083 = vadd.f32 %v4922, %v5082
      %v5084 = vpop.f32.mrb[0].mxu0
      %v5085 = vpop.f32.mrb[0].mxu0
      %v5086 = vadd.f32 %v4925, %v5085
      %v5087 = vpop.f32.mrb[0].mxu0
      %5088 = vmatprep.mubr.bf16.mxu0 0
      %5089 = vmatmul.mubr.bf16.gmra.mrb[0].mxu0 %v4635
      %v5090 = vpop.f32.mrb[0].mxu0
      %v5091 = vadd.f32 %v4930, %v5090
      %v5092 = vpop.f32.mrb[0].mxu0
      %v5093 = vpop.f32.mrb[0].mxu0
      %v5094 = vadd.f32 %v4933, %v5093
      %v5095 = vpop.f32.mrb[0].mxu0
      %5096 = vmatprep.mubr.bf16.mxu0 0
      %5097 = vmatmul.mubr.bf16.gmra.mrb[0].mxu0 %v4636
      %v5098 = vpop.f32.mrb[0].mxu0
      %v5099 = vadd.f32 %v4938, %v5098
      %v5100 = vpop.f32.mrb[0].mxu0
      %v5101 = vpop.f32.mrb[0].mxu0
      %v5102 = vadd.f32 %v4941, %v5101
      %v5103 = vpop.f32.mrb[0].mxu0
      %5104 = vmatprep.mubr.bf16.mxu0 0
      %5105 = vmatmul.mubr.bf16.gmra.mrb[0].mxu0 %v4637
      %v5106 = vpop.f32.mrb[0].mxu0
      %v5107 = vadd.f32 %v4946, %v5106
      %v5108 = vpop.f32.mrb[0].mxu0
      %v5109 = vpop.f32.mrb[0].mxu0
      %v5110 = vadd.f32 %v4949, %v5109
      %v5111 = vpop.f32.mrb[0].mxu0
      %5112 = vmatprep.mubr.bf16.mxu0 0
      %5113 = vmatmul.mubr.bf16.gmra.mrb[0].mxu0 %v4638
      %v5114 = vpop.f32.mrb[0].mxu0
      %v5115 = vadd.f32 %v4954, %v5114
      %v5116 = vpop.f32.mrb[0].mxu0
      %v5117 = vpop.f32.mrb[0].mxu0
      %v5118 = vadd.f32 %v4957, %v5117
      %v5119 = vpop.f32.mrb[0].mxu0
      %5120 = vmatprep.mubr.bf16.mxu0 0
      %5121 = vmatmul.mubr.bf16.gmra.mrb[0].mxu0 %v4639
      %v5122 = vpop.f32.mrb[0].mxu0
      %v5123 = vadd.f32 %v4962, %v5122
      %v5124 = vpop.f32.mrb[0].mxu0
      %v5125 = vpop.f32.mrb[0].mxu0
      %v5126 = vadd.f32 %v4965, %v5125
      %v5127 = vpop.f32.mrb[0].mxu0
      %5128 = vmatprep.mubr.bf16.mxu0 0
      %5129 = vmatmul.mubr.bf16.gmra.mrb[0].mxu0 %v4640
      %v5130 = vpop.f32.mrb[0].mxu0
      %v5131 = vadd.f32 %v4970, %v5130
      %v5132 = vpop.f32.mrb[0].mxu0
      %v5133 = vpop.f32.mrb[0].mxu0
      %v5134 = vadd.f32 %v4973, %v5133
      %v5135 = vpop.f32.mrb[0].mxu0
      %5136 = vmatprep.mubr.bf16.mxu0 0
      %5137 = vmatmul.mubr.bf16.gmra.mrb[0].mxu0 %v4641
      %v5138 = vpop.f32.mrb[0].mxu0
      %v5139 = vadd.f32 %v4978, %v5138
      %v5140 = vpop.f32.mrb[0].mxu0
      %v5141 = vpop.f32.mrb[0].mxu0
      %v5142 = vadd.f32 %v4981, %v5141
      %v5143 = vpop.f32.mrb[0].mxu0
      %5144 = vmatprep.mubr.bf16.mxu0 0
      %5145 = vmatmul.mubr.bf16.gmra.mrb[0].mxu0 %v4642
      %v5146 = vpop.f32.mrb[0].mxu0
      %v5147 = vadd.f32 %v4986, %v5146
      %v5148 = vpop.f32.mrb[0].mxu0
      %v5149 = vpop.f32.mrb[0].mxu0
      %v5150 = vadd.f32 %v4989, %v5149
      %v5151 = vpop.f32.mrb[0].mxu0
      %5152 = vmatprep.mubr.bf16.mxu0 0
      %5153 = vmatmul.mubr.bf16.gmra.mrb[0].mxu0 %v4643
      %v5154 = vpop.f32.mrb[0].mxu0
      %v5155 = vadd.f32 %v4994, %v5154
      %v5156 = vpop.f32.mrb[0].mxu0
      %v5157 = vpop.f32.mrb[0].mxu0
      %v5158 = vadd.f32 %v4997, %v5157
      %v5159 = vpop.f32.mrb[0].mxu0
      %5160 = vmatprep.mubr.bf16.mxu0 0
      %5161 = vmatmul.mubr.bf16.gmra.mrb[0].mxu0 %v4644
      %v5162 = vpop.f32.mrb[0].mxu0
      %v5163 = vadd.f32 %v5002, %v5162
      %v5164 = vpop.f32.mrb[0].mxu0
      %v5165 = vpop.f32.mrb[0].mxu0
      %v5166 = vadd.f32 %v5005, %v5165
      %v5167 = vpop.f32.mrb[0].mxu0
      %5168 = vmatprep.mubr.bf16.mxu0 0
      %5169 = vmatmul.mubr.bf16.gmra.mrb[0].mxu0 %v4645
      %v5170 = vpop.f32.mrb[0].mxu0
      %v5171 = vadd.f32 %v5010, %v5170
      %v5172 = vpop.f32.mrb[0].mxu0
      %v5173 = vpop.f32.mrb[0].mxu0
      %v5174 = vadd.f32 %v5013, %v5173
      %v5175 = vpop.f32.mrb[0].mxu0
      %5176 = vdwg.mxu0
      %v5177 = vadd.f32 %v3719, %v5051
      %v5178 = vadd.f32 %v3722, %v5054
      %v5179 = vadd.f32 %v3727, %v5059
      %v5180 = vadd.f32 %v3730, %v5062
      %v5181 = vadd.f32 %v3735, %v5067
      %v5182 = vadd.f32 %v3738, %v5070
      %v5183 = vadd.f32 %v3743, %v5075
      %v5184 = vadd.f32 %v3746, %v5078
      %v5185 = vadd.f32 %v3751, %v5083
      %v5186 = vadd.f32 %v3754, %v5086
      %v5187 = vadd.f32 %v3759, %v5091
      %v5188 = vadd.f32 %v3762, %v5094
      %v5189 = vadd.f32 %v3767, %v5099
      %v5190 = vadd.f32 %v3770, %v5102
      %v5191 = vadd.f32 %v3775, %v5107
      %v5192 = vadd.f32 %v3778, %v5110
      %v5193 = vadd.f32 %v3783, %v5115
      %v5194 = vadd.f32 %v3786, %v5118
      %v5195 = vadd.f32 %v3791, %v5123
      %v5196 = vadd.f32 %v3794, %v5126
      %v5197 = vadd.f32 %v3799, %v5131
      %v5198 = vadd.f32 %v3802, %v5134
      %v5199 = vadd.f32 %v3807, %v5139
      %v5200 = vadd.f32 %v3810, %v5142
      %v5201 = vadd.f32 %v3815, %v5147
      %v5202 = vadd.f32 %v3818, %v5150
      %v5203 = vadd.f32 %v3823, %v5155
      %v5204 = vadd.f32 %v3826, %v5158
      %v5205 = vadd.f32 %v3831, %v5163
      %v5206 = vadd.f32 %v3834, %v5166
      %v5207 = vadd.f32 %v3839, %v5171
      %v5208 = vadd.f32 %v3842, %v5174
      %v5209 = vpack.c.bf16 %v5178, %v5177
      %v5210 = vpack.c.bf16 %v5180, %v5179
      %v5211 = vpack.c.bf16 %v5182, %v5181
      %v5212 = vpack.c.bf16 %v5184, %v5183
      %v5213 = vpack.c.bf16 %v5186, %v5185
      %v5214 = vpack.c.bf16 %v5188, %v5187
      %v5215 = vpack.c.bf16 %v5190, %v5189
      %v5216 = vpack.c.bf16 %v5192, %v5191
      %v5217 = vpack.c.bf16 %v5194, %v5193
      %v5218 = vpack.c.bf16 %v5196, %v5195
      %v5219 = vpack.c.bf16 %v5198, %v5197
      %v5220 = vpack.c.bf16 %v5200, %v5199
      %v5221 = vpack.c.bf16 %v5202, %v5201
      %v5222 = vpack.c.bf16 %v5204, %v5203
      %v5223 = vpack.c.bf16 %v5206, %v5205
      %v5224 = vpack.c.bf16 %v5208, %v5207
      %v5241 = vunpack.c.l.b16 %v5209
      %v5242 = vunpack.c.h.b16 %v5209
      %v5243 = vunpack.c.l.b16 %v5210
      %v5244 = vunpack.c.h.b16 %v5210
      %v5245 = vunpack.c.l.b16 %v5211
      %v5246 = vunpack.c.h.b16 %v5211
      %v5247 = vunpack.c.l.b16 %v5212
      %v5248 = vunpack.c.h.b16 %v5212
      %v5249 = vunpack.c.l.b16 %v5213
      %v5250 = vunpack.c.h.b16 %v5213
      %v5251 = vunpack.c.l.b16 %v5214
      %v5252 = vunpack.c.h.b16 %v5214
      %v5253 = vunpack.c.l.b16 %v5215
      %v5254 = vunpack.c.h.b16 %v5215
      %v5255 = vunpack.c.l.b16 %v5216
      %v5256 = vunpack.c.h.b16 %v5216
      %v5257 = vunpack.c.l.b16 %v5217
      %v5258 = vunpack.c.h.b16 %v5217
      %v5259 = vunpack.c.l.b16 %v5218
      %v5260 = vunpack.c.h.b16 %v5218
      %v5261 = vunpack.c.l.b16 %v5219
      %v5262 = vunpack.c.h.b16 %v5219
      %v5263 = vunpack.c.l.b16 %v5220
      %v5264 = vunpack.c.h.b16 %v5220
      %v5265 = vunpack.c.l.b16 %v5221
      %v5266 = vunpack.c.h.b16 %v5221
      %v5267 = vunpack.c.l.b16 %v5222
      %v5268 = vunpack.c.h.b16 %v5222
      %v5269 = vunpack.c.l.b16 %v5223
      %v5270 = vunpack.c.h.b16 %v5223
      %v5271 = vunpack.c.l.b16 %v5224
      %v5272 = vunpack.c.h.b16 %v5224
      %v5273 = vpack.c.b16 %v5241, %v5241
      %v5274 = vpack.c.b16 %v5242, %v5242
      %v5275 = vpack.c.b16 %v5243, %v5243
      %v5276 = vpack.c.b16 %v5244, %v5244
      %v5277 = vpack.c.b16 %v5245, %v5245
      %v5278 = vpack.c.b16 %v5246, %v5246
      %v5279 = vpack.c.b16 %v5247, %v5247
      %v5280 = vpack.c.b16 %v5248, %v5248
      %v5281 = vpack.c.b16 %v5249, %v5249
      %v5282 = vpack.c.b16 %v5250, %v5250
      %v5283 = vpack.c.b16 %v5251, %v5251
      %v5284 = vpack.c.b16 %v5252, %v5252
      %v5285 = vpack.c.b16 %v5253, %v5253
      %v5286 = vpack.c.b16 %v5254, %v5254
      %v5287 = vpack.c.b16 %v5255, %v5255
      %v5288 = vpack.c.b16 %v5256, %v5256
      %v5289 = vpack.c.b16 %v5257, %v5257
      %v5290 = vpack.c.b16 %v5258, %v5258
      %v5291 = vpack.c.b16 %v5259, %v5259
      %v5292 = vpack.c.b16 %v5260, %v5260
      %v5293 = vpack.c.b16 %v5261, %v5261
      %v5294 = vpack.c.b16 %v5262, %v5262
      %v5295 = vpack.c.b16 %v5263, %v5263
      %v5296 = vpack.c.b16 %v5264, %v5264
      %v5297 = vpack.c.b16 %v5265, %v5265
      %v5298 = vpack.c.b16 %v5266, %v5266
      %v5299 = vpack.c.b16 %v5267, %v5267
      %v5300 = vpack.c.b16 %v5268, %v5268
      %v5301 = vpack.c.b16 %v5269, %v5269
      %v5302 = vpack.c.b16 %v5270, %v5270
      %v5303 = vpack.c.b16 %v5271, %v5271
      %v5304 = vpack.c.b16 %v5272, %v5272
      %5337 = vst [vmem:[%s258] sm:$0xf] %v5273
      %5338 = vst [vmem:[%s258 + $0x4] sm:$0xf] %v5274
      %5339 = vst [vmem:[%s258 + $0x8] sm:$0xf] %v5275
      %5340 = vst [vmem:[%s258 + $0xc] sm:$0xf] %v5276
      %5341 = vst [vmem:[%s258 + $0x10] sm:$0xf] %v5277
      %5342 = vst [vmem:[%s258 + $0x14] sm:$0xf] %v5278
      %5343 = vst [vmem:[%s258 + $0x18] sm:$0xf] %v5279
      %5344 = vst [vmem:[%s258 + $0x1c] sm:$0xf] %v5280
      %5345 = vst [vmem:[%s258 + $0x20] sm:$0xf] %v5281
      %5346 = vst [vmem:[%s258 + $0x24] sm:$0xf] %v5282
      %5347 = vst [vmem:[%s258 + $0x28] sm:$0xf] %v5283
      %5348 = vst [vmem:[%s258 + $0x2c] sm:$0xf] %v5284
      %5349 = vst [vmem:[%s258 + $0x30] sm:$0xf] %v5285
      %5350 = vst [vmem:[%s258 + $0x34] sm:$0xf] %v5286
      %5351 = vst [vmem:[%s258 + $0x38] sm:$0xf] %v5287
      %5352 = vst [vmem:[%s258 + $0x3c] sm:$0xf] %v5288
      %5353 = vst [vmem:[%s258 + $0x40] sm:$0xf] %v5289
      %5354 = vst [vmem:[%s258 + $0x44] sm:$0xf] %v5290
      %5355 = vst [vmem:[%s258 + $0x48] sm:$0xf] %v5291
      %5356 = vst [vmem:[%s258 + $0x4c] sm:$0xf] %v5292
      %5357 = vst [vmem:[%s258 + $0x50] sm:$0xf] %v5293
      %5358 = vst [vmem:[%s258 + $0x54] sm:$0xf] %v5294
      %5359 = vst [vmem:[%s258 + $0x58] sm:$0xf] %v5295
      %5360 = vst [vmem:[%s258 + $0x5c] sm:$0xf] %v5296
      %5361 = vst [vmem:[%s258 + $0x60] sm:$0xf] %v5297
      %5362 = vst [vmem:[%s258 + $0x64] sm:$0xf] %v5298
      %5363 = vst [vmem:[%s258 + $0x68] sm:$0xf] %v5299
      %5364 = vst [vmem:[%s258 + $0x6c] sm:$0xf] %v5300
      %5365 = vst [vmem:[%s258 + $0x70] sm:$0xf] %v5301
      %5366 = vst [vmem:[%s258 + $0x74] sm:$0xf] %v5302
      %5367 = vst [vmem:[%s258 + $0x78] sm:$0xf] %v5303
      %5368 = vst [vmem:[%s258 + $0x7c] sm:$0xf] %v5304
      %v5369 = vadd.f32 %v5177, %v5178
      %v5370 = vadd.f32 %v5369, %v5179
      %v5371 = vadd.f32 %v5370, %v5180
      %v5372 = vadd.f32 %v5371, %v5181
      %v5373 = vadd.f32 %v5372, %v5182
      %v5374 = vadd.f32 %v5373, %v5183
      %v5375 = vadd.f32 %v5374, %v5184
      %v5376 = vadd.f32 %v5375, %v5185
      %v5377 = vadd.f32 %v5376, %v5186
      %v5378 = vadd.f32 %v5377, %v5187
      %v5379 = vadd.f32 %v5378, %v5188
      %v5380 = vadd.f32 %v5379, %v5189
      %v5381 = vadd.f32 %v5380, %v5190
      %v5382 = vadd.f32 %v5381, %v5191
      %v5383 = vadd.f32 %v5382, %v5192
      %v5384 = vadd.f32 %v5383, %v5193
      %v5385 = vadd.f32 %v5384, %v5194
      %v5386 = vadd.f32 %v5385, %v5195
      %v5387 = vadd.f32 %v5386, %v5196
      %v5388 = vadd.f32 %v5387, %v5197
      %v5389 = vadd.f32 %v5388, %v5198
      %v5390 = vadd.f32 %v5389, %v5199
      %v5391 = vadd.f32 %v5390, %v5200
      %v5392 = vadd.f32 %v5391, %v5201
      %v5393 = vadd.f32 %v5392, %v5202
      %v5394 = vadd.f32 %v5393, %v5203
      %v5395 = vadd.f32 %v5394, %v5204
      %v5396 = vadd.f32 %v5395, %v5205
      %v5397 = vadd.f32 %v5396, %v5206
      %v5398 = vadd.f32 %v5397, %v5207
      %v5399 = vadd.f32 %v5398, %v5208
      %v5400 = vrot.slane %v5399, 4
      %v5401 = vadd.f32 %v5399, %v5400
      %v5402 = vrot.slane %v5401, 2
      %v5403 = vadd.f32 %v5401, %v5402
      %v5404 = vrot.slane %v5403, 1
      %v5405 = vadd.f32 %v5403, %v5404
      %5406 = vst [vmem:[%s262] sm:$0x1] %v5405
      %v5407 = vmul.f32 %v5177, %v5177
      %v5408 = vmul.f32 %v5178, %v5178
      %v5409 = vmul.f32 %v5179, %v5179
      %v5410 = vmul.f32 %v5180, %v5180
      %v5411 = vmul.f32 %v5181, %v5181
      %v5412 = vmul.f32 %v5182, %v5182
      %v5413 = vmul.f32 %v5183, %v5183
      %v5414 = vmul.f32 %v5184, %v5184
      %v5415 = vmul.f32 %v5185, %v5185
      %v5416 = vmul.f32 %v5186, %v5186
      %v5417 = vmul.f32 %v5187, %v5187
      %v5418 = vmul.f32 %v5188, %v5188
      %v5419 = vmul.f32 %v5189, %v5189
      %v5420 = vmul.f32 %v5190, %v5190
      %v5421 = vmul.f32 %v5191, %v5191
      %v5422 = vmul.f32 %v5192, %v5192
      %v5423 = vmul.f32 %v5193, %v5193
      %v5424 = vmul.f32 %v5194, %v5194
      %v5425 = vmul.f32 %v5195, %v5195
      %v5426 = vmul.f32 %v5196, %v5196
      %v5427 = vmul.f32 %v5197, %v5197
      %v5428 = vmul.f32 %v5198, %v5198
      %v5429 = vmul.f32 %v5199, %v5199
      %v5430 = vmul.f32 %v5200, %v5200
      %v5431 = vmul.f32 %v5201, %v5201
      %v5432 = vmul.f32 %v5202, %v5202
      %v5433 = vmul.f32 %v5203, %v5203
      %v5434 = vmul.f32 %v5204, %v5204
      %v5435 = vmul.f32 %v5205, %v5205
      %v5436 = vmul.f32 %v5206, %v5206
      %v5437 = vmul.f32 %v5207, %v5207
      %v5438 = vmul.f32 %v5208, %v5208
      %v5439 = vadd.f32 %v5407, %v5408
      %v5440 = vadd.f32 %v5439, %v5409
      %v5441 = vadd.f32 %v5440, %v5410
      %v5442 = vadd.f32 %v5441, %v5411
      %v5443 = vadd.f32 %v5442, %v5412
      %v5444 = vadd.f32 %v5443, %v5413
      %v5445 = vadd.f32 %v5444, %v5414
      %v5446 = vadd.f32 %v5445, %v5415
      %v5447 = vadd.f32 %v5446, %v5416
      %v5448 = vadd.f32 %v5447, %v5417
      %v5449 = vadd.f32 %v5448, %v5418
      %v5450 = vadd.f32 %v5449, %v5419
      %v5451 = vadd.f32 %v5450, %v5420
      %v5452 = vadd.f32 %v5451, %v5421
      %v5453 = vadd.f32 %v5452, %v5422
      %v5454 = vadd.f32 %v5453, %v5423
      %v5455 = vadd.f32 %v5454, %v5424
      %v5456 = vadd.f32 %v5455, %v5425
      %v5457 = vadd.f32 %v5456, %v5426
      %v5458 = vadd.f32 %v5457, %v5427
      %v5459 = vadd.f32 %v5458, %v5428
      %v5460 = vadd.f32 %v5459, %v5429
      %v5461 = vadd.f32 %v5460, %v5430
      %v5462 = vadd.f32 %v5461, %v5431
      %v5463 = vadd.f32 %v5462, %v5432
      %v5464 = vadd.f32 %v5463, %v5433
      %v5465 = vadd.f32 %v5464, %v5434
      %v5466 = vadd.f32 %v5465, %v5435
      %v5467 = vadd.f32 %v5466, %v5436
      %v5468 = vadd.f32 %v5467, %v5437
      %v5469 = vadd.f32 %v5468, %v5438
      %v5470 = vrot.slane %v5469, 4
      %v5471 = vadd.f32 %v5469, %v5470
      %v5472 = vrot.slane %v5471, 2
      %v5473 = vadd.f32 %v5471, %v5472
      %v5474 = vrot.slane %v5473, 1
      %v5475 = vadd.f32 %v5473, %v5474
      %5476 = vst [vmem:[%s262 + $0x1] sm:$0x1] %v5475
      %p5477 = scmp.lt.s32.totalorder %s18, 1
      %s5478 = scalar_select %p5477, %s18, 1
      %s5479 = smul.addr %s5478, 32
      %s5480 = smul.addr %s5479, 4
      %s5481 = scalar_lea.vmem %s5, %s5480
      %p5482 = scmp.lt.s32.totalorder %s18, 1
      %s5483 = scalar_select %p5482, %s18, 1
      %s5484 = smul.addr %s5483, 2
      %s5485 = scalar_lea.vmem %s6, %s5484
      // Predicated region
      $region41: #{res_block_forward.5} parent=39 // pred_check
        %p5486 = pneg %p146
      $region42: #{res_block_forward.5} parent=39 // pred_check_branch
        %5488 = sbr.rel (%p5486) target = $region44
      $region43: #{res_block_forward.5} parent=39 // pred_region
        _
      $region44: #{res_block_forward.5} parent=39 // pred_fallthru
        _
      // Predicated region
      $region45: #{res_block_forward.5} parent=39 // pred_check
        %p5489 = pneg %p172
      $region46: #{res_block_forward.5} parent=39 // pred_check_branch
        %5491 = sbr.rel (%p5489) target = $region48
      $region47: #{res_block_forward.5} parent=39 // pred_region
        _
      $region48: #{res_block_forward.5} parent=39 // pred_fallthru
        _
    $region40: #{res_block_forward.5} parent=5 // pred_fallthru
      _
    %p5492 = scmp.le.s32.totalorder 2, %s13
    // Predicated region
    $region49: #{res_block_forward.5} parent=5 // pred_check
      %p5493 = pneg %p5492
    $region50: #{res_block_forward.5} parent=5 // pred_check_branch
      %5495 = sbr.rel (%p5493) target = $region52
    $region51: #{res_block_forward.5} parent=5 // pred_region
      %s5496 = ssub.s32 %s13, 2
      // Predicated region
      $region53: #{res_block_forward.5} parent=51 // pred_check
        %p5497 = pneg %p152
      $region54: #{res_block_forward.5} parent=51 // pred_check_branch
        %5499 = sbr.rel (%p5497) target = $region56
      $region55: #{res_block_forward.5} parent=51 // pred_region
        %p5500 = scmp.lt.s32.totalorder %s19, 1
        %s5501 = scalar_select %p5500, %s19, 1
        %s5502 = smul.addr %s5501, 32
        %s5503 = smul.addr %s5502, 4
        %s5504 = scalar_lea.vmem %s5, %s5503
      $region56: #{res_block_forward.5} parent=51 // pred_fallthru
        _
      // Predicated region
      $region57: #{res_block_forward.5} parent=51 // pred_check
        %p5505 = pneg %p178
      $region58: #{res_block_forward.5} parent=51 // pred_check_branch
        %5507 = sbr.rel (%p5505) target = $region60
      $region59: #{res_block_forward.5} parent=51 // pred_region
        %p5508 = scmp.lt.s32.totalorder %s19, 1
        %s5509 = scalar_select %p5508, %s19, 1
        %s5510 = smul.addr %s5509, 2
        %s5511 = scalar_lea.vmem %s6, %s5510
      $region60: #{res_block_forward.5} parent=51 // pred_fallthru
        _
    $region52: #{res_block_forward.5} parent=5 // pred_fallthru
      _
  $region6: #{res_block_forward.5} parent=0 // loop_footer
    %s17 = sadd.s32 1, %s13
  $region7: #{res_block_forward.5} parent=0 // loop_footer_branch
    %12 = sbr.rel target = $region3
  $region8: #{res_block_forward.5} parent=0 // loop_exit
    _

</llo_original>
